<compile_context>
chip_gen: v7x
topology: tpu7x:2x2x1
jax: 0.10.0
libtpu: 0.0.40
codegen_flags: <defaults>
</compile_context>

<pallas_src>
import math

import jax
import jax.numpy as jnp
from jax.experimental import pallas as pl
from jax.experimental.pallas import tpu as pltpu

EPS = 1e-5


# ------------------------------ small helpers -------------------------------

def _cdiv(a, b):
    return -(-a // b)


def _round_up(x, m):
    return _cdiv(x, m) * m


def _vmem_limit_bytes():
    """~3/4 of physical VMEM, capped at 96 MiB; safe fallback if probing fails."""
    try:
        cap = int(pltpu.get_tpu_info().vmem_capacity_bytes)
        if cap > 0:
            return max(48 * 1024 * 1024, min(cap * 3 // 4, 96 * 1024 * 1024))
    except Exception:
        pass
    return 48 * 1024 * 1024


_VMEM_LIMIT = _vmem_limit_bytes()


def _choose_row_tiles(M, K):
    """Row tiling: tm multiple of 128 (full MXU pass / bf16 sublane packing);
    A tile capped at ~8 MiB bf16 so the working set fits v7x's 64 MiB VMEM."""
    cap = max(128, min(2048, ((8 << 20) // max(1, 2 * K)) // 128 * 128))
    n_row = max(1, _cdiv(M, cap))
    tm = _round_up(_cdiv(M, n_row), 128)
    return tm, n_row


def _choose_col_tiles(Wc, cap=1024):
    """Column tiling: tn = largest multiple-of-128 divisor of Wc that is <= cap."""
    m = Wc // 128
    best = 1
    for t in range(1, cap // 128 + 1):
        if m % t == 0:
            best = t
    tn = 128 * best
    return tn, Wc // tn


def _pad_channels(C, groups):
    """Smallest C_pad >= C such that groups * C_pad is a multiple of 128 lanes."""
    step = 128 // math.gcd(groups, 128)
    return _round_up(C, step)


def _pad_rows_bf16(a, m_pad):
    a = a.astype(jnp.bfloat16)
    return jnp.pad(a, ((0, m_pad - a.shape[0]), (0, 0)))


def _weight_spec(block_shape, index_map, nbytes):
    """Weight tile spec.  Large tiles (reused across every inner row step) request a
    single pipeline buffer — the second buffer would be pure VMEM waste on v7x."""
    if nbytes > (2 << 20):
        try:
            return pl.BlockSpec(block_shape, index_map, pipeline_mode=pl.Buffered(1))
        except Exception:
            pass
    return pl.BlockSpec(block_shape, index_map)


# ------------------------------ Pallas kernels -------------------------------

def _gemm_stats_kernel(a_ref, b_ref, y_ref, st_ref):
    """bf16 x bf16 -> f32 MXU GEMM tile; bf16 writeback; per-column sum (row 0) and
    sum-of-squares (row 1) from the f32 accumulator packed into one (8, tn) block."""
    acc = jnp.dot(a_ref[...], b_ref[...], preferred_element_type=jnp.float32)
    y_ref[...] = acc.astype(y_ref.dtype)
    s = jnp.sum(acc, axis=0, keepdims=True)
    q = jnp.sum(acc * acc, axis=0, keepdims=True)
    row = jax.lax.broadcasted_iota(jnp.int32, st_ref.shape, 0)
    st_ref[...] = jnp.where(row == 0, s, jnp.where(row == 1, q, 0.0))


def _gemm_bias_tanh_kernel(a_ref, b_ref, bias_ref, y_ref):
    """Final layer: GEMM with fused bias + tanh epilogue, bf16 writeback."""
    acc = jnp.dot(a_ref[...], b_ref[...], preferred_element_type=jnp.float32)
    y_ref[...] = jnp.tanh(acc + bias_ref[...]).astype(y_ref.dtype)


def _affine_relu_kernel(y_ref, s_ref, t_ref, o_ref):
    """Per-column affine (BatchNorm) + ReLU; bf16 in/out, f32 math."""
    z = y_ref[...].astype(jnp.float32) * s_ref[...] + t_ref[...]
    o_ref[...] = jnp.maximum(z, 0.0).astype(o_ref.dtype)


# ------------------------------ Pallas wrappers ------------------------------

def pallas_gemm_bn_stats(a, b, tm, n_row, tn, n_col):
    """A (tm*n_row, K) bf16 @ B (K, tn*n_col) -> Y bf16 + f32 col sum / sum-of-squares."""
    M_pad, K = a.shape
    Wc = b.shape[1]
    y, st = pl.pallas_call(
        _gemm_stats_kernel,
        out_shape=(jax.ShapeDtypeStruct((M_pad, Wc), jnp.bfloat16),
                   jax.ShapeDtypeStruct((n_row * 8, Wc), jnp.float32)),
        grid=(n_col, n_row),                          # rows innermost: B reused per column tile
        in_specs=[
            pl.BlockSpec((tm, K), lambda j, i: (i, 0)),
            _weight_spec((K, tn), lambda j, i: (0, j), 2 * K * tn),
        ],
        out_specs=(pl.BlockSpec((tm, tn), lambda j, i: (i, j)),
                   pl.BlockSpec((8, tn), lambda j, i: (i, j))),
        compiler_params=pltpu.CompilerParams(
            dimension_semantics=("parallel", "parallel"),
            vmem_limit_bytes=_VMEM_LIMIT),
    )(a, b.astype(jnp.bfloat16))
    st = st.reshape(n_row, 8, Wc)
    return y, st[:, 0, :].sum(axis=0), st[:, 1, :].sum(axis=0)


def pallas_gemm_bias_tanh(a, b, bias_col, tm, n_row, tn, n_col):
    """A (tm*n_row, K) bf16 @ B (K, tn*n_col) with fused bias + tanh; bf16 out."""
    M_pad, K = a.shape
    Wc = b.shape[1]
    return pl.pallas_call(
        _gemm_bias_tanh_kernel,
        out_shape=jax.ShapeDtypeStruct((M_pad, Wc), jnp.bfloat16),
        grid=(n_col, n_row),
        in_specs=[
            pl.BlockSpec((tm, K), lambda j, i: (i, 0)),
            _weight_spec((K, tn), lambda j, i: (0, j), 2 * K * tn),
            pl.BlockSpec((1, tn), lambda j, i: (0, j)),
        ],
        out_specs=pl.BlockSpec((tm, tn), lambda j, i: (i, j)),
        compiler_params=pltpu.CompilerParams(
            dimension_semantics=("parallel", "parallel"),
            vmem_limit_bytes=_VMEM_LIMIT),
    )(a, b.astype(jnp.bfloat16), bias_col.reshape(1, Wc).astype(jnp.float32))


def pallas_affine_relu(y, scale_col, shift_col, tm, n_row, tn, n_col):
    """Fused BatchNorm affine + ReLU over a lane-dense (M_pad, Wc) bf16 activation."""
    M_pad, Wc = y.shape
    return pl.pallas_call(
        _affine_relu_kernel,
        out_shape=jax.ShapeDtypeStruct((M_pad, Wc), jnp.bfloat16),
        grid=(n_col, n_row),
        in_specs=[
            pl.BlockSpec((tm, tn), lambda j, i: (i, j)),
            pl.BlockSpec((1, tn), lambda j, i: (0, j)),
            pl.BlockSpec((1, tn), lambda j, i: (0, j)),
        ],
        out_specs=pl.BlockSpec((tm, tn), lambda j, i: (i, j)),
        compiler_params=pltpu.CompilerParams(
            dimension_semantics=("parallel", "parallel"),
            vmem_limit_bytes=_VMEM_LIMIT),
    )(y, scale_col.reshape(1, Wc).astype(jnp.float32),
      shift_col.reshape(1, Wc).astype(jnp.float32))


# ------------------- ConvTranspose2d (k=4, s=2, p=1) as GEMM ------------------
# Sub-pixel decomposition: output pixel (2my+ry, 2mx+rx) only touches a 2x2 window
# of the (zero-padded) input and a 2x2 sub-kernel, so
#   Y[(n,py,px), (ry,rx,co)] = sum_{dy,dx,ci} xpad[n,py+dy,px+dx,ci] * w[ci,co,3-ry-2dy,3-rx-2dx]
#   out[n, 2my+ry, 2mx+rx, co] = Y[n, my+ry, mx+rx, (ry,rx,co)]
# A and B are fully dense (no structural zeros).
# TODO(synk): replace the materialized im2col A by 4 shifted BlockSpec views with
# in-kernel accumulation to remove the 4x activation copy through HBM.

def _subpixel_patches(x, m_pad):
    """x: (N, H, W, C) NHWC -> A: (m_pad, 4*C) bf16 with K-order (dy, dx, ci);
    trailing rows are zero (they contribute zero to the in-kernel BN stats)."""
    N, H, W, C = x.shape
    x = x.astype(jnp.bfloat16)
    xp = jnp.pad(x, ((0, 0), (1, 1), (1, 1), (0, 0)))
    pats = [xp[:, dy:dy + H + 1, dx:dx + W + 1, :] for dy in (0, 1) for dx in (0, 1)]
    a = jnp.stack(pats, axis=3).reshape(N * (H + 1) * (W + 1), 4 * C)
    return jnp.pad(a, ((0, m_pad - a.shape[0]), (0, 0)))


def _subpixel_weights(w, C_pad):
    """w: (Cin, Cout, 4, 4) -> B: (4*Cin, 4*C_pad) with col-order (ry, rx, co)."""
    Cin, Cout, _, _ = w.shape
    wk = w[:, :, ::-1, ::-1].reshape(Cin, Cout, 2, 2, 2, 2)     # (ci, co, dy, ry, dx, rx)
    B6 = jnp.transpose(wk, (2, 4, 0, 3, 5, 1))                  # (dy, dx, ci, ry, rx, co)
    B6 = jnp.pad(B6, ((0, 0),) * 5 + ((0, C_pad - Cout),))
    return B6.reshape(4 * Cin, 4 * C_pad)


def _depth_to_space(Y, N, H, W, C_pad, C):
    """Interleave the 4 sub-pixel phases into the (N, 2H, 2W, C) output."""
    Y6 = Y[:N * (H + 1) * (W + 1)].reshape(N, H + 1, W + 1, 2, 2, C_pad)
    rows = []
    for ry in (0, 1):
        cols = [Y6[:, ry:ry + H, rx:rx + W, ry, rx, :C] for rx in (0, 1)]
        rows.append(jnp.stack(cols, axis=3))                    # (N, H, W, 2, C)
    out = jnp.stack(rows, axis=2)                               # (N, H, 2, W, 2, C)
    return out.reshape(N, 2 * H, 2 * W, C)


# ------------------------------ BatchNorm stats -------------------------------

def _dense_bn_stats(col_sum, col_sumsq, groups, C_pad, count):
    """Stats when every GEMM row/column group is a valid output element (block 1)."""
    mean = col_sum.reshape(groups, C_pad).sum(axis=0) / count
    msq = col_sumsq.reshape(groups, C_pad).sum(axis=0) / count
    var = jnp.maximum(msq - mean * mean, 0.0)
    return mean, var


def _subpixel_bn_stats(Y, col_sum, col_sumsq, N, H, W, C_pad):
    """Exact batch stats over the (N, 2H, 2W, C) output: subtract the boundary
    rows of the (H+1, W+1) sub-pixel grid that each phase discards.  Bulk sums come
    from the f32 accumulator; the (small) boundary strips are read from bf16 Y and
    upcast to f32 before summing."""
    s_full = col_sum.reshape(2, 2, C_pad)
    q_full = col_sumsq.reshape(2, 2, C_pad)
    Y6 = Y[:N * (H + 1) * (W + 1)].reshape(N, H + 1, W + 1, 2, 2, C_pad)
    s_tot = jnp.zeros((C_pad,), jnp.float32)
    q_tot = jnp.zeros((C_pad,), jnp.float32)
    for ry in (0, 1):
        for rx in (0, 1):
            drow = H if ry == 0 else 0
            dcol = W if rx == 0 else 0
            strip_r = Y6[:, drow, :, ry, rx, :].astype(jnp.float32)          # (N, W+1, C)
            strip_c = Y6[:, ry:ry + H, dcol, ry, rx, :].astype(jnp.float32)  # (N, H,   C)
            es = strip_r.sum(axis=(0, 1)) + strip_c.sum(axis=(0, 1))
            eq = (strip_r * strip_r).sum(axis=(0, 1)) + (strip_c * strip_c).sum(axis=(0, 1))
            s_tot = s_tot + s_full[ry, rx] - es
            q_tot = q_tot + q_full[ry, rx] - eq
    count = float(N * 4 * H * W)
    mean = s_tot / count
    var = jnp.maximum(q_tot / count - mean * mean, 0.0)
    return mean, var


def _bn_scale_shift(gamma, beta, mean, var, C_pad):
    C = gamma.shape[0]
    g = jnp.pad(gamma, (0, C_pad - C))
    b = jnp.pad(beta, (0, C_pad - C))
    scale = g * jax.lax.rsqrt(var + EPS)
    shift = b - mean * scale
    return scale, shift


# --------------------------------- layers ------------------------------------

def convt_bn_relu_s2(x, w, gamma, beta):
    """ConvTranspose2d(k=4, s=2, p=1, bias=False) + BatchNorm2d (batch stats) + ReLU."""
    N, H, W, _ = x.shape
    Cin, Cout = w.shape[0], w.shape[1]
    Cp = _pad_channels(Cout, 4)
    Wc, K = 4 * Cp, 4 * Cin
    M = N * (H + 1) * (W + 1)
    tm, n_row = _choose_row_tiles(M, K)
    tn, n_col = _choose_col_tiles(Wc)
    A = _subpixel_patches(x, tm * n_row)
    B = _subpixel_weights(w, Cp)
    Y, cs, cq = pallas_gemm_bn_stats(A, B, tm, n_row, tn, n_col)
    mean, var = _subpixel_bn_stats(Y, cs, cq, N, H, W, Cp)
    scale, shift = _bn_scale_shift(gamma, beta, mean, var, Cp)
    Z = pallas_affine_relu(Y, jnp.tile(scale, 4), jnp.tile(shift, 4), tm, n_row, tn, n_col)
    return _depth_to_space(Z, N, H, W, Cp, Cout)


def convt_bias_tanh_s2(x, w, bias):
    """Final ConvTranspose2d(k=4, s=2, p=1) with bias + tanh fused in the GEMM."""
    N, H, W, _ = x.shape
    Cin, Cout = w.shape[0], w.shape[1]
    Cp = _pad_channels(Cout, 4)
    Wc, K = 4 * Cp, 4 * Cin
    M = N * (H + 1) * (W + 1)
    tm, n_row = _choose_row_tiles(M, K)
    tn, n_col = _choose_col_tiles(Wc)
    A = _subpixel_patches(x, tm * n_row)
    B = _subpixel_weights(w, Cp)
    bias_col = jnp.tile(jnp.pad(bias, (0, Cp - Cout)), 4)
    Y = pallas_gemm_bias_tanh(A, B, bias_col, tm, n_row, tn, n_col)
    return _depth_to_space(Y, N, H, W, Cp, Cout)


# -------------------------------- Generator ----------------------------------

def init_generator_params(key, z_dim, channels_img, features_g, num_classes, embed_size):
    keys = jax.random.split(key, 8)
    fg = features_g

    def wnorm(k, shape, fan):
        return jax.random.normal(k, shape, jnp.float32) / jnp.sqrt(float(fan))

    block_dims = [
        (z_dim + embed_size, fg * 16),
        (fg * 16, fg * 8),
        (fg * 8, fg * 4),
        (fg * 4, fg * 2),
    ]
    params = {"blocks": []}
    for i, (cin, cout) in enumerate(block_dims):
        params["blocks"].append({
            "w": wnorm(keys[i], (cin, cout, 4, 4), cin * 16),
            "gamma": jnp.ones((cout,), jnp.float32),
            "beta": jnp.zeros((cout,), jnp.float32),
        })
    cin, cout = fg * 2, channels_img
    params["final_w"] = wnorm(keys[4], (cin, cout, 4, 4), cin * 16)
    params["final_b"] = jnp.zeros((cout,), jnp.float32)
    params["embed"] = jax.random.normal(keys[5], (num_classes, embed_size), jnp.float32)
    return params


def generator_forward(params, X, labels):
    """X: (N, z_dim, 1, 1) f32 NCHW; labels: (N,) int32. Returns NCHW image in [-1, 1]."""
    N = X.shape[0]
    emb = params["embed"][labels]                               # embedding lookup
    x_vec = jnp.concatenate([X.reshape(N, -1), emb], axis=1)    # channel concat (1x1 spatial)

    # Block 1: ConvTranspose(k=4, s=1, p=0) on a 1x1 input == dense GEMM to a 4x4 map.
    blk = params["blocks"][0]
    Cout = blk["w"].shape[1]
    Cp = _pad_channels(Cout, 16)
    Wc = 16 * Cp
    B1 = jnp.transpose(blk["w"], (0, 2, 3, 1))                  # (Cin, ky, kx, Cout)
    B1 = jnp.pad(B1, ((0, 0), (0, 0), (0, 0), (0, Cp - Cout))).reshape(-1, Wc)
    tm, n_row = _choose_row_tiles(N, x_vec.shape[1])
    tn, n_col = _choose_col_tiles(Wc)
    A = _pad_rows_bf16(x_vec, tm * n_row)
    Y, cs, cq = pallas_gemm_bn_stats(A, B1, tm, n_row, tn, n_col)
    mean, var = _dense_bn_stats(cs, cq, 16, Cp, N * 16)
    scale, shift = _bn_scale_shift(blk["gamma"], blk["beta"], mean, var, Cp)
    Z = pallas_affine_relu(Y, jnp.tile(scale, 16), jnp.tile(shift, 16), tm, n_row, tn, n_col)
    x = Z[:N].reshape(N, 4, 4, Cp)[..., :Cout]                  # NHWC, bf16

    # Blocks 2-4: sub-pixel ConvTranspose(k=4, s=2, p=1) + BN + ReLU (NHWC, bf16 throughout).
    for blk in params["blocks"][1:]:
        x = convt_bn_relu_s2(x, blk["w"], blk["gamma"], blk["beta"])

    # Final layer: sub-pixel ConvTranspose + bias + tanh fused into the GEMM epilogue.
    img = convt_bias_tanh_s2(x, params["final_w"], params["final_b"])
    return jnp.transpose(img, (0, 3, 1, 2)).astype(jnp.float32)  # NHWC -> NCHW (module output)


# --------------------- pure-JAX f32 reference (for checking) ------------------

def _ref_conv_transpose2d(x, w, stride, padding):
    N, Cin, H, W = x.shape
    _, Cout, k, _ = w.shape
    Ho = (H - 1) * stride - 2 * padding + k
    Wo = (W - 1) * stride - 2 * padding + k
    Hd, Wd = (H - 1) * stride + 1, (W - 1) * stride + 1
    xd = jnp.zeros((N, Cin, Hd, Wd), x.dtype).at[:, :, ::stride, ::stride].set(x)
    p = k - 1 - padding
    xp = jnp.pad(xd, ((0, 0), (0, 0), (p, p), (p, p)))
    wf = w[:, :, ::-1, ::-1]
    out = jnp.zeros((N, Cout, Ho, Wo), jnp.float32)
    for ky in range(k):
        for kx in range(k):
            patch = xp[:, :, ky:ky + Ho, kx:kx + Wo]
            out = out + jnp.einsum('nchw,cd->ndhw', patch, wf[:, :, ky, kx])
    return out


def _ref_forward(params, X, labels):
    emb = params["embed"][labels][:, :, None, None]
    x = jnp.concatenate([X, emb], axis=1)
    strides = [1, 2, 2, 2]
    pads = [0, 1, 1, 1]
    for blk, s, p in zip(params["blocks"], strides, pads):
        y = _ref_conv_transpose2d(x, blk["w"], s, p)
        mean = y.mean(axis=(0, 2, 3), keepdims=True)
        var = y.var(axis=(0, 2, 3), keepdims=True)
        y = (y - mean) / jnp.sqrt(var + EPS)
        y = y * blk["gamma"][None, :, None, None] + blk["beta"][None, :, None, None]
        x = jnp.maximum(y, 0.0)
    y = _ref_conv_transpose2d(x, params["final_w"], 2, 1)
    y = y + params["final_b"][None, :, None, None]
    return jnp.tanh(y)


# ----------------------------------- main -------------------------------------

if __name__ == "__main__":
    # Small, architecture-consistent configuration (5 upsampling stages: 1->4->8->16->32->64).
    batch = 2
    z_dim = 16
    embed_size = 8
    features_g = 4
    channels_img = 3
    num_classes = 10
    img_size = 64

    key = jax.random.PRNGKey(0)
    k_param, k_z, k_lab = jax.random.split(key, 3)

    params = init_generator_params(k_param, z_dim, channels_img, features_g,
                                   num_classes, embed_size)
    X = jax.random.normal(k_z, (batch, z_dim, 1, 1), jnp.float32)
    labels = jax.random.randint(k_lab, (batch,), 0, num_classes, jnp.int32)

    fwd = jax.jit(generator_forward)
    out = jax.block_until_ready(fwd(params, X, labels))

    assert out.shape == (batch, channels_img, img_size, img_size), out.shape
    assert bool(jnp.all(jnp.isfinite(out)))
    assert bool(jnp.all(jnp.abs(out) <= 1.0 + 1e-6))            # tanh range

    # Cross-check against a pure-JAX float32 reference of the same module
    # (bf16 MXU inputs / bf16 activation storage -> small numeric drift is expected).
    ref = jax.jit(_ref_forward)(params, X, labels)
    err = float(jnp.max(jnp.abs(out - ref)))
    assert err < 0.25, f"max abs diff vs f32 reference too large: {err}"

    print("KERNEL_OK")
</pallas_src>

<mosaic_0001>
module attributes {stable_mosaic.version = 11 : i64} {
  func.func @_gemm_stats_kernel(%arg0: i32, %arg1: i32, %arg2: memref<128x24xbf16, #tpu.memory_space<vmem>>, %arg3: memref<24x1024xbf16, #tpu.memory_space<vmem>>, %arg4: memref<128x1024xbf16, #tpu.memory_space<vmem>>, %arg5: memref<8x1024xf32, #tpu.memory_space<vmem>>) attributes {dimension_semantics = [#tpu.dimension_semantics<parallel>, #tpu.dimension_semantics<parallel>], iteration_bounds = array<i64: 1, 1>, scalar_prefetch = 0 : i64, scratch_operands = 0 : i64, tpu.core_type = #tpu.core_type<tc>, window_params = [{transform_indices = @transform_0, window_bounds = array<i64: 128, 24>}, {transform_indices = @transform_1, window_bounds = array<i64: 24, 1024>}, {transform_indices = @transform_2, window_bounds = array<i64: 128, 1024>}, {transform_indices = @transform_3, window_bounds = array<i64: 8, 1024>}]} {
    %c0 = arith.constant 0 : index
    %c0_0 = arith.constant 0 : index
    %0 = vector.load %arg2[%c0, %c0_0] : memref<128x24xbf16, #tpu.memory_space<vmem>>, vector<128x24xbf16>
    %c0_1 = arith.constant 0 : index
    %c0_2 = arith.constant 0 : index
    %1 = vector.load %arg3[%c0_1, %c0_2] : memref<24x1024xbf16, #tpu.memory_space<vmem>>, vector<24x1024xbf16>
    %cst = arith.constant dense<0.000000e+00> : vector<128x1024xf32>
    %2 = tpu.matmul %0, %1, %cst {dimension_numbers = #tpu.dot_dimension_numbers<[1], [0], [0], [1], [0, 0, 1, 1], [], []>} : vector<128x24xbf16>, vector<24x1024xbf16>, vector<128x1024xf32> -> vector<128x1024xf32>
    %3 = arith.truncf %2 : vector<128x1024xf32> to vector<128x1024xbf16>
    %c0_3 = arith.constant 0 : index
    %c0_4 = arith.constant 0 : index
    %4 = vector.load %arg4[%c0_3, %c0_4] : memref<128x1024xbf16, #tpu.memory_space<vmem>>, vector<128x1024xbf16>
    tpu.vector_store %arg4[%c0_3, %c0_4], %3 {strides = array<i32>} : memref<128x1024xbf16, #tpu.memory_space<vmem>>, vector<128x1024xbf16>,
    %cst_5 = arith.constant dense<0.000000e+00> : vector<1024xf32>
    %5 = vector.multi_reduction <add>, %2, %cst_5 [0] : vector<128x1024xf32> to vector<1024xf32>
    %6 = vector.shape_cast %5 : vector<1024xf32> to vector<1x1024xf32>
    %7 = arith.mulf %2, %2 : vector<128x1024xf32>
    %cst_6 = arith.constant dense<0.000000e+00> : vector<1024xf32>
    %8 = vector.multi_reduction <add>, %7, %cst_6 [0] : vector<128x1024xf32> to vector<1024xf32>
    %9 = vector.shape_cast %8 : vector<1024xf32> to vector<1x1024xf32>
    %10 = tpu.iota {dimensions = array<i32: 0>} : vector<8x1024xi32>
    %c0_i32 = arith.constant 0 : i32
    %11 = vector.broadcast %c0_i32 : i32 to vector<8x1024xi32>
    %12 = arith.cmpi eq, %10, %11 : vector<8x1024xi32>
    %c1_i32 = arith.constant 1 : i32
    %13 = vector.broadcast %c1_i32 : i32 to vector<8x1024xi32>
    %14 = arith.cmpi eq, %10, %13 : vector<8x1024xi32>
    %cst_7 = arith.constant 0.000000e+00 : f32
    %15 = vector.shape_cast %9 : vector<1x1024xf32> to vector<1x1024xf32>
    %16 = vector.broadcast %15 : vector<1x1024xf32> to vector<8x1024xf32>
    %17 = vector.broadcast %cst_7 : f32 to vector<8x1024xf32>
    %18 = arith.select %14, %16, %17 : vector<8x1024xi1>, vector<8x1024xf32>
    %19 = vector.shape_cast %6 : vector<1x1024xf32> to vector<1x1024xf32>
    %20 = vector.broadcast %19 : vector<1x1024xf32> to vector<8x1024xf32>
    %21 = arith.select %12, %20, %18 : vector<8x1024xi1>, vector<8x1024xf32>
    %c0_8 = arith.constant 0 : index
    %c0_9 = arith.constant 0 : index
    %22 = vector.load %arg5[%c0_8, %c0_9] : memref<8x1024xf32, #tpu.memory_space<vmem>>, vector<8x1024xf32>
    tpu.vector_store %arg5[%c0_8, %c0_9], %21 {strides = array<i32>} : memref<8x1024xf32, #tpu.memory_space<vmem>>, vector<8x1024xf32>,
    return
  }
  func.func @transform_0(%arg0: i32, %arg1: i32) -> (i32, i32) {
    %c0_i32 = arith.constant 0 : i32
    %c0_i32_0 = arith.constant 0 : i32
    return %arg1, %c0_i32 : i32, i32
  }
  func.func @transform_1(%arg0: i32, %arg1: i32) -> (i32, i32) {
    %c0_i32 = arith.constant 0 : i32
    %c0_i32_0 = arith.constant 0 : i32
    return %c0_i32, %arg0 : i32, i32
  }
  func.func @transform_2(%arg0: i32, %arg1: i32) -> (i32, i32) {
    %c0_i32 = arith.constant 0 : i32
    return %arg1, %arg0 : i32, i32
  }
  func.func @transform_3(%arg0: i32, %arg1: i32) -> (i32, i32) {
    %c0_i32 = arith.constant 0 : i32
    return %arg1, %arg0 : i32, i32
  }
}

module attributes {stable_mosaic.version = 11 : i64} {
  func.func @_affine_relu_kernel(%arg0: i32, %arg1: i32, %arg2: memref<128x1024xbf16, #tpu.memory_space<vmem>>, %arg3: memref<1x1024xf32, #tpu.memory_space<vmem>>, %arg4: memref<1x1024xf32, #tpu.memory_space<vmem>>, %arg5: memref<128x1024xbf16, #tpu.memory_space<vmem>>) attributes {dimension_semantics = [#tpu.dimension_semantics<parallel>, #tpu.dimension_semantics<parallel>], iteration_bounds = array<i64: 1, 1>, scalar_prefetch = 0 : i64, scratch_operands = 0 : i64, tpu.core_type = #tpu.core_type<tc>, window_params = [{transform_indices = @transform_0, window_bounds = array<i64: 128, 1024>}, {transform_indices = @transform_1, window_bounds = array<i64: 1, 1024>}, {transform_indices = @transform_2, window_bounds = array<i64: 1, 1024>}, {transform_indices = @transform_3, window_bounds = array<i64: 128, 1024>}]} {
    %c0 = arith.constant 0 : index
    %c0_0 = arith.constant 0 : index
    %0 = vector.load %arg2[%c0, %c0_0] : memref<128x1024xbf16, #tpu.memory_space<vmem>>, vector<128x1024xbf16>
    %1 = arith.extf %0 : vector<128x1024xbf16> to vector<128x1024xf32>
    %c0_1 = arith.constant 0 : index
    %c0_2 = arith.constant 0 : index
    %2 = vector.load %arg3[%c0_1, %c0_2] : memref<1x1024xf32, #tpu.memory_space<vmem>>, vector<1x1024xf32>
    %3 = vector.broadcast %2 : vector<1x1024xf32> to vector<128x1024xf32>
    %4 = arith.mulf %1, %3 : vector<128x1024xf32>
    %c0_3 = arith.constant 0 : index
    %c0_4 = arith.constant 0 : index
    %5 = vector.load %arg4[%c0_3, %c0_4] : memref<1x1024xf32, #tpu.memory_space<vmem>>, vector<1x1024xf32>
    %6 = vector.broadcast %5 : vector<1x1024xf32> to vector<128x1024xf32>
    %7 = arith.addf %4, %6 : vector<128x1024xf32>
    %cst = arith.constant 0.000000e+00 : f32
    %8 = vector.broadcast %cst : f32 to vector<128x1024xf32>
    %9 = arith.maximumf %7, %8 : vector<128x1024xf32>
    %10 = arith.truncf %9 : vector<128x1024xf32> to vector<128x1024xbf16>
    %c0_5 = arith.constant 0 : index
    %c0_6 = arith.constant 0 : index
    %11 = vector.load %arg5[%c0_5, %c0_6] : memref<128x1024xbf16, #tpu.memory_space<vmem>>, vector<128x1024xbf16>
    tpu.vector_store %arg5[%c0_5, %c0_6], %10 {strides = array<i32>} : memref<128x1024xbf16, #tpu.memory_space<vmem>>, vector<128x1024xbf16>,
    return
  }
  func.func @transform_0(%arg0: i32, %arg1: i32) -> (i32, i32) {
    %c0_i32 = arith.constant 0 : i32
    return %arg1, %arg0 : i32, i32
  }
  func.func @transform_1(%arg0: i32, %arg1: i32) -> (i32, i32) {
    %c0_i32 = arith.constant 0 : i32
    %c0_i32_0 = arith.constant 0 : i32
    return %c0_i32, %arg0 : i32, i32
  }
  func.func @transform_2(%arg0: i32, %arg1: i32) -> (i32, i32) {
    %c0_i32 = arith.constant 0 : i32
    %c0_i32_0 = arith.constant 0 : i32
    return %c0_i32, %arg0 : i32, i32
  }
  func.func @transform_3(%arg0: i32, %arg1: i32) -> (i32, i32) {
    %c0_i32 = arith.constant 0 : i32
    return %arg1, %arg0 : i32, i32
  }
}

module attributes {stable_mosaic.version = 11 : i64} {
  func.func @_gemm_stats_kernel(%arg0: i32, %arg1: i32, %arg2: memref<128x256xbf16, #tpu.memory_space<vmem>>, %arg3: memref<256x128xbf16, #tpu.memory_space<vmem>>, %arg4: memref<128x128xbf16, #tpu.memory_space<vmem>>, %arg5: memref<8x128xf32, #tpu.memory_space<vmem>>) attributes {dimension_semantics = [#tpu.dimension_semantics<parallel>, #tpu.dimension_semantics<parallel>], iteration_bounds = array<i64: 1, 1>, scalar_prefetch = 0 : i64, scratch_operands = 0 : i64, tpu.core_type = #tpu.core_type<tc>, window_params = [{transform_indices = @transform_0, window_bounds = array<i64: 128, 256>}, {transform_indices = @transform_1, window_bounds = array<i64: 256, 128>}, {transform_indices = @transform_2, window_bounds = array<i64: 128, 128>}, {transform_indices = @transform_3, window_bounds = array<i64: 8, 128>}]} {
    %c0 = arith.constant 0 : index
    %c0_0 = arith.constant 0 : index
    %0 = vector.load %arg2[%c0, %c0_0] : memref<128x256xbf16, #tpu.memory_space<vmem>>, vector<128x256xbf16>
    %c0_1 = arith.constant 0 : index
    %c0_2 = arith.constant 0 : index
    %1 = vector.load %arg3[%c0_1, %c0_2] : memref<256x128xbf16, #tpu.memory_space<vmem>>, vector<256x128xbf16>
    %cst = arith.constant dense<0.000000e+00> : vector<128x128xf32>
    %2 = tpu.matmul %0, %1, %cst {dimension_numbers = #tpu.dot_dimension_numbers<[1], [0], [0], [1], [0, 0, 1, 1], [], []>} : vector<128x256xbf16>, vector<256x128xbf16>, vector<128x128xf32> -> vector<128x128xf32>
    %3 = arith.truncf %2 : vector<128x128xf32> to vector<128x128xbf16>
    %c0_3 = arith.constant 0 : index
    %c0_4 = arith.constant 0 : index
    %4 = vector.load %arg4[%c0_3, %c0_4] : memref<128x128xbf16, #tpu.memory_space<vmem>>, vector<128x128xbf16>
    tpu.vector_store %arg4[%c0_3, %c0_4], %3 {strides = array<i32>} : memref<128x128xbf16, #tpu.memory_space<vmem>>, vector<128x128xbf16>,
    %cst_5 = arith.constant dense<0.000000e+00> : vector<128xf32>
    %5 = vector.multi_reduction <add>, %2, %cst_5 [0] : vector<128x128xf32> to vector<128xf32>
    %6 = vector.shape_cast %5 : vector<128xf32> to vector<1x128xf32>
    %7 = arith.mulf %2, %2 : vector<128x128xf32>
    %cst_6 = arith.constant dense<0.000000e+00> : vector<128xf32>
    %8 = vector.multi_reduction <add>, %7, %cst_6 [0] : vector<128x128xf32> to vector<128xf32>
    %9 = vector.shape_cast %8 : vector<128xf32> to vector<1x128xf32>
    %10 = tpu.iota {dimensions = array<i32: 0>} : vector<8x128xi32>
    %c0_i32 = arith.constant 0 : i32
    %11 = vector.broadcast %c0_i32 : i32 to vector<8x128xi32>
    %12 = arith.cmpi eq, %10, %11 : vector<8x128xi32>
    %c1_i32 = arith.constant 1 : i32
    %13 = vector.broadcast %c1_i32 : i32 to vector<8x128xi32>
    %14 = arith.cmpi eq, %10, %13 : vector<8x128xi32>
    %cst_7 = arith.constant 0.000000e+00 : f32
    %15 = vector.shape_cast %9 : vector<1x128xf32> to vector<1x128xf32>
    %16 = vector.broadcast %15 : vector<1x128xf32> to vector<8x128xf32>
    %17 = vector.broadcast %cst_7 : f32 to vector<8x128xf32>
    %18 = arith.select %14, %16, %17 : vector<8x128xi1>, vector<8x128xf32>
    %19 = vector.shape_cast %6 : vector<1x128xf32> to vector<1x128xf32>
    %20 = vector.broadcast %19 : vector<1x128xf32> to vector<8x128xf32>
    %21 = arith.select %12, %20, %18 : vector<8x128xi1>, vector<8x128xf32>
    %c0_8 = arith.constant 0 : index
    %c0_9 = arith.constant 0 : index
    %22 = vector.load %arg5[%c0_8, %c0_9] : memref<8x128xf32, #tpu.memory_space<vmem>>, vector<8x128xf32>
    tpu.vector_store %arg5[%c0_8, %c0_9], %21 {strides = array<i32>} : memref<8x128xf32, #tpu.memory_space<vmem>>, vector<8x128xf32>,
    return
  }
  func.func @transform_0(%arg0: i32, %arg1: i32) -> (i32, i32) {
    %c0_i32 = arith.constant 0 : i32
    %c0_i32_0 = arith.constant 0 : i32
    return %arg1, %c0_i32 : i32, i32
  }
  func.func @transform_1(%arg0: i32, %arg1: i32) -> (i32, i32) {
    %c0_i32 = arith.constant 0 : i32
    %c0_i32_0 = arith.constant 0 : i32
    return %c0_i32, %arg0 : i32, i32
  }
  func.func @transform_2(%arg0: i32, %arg1: i32) -> (i32, i32) {
    %c0_i32 = arith.constant 0 : i32
    return %arg1, %arg0 : i32, i32
  }
  func.func @transform_3(%arg0: i32, %arg1: i32) -> (i32, i32) {
    %c0_i32 = arith.constant 0 : i32
    return %arg1, %arg0 : i32, i32
  }
}

module attributes {stable_mosaic.version = 11 : i64} {
  func.func @_affine_relu_kernel(%arg0: i32, %arg1: i32, %arg2: memref<128x128xbf16, #tpu.memory_space<vmem>>, %arg3: memref<1x128xf32, #tpu.memory_space<vmem>>, %arg4: memref<1x128xf32, #tpu.memory_space<vmem>>, %arg5: memref<128x128xbf16, #tpu.memory_space<vmem>>) attributes {dimension_semantics = [#tpu.dimension_semantics<parallel>, #tpu.dimension_semantics<parallel>], iteration_bounds = array<i64: 1, 1>, scalar_prefetch = 0 : i64, scratch_operands = 0 : i64, tpu.core_type = #tpu.core_type<tc>, window_params = [{transform_indices = @transform_0, window_bounds = array<i64: 128, 128>}, {transform_indices = @transform_1, window_bounds = array<i64: 1, 128>}, {transform_indices = @transform_2, window_bounds = array<i64: 1, 128>}, {transform_indices = @transform_3, window_bounds = array<i64: 128, 128>}]} {
    %c0 = arith.constant 0 : index
    %c0_0 = arith.constant 0 : index
    %0 = vector.load %arg2[%c0, %c0_0] : memref<128x128xbf16, #tpu.memory_space<vmem>>, vector<128x128xbf16>
    %1 = arith.extf %0 : vector<128x128xbf16> to vector<128x128xf32>
    %c0_1 = arith.constant 0 : index
    %c0_2 = arith.constant 0 : index
    %2 = vector.load %arg3[%c0_1, %c0_2] : memref<1x128xf32, #tpu.memory_space<vmem>>, vector<1x128xf32>
    %3 = vector.broadcast %2 : vector<1x128xf32> to vector<128x128xf32>
    %4 = arith.mulf %1, %3 : vector<128x128xf32>
    %c0_3 = arith.constant 0 : index
    %c0_4 = arith.constant 0 : index
    %5 = vector.load %arg4[%c0_3, %c0_4] : memref<1x128xf32, #tpu.memory_space<vmem>>, vector<1x128xf32>
    %6 = vector.broadcast %5 : vector<1x128xf32> to vector<128x128xf32>
    %7 = arith.addf %4, %6 : vector<128x128xf32>
    %cst = arith.constant 0.000000e+00 : f32
    %8 = vector.broadcast %cst : f32 to vector<128x128xf32>
    %9 = arith.maximumf %7, %8 : vector<128x128xf32>
    %10 = arith.truncf %9 : vector<128x128xf32> to vector<128x128xbf16>
    %c0_5 = arith.constant 0 : index
    %c0_6 = arith.constant 0 : index
    %11 = vector.load %arg5[%c0_5, %c0_6] : memref<128x128xbf16, #tpu.memory_space<vmem>>, vector<128x128xbf16>
    tpu.vector_store %arg5[%c0_5, %c0_6], %10 {strides = array<i32>} : memref<128x128xbf16, #tpu.memory_space<vmem>>, vector<128x128xbf16>,
    return
  }
  func.func @transform_0(%arg0: i32, %arg1: i32) -> (i32, i32) {
    %c0_i32 = arith.constant 0 : i32
    return %arg1, %arg0 : i32, i32
  }
  func.func @transform_1(%arg0: i32, %arg1: i32) -> (i32, i32) {
    %c0_i32 = arith.constant 0 : i32
    %c0_i32_0 = arith.constant 0 : i32
    return %c0_i32, %arg0 : i32, i32
  }
  func.func @transform_2(%arg0: i32, %arg1: i32) -> (i32, i32) {
    %c0_i32 = arith.constant 0 : i32
    %c0_i32_0 = arith.constant 0 : i32
    return %c0_i32, %arg0 : i32, i32
  }
  func.func @transform_3(%arg0: i32, %arg1: i32) -> (i32, i32) {
    %c0_i32 = arith.constant 0 : i32
    return %arg1, %arg0 : i32, i32
  }
}

module attributes {stable_mosaic.version = 11 : i64} {
  func.func @_gemm_stats_kernel(%arg0: i32, %arg1: i32, %arg2: memref<256x128xbf16, #tpu.memory_space<vmem>>, %arg3: memref<128x128xbf16, #tpu.memory_space<vmem>>, %arg4: memref<256x128xbf16, #tpu.memory_space<vmem>>, %arg5: memref<8x128xf32, #tpu.memory_space<vmem>>) attributes {dimension_semantics = [#tpu.dimension_semantics<parallel>, #tpu.dimension_semantics<parallel>], iteration_bounds = array<i64: 1, 1>, scalar_prefetch = 0 : i64, scratch_operands = 0 : i64, tpu.core_type = #tpu.core_type<tc>, window_params = [{transform_indices = @transform_0, window_bounds = array<i64: 256, 128>}, {transform_indices = @transform_1, window_bounds = array<i64: 128, 128>}, {transform_indices = @transform_2, window_bounds = array<i64: 256, 128>}, {transform_indices = @transform_3, window_bounds = array<i64: 8, 128>}]} {
    %c0 = arith.constant 0 : index
    %c0_0 = arith.constant 0 : index
    %0 = vector.load %arg2[%c0, %c0_0] : memref<256x128xbf16, #tpu.memory_space<vmem>>, vector<256x128xbf16>
    %c0_1 = arith.constant 0 : index
    %c0_2 = arith.constant 0 : index
    %1 = vector.load %arg3[%c0_1, %c0_2] : memref<128x128xbf16, #tpu.memory_space<vmem>>, vector<128x128xbf16>
    %cst = arith.constant dense<0.000000e+00> : vector<256x128xf32>
    %2 = tpu.matmul %0, %1, %cst {dimension_numbers = #tpu.dot_dimension_numbers<[1], [0], [0], [1], [0, 0, 1, 1], [], []>} : vector<256x128xbf16>, vector<128x128xbf16>, vector<256x128xf32> -> vector<256x128xf32>
    %3 = arith.truncf %2 : vector<256x128xf32> to vector<256x128xbf16>
    %c0_3 = arith.constant 0 : index
    %c0_4 = arith.constant 0 : index
    %4 = vector.load %arg4[%c0_3, %c0_4] : memref<256x128xbf16, #tpu.memory_space<vmem>>, vector<256x128xbf16>
    tpu.vector_store %arg4[%c0_3, %c0_4], %3 {strides = array<i32>} : memref<256x128xbf16, #tpu.memory_space<vmem>>, vector<256x128xbf16>,
    %cst_5 = arith.constant dense<0.000000e+00> : vector<128xf32>
    %5 = vector.multi_reduction <add>, %2, %cst_5 [0] : vector<256x128xf32> to vector<128xf32>
    %6 = vector.shape_cast %5 : vector<128xf32> to vector<1x128xf32>
    %7 = arith.mulf %2, %2 : vector<256x128xf32>
    %cst_6 = arith.constant dense<0.000000e+00> : vector<128xf32>
    %8 = vector.multi_reduction <add>, %7, %cst_6 [0] : vector<256x128xf32> to vector<128xf32>
    %9 = vector.shape_cast %8 : vector<128xf32> to vector<1x128xf32>
    %10 = tpu.iota {dimensions = array<i32: 0>} : vector<8x128xi32>
    %c0_i32 = arith.constant 0 : i32
    %11 = vector.broadcast %c0_i32 : i32 to vector<8x128xi32>
    %12 = arith.cmpi eq, %10, %11 : vector<8x128xi32>
    %c1_i32 = arith.constant 1 : i32
    %13 = vector.broadcast %c1_i32 : i32 to vector<8x128xi32>
    %14 = arith.cmpi eq, %10, %13 : vector<8x128xi32>
    %cst_7 = arith.constant 0.000000e+00 : f32
    %15 = vector.shape_cast %9 : vector<1x128xf32> to vector<1x128xf32>
    %16 = vector.broadcast %15 : vector<1x128xf32> to vector<8x128xf32>
    %17 = vector.broadcast %cst_7 : f32 to vector<8x128xf32>
    %18 = arith.select %14, %16, %17 : vector<8x128xi1>, vector<8x128xf32>
    %19 = vector.shape_cast %6 : vector<1x128xf32> to vector<1x128xf32>
    %20 = vector.broadcast %19 : vector<1x128xf32> to vector<8x128xf32>
    %21 = arith.select %12, %20, %18 : vector<8x128xi1>, vector<8x128xf32>
    %c0_8 = arith.constant 0 : index
    %c0_9 = arith.constant 0 : index
    %22 = vector.load %arg5[%c0_8, %c0_9] : memref<8x128xf32, #tpu.memory_space<vmem>>, vector<8x128xf32>
    tpu.vector_store %arg5[%c0_8, %c0_9], %21 {strides = array<i32>} : memref<8x128xf32, #tpu.memory_space<vmem>>, vector<8x128xf32>,
    return
  }
  func.func @transform_0(%arg0: i32, %arg1: i32) -> (i32, i32) {
    %c0_i32 = arith.constant 0 : i32
    %c0_i32_0 = arith.constant 0 : i32
    return %arg1, %c0_i32 : i32, i32
  }
  func.func @transform_1(%arg0: i32, %arg1: i32) -> (i32, i32) {
    %c0_i32 = arith.constant 0 : i32
    %c0_i32_0 = arith.constant 0 : i32
    return %c0_i32, %arg0 : i32, i32
  }
  func.func @transform_2(%arg0: i32, %arg1: i32) -> (i32, i32) {
    %c0_i32 = arith.constant 0 : i32
    return %arg1, %arg0 : i32, i32
  }
  func.func @transform_3(%arg0: i32, %arg1: i32) -> (i32, i32) {
    %c0_i32 = arith.constant 0 : i32
    return %arg1, %arg0 : i32, i32
  }
}

module attributes {stable_mosaic.version = 11 : i64} {
  func.func @_affine_relu_kernel(%arg0: i32, %arg1: i32, %arg2: memref<256x128xbf16, #tpu.memory_space<vmem>>, %arg3: memref<1x128xf32, #tpu.memory_space<vmem>>, %arg4: memref<1x128xf32, #tpu.memory_space<vmem>>, %arg5: memref<256x128xbf16, #tpu.memory_space<vmem>>) attributes {dimension_semantics = [#tpu.dimension_semantics<parallel>, #tpu.dimension_semantics<parallel>], iteration_bounds = array<i64: 1, 1>, scalar_prefetch = 0 : i64, scratch_operands = 0 : i64, tpu.core_type = #tpu.core_type<tc>, window_params = [{transform_indices = @transform_0, window_bounds = array<i64: 256, 128>}, {transform_indices = @transform_1, window_bounds = array<i64: 1, 128>}, {transform_indices = @transform_2, window_bounds = array<i64: 1, 128>}, {transform_indices = @transform_3, window_bounds = array<i64: 256, 128>}]} {
    %c0 = arith.constant 0 : index
    %c0_0 = arith.constant 0 : index
    %0 = vector.load %arg2[%c0, %c0_0] : memref<256x128xbf16, #tpu.memory_space<vmem>>, vector<256x128xbf16>
    %1 = arith.extf %0 : vector<256x128xbf16> to vector<256x128xf32>
    %c0_1 = arith.constant 0 : index
    %c0_2 = arith.constant 0 : index
    %2 = vector.load %arg3[%c0_1, %c0_2] : memref<1x128xf32, #tpu.memory_space<vmem>>, vector<1x128xf32>
    %3 = vector.broadcast %2 : vector<1x128xf32> to vector<256x128xf32>
    %4 = arith.mulf %1, %3 : vector<256x128xf32>
    %c0_3 = arith.constant 0 : index
    %c0_4 = arith.constant 0 : index
    %5 = vector.load %arg4[%c0_3, %c0_4] : memref<1x128xf32, #tpu.memory_space<vmem>>, vector<1x128xf32>
    %6 = vector.broadcast %5 : vector<1x128xf32> to vector<256x128xf32>
    %7 = arith.addf %4, %6 : vector<256x128xf32>
    %cst = arith.constant 0.000000e+00 : f32
    %8 = vector.broadcast %cst : f32 to vector<256x128xf32>
    %9 = arith.maximumf %7, %8 : vector<256x128xf32>
    %10 = arith.truncf %9 : vector<256x128xf32> to vector<256x128xbf16>
    %c0_5 = arith.constant 0 : index
    %c0_6 = arith.constant 0 : index
    %11 = vector.load %arg5[%c0_5, %c0_6] : memref<256x128xbf16, #tpu.memory_space<vmem>>, vector<256x128xbf16>
    tpu.vector_store %arg5[%c0_5, %c0_6], %10 {strides = array<i32>} : memref<256x128xbf16, #tpu.memory_space<vmem>>, vector<256x128xbf16>,
    return
  }
  func.func @transform_0(%arg0: i32, %arg1: i32) -> (i32, i32) {
    %c0_i32 = arith.constant 0 : i32
    return %arg1, %arg0 : i32, i32
  }
  func.func @transform_1(%arg0: i32, %arg1: i32) -> (i32, i32) {
    %c0_i32 = arith.constant 0 : i32
    %c0_i32_0 = arith.constant 0 : i32
    return %c0_i32, %arg0 : i32, i32
  }
  func.func @transform_2(%arg0: i32, %arg1: i32) -> (i32, i32) {
    %c0_i32 = arith.constant 0 : i32
    %c0_i32_0 = arith.constant 0 : i32
    return %c0_i32, %arg0 : i32, i32
  }
  func.func @transform_3(%arg0: i32, %arg1: i32) -> (i32, i32) {
    %c0_i32 = arith.constant 0 : i32
    return %arg1, %arg0 : i32, i32
  }
}

module attributes {stable_mosaic.version = 11 : i64} {
  func.func @_gemm_stats_kernel(%arg0: i32, %arg1: i32, %arg2: memref<640x64xbf16, #tpu.memory_space<vmem>>, %arg3: memref<64x128xbf16, #tpu.memory_space<vmem>>, %arg4: memref<640x128xbf16, #tpu.memory_space<vmem>>, %arg5: memref<8x128xf32, #tpu.memory_space<vmem>>) attributes {dimension_semantics = [#tpu.dimension_semantics<parallel>, #tpu.dimension_semantics<parallel>], iteration_bounds = array<i64: 1, 1>, scalar_prefetch = 0 : i64, scratch_operands = 0 : i64, tpu.core_type = #tpu.core_type<tc>, window_params = [{transform_indices = @transform_0, window_bounds = array<i64: 640, 64>}, {transform_indices = @transform_1, window_bounds = array<i64: 64, 128>}, {transform_indices = @transform_2, window_bounds = array<i64: 640, 128>}, {transform_indices = @transform_3, window_bounds = array<i64: 8, 128>}]} {
    %c0 = arith.constant 0 : index
    %c0_0 = arith.constant 0 : index
    %0 = vector.load %arg2[%c0, %c0_0] : memref<640x64xbf16, #tpu.memory_space<vmem>>, vector<640x64xbf16>
    %c0_1 = arith.constant 0 : index
    %c0_2 = arith.constant 0 : index
    %1 = vector.load %arg3[%c0_1, %c0_2] : memref<64x128xbf16, #tpu.memory_space<vmem>>, vector<64x128xbf16>
    %cst = arith.constant dense<0.000000e+00> : vector<640x128xf32>
    %2 = tpu.matmul %0, %1, %cst {dimension_numbers = #tpu.dot_dimension_numbers<[1], [0], [0], [1], [0, 0, 1, 1], [], []>} : vector<640x64xbf16>, vector<64x128xbf16>, vector<640x128xf32> -> vector<640x128xf32>
    %3 = arith.truncf %2 : vector<640x128xf32> to vector<640x128xbf16>
    %c0_3 = arith.constant 0 : index
    %c0_4 = arith.constant 0 : index
    %4 = vector.load %arg4[%c0_3, %c0_4] : memref<640x128xbf16, #tpu.memory_space<vmem>>, vector<640x128xbf16>
    tpu.vector_store %arg4[%c0_3, %c0_4], %3 {strides = array<i32>} : memref<640x128xbf16, #tpu.memory_space<vmem>>, vector<640x128xbf16>,
    %cst_5 = arith.constant dense<0.000000e+00> : vector<128xf32>
    %5 = vector.multi_reduction <add>, %2, %cst_5 [0] : vector<640x128xf32> to vector<128xf32>
    %6 = vector.shape_cast %5 : vector<128xf32> to vector<1x128xf32>
    %7 = arith.mulf %2, %2 : vector<640x128xf32>
    %cst_6 = arith.constant dense<0.000000e+00> : vector<128xf32>
    %8 = vector.multi_reduction <add>, %7, %cst_6 [0] : vector<640x128xf32> to vector<128xf32>
    %9 = vector.shape_cast %8 : vector<128xf32> to vector<1x128xf32>
    %10 = tpu.iota {dimensions = array<i32: 0>} : vector<8x128xi32>
    %c0_i32 = arith.constant 0 : i32
    %11 = vector.broadcast %c0_i32 : i32 to vector<8x128xi32>
    %12 = arith.cmpi eq, %10, %11 : vector<8x128xi32>
    %c1_i32 = arith.constant 1 : i32
    %13 = vector.broadcast %c1_i32 : i32 to vector<8x128xi32>
    %14 = arith.cmpi eq, %10, %13 : vector<8x128xi32>
    %cst_7 = arith.constant 0.000000e+00 : f32
    %15 = vector.shape_cast %9 : vector<1x128xf32> to vector<1x128xf32>
    %16 = vector.broadcast %15 : vector<1x128xf32> to vector<8x128xf32>
    %17 = vector.broadcast %cst_7 : f32 to vector<8x128xf32>
    %18 = arith.select %14, %16, %17 : vector<8x128xi1>, vector<8x128xf32>
    %19 = vector.shape_cast %6 : vector<1x128xf32> to vector<1x128xf32>
    %20 = vector.broadcast %19 : vector<1x128xf32> to vector<8x128xf32>
    %21 = arith.select %12, %20, %18 : vector<8x128xi1>, vector<8x128xf32>
    %c0_8 = arith.constant 0 : index
    %c0_9 = arith.constant 0 : index
    %22 = vector.load %arg5[%c0_8, %c0_9] : memref<8x128xf32, #tpu.memory_space<vmem>>, vector<8x128xf32>
    tpu.vector_store %arg5[%c0_8, %c0_9], %21 {strides = array<i32>} : memref<8x128xf32, #tpu.memory_space<vmem>>, vector<8x128xf32>,
    return
  }
  func.func @transform_0(%arg0: i32, %arg1: i32) -> (i32, i32) {
    %c0_i32 = arith.constant 0 : i32
    %c0_i32_0 = arith.constant 0 : i32
    return %arg1, %c0_i32 : i32, i32
  }
  func.func @transform_1(%arg0: i32, %arg1: i32) -> (i32, i32) {
    %c0_i32 = arith.constant 0 : i32
    %c0_i32_0 = arith.constant 0 : i32
    return %c0_i32, %arg0 : i32, i32
  }
  func.func @transform_2(%arg0: i32, %arg1: i32) -> (i32, i32) {
    %c0_i32 = arith.constant 0 : i32
    return %arg1, %arg0 : i32, i32
  }
  func.func @transform_3(%arg0: i32, %arg1: i32) -> (i32, i32) {
    %c0_i32 = arith.constant 0 : i32
    return %arg1, %arg0 : i32, i32
  }
}

module attributes {stable_mosaic.version = 11 : i64} {
  func.func @_affine_relu_kernel(%arg0: i32, %arg1: i32, %arg2: memref<640x128xbf16, #tpu.memory_space<vmem>>, %arg3: memref<1x128xf32, #tpu.memory_space<vmem>>, %arg4: memref<1x128xf32, #tpu.memory_space<vmem>>, %arg5: memref<640x128xbf16, #tpu.memory_space<vmem>>) attributes {dimension_semantics = [#tpu.dimension_semantics<parallel>, #tpu.dimension_semantics<parallel>], iteration_bounds = array<i64: 1, 1>, scalar_prefetch = 0 : i64, scratch_operands = 0 : i64, tpu.core_type = #tpu.core_type<tc>, window_params = [{transform_indices = @transform_0, window_bounds = array<i64: 640, 128>}, {transform_indices = @transform_1, window_bounds = array<i64: 1, 128>}, {transform_indices = @transform_2, window_bounds = array<i64: 1, 128>}, {transform_indices = @transform_3, window_bounds = array<i64: 640, 128>}]} {
    %c0 = arith.constant 0 : index
    %c0_0 = arith.constant 0 : index
    %0 = vector.load %arg2[%c0, %c0_0] : memref<640x128xbf16, #tpu.memory_space<vmem>>, vector<640x128xbf16>
    %1 = arith.extf %0 : vector<640x128xbf16> to vector<640x128xf32>
    %c0_1 = arith.constant 0 : index
    %c0_2 = arith.constant 0 : index
    %2 = vector.load %arg3[%c0_1, %c0_2] : memref<1x128xf32, #tpu.memory_space<vmem>>, vector<1x128xf32>
    %3 = vector.broadcast %2 : vector<1x128xf32> to vector<640x128xf32>
    %4 = arith.mulf %1, %3 : vector<640x128xf32>
    %c0_3 = arith.constant 0 : index
    %c0_4 = arith.constant 0 : index
    %5 = vector.load %arg4[%c0_3, %c0_4] : memref<1x128xf32, #tpu.memory_space<vmem>>, vector<1x128xf32>
    %6 = vector.broadcast %5 : vector<1x128xf32> to vector<640x128xf32>
    %7 = arith.addf %4, %6 : vector<640x128xf32>
    %cst = arith.constant 0.000000e+00 : f32
    %8 = vector.broadcast %cst : f32 to vector<640x128xf32>
    %9 = arith.maximumf %7, %8 : vector<640x128xf32>
    %10 = arith.truncf %9 : vector<640x128xf32> to vector<640x128xbf16>
    %c0_5 = arith.constant 0 : index
    %c0_6 = arith.constant 0 : index
    %11 = vector.load %arg5[%c0_5, %c0_6] : memref<640x128xbf16, #tpu.memory_space<vmem>>, vector<640x128xbf16>
    tpu.vector_store %arg5[%c0_5, %c0_6], %10 {strides = array<i32>} : memref<640x128xbf16, #tpu.memory_space<vmem>>, vector<640x128xbf16>,
    return
  }
  func.func @transform_0(%arg0: i32, %arg1: i32) -> (i32, i32) {
    %c0_i32 = arith.constant 0 : i32
    return %arg1, %arg0 : i32, i32
  }
  func.func @transform_1(%arg0: i32, %arg1: i32) -> (i32, i32) {
    %c0_i32 = arith.constant 0 : i32
    %c0_i32_0 = arith.constant 0 : i32
    return %c0_i32, %arg0 : i32, i32
  }
  func.func @transform_2(%arg0: i32, %arg1: i32) -> (i32, i32) {
    %c0_i32 = arith.constant 0 : i32
    %c0_i32_0 = arith.constant 0 : i32
    return %c0_i32, %arg0 : i32, i32
  }
  func.func @transform_3(%arg0: i32, %arg1: i32) -> (i32, i32) {
    %c0_i32 = arith.constant 0 : i32
    return %arg1, %arg0 : i32, i32
  }
}

module attributes {stable_mosaic.version = 11 : i64} {
  func.func @_gemm_bias_tanh_kernel(%arg0: i32, %arg1: i32, %arg2: memref<1152x32xbf16, #tpu.memory_space<vmem>>, %arg3: memref<32x128xbf16, #tpu.memory_space<vmem>>, %arg4: memref<1x128xf32, #tpu.memory_space<vmem>>, %arg5: memref<1152x128xbf16, #tpu.memory_space<vmem>>) attributes {dimension_semantics = [#tpu.dimension_semantics<parallel>, #tpu.dimension_semantics<parallel>], iteration_bounds = array<i64: 1, 2>, scalar_prefetch = 0 : i64, scratch_operands = 0 : i64, tpu.core_type = #tpu.core_type<tc>, window_params = [{transform_indices = @transform_0, window_bounds = array<i64: 1152, 32>}, {transform_indices = @transform_1, window_bounds = array<i64: 32, 128>}, {transform_indices = @transform_2, window_bounds = array<i64: 1, 128>}, {transform_indices = @transform_3, window_bounds = array<i64: 1152, 128>}]} {
    %c0 = arith.constant 0 : index
    %c0_0 = arith.constant 0 : index
    %0 = vector.load %arg2[%c0, %c0_0] : memref<1152x32xbf16, #tpu.memory_space<vmem>>, vector<1152x32xbf16>
    %c0_1 = arith.constant 0 : index
    %c0_2 = arith.constant 0 : index
    %1 = vector.load %arg3[%c0_1, %c0_2] : memref<32x128xbf16, #tpu.memory_space<vmem>>, vector<32x128xbf16>
    %cst = arith.constant dense<0.000000e+00> : vector<1152x128xf32>
    %2 = tpu.matmul %0, %1, %cst {dimension_numbers = #tpu.dot_dimension_numbers<[1], [0], [0], [1], [0, 0, 1, 1], [], []>} : vector<1152x32xbf16>, vector<32x128xbf16>, vector<1152x128xf32> -> vector<1152x128xf32>
    %c0_3 = arith.constant 0 : index
    %c0_4 = arith.constant 0 : index
    %3 = vector.load %arg4[%c0_3, %c0_4] : memref<1x128xf32, #tpu.memory_space<vmem>>, vector<1x128xf32>
    %4 = vector.broadcast %3 : vector<1x128xf32> to vector<1152x128xf32>
    %5 = arith.addf %2, %4 : vector<1152x128xf32>
    %6 = math.tanh %5 : vector<1152x128xf32>
    %7 = arith.truncf %6 : vector<1152x128xf32> to vector<1152x128xbf16>
    %c0_5 = arith.constant 0 : index
    %c0_6 = arith.constant 0 : index
    %8 = vector.load %arg5[%c0_5, %c0_6] : memref<1152x128xbf16, #tpu.memory_space<vmem>>, vector<1152x128xbf16>
    tpu.vector_store %arg5[%c0_5, %c0_6], %7 {strides = array<i32>} : memref<1152x128xbf16, #tpu.memory_space<vmem>>, vector<1152x128xbf16>,
    return
  }
  func.func @transform_0(%arg0: i32, %arg1: i32) -> (i32, i32) {
    %c0_i32 = arith.constant 0 : i32
    %c0_i32_0 = arith.constant 0 : i32
    return %arg1, %c0_i32 : i32, i32
  }
  func.func @transform_1(%arg0: i32, %arg1: i32) -> (i32, i32) {
    %c0_i32 = arith.constant 0 : i32
    %c0_i32_0 = arith.constant 0 : i32
    return %c0_i32, %arg0 : i32, i32
  }
  func.func @transform_2(%arg0: i32, %arg1: i32) -> (i32, i32) {
    %c0_i32 = arith.constant 0 : i32
    %c0_i32_0 = arith.constant 0 : i32
    return %c0_i32, %arg0 : i32, i32
  }
  func.func @transform_3(%arg0: i32, %arg1: i32) -> (i32, i32) {
    %c0_i32 = arith.constant 0 : i32
    return %arg1, %arg0 : i32, i32
  }
}

</mosaic_0001>

<llo_original>
// kernel: tile.88
$region0: #{tile.88}
  #allocation0 [shape = 's32[1]{0}', space=sflag, size = 0x4, scoped, tag = 'scoped memory for tile.88']
  %s0 = inlined_call_operand.vmem [shape: f32[32], index: 0, kind: input, shape index: {}]
  %s1 = inlined_call_operand.vmem [shape: f32[4,32], index: 1, kind: output, shape index: {}]
  // Predicated region
  $region2: #{tile.88} parent=0 // pred_check
    _
  $region3: #{tile.88} parent=0 // pred_check_branch
    %3 = sbr.rel (0) target = $region5
  $region4: #{tile.88} parent=0 // pred_region
    _
  $region5: #{tile.88} parent=0 // pred_fallthru
    _
  %v4 = vld [vmem:[%s0] ss:$0 sm:$0xff]
  %5 = vst [vmem:[%s1] sm:$0xf] %v4

// kernel: tile.89
$region0: #{tile.89}
  %s0 = inlined_call_operand.vmem [shape: f32[4,32], index: 0, kind: input, shape index: {}]
  %s1 = inlined_call_operand.vmem [shape: f32[1,128], index: 1, kind: output, shape index: {}]
  $region1: #{tile.89} parent=0
    #allocation0 [shape = 'u8[4096]{0}', space=vmem, size = 0x1000, scoped, tag = 'scoped mem for output reshape']
    #allocation1 [shape = 'u8[4096]{0}', space=vmem, size = 0x1000, scoped, tag = 'scoped mem for input reshape']
    %s3 = sshllo.u32 0, 4
    %v4 = vld [vmem:[%s0] sm:%s3]
    %5 = vst [vmem:[#allocation1] sm:%s3] %v4
    %v6 = vld [vmem:[#allocation1] sm:$0x1]
    %vm7 = vcmask 261120
    %8 = vst.msk [vmem:[#allocation0] sm:$0x1] %vm7, %v6
    %s9 = scalar_lea.vmem [#allocation1], 3
    %v10 = vld [vmem:[%s9] sm:$0x1]
    %11 = vrot.lane.b32.xlu0 %v10, 96
    %v12 = vpop.permute.xlu0 %11
    %vm13 = vcmask 1048320
    %14 = vst.msk [vmem:[#allocation0] sm:$0x1] %vm13, %v12
    %s15 = scalar_lea.vmem [#allocation1], 2
    %v16 = vld [vmem:[%s15] sm:$0x1]
    %17 = vrot.lane.b32.xlu0 %v16, 64
    %v18 = vpop.permute.xlu0 %17
    %vm19 = vcmask 785920
    %20 = vst.msk [vmem:[#allocation0] sm:$0x1] %vm19, %v18
    %s21 = scalar_lea.vmem [#allocation1], 1
    %v22 = vld [vmem:[%s21] sm:$0x1]
    %23 = vrot.lane.b32.xlu0 %v22, 32
    %v24 = vpop.permute.xlu0 %23
    %vm25 = vcmask 523520
    %26 = vst.msk [vmem:[#allocation0] sm:$0x1] %vm25, %v24
    %s28 = sshllo.u32 0, 1
    %v30 = vld [vmem:[#allocation0] sm:%s28]
    %s31 = sshllo.u32 0, 1
    %32 = vst [vmem:[%s1] sm:%s31] %v30

// kernel: tile.52
$region0: #{tile.52}
  #allocation0 [shape = 's32[1]{0}', space=sflag, size = 0x4, scoped, tag = 'scoped memory for tile.52']
  %s0 = inlined_call_operand.vmem [shape: f32[64], index: 0, kind: input, shape index: {}]
  %s1 = inlined_call_operand.vmem [shape: f32[16,64], index: 1, kind: output, shape index: {}]
  // Predicated region
  $region2: #{tile.52} parent=0 // pred_check
    _
  $region3: #{tile.52} parent=0 // pred_check_branch
    %3 = sbr.rel (0) target = $region5
  $region4: #{tile.52} parent=0 // pred_region
    _
  $region5: #{tile.52} parent=0 // pred_fallthru
    _
  %v4 = vld [vmem:[%s0] ss:$0 sm:$0xff]
  %5 = vst [vmem:[%s1] sm:$0xff] %v4
  %s6 = scalar_lea.vmem %s1, 8
  %7 = vst [vmem:[%s6] sm:$0xff] %v4

// kernel: tile.54
$region0: #{tile.54}
  %s0 = inlined_call_operand.vmem [shape: f32[16,64], index: 0, kind: input, shape index: {}]
  %s1 = inlined_call_operand.vmem [shape: f32[1,1024], index: 1, kind: output, shape index: {}]
  $region1: #{tile.54} parent=0
    #allocation0 [shape = 'u8[32768]{0}', space=vmem, size = 0x8000, scoped, tag = 'scoped mem for output reshape']
    %v2 = vld [vmem:[%s0] ss:$2 sm:$0xff]
    %vm3 = vcmask 523264
    %4 = vst.msk [vmem:[#allocation0] ss:$8 sm:$0xf] %vm3, %v2
    %5 = vst.msk [vmem:[#allocation0] ss:$8 sm:$0xf0] %vm3, %v2
    %s6 = scalar_lea.vmem %s0, 1
    %v7 = vld [vmem:[%s6] ss:$2 sm:$0xff]
    %8 = vrot.lane.b32.xlu0 %v7, 64
    %v9 = vpop.permute.xlu0 %8
    %vm10 = vcmask 1048064
    %11 = vst.msk [vmem:[#allocation0] ss:$8 sm:$0xf] %vm10, %v9
    %12 = vst.msk [vmem:[#allocation0] ss:$8 sm:$0xf0] %vm10, %v9
    %s14 = sshllo.u32 0, 1
    %v16 = vld [vmem:[#allocation0] sm:%s14]
    %s17 = sshllo.u32 0, 1
    %18 = vst [vmem:[%s1] sm:%s17] %v16
    %s19 = scalar_lea.vmem [#allocation0], 8
    %v20 = vld [vmem:[%s19] sm:%s14]
    %s21 = sshllo.u32 0, 1
    %s22 = scalar_lea.vmem %s1, 1
    %23 = vst [vmem:[%s22] sm:%s21] %v20
    %s24 = scalar_lea.vmem [#allocation0], 16
    %v25 = vld [vmem:[%s24] sm:%s14]
    %s26 = sshllo.u32 0, 1
    %s27 = smul.addr 1, 2
    %s28 = scalar_lea.vmem %s1, %s27
    %29 = vst [vmem:[%s28] sm:%s26] %v25
    %s30 = scalar_lea.vmem [#allocation0], 24
    %v31 = vld [vmem:[%s30] sm:%s14]
    %s32 = sshllo.u32 0, 1
    %s33 = smul.addr 1, 3
    %s34 = scalar_lea.vmem %s1, %s33
    %35 = vst [vmem:[%s34] sm:%s32] %v31
    %s36 = scalar_lea.vmem [#allocation0], 32
    %v37 = vld [vmem:[%s36] sm:%s14]
    %s38 = sshllo.u32 0, 1
    %s39 = smul.addr 1, 4
    %s40 = scalar_lea.vmem %s1, %s39
    %41 = vst [vmem:[%s40] sm:%s38] %v37
    %s42 = scalar_lea.vmem [#allocation0], 40
    %v43 = vld [vmem:[%s42] sm:%s14]
    %s44 = sshllo.u32 0, 1
    %s45 = smul.addr 1, 5
    %s46 = scalar_lea.vmem %s1, %s45
    %47 = vst [vmem:[%s46] sm:%s44] %v43
    %s48 = scalar_lea.vmem [#allocation0], 48
    %v49 = vld [vmem:[%s48] sm:%s14]
    %s50 = sshllo.u32 0, 1
    %s51 = smul.addr 1, 6
    %s52 = scalar_lea.vmem %s1, %s51
    %53 = vst [vmem:[%s52] sm:%s50] %v49
    %s54 = scalar_lea.vmem [#allocation0], 56
    %v55 = vld [vmem:[%s54] sm:%s14]
    %s56 = sshllo.u32 0, 1
    %s57 = smul.addr 1, 7
    %s58 = scalar_lea.vmem %s1, %s57
    %59 = vst [vmem:[%s58] sm:%s56] %v55

// kernel: generator_forward.10
$region0: #{generator_forward.10}
  #allocation0 [shape = 'u32[]', space=smem, size = 0x4, offset = 0x4, fixed_abs, tag = 'smem constant byte address 0x4 - core index']
  #allocation1 [shape = 'u32[144,128]{1,0:T(1,128)}', space=vmem, size = 0x12000, scoped, tag = 'internal scratch']
  %s0 = inlined_call_operand.vmem [shape: bf16[128,1024], index: 0, kind: input, shape index: {}]
  %s1 = inlined_call_operand.vmem [shape: f32[1,1024], index: 1, kind: input, shape index: {}]
  %s2 = inlined_call_operand.vmem [shape: f32[1,1024], index: 2, kind: input, shape index: {}]
  %s3 = inlined_call_operand.vmem [shape: bf16[128,1024], index: 3, kind: output, shape index: {}]
  %s4 = sld [smem:[#allocation0]]
  $region22: #{generator_forward.10} parent=0
    _
  %s6 = ssub.s32 1, %s4
  %s7 = scalar_select 0, %s6, %s4
  // Predicated region
  $region2: #{generator_forward.10} parent=0 // pred_check
    _
  $region3: #{generator_forward.10} parent=0 // pred_check_branch
    %9 = sbr.rel (0) target = $region5
  $region4: #{generator_forward.10} parent=0 // pred_region
    _
  $region5: #{generator_forward.10} parent=0 // pred_fallthru
    _
  // Predicated region
  $region6: #{generator_forward.10} parent=0 // pred_check
    _
  $region7: #{generator_forward.10} parent=0 // pred_check_branch
    %11 = sbr.rel (0) target = $region9
  $region8: #{generator_forward.10} parent=0 // pred_region
    _
  $region9: #{generator_forward.10} parent=0 // pred_fallthru
    _
  // Predicated region
  $region10: #{generator_forward.10} parent=0 // pred_check
    _
  $region11: #{generator_forward.10} parent=0 // pred_check_branch
    %13 = sbr.rel (0) target = $region13
  $region12: #{generator_forward.10} parent=0 // pred_region
    _
  $region13: #{generator_forward.10} parent=0 // pred_fallthru
    _
  %v14 = vld [vmem:[%s0] sm:$0xff]
  %v15 = vld [vmem:[%s0 + $0x8] sm:$0xff]
  %v16 = vld [vmem:[%s0 + $0x10] sm:$0xff]
  %v17 = vld [vmem:[%s0 + $0x18] sm:$0xff]
  %v18 = vld [vmem:[%s0 + $0x20] sm:$0xff]
  %v19 = vld [vmem:[%s0 + $0x28] sm:$0xff]
  %v20 = vld [vmem:[%s0 + $0x30] sm:$0xff]
  %v21 = vld [vmem:[%s0 + $0x38] sm:$0xff]
  %v22 = vld [vmem:[%s0 + $0x40] sm:$0xff]
  %v23 = vld [vmem:[%s0 + $0x48] sm:$0xff]
  %v24 = vld [vmem:[%s0 + $0x50] sm:$0xff]
  %v25 = vld [vmem:[%s0 + $0x58] sm:$0xff]
  %v26 = vld [vmem:[%s0 + $0x60] sm:$0xff]
  %v27 = vld [vmem:[%s0 + $0x68] sm:$0xff]
  %v28 = vld [vmem:[%s0 + $0x70] sm:$0xff]
  %v29 = vld [vmem:[%s0 + $0x78] sm:$0xff]
  %v30 = vld [vmem:[%s0 + $0x80] sm:$0xff]
  %v31 = vld [vmem:[%s0 + $0x88] sm:$0xff]
  %v32 = vld [vmem:[%s0 + $0x90] sm:$0xff]
  %v33 = vld [vmem:[%s0 + $0x98] sm:$0xff]
  %v34 = vld [vmem:[%s0 + $0xa0] sm:$0xff]
  %v35 = vld [vmem:[%s0 + $0xa8] sm:$0xff]
  %v36 = vld [vmem:[%s0 + $0xb0] sm:$0xff]
  %v37 = vld [vmem:[%s0 + $0xb8] sm:$0xff]
  %v38 = vld [vmem:[%s0 + $0xc0] sm:$0xff]
  %v39 = vld [vmem:[%s0 + $0xc8] sm:$0xff]
  %v40 = vld [vmem:[%s0 + $0xd0] sm:$0xff]
  %v41 = vld [vmem:[%s0 + $0xd8] sm:$0xff]
  %v42 = vld [vmem:[%s0 + $0xe0] sm:$0xff]
  %v43 = vld [vmem:[%s0 + $0xe8] sm:$0xff]
  %v44 = vld [vmem:[%s0 + $0xf0] sm:$0xff]
  %v45 = vld [vmem:[%s0 + $0xf8] sm:$0xff]
  %v46 = vld [vmem:[%s0 + $0x100] sm:$0xff]
  %v47 = vld [vmem:[%s0 + $0x108] sm:$0xff]
  %v48 = vld [vmem:[%s0 + $0x110] sm:$0xff]
  %v49 = vld [vmem:[%s0 + $0x118] sm:$0xff]
  %v50 = vld [vmem:[%s0 + $0x120] sm:$0xff]
  %v51 = vld [vmem:[%s0 + $0x128] sm:$0xff]
  %v52 = vld [vmem:[%s0 + $0x130] sm:$0xff]
  %v53 = vld [vmem:[%s0 + $0x138] sm:$0xff]
  %v54 = vld [vmem:[%s0 + $0x140] sm:$0xff]
  %v55 = vld [vmem:[%s0 + $0x148] sm:$0xff]
  %v56 = vld [vmem:[%s0 + $0x150] sm:$0xff]
  %v57 = vld [vmem:[%s0 + $0x158] sm:$0xff]
  %v58 = vld [vmem:[%s0 + $0x160] sm:$0xff]
  %v59 = vld [vmem:[%s0 + $0x168] sm:$0xff]
  %v60 = vld [vmem:[%s0 + $0x170] sm:$0xff]
  %v61 = vld [vmem:[%s0 + $0x178] sm:$0xff]
  %v62 = vld [vmem:[%s0 + $0x180] sm:$0xff]
  %v63 = vld [vmem:[%s0 + $0x188] sm:$0xff]
  %v64 = vld [vmem:[%s0 + $0x190] sm:$0xff]
  %v65 = vld [vmem:[%s0 + $0x198] sm:$0xff]
  %v66 = vld [vmem:[%s0 + $0x1a0] sm:$0xff]
  %v67 = vld [vmem:[%s0 + $0x1a8] sm:$0xff]
  %v68 = vld [vmem:[%s0 + $0x1b0] sm:$0xff]
  %v69 = vld [vmem:[%s0 + $0x1b8] sm:$0xff]
  %v70 = vld [vmem:[%s0 + $0x1c0] sm:$0xff]
  %v71 = vld [vmem:[%s0 + $0x1c8] sm:$0xff]
  %v72 = vld [vmem:[%s0 + $0x1d0] sm:$0xff]
  %v73 = vld [vmem:[%s0 + $0x1d8] sm:$0xff]
  %v74 = vld [vmem:[%s0 + $0x1e0] sm:$0xff]
  %v75 = vld [vmem:[%s0 + $0x1e8] sm:$0xff]
  %v76 = vld [vmem:[%s0 + $0x1f0] sm:$0xff]
  %v77 = vld [vmem:[%s0 + $0x1f8] sm:$0xff]
  %v78 = vunpack.c.l.bf16 %v14
  %v79 = vunpack.c.h.bf16 %v14
  %v80 = vunpack.c.l.bf16 %v15
  %v81 = vunpack.c.h.bf16 %v15
  %v82 = vunpack.c.l.bf16 %v16
  %v83 = vunpack.c.h.bf16 %v16
  %v84 = vunpack.c.l.bf16 %v17
  %v85 = vunpack.c.h.bf16 %v17
  %v86 = vunpack.c.l.bf16 %v18
  %v87 = vunpack.c.h.bf16 %v18
  %v88 = vunpack.c.l.bf16 %v19
  %v89 = vunpack.c.h.bf16 %v19
  %v90 = vunpack.c.l.bf16 %v20
  %v91 = vunpack.c.h.bf16 %v20
  %v92 = vunpack.c.l.bf16 %v21
  %v93 = vunpack.c.h.bf16 %v21
  %v94 = vunpack.c.l.bf16 %v22
  %v95 = vunpack.c.h.bf16 %v22
  %v96 = vunpack.c.l.bf16 %v23
  %v97 = vunpack.c.h.bf16 %v23
  %v98 = vunpack.c.l.bf16 %v24
  %v99 = vunpack.c.h.bf16 %v24
  %v100 = vunpack.c.l.bf16 %v25
  %v101 = vunpack.c.h.bf16 %v25
  %v102 = vunpack.c.l.bf16 %v26
  %v103 = vunpack.c.h.bf16 %v26
  %v104 = vunpack.c.l.bf16 %v27
  %v105 = vunpack.c.h.bf16 %v27
  %v106 = vunpack.c.l.bf16 %v28
  %v107 = vunpack.c.h.bf16 %v28
  %v108 = vunpack.c.l.bf16 %v29
  %v109 = vunpack.c.h.bf16 %v29
  %v110 = vunpack.c.l.bf16 %v30
  %v111 = vunpack.c.h.bf16 %v30
  %v112 = vunpack.c.l.bf16 %v31
  %v113 = vunpack.c.h.bf16 %v31
  %v114 = vunpack.c.l.bf16 %v32
  %v115 = vunpack.c.h.bf16 %v32
  %v116 = vunpack.c.l.bf16 %v33
  %v117 = vunpack.c.h.bf16 %v33
  %v118 = vunpack.c.l.bf16 %v34
  %v119 = vunpack.c.h.bf16 %v34
  %v120 = vunpack.c.l.bf16 %v35
  %v121 = vunpack.c.h.bf16 %v35
  %v122 = vunpack.c.l.bf16 %v36
  %v123 = vunpack.c.h.bf16 %v36
  %v124 = vunpack.c.l.bf16 %v37
  %v125 = vunpack.c.h.bf16 %v37
  %v126 = vunpack.c.l.bf16 %v38
  %v127 = vunpack.c.h.bf16 %v38
  %v128 = vunpack.c.l.bf16 %v39
  %v129 = vunpack.c.h.bf16 %v39
  %v130 = vunpack.c.l.bf16 %v40
  %v131 = vunpack.c.h.bf16 %v40
  %v132 = vunpack.c.l.bf16 %v41
  %v133 = vunpack.c.h.bf16 %v41
  %v134 = vunpack.c.l.bf16 %v42
  %v135 = vunpack.c.h.bf16 %v42
  %v136 = vunpack.c.l.bf16 %v43
  %v137 = vunpack.c.h.bf16 %v43
  %v138 = vunpack.c.l.bf16 %v44
  %v139 = vunpack.c.h.bf16 %v44
  %v140 = vunpack.c.l.bf16 %v45
  %v141 = vunpack.c.h.bf16 %v45
  %v142 = vunpack.c.l.bf16 %v46
  %v143 = vunpack.c.h.bf16 %v46
  %v144 = vunpack.c.l.bf16 %v47
  %v145 = vunpack.c.h.bf16 %v47
  %v146 = vunpack.c.l.bf16 %v48
  %v147 = vunpack.c.h.bf16 %v48
  %v148 = vunpack.c.l.bf16 %v49
  %v149 = vunpack.c.h.bf16 %v49
  %v150 = vunpack.c.l.bf16 %v50
  %v151 = vunpack.c.h.bf16 %v50
  %v152 = vunpack.c.l.bf16 %v51
  %v153 = vunpack.c.h.bf16 %v51
  %v154 = vunpack.c.l.bf16 %v52
  %v155 = vunpack.c.h.bf16 %v52
  %v156 = vunpack.c.l.bf16 %v53
  %v157 = vunpack.c.h.bf16 %v53
  %v158 = vunpack.c.l.bf16 %v54
  %v159 = vunpack.c.h.bf16 %v54
  %v160 = vunpack.c.l.bf16 %v55
  %v161 = vunpack.c.h.bf16 %v55
  %v162 = vunpack.c.l.bf16 %v56
  %v163 = vunpack.c.h.bf16 %v56
  %v164 = vunpack.c.l.bf16 %v57
  %v165 = vunpack.c.h.bf16 %v57
  %v166 = vunpack.c.l.bf16 %v58
  %v167 = vunpack.c.h.bf16 %v58
  %v168 = vunpack.c.l.bf16 %v59
  %v169 = vunpack.c.h.bf16 %v59
  %v170 = vunpack.c.l.bf16 %v60
  %v171 = vunpack.c.h.bf16 %v60
  %v172 = vunpack.c.l.bf16 %v61
  %v173 = vunpack.c.h.bf16 %v61
  %v174 = vunpack.c.l.bf16 %v62
  %v175 = vunpack.c.h.bf16 %v62
  %v176 = vunpack.c.l.bf16 %v63
  %v177 = vunpack.c.h.bf16 %v63
  %v178 = vunpack.c.l.bf16 %v64
  %v179 = vunpack.c.h.bf16 %v64
  %v180 = vunpack.c.l.bf16 %v65
  %v181 = vunpack.c.h.bf16 %v65
  %v182 = vunpack.c.l.bf16 %v66
  %v183 = vunpack.c.h.bf16 %v66
  %v184 = vunpack.c.l.bf16 %v67
  %v185 = vunpack.c.h.bf16 %v67
  %v186 = vunpack.c.l.bf16 %v68
  %v187 = vunpack.c.h.bf16 %v68
  %v188 = vunpack.c.l.bf16 %v69
  %v189 = vunpack.c.h.bf16 %v69
  %v190 = vunpack.c.l.bf16 %v70
  %v191 = vunpack.c.h.bf16 %v70
  %v192 = vunpack.c.l.bf16 %v71
  %v193 = vunpack.c.h.bf16 %v71
  %v194 = vunpack.c.l.bf16 %v72
  %v195 = vunpack.c.h.bf16 %v72
  %v196 = vunpack.c.l.bf16 %v73
  %v197 = vunpack.c.h.bf16 %v73
  %v198 = vunpack.c.l.bf16 %v74
  %v199 = vunpack.c.h.bf16 %v74
  %v200 = vunpack.c.l.bf16 %v75
  %v201 = vunpack.c.h.bf16 %v75
  %v202 = vunpack.c.l.bf16 %v76
  %v203 = vunpack.c.h.bf16 %v76
  %v204 = vunpack.c.l.bf16 %v77
  %v205 = vunpack.c.h.bf16 %v77
  %v206 = vld [vmem:[%s1] sm:$0xff]
  %v208 = vlaneseq
  %v209 = vshrl.u32 %v208, 7
  %v210 = vsub.s32 0, %v209
  %v211 = vrot.slane %v206, %v210
  %v212 = vlaneseq
  %v213 = vshrl.u32 %v212, 7
  %v214 = vsub.s32 1, %v213
  %v215 = vrot.slane %v206, %v214
  %v216 = vlaneseq
  %v217 = vshrl.u32 %v216, 7
  %v218 = vsub.s32 2, %v217
  %v219 = vrot.slane %v206, %v218
  %v220 = vlaneseq
  %v221 = vshrl.u32 %v220, 7
  %v222 = vsub.s32 3, %v221
  %v223 = vrot.slane %v206, %v222
  %v224 = vlaneseq
  %v225 = vshrl.u32 %v224, 7
  %v226 = vsub.s32 4, %v225
  %v227 = vrot.slane %v206, %v226
  %v228 = vlaneseq
  %v229 = vshrl.u32 %v228, 7
  %v230 = vsub.s32 5, %v229
  %v231 = vrot.slane %v206, %v230
  %v232 = vlaneseq
  %v233 = vshrl.u32 %v232, 7
  %v234 = vsub.s32 6, %v233
  %v235 = vrot.slane %v206, %v234
  %v236 = vlaneseq
  %v237 = vshrl.u32 %v236, 7
  %v238 = vsub.s32 7, %v237
  %v239 = vrot.slane %v206, %v238
  %v248 = vmul.f32 %v78, %v211
  %v249 = vmul.f32 %v79, %v215
  %v250 = vmul.f32 %v80, %v219
  %v251 = vmul.f32 %v81, %v223
  %v252 = vmul.f32 %v82, %v227
  %v253 = vmul.f32 %v83, %v231
  %v254 = vmul.f32 %v84, %v235
  %v255 = vmul.f32 %v85, %v239
  %v256 = vmul.f32 %v86, %v211
  %v257 = vmul.f32 %v87, %v215
  %v258 = vmul.f32 %v88, %v219
  %v259 = vmul.f32 %v89, %v223
  %v260 = vmul.f32 %v90, %v227
  %v261 = vmul.f32 %v91, %v231
  %v262 = vmul.f32 %v92, %v235
  %v263 = vmul.f32 %v93, %v239
  %v264 = vmul.f32 %v94, %v211
  %v265 = vmul.f32 %v95, %v215
  %v266 = vmul.f32 %v96, %v219
  %v267 = vmul.f32 %v97, %v223
  %v268 = vmul.f32 %v98, %v227
  %v269 = vmul.f32 %v99, %v231
  %v270 = vmul.f32 %v100, %v235
  %v271 = vmul.f32 %v101, %v239
  %v272 = vmul.f32 %v102, %v211
  %v273 = vmul.f32 %v103, %v215
  %v274 = vmul.f32 %v104, %v219
  %v275 = vmul.f32 %v105, %v223
  %v276 = vmul.f32 %v106, %v227
  %v277 = vmul.f32 %v107, %v231
  %v278 = vmul.f32 %v108, %v235
  %v279 = vmul.f32 %v109, %v239
  %v280 = vmul.f32 %v110, %v211
  %v281 = vmul.f32 %v111, %v215
  %v282 = vmul.f32 %v112, %v219
  %v283 = vmul.f32 %v113, %v223
  %v284 = vmul.f32 %v114, %v227
  %v285 = vmul.f32 %v115, %v231
  %v286 = vmul.f32 %v116, %v235
  %v287 = vmul.f32 %v117, %v239
  %v288 = vmul.f32 %v118, %v211
  %v289 = vmul.f32 %v119, %v215
  %v290 = vmul.f32 %v120, %v219
  %v291 = vmul.f32 %v121, %v223
  %v292 = vmul.f32 %v122, %v227
  %v293 = vmul.f32 %v123, %v231
  %v294 = vmul.f32 %v124, %v235
  %v295 = vmul.f32 %v125, %v239
  %v296 = vmul.f32 %v126, %v211
  %v297 = vmul.f32 %v127, %v215
  %v298 = vmul.f32 %v128, %v219
  %v299 = vmul.f32 %v129, %v223
  %v300 = vmul.f32 %v130, %v227
  %v301 = vmul.f32 %v131, %v231
  %v302 = vmul.f32 %v132, %v235
  %v303 = vmul.f32 %v133, %v239
  %v304 = vmul.f32 %v134, %v211
  %v305 = vmul.f32 %v135, %v215
  %v306 = vmul.f32 %v136, %v219
  %v307 = vmul.f32 %v137, %v223
  %v308 = vmul.f32 %v138, %v227
  %v309 = vmul.f32 %v139, %v231
  %v310 = vmul.f32 %v140, %v235
  %v311 = vmul.f32 %v141, %v239
  %v312 = vmul.f32 %v142, %v211
  %v313 = vmul.f32 %v143, %v215
  %v314 = vmul.f32 %v144, %v219
  %v315 = vmul.f32 %v145, %v223
  %v316 = vmul.f32 %v146, %v227
  %v317 = vmul.f32 %v147, %v231
  %v318 = vmul.f32 %v148, %v235
  %v319 = vmul.f32 %v149, %v239
  %v320 = vmul.f32 %v150, %v211
  %v321 = vmul.f32 %v151, %v215
  %v322 = vmul.f32 %v152, %v219
  %v323 = vmul.f32 %v153, %v223
  %v324 = vmul.f32 %v154, %v227
  %v325 = vmul.f32 %v155, %v231
  %v326 = vmul.f32 %v156, %v235
  %v327 = vmul.f32 %v157, %v239
  %v328 = vmul.f32 %v158, %v211
  %v329 = vmul.f32 %v159, %v215
  %v330 = vmul.f32 %v160, %v219
  %v331 = vmul.f32 %v161, %v223
  %v332 = vmul.f32 %v162, %v227
  %v333 = vmul.f32 %v163, %v231
  %v334 = vmul.f32 %v164, %v235
  %v335 = vmul.f32 %v165, %v239
  %v336 = vmul.f32 %v166, %v211
  %v337 = vmul.f32 %v167, %v215
  %v338 = vmul.f32 %v168, %v219
  %v339 = vmul.f32 %v169, %v223
  %v340 = vmul.f32 %v170, %v227
  %v341 = vmul.f32 %v171, %v231
  %v342 = vmul.f32 %v172, %v235
  %v343 = vmul.f32 %v173, %v239
  %v344 = vmul.f32 %v174, %v211
  %v345 = vmul.f32 %v175, %v215
  %v346 = vmul.f32 %v176, %v219
  %v347 = vmul.f32 %v177, %v223
  %v348 = vmul.f32 %v178, %v227
  %v349 = vmul.f32 %v179, %v231
  %v350 = vmul.f32 %v180, %v235
  %v351 = vmul.f32 %v181, %v239
  %v352 = vmul.f32 %v182, %v211
  %v353 = vmul.f32 %v183, %v215
  %v354 = vmul.f32 %v184, %v219
  %v355 = vmul.f32 %v185, %v223
  %v356 = vmul.f32 %v186, %v227
  %v357 = vmul.f32 %v187, %v231
  %v358 = vmul.f32 %v188, %v235
  %v359 = vmul.f32 %v189, %v239
  %v360 = vmul.f32 %v190, %v211
  %v361 = vmul.f32 %v191, %v215
  %v362 = vmul.f32 %v192, %v219
  %v363 = vmul.f32 %v193, %v223
  %v364 = vmul.f32 %v194, %v227
  %v365 = vmul.f32 %v195, %v231
  %v366 = vmul.f32 %v196, %v235
  %v367 = vmul.f32 %v197, %v239
  %v368 = vmul.f32 %v198, %v211
  %v369 = vmul.f32 %v199, %v215
  %v370 = vmul.f32 %v200, %v219
  %v371 = vmul.f32 %v201, %v223
  %v372 = vmul.f32 %v202, %v227
  %v373 = vmul.f32 %v203, %v231
  %v374 = vmul.f32 %v204, %v235
  %v375 = vmul.f32 %v205, %v239
  %v376 = vld [vmem:[%s2] sm:$0xff]
  %v378 = vlaneseq
  %v379 = vshrl.u32 %v378, 7
  %v380 = vsub.s32 0, %v379
  %v381 = vrot.slane %v376, %v380
  %v382 = vlaneseq
  %v383 = vshrl.u32 %v382, 7
  %v384 = vsub.s32 1, %v383
  %v385 = vrot.slane %v376, %v384
  %v386 = vlaneseq
  %v387 = vshrl.u32 %v386, 7
  %v388 = vsub.s32 2, %v387
  %v389 = vrot.slane %v376, %v388
  %v390 = vlaneseq
  %v391 = vshrl.u32 %v390, 7
  %v392 = vsub.s32 3, %v391
  %v393 = vrot.slane %v376, %v392
  %v394 = vlaneseq
  %v395 = vshrl.u32 %v394, 7
  %v396 = vsub.s32 4, %v395
  %v397 = vrot.slane %v376, %v396
  %v398 = vlaneseq
  %v399 = vshrl.u32 %v398, 7
  %v400 = vsub.s32 5, %v399
  %v401 = vrot.slane %v376, %v400
  %v402 = vlaneseq
  %v403 = vshrl.u32 %v402, 7
  %v404 = vsub.s32 6, %v403
  %v405 = vrot.slane %v376, %v404
  %v406 = vlaneseq
  %v407 = vshrl.u32 %v406, 7
  %v408 = vsub.s32 7, %v407
  %v409 = vrot.slane %v376, %v408
  %v418 = vadd.f32 %v248, %v381
  %v419 = vadd.f32 %v249, %v385
  %v420 = vadd.f32 %v250, %v389
  %v421 = vadd.f32 %v251, %v393
  %v422 = vadd.f32 %v252, %v397
  %v423 = vadd.f32 %v253, %v401
  %v424 = vadd.f32 %v254, %v405
  %v425 = vadd.f32 %v255, %v409
  %v426 = vadd.f32 %v256, %v381
  %v427 = vadd.f32 %v257, %v385
  %v428 = vadd.f32 %v258, %v389
  %v429 = vadd.f32 %v259, %v393
  %v430 = vadd.f32 %v260, %v397
  %v431 = vadd.f32 %v261, %v401
  %v432 = vadd.f32 %v262, %v405
  %v433 = vadd.f32 %v263, %v409
  %v434 = vadd.f32 %v264, %v381
  %v435 = vadd.f32 %v265, %v385
  %v436 = vadd.f32 %v266, %v389
  %v437 = vadd.f32 %v267, %v393
  %v438 = vadd.f32 %v268, %v397
  %v439 = vadd.f32 %v269, %v401
  %v440 = vadd.f32 %v270, %v405
  %v441 = vadd.f32 %v271, %v409
  %v442 = vadd.f32 %v272, %v381
  %v443 = vadd.f32 %v273, %v385
  %v444 = vadd.f32 %v274, %v389
  %v445 = vadd.f32 %v275, %v393
  %v446 = vadd.f32 %v276, %v397
  %v447 = vadd.f32 %v277, %v401
  %v448 = vadd.f32 %v278, %v405
  %v449 = vadd.f32 %v279, %v409
  %v450 = vadd.f32 %v280, %v381
  %v451 = vadd.f32 %v281, %v385
  %v452 = vadd.f32 %v282, %v389
  %v453 = vadd.f32 %v283, %v393
  %v454 = vadd.f32 %v284, %v397
  %v455 = vadd.f32 %v285, %v401
  %v456 = vadd.f32 %v286, %v405
  %v457 = vadd.f32 %v287, %v409
  %v458 = vadd.f32 %v288, %v381
  %v459 = vadd.f32 %v289, %v385
  %v460 = vadd.f32 %v290, %v389
  %v461 = vadd.f32 %v291, %v393
  %v462 = vadd.f32 %v292, %v397
  %v463 = vadd.f32 %v293, %v401
  %v464 = vadd.f32 %v294, %v405
  %v465 = vadd.f32 %v295, %v409
  %v466 = vadd.f32 %v296, %v381
  %v467 = vadd.f32 %v297, %v385
  %v468 = vadd.f32 %v298, %v389
  %v469 = vadd.f32 %v299, %v393
  %v470 = vadd.f32 %v300, %v397
  %v471 = vadd.f32 %v301, %v401
  %v472 = vadd.f32 %v302, %v405
  %v473 = vadd.f32 %v303, %v409
  %v474 = vadd.f32 %v304, %v381
  %v475 = vadd.f32 %v305, %v385
  %v476 = vadd.f32 %v306, %v389
  %v477 = vadd.f32 %v307, %v393
  %v478 = vadd.f32 %v308, %v397
  %v479 = vadd.f32 %v309, %v401
  %v480 = vadd.f32 %v310, %v405
  %v481 = vadd.f32 %v311, %v409
  %v482 = vadd.f32 %v312, %v381
  %v483 = vadd.f32 %v313, %v385
  %v484 = vadd.f32 %v314, %v389
  %v485 = vadd.f32 %v315, %v393
  %v486 = vadd.f32 %v316, %v397
  %v487 = vadd.f32 %v317, %v401
  %v488 = vadd.f32 %v318, %v405
  %v489 = vadd.f32 %v319, %v409
  %v490 = vadd.f32 %v320, %v381
  %v491 = vadd.f32 %v321, %v385
  %v492 = vadd.f32 %v322, %v389
  %v493 = vadd.f32 %v323, %v393
  %v494 = vadd.f32 %v324, %v397
  %v495 = vadd.f32 %v325, %v401
  %v496 = vadd.f32 %v326, %v405
  %v497 = vadd.f32 %v327, %v409
  %v498 = vadd.f32 %v328, %v381
  %v499 = vadd.f32 %v329, %v385
  %v500 = vadd.f32 %v330, %v389
  %v501 = vadd.f32 %v331, %v393
  %v502 = vadd.f32 %v332, %v397
  %v503 = vadd.f32 %v333, %v401
  %v504 = vadd.f32 %v334, %v405
  %v505 = vadd.f32 %v335, %v409
  %v506 = vadd.f32 %v336, %v381
  %v507 = vadd.f32 %v337, %v385
  %v508 = vadd.f32 %v338, %v389
  %v509 = vadd.f32 %v339, %v393
  %v510 = vadd.f32 %v340, %v397
  %v511 = vadd.f32 %v341, %v401
  %v512 = vadd.f32 %v342, %v405
  %v513 = vadd.f32 %v343, %v409
  %v514 = vadd.f32 %v344, %v381
  %v515 = vadd.f32 %v345, %v385
  %v516 = vadd.f32 %v346, %v389
  %v517 = vadd.f32 %v347, %v393
  %v518 = vadd.f32 %v348, %v397
  %v519 = vadd.f32 %v349, %v401
  %v520 = vadd.f32 %v350, %v405
  %v521 = vadd.f32 %v351, %v409
  %v522 = vadd.f32 %v352, %v381
  %v523 = vadd.f32 %v353, %v385
  %v524 = vadd.f32 %v354, %v389
  %v525 = vadd.f32 %v355, %v393
  %v526 = vadd.f32 %v356, %v397
  %v527 = vadd.f32 %v357, %v401
  %v528 = vadd.f32 %v358, %v405
  %v529 = vadd.f32 %v359, %v409
  %v530 = vadd.f32 %v360, %v381
  %v531 = vadd.f32 %v361, %v385
  %v532 = vadd.f32 %v362, %v389
  %v533 = vadd.f32 %v363, %v393
  %v534 = vadd.f32 %v364, %v397
  %v535 = vadd.f32 %v365, %v401
  %v536 = vadd.f32 %v366, %v405
  %v537 = vadd.f32 %v367, %v409
  %v538 = vadd.f32 %v368, %v381
  %v539 = vadd.f32 %v369, %v385
  %v540 = vadd.f32 %v370, %v389
  %v541 = vadd.f32 %v371, %v393
  %v542 = vadd.f32 %v372, %v397
  %v543 = vadd.f32 %v373, %v401
  %v544 = vadd.f32 %v374, %v405
  %v545 = vadd.f32 %v375, %v409
  %v546 = vmax.f32 %v418, 0.0
  %v547 = vmax.f32 %v419, 0.0
  %v548 = vmax.f32 %v420, 0.0
  %v549 = vmax.f32 %v421, 0.0
  %v550 = vmax.f32 %v422, 0.0
  %v551 = vmax.f32 %v423, 0.0
  %v552 = vmax.f32 %v424, 0.0
  %v553 = vmax.f32 %v425, 0.0
  %v554 = vmax.f32 %v426, 0.0
  %v555 = vmax.f32 %v427, 0.0
  %v556 = vmax.f32 %v428, 0.0
  %v557 = vmax.f32 %v429, 0.0
  %v558 = vmax.f32 %v430, 0.0
  %v559 = vmax.f32 %v431, 0.0
  %v560 = vmax.f32 %v432, 0.0
  %v561 = vmax.f32 %v433, 0.0
  %v562 = vmax.f32 %v434, 0.0
  %v563 = vmax.f32 %v435, 0.0
  %v564 = vmax.f32 %v436, 0.0
  %v565 = vmax.f32 %v437, 0.0
  %v566 = vmax.f32 %v438, 0.0
  %v567 = vmax.f32 %v439, 0.0
  %v568 = vmax.f32 %v440, 0.0
  %v569 = vmax.f32 %v441, 0.0
  %v570 = vmax.f32 %v442, 0.0
  %v571 = vmax.f32 %v443, 0.0
  %v572 = vmax.f32 %v444, 0.0
  %v573 = vmax.f32 %v445, 0.0
  %v574 = vmax.f32 %v446, 0.0
  %v575 = vmax.f32 %v447, 0.0
  %v576 = vmax.f32 %v448, 0.0
  %v577 = vmax.f32 %v449, 0.0
  %v578 = vmax.f32 %v450, 0.0
  %v579 = vmax.f32 %v451, 0.0
  %v580 = vmax.f32 %v452, 0.0
  %v581 = vmax.f32 %v453, 0.0
  %v582 = vmax.f32 %v454, 0.0
  %v583 = vmax.f32 %v455, 0.0
  %v584 = vmax.f32 %v456, 0.0
  %v585 = vmax.f32 %v457, 0.0
  %v586 = vmax.f32 %v458, 0.0
  %v587 = vmax.f32 %v459, 0.0
  %v588 = vmax.f32 %v460, 0.0
  %v589 = vmax.f32 %v461, 0.0
  %v590 = vmax.f32 %v462, 0.0
  %v591 = vmax.f32 %v463, 0.0
  %v592 = vmax.f32 %v464, 0.0
  %v593 = vmax.f32 %v465, 0.0
  %v594 = vmax.f32 %v466, 0.0
  %v595 = vmax.f32 %v467, 0.0
  %v596 = vmax.f32 %v468, 0.0
  %v597 = vmax.f32 %v469, 0.0
  %v598 = vmax.f32 %v470, 0.0
  %v599 = vmax.f32 %v471, 0.0
  %v600 = vmax.f32 %v472, 0.0
  %v601 = vmax.f32 %v473, 0.0
  %v602 = vmax.f32 %v474, 0.0
  %v603 = vmax.f32 %v475, 0.0
  %v604 = vmax.f32 %v476, 0.0
  %v605 = vmax.f32 %v477, 0.0
  %v606 = vmax.f32 %v478, 0.0
  %v607 = vmax.f32 %v479, 0.0
  %v608 = vmax.f32 %v480, 0.0
  %v609 = vmax.f32 %v481, 0.0
  %v610 = vmax.f32 %v482, 0.0
  %v611 = vmax.f32 %v483, 0.0
  %v612 = vmax.f32 %v484, 0.0
  %v613 = vmax.f32 %v485, 0.0
  %v614 = vmax.f32 %v486, 0.0
  %v615 = vmax.f32 %v487, 0.0
  %v616 = vmax.f32 %v488, 0.0
  %v617 = vmax.f32 %v489, 0.0
  %v618 = vmax.f32 %v490, 0.0
  %v619 = vmax.f32 %v491, 0.0
  %v620 = vmax.f32 %v492, 0.0
  %v621 = vmax.f32 %v493, 0.0
  %v622 = vmax.f32 %v494, 0.0
  %v623 = vmax.f32 %v495, 0.0
  %v624 = vmax.f32 %v496, 0.0
  %v625 = vmax.f32 %v497, 0.0
  %v626 = vmax.f32 %v498, 0.0
  %v627 = vmax.f32 %v499, 0.0
  %v628 = vmax.f32 %v500, 0.0
  %v629 = vmax.f32 %v501, 0.0
  %v630 = vmax.f32 %v502, 0.0
  %v631 = vmax.f32 %v503, 0.0
  %v632 = vmax.f32 %v504, 0.0
  %v633 = vmax.f32 %v505, 0.0
  %v634 = vmax.f32 %v506, 0.0
  %v635 = vmax.f32 %v507, 0.0
  %v636 = vmax.f32 %v508, 0.0
  %v637 = vmax.f32 %v509, 0.0
  %v638 = vmax.f32 %v510, 0.0
  %v639 = vmax.f32 %v511, 0.0
  %v640 = vmax.f32 %v512, 0.0
  %v641 = vmax.f32 %v513, 0.0
  %v642 = vmax.f32 %v514, 0.0
  %v643 = vmax.f32 %v515, 0.0
  %v644 = vmax.f32 %v516, 0.0
  %v645 = vmax.f32 %v517, 0.0
  %v646 = vmax.f32 %v518, 0.0
  %v647 = vmax.f32 %v519, 0.0
  %v648 = vmax.f32 %v520, 0.0
  %v649 = vmax.f32 %v521, 0.0
  %v650 = vmax.f32 %v522, 0.0
  %v651 = vmax.f32 %v523, 0.0
  %v652 = vmax.f32 %v524, 0.0
  %v653 = vmax.f32 %v525, 0.0
  %v654 = vmax.f32 %v526, 0.0
  %v655 = vmax.f32 %v527, 0.0
  %v656 = vmax.f32 %v528, 0.0
  %v657 = vmax.f32 %v529, 0.0
  %v658 = vmax.f32 %v530, 0.0
  %v659 = vmax.f32 %v531, 0.0
  %v660 = vmax.f32 %v532, 0.0
  %v661 = vmax.f32 %v533, 0.0
  %v662 = vmax.f32 %v534, 0.0
  %v663 = vmax.f32 %v535, 0.0
  %v664 = vmax.f32 %v536, 0.0
  %v665 = vmax.f32 %v537, 0.0
  %v666 = vmax.f32 %v538, 0.0
  %v667 = vmax.f32 %v539, 0.0
  %v668 = vmax.f32 %v540, 0.0
  %v669 = vmax.f32 %v541, 0.0
  %v670 = vmax.f32 %v542, 0.0
  %v671 = vmax.f32 %v543, 0.0
  %v672 = vmax.f32 %v544, 0.0
  %v673 = vmax.f32 %v545, 0.0
  %v674 = vpack.c.bf16 %v554, %v546
  %v675 = vpack.c.bf16 %v555, %v547
  %v676 = vpack.c.bf16 %v556, %v548
  %v677 = vpack.c.bf16 %v557, %v549
  %v678 = vpack.c.bf16 %v558, %v550
  %v679 = vpack.c.bf16 %v559, %v551
  %v680 = vpack.c.bf16 %v560, %v552
  %v681 = vpack.c.bf16 %v561, %v553
  %v682 = vpack.c.bf16 %v570, %v562
  %v683 = vpack.c.bf16 %v571, %v563
  %v684 = vpack.c.bf16 %v572, %v564
  %v685 = vpack.c.bf16 %v573, %v565
  %v686 = vpack.c.bf16 %v574, %v566
  %v687 = vpack.c.bf16 %v575, %v567
  %v688 = vpack.c.bf16 %v576, %v568
  %v689 = vpack.c.bf16 %v577, %v569
  %v690 = vpack.c.bf16 %v586, %v578
  %v691 = vpack.c.bf16 %v587, %v579
  %v692 = vpack.c.bf16 %v588, %v580
  %v693 = vpack.c.bf16 %v589, %v581
  %v694 = vpack.c.bf16 %v590, %v582
  %v695 = vpack.c.bf16 %v591, %v583
  %v696 = vpack.c.bf16 %v592, %v584
  %v697 = vpack.c.bf16 %v593, %v585
  %v698 = vpack.c.bf16 %v602, %v594
  %v699 = vpack.c.bf16 %v603, %v595
  %v700 = vpack.c.bf16 %v604, %v596
  %v701 = vpack.c.bf16 %v605, %v597
  %v702 = vpack.c.bf16 %v606, %v598
  %v703 = vpack.c.bf16 %v607, %v599
  %v704 = vpack.c.bf16 %v608, %v600
  %v705 = vpack.c.bf16 %v609, %v601
  %v706 = vpack.c.bf16 %v618, %v610
  %v707 = vpack.c.bf16 %v619, %v611
  %v708 = vpack.c.bf16 %v620, %v612
  %v709 = vpack.c.bf16 %v621, %v613
  %v710 = vpack.c.bf16 %v622, %v614
  %v711 = vpack.c.bf16 %v623, %v615
  %v712 = vpack.c.bf16 %v624, %v616
  %v713 = vpack.c.bf16 %v625, %v617
  %v714 = vpack.c.bf16 %v634, %v626
  %v715 = vpack.c.bf16 %v635, %v627
  %v716 = vpack.c.bf16 %v636, %v628
  %v717 = vpack.c.bf16 %v637, %v629
  %v718 = vpack.c.bf16 %v638, %v630
  %v719 = vpack.c.bf16 %v639, %v631
  %v720 = vpack.c.bf16 %v640, %v632
  %v721 = vpack.c.bf16 %v641, %v633
  %v722 = vpack.c.bf16 %v650, %v642
  %v723 = vpack.c.bf16 %v651, %v643
  %v724 = vpack.c.bf16 %v652, %v644
  %v725 = vpack.c.bf16 %v653, %v645
  %v726 = vpack.c.bf16 %v654, %v646
  %v727 = vpack.c.bf16 %v655, %v647
  %v728 = vpack.c.bf16 %v656, %v648
  %v729 = vpack.c.bf16 %v657, %v649
  %v730 = vpack.c.bf16 %v666, %v658
  %v731 = vpack.c.bf16 %v667, %v659
  %v732 = vpack.c.bf16 %v668, %v660
  %v733 = vpack.c.bf16 %v669, %v661
  %v734 = vpack.c.bf16 %v670, %v662
  %v735 = vpack.c.bf16 %v671, %v663
  %v736 = vpack.c.bf16 %v672, %v664
  %v737 = vpack.c.bf16 %v673, %v665
  %v802 = vunpack.c.l.b16 %v674
  %v803 = vunpack.c.l.b16 %v675
  %v804 = vunpack.c.l.b16 %v676
  %v805 = vunpack.c.l.b16 %v677
  %v806 = vunpack.c.l.b16 %v678
  %v807 = vunpack.c.l.b16 %v679
  %v808 = vunpack.c.l.b16 %v680
  %v809 = vunpack.c.l.b16 %v681
  %v810 = vunpack.c.h.b16 %v674
  %v811 = vunpack.c.h.b16 %v675
  %v812 = vunpack.c.h.b16 %v676
  %v813 = vunpack.c.h.b16 %v677
  %v814 = vunpack.c.h.b16 %v678
  %v815 = vunpack.c.h.b16 %v679
  %v816 = vunpack.c.h.b16 %v680
  %v817 = vunpack.c.h.b16 %v681
  %v818 = vunpack.c.l.b16 %v682
  %v819 = vunpack.c.l.b16 %v683
  %v820 = vunpack.c.l.b16 %v684
  %v821 = vunpack.c.l.b16 %v685
  %v822 = vunpack.c.l.b16 %v686
  %v823 = vunpack.c.l.b16 %v687
  %v824 = vunpack.c.l.b16 %v688
  %v825 = vunpack.c.l.b16 %v689
  %v826 = vunpack.c.h.b16 %v682
  %v827 = vunpack.c.h.b16 %v683
  %v828 = vunpack.c.h.b16 %v684
  %v829 = vunpack.c.h.b16 %v685
  %v830 = vunpack.c.h.b16 %v686
  %v831 = vunpack.c.h.b16 %v687
  %v832 = vunpack.c.h.b16 %v688
  %v833 = vunpack.c.h.b16 %v689
  %v834 = vunpack.c.l.b16 %v690
  %v835 = vunpack.c.l.b16 %v691
  %v836 = vunpack.c.l.b16 %v692
  %v837 = vunpack.c.l.b16 %v693
  %v838 = vunpack.c.l.b16 %v694
  %v839 = vunpack.c.l.b16 %v695
  %v840 = vunpack.c.l.b16 %v696
  %v841 = vunpack.c.l.b16 %v697
  %v842 = vunpack.c.h.b16 %v690
  %v843 = vunpack.c.h.b16 %v691
  %v844 = vunpack.c.h.b16 %v692
  %v845 = vunpack.c.h.b16 %v693
  %v846 = vunpack.c.h.b16 %v694
  %v847 = vunpack.c.h.b16 %v695
  %v848 = vunpack.c.h.b16 %v696
  %v849 = vunpack.c.h.b16 %v697
  %v850 = vunpack.c.l.b16 %v698
  %v851 = vunpack.c.l.b16 %v699
  %v852 = vunpack.c.l.b16 %v700
  %v853 = vunpack.c.l.b16 %v701
  %v854 = vunpack.c.l.b16 %v702
  %v855 = vunpack.c.l.b16 %v703
  %v856 = vunpack.c.l.b16 %v704
  %v857 = vunpack.c.l.b16 %v705
  %v858 = vunpack.c.h.b16 %v698
  %v859 = vunpack.c.h.b16 %v699
  %v860 = vunpack.c.h.b16 %v700
  %v861 = vunpack.c.h.b16 %v701
  %v862 = vunpack.c.h.b16 %v702
  %v863 = vunpack.c.h.b16 %v703
  %v864 = vunpack.c.h.b16 %v704
  %v865 = vunpack.c.h.b16 %v705
  %v866 = vunpack.c.l.b16 %v706
  %v867 = vunpack.c.l.b16 %v707
  %v868 = vunpack.c.l.b16 %v708
  %v869 = vunpack.c.l.b16 %v709
  %v870 = vunpack.c.l.b16 %v710
  %v871 = vunpack.c.l.b16 %v711
  %v872 = vunpack.c.l.b16 %v712
  %v873 = vunpack.c.l.b16 %v713
  %v874 = vunpack.c.h.b16 %v706
  %v875 = vunpack.c.h.b16 %v707
  %v876 = vunpack.c.h.b16 %v708
  %v877 = vunpack.c.h.b16 %v709
  %v878 = vunpack.c.h.b16 %v710
  %v879 = vunpack.c.h.b16 %v711
  %v880 = vunpack.c.h.b16 %v712
  %v881 = vunpack.c.h.b16 %v713
  %v882 = vunpack.c.l.b16 %v714
  %v883 = vunpack.c.l.b16 %v715
  %v884 = vunpack.c.l.b16 %v716
  %v885 = vunpack.c.l.b16 %v717
  %v886 = vunpack.c.l.b16 %v718
  %v887 = vunpack.c.l.b16 %v719
  %v888 = vunpack.c.l.b16 %v720
  %v889 = vunpack.c.l.b16 %v721
  %v890 = vunpack.c.h.b16 %v714
  %v891 = vunpack.c.h.b16 %v715
  %v892 = vunpack.c.h.b16 %v716
  %v893 = vunpack.c.h.b16 %v717
  %v894 = vunpack.c.h.b16 %v718
  %v895 = vunpack.c.h.b16 %v719
  %v896 = vunpack.c.h.b16 %v720
  %v897 = vunpack.c.h.b16 %v721
  %v898 = vunpack.c.l.b16 %v722
  %v899 = vunpack.c.l.b16 %v723
  %v900 = vunpack.c.l.b16 %v724
  %v901 = vunpack.c.l.b16 %v725
  %v902 = vunpack.c.l.b16 %v726
  %v903 = vunpack.c.l.b16 %v727
  %v904 = vunpack.c.l.b16 %v728
  %v905 = vunpack.c.l.b16 %v729
  %v906 = vunpack.c.h.b16 %v722
  %v907 = vunpack.c.h.b16 %v723
  %v908 = vunpack.c.h.b16 %v724
  %v909 = vunpack.c.h.b16 %v725
  %v910 = vunpack.c.h.b16 %v726
  %v911 = vunpack.c.h.b16 %v727
  %v912 = vunpack.c.h.b16 %v728
  %v913 = vunpack.c.h.b16 %v729
  %v914 = vunpack.c.l.b16 %v730
  %v915 = vunpack.c.l.b16 %v731
  %v916 = vunpack.c.l.b16 %v732
  %v917 = vunpack.c.l.b16 %v733
  %v918 = vunpack.c.l.b16 %v734
  %v919 = vunpack.c.l.b16 %v735
  %v920 = vunpack.c.l.b16 %v736
  %v921 = vunpack.c.l.b16 %v737
  %v922 = vunpack.c.h.b16 %v730
  %v923 = vunpack.c.h.b16 %v731
  %v924 = vunpack.c.h.b16 %v732
  %v925 = vunpack.c.h.b16 %v733
  %v926 = vunpack.c.h.b16 %v734
  %v927 = vunpack.c.h.b16 %v735
  %v928 = vunpack.c.h.b16 %v736
  %v929 = vunpack.c.h.b16 %v737
  %v930 = vpack.c.b16 %v803, %v802
  %v931 = vpack.c.b16 %v805, %v804
  %v932 = vpack.c.b16 %v807, %v806
  %v933 = vpack.c.b16 %v809, %v808
  %v934 = vpack.c.b16 %v811, %v810
  %v935 = vpack.c.b16 %v813, %v812
  %v936 = vpack.c.b16 %v815, %v814
  %v937 = vpack.c.b16 %v817, %v816
  %v938 = vpack.c.b16 %v819, %v818
  %v939 = vpack.c.b16 %v821, %v820
  %v940 = vpack.c.b16 %v823, %v822
  %v941 = vpack.c.b16 %v825, %v824
  %v942 = vpack.c.b16 %v827, %v826
  %v943 = vpack.c.b16 %v829, %v828
  %v944 = vpack.c.b16 %v831, %v830
  %v945 = vpack.c.b16 %v833, %v832
  %v946 = vpack.c.b16 %v835, %v834
  %v947 = vpack.c.b16 %v837, %v836
  %v948 = vpack.c.b16 %v839, %v838
  %v949 = vpack.c.b16 %v841, %v840
  %v950 = vpack.c.b16 %v843, %v842
  %v951 = vpack.c.b16 %v845, %v844
  %v952 = vpack.c.b16 %v847, %v846
  %v953 = vpack.c.b16 %v849, %v848
  %v954 = vpack.c.b16 %v851, %v850
  %v955 = vpack.c.b16 %v853, %v852
  %v956 = vpack.c.b16 %v855, %v854
  %v957 = vpack.c.b16 %v857, %v856
  %v958 = vpack.c.b16 %v859, %v858
  %v959 = vpack.c.b16 %v861, %v860
  %v960 = vpack.c.b16 %v863, %v862
  %v961 = vpack.c.b16 %v865, %v864
  %v962 = vpack.c.b16 %v867, %v866
  %v963 = vpack.c.b16 %v869, %v868
  %v964 = vpack.c.b16 %v871, %v870
  %v965 = vpack.c.b16 %v873, %v872
  %v966 = vpack.c.b16 %v875, %v874
  %v967 = vpack.c.b16 %v877, %v876
  %v968 = vpack.c.b16 %v879, %v878
  %v969 = vpack.c.b16 %v881, %v880
  %v970 = vpack.c.b16 %v883, %v882
  %v971 = vpack.c.b16 %v885, %v884
  %v972 = vpack.c.b16 %v887, %v886
  %v973 = vpack.c.b16 %v889, %v888
  %v974 = vpack.c.b16 %v891, %v890
  %v975 = vpack.c.b16 %v893, %v892
  %v976 = vpack.c.b16 %v895, %v894
  %v977 = vpack.c.b16 %v897, %v896
  %v978 = vpack.c.b16 %v899, %v898
  %v979 = vpack.c.b16 %v901, %v900
  %v980 = vpack.c.b16 %v903, %v902
  %v981 = vpack.c.b16 %v905, %v904
  %v982 = vpack.c.b16 %v907, %v906
  %v983 = vpack.c.b16 %v909, %v908
  %v984 = vpack.c.b16 %v911, %v910
  %v985 = vpack.c.b16 %v913, %v912
  %v986 = vpack.c.b16 %v915, %v914
  %v987 = vpack.c.b16 %v917, %v916
  %v988 = vpack.c.b16 %v919, %v918
  %v989 = vpack.c.b16 %v921, %v920
  %v990 = vpack.c.b16 %v923, %v922
  %v991 = vpack.c.b16 %v925, %v924
  %v992 = vpack.c.b16 %v927, %v926
  %v993 = vpack.c.b16 %v929, %v928
  %1058 = vst [vmem:[%s3] sm:$0xff] %v930
  %1059 = vst [vmem:[%s3 + $0x8] sm:$0xff] %v931
  %1060 = vst [vmem:[%s3 + $0x10] sm:$0xff] %v932
  %1061 = vst [vmem:[%s3 + $0x18] sm:$0xff] %v933
  %1062 = vst [vmem:[%s3 + $0x20] sm:$0xff] %v934
  %1063 = vst [vmem:[%s3 + $0x28] sm:$0xff] %v935
  %1064 = vst [vmem:[%s3 + $0x30] sm:$0xff] %v936
  %1065 = vst [vmem:[%s3 + $0x38] sm:$0xff] %v937
  %1066 = vst [vmem:[%s3 + $0x40] sm:$0xff] %v938
  %1067 = vst [vmem:[%s3 + $0x48] sm:$0xff] %v939
  %1068 = vst [vmem:[%s3 + $0x50] sm:$0xff] %v940
  %1069 = vst [vmem:[%s3 + $0x58] sm:$0xff] %v941
  %1070 = vst [vmem:[%s3 + $0x60] sm:$0xff] %v942
  %1071 = vst [vmem:[%s3 + $0x68] sm:$0xff] %v943
  %1072 = vst [vmem:[%s3 + $0x70] sm:$0xff] %v944
  %1073 = vst [vmem:[%s3 + $0x78] sm:$0xff] %v945
  %1074 = vst [vmem:[%s3 + $0x80] sm:$0xff] %v946
  %1075 = vst [vmem:[%s3 + $0x88] sm:$0xff] %v947
  %1076 = vst [vmem:[%s3 + $0x90] sm:$0xff] %v948
  %1077 = vst [vmem:[%s3 + $0x98] sm:$0xff] %v949
  %1078 = vst [vmem:[%s3 + $0xa0] sm:$0xff] %v950
  %1079 = vst [vmem:[%s3 + $0xa8] sm:$0xff] %v951
  %1080 = vst [vmem:[%s3 + $0xb0] sm:$0xff] %v952
  %1081 = vst [vmem:[%s3 + $0xb8] sm:$0xff] %v953
  %1082 = vst [vmem:[%s3 + $0xc0] sm:$0xff] %v954
  %1083 = vst [vmem:[%s3 + $0xc8] sm:$0xff] %v955
  %1084 = vst [vmem:[%s3 + $0xd0] sm:$0xff] %v956
  %1085 = vst [vmem:[%s3 + $0xd8] sm:$0xff] %v957
  %1086 = vst [vmem:[%s3 + $0xe0] sm:$0xff] %v958
  %1087 = vst [vmem:[%s3 + $0xe8] sm:$0xff] %v959
  %1088 = vst [vmem:[%s3 + $0xf0] sm:$0xff] %v960
  %1089 = vst [vmem:[%s3 + $0xf8] sm:$0xff] %v961
  %1090 = vst [vmem:[%s3 + $0x100] sm:$0xff] %v962
  %1091 = vst [vmem:[%s3 + $0x108] sm:$0xff] %v963
  %1092 = vst [vmem:[%s3 + $0x110] sm:$0xff] %v964
  %1093 = vst [vmem:[%s3 + $0x118] sm:$0xff] %v965
  %1094 = vst [vmem:[%s3 + $0x120] sm:$0xff] %v966
  %1095 = vst [vmem:[%s3 + $0x128] sm:$0xff] %v967
  %1096 = vst [vmem:[%s3 + $0x130] sm:$0xff] %v968
  %1097 = vst [vmem:[%s3 + $0x138] sm:$0xff] %v969
  %1098 = vst [vmem:[%s3 + $0x140] sm:$0xff] %v970
  %1099 = vst [vmem:[%s3 + $0x148] sm:$0xff] %v971
  %1100 = vst [vmem:[%s3 + $0x150] sm:$0xff] %v972
  %1101 = vst [vmem:[%s3 + $0x158] sm:$0xff] %v973
  %1102 = vst [vmem:[%s3 + $0x160] sm:$0xff] %v974
  %1103 = vst [vmem:[%s3 + $0x168] sm:$0xff] %v975
  %1104 = vst [vmem:[%s3 + $0x170] sm:$0xff] %v976
  %1105 = vst [vmem:[%s3 + $0x178] sm:$0xff] %v977
  %1106 = vst [vmem:[%s3 + $0x180] sm:$0xff] %v978
  %1107 = vst [vmem:[%s3 + $0x188] sm:$0xff] %v979
  %1108 = vst [vmem:[%s3 + $0x190] sm:$0xff] %v980
  %1109 = vst [vmem:[%s3 + $0x198] sm:$0xff] %v981
  %1110 = vst [vmem:[%s3 + $0x1a0] sm:$0xff] %v982
  %1111 = vst [vmem:[%s3 + $0x1a8] sm:$0xff] %v983
  %1112 = vst [vmem:[%s3 + $0x1b0] sm:$0xff] %v984
  %1113 = vst [vmem:[%s3 + $0x1b8] sm:$0xff] %v985
  %1114 = vst [vmem:[%s3 + $0x1c0] sm:$0xff] %v986
  %1115 = vst [vmem:[%s3 + $0x1c8] sm:$0xff] %v987
  %1116 = vst [vmem:[%s3 + $0x1d0] sm:$0xff] %v988
  %1117 = vst [vmem:[%s3 + $0x1d8] sm:$0xff] %v989
  %1118 = vst [vmem:[%s3 + $0x1e0] sm:$0xff] %v990
  %1119 = vst [vmem:[%s3 + $0x1e8] sm:$0xff] %v991
  %1120 = vst [vmem:[%s3 + $0x1f0] sm:$0xff] %v992
  %1121 = vst [vmem:[%s3 + $0x1f8] sm:$0xff] %v993
  // Predicated region
  $region14: #{generator_forward.10} parent=0 // pred_check
    _
  $region15: #{generator_forward.10} parent=0 // pred_check_branch
    %1123 = sbr.rel (0) target = $region17
  $region16: #{generator_forward.10} parent=0 // pred_region
    _
  $region17: #{generator_forward.10} parent=0 // pred_fallthru
    _
  // Predicated region
  $region18: #{generator_forward.10} parent=0 // pred_check
    _
  $region19: #{generator_forward.10} parent=0 // pred_check_branch
    %1125 = sbr.rel (0) target = $region21
  $region20: #{generator_forward.10} parent=0 // pred_region
    _
  $region21: #{generator_forward.10} parent=0 // pred_fallthru
    _

// kernel: generator_forward.9
$region0: #{generator_forward.9}
  #allocation0 [shape = 'u32[]', space=smem, size = 0x4, offset = 0x4, fixed_abs, tag = 'smem constant byte address 0x4 - core index']
  #allocation1 [shape = 'u32[144,128]{1,0:T(1,128)}', space=vmem, size = 0x12000, scoped, tag = 'internal scratch']
  %s0 = inlined_call_operand.vmem [shape: bf16[128,24], index: 0, kind: input, shape index: {}]
  %s1 = inlined_call_operand.vmem [shape: bf16[24,1024], index: 1, kind: input, shape index: {}]
  %s2 = inlined_call_operand.vmem [shape: bf16[128,1024], index: 2, kind: output, shape index: {0}]
  %s3 = inlined_call_operand.vmem [shape: f32[8,1024], index: 3, kind: output, shape index: {1}]
  %4 = xla_tuple %s2, %s3
  %s5 = sld [smem:[#allocation0]]
  $region26: #{generator_forward.9} parent=0
    _
  %s7 = ssub.s32 1, %s5
  %s8 = scalar_select 0, %s7, %s5
  // Predicated region
  $region2: #{generator_forward.9} parent=0 // pred_check
    _
  $region3: #{generator_forward.9} parent=0 // pred_check_branch
    %10 = sbr.rel (0) target = $region5
  $region4: #{generator_forward.9} parent=0 // pred_region
    _
  $region5: #{generator_forward.9} parent=0 // pred_fallthru
    _
  // Predicated region
  $region6: #{generator_forward.9} parent=0 // pred_check
    _
  $region7: #{generator_forward.9} parent=0 // pred_check_branch
    %12 = sbr.rel (0) target = $region9
  $region8: #{generator_forward.9} parent=0 // pred_region
    _
  $region9: #{generator_forward.9} parent=0 // pred_fallthru
    _
  %v14 = vld [vmem:[%s0] sm:$0xf]
  %v15 = vld [vmem:[%s0 + $0x4] sm:$0xf]
  %v16 = vld [vmem:[%s0 + $0x8] sm:$0xf]
  %v17 = vld [vmem:[%s0 + $0xc] sm:$0xf]
  %v18 = vld [vmem:[%s0 + $0x10] sm:$0xf]
  %v19 = vld [vmem:[%s0 + $0x14] sm:$0xf]
  %v20 = vld [vmem:[%s0 + $0x18] sm:$0xf]
  %v21 = vld [vmem:[%s0 + $0x1c] sm:$0xf]
  %v22 = vld [vmem:[%s0 + $0x20] sm:$0xf]
  %v23 = vld [vmem:[%s0 + $0x24] sm:$0xf]
  %v24 = vld [vmem:[%s0 + $0x28] sm:$0xf]
  %v25 = vld [vmem:[%s0 + $0x2c] sm:$0xf]
  %v26 = vld [vmem:[%s0 + $0x30] sm:$0xf]
  %v27 = vld [vmem:[%s0 + $0x34] sm:$0xf]
  %v28 = vld [vmem:[%s0 + $0x38] sm:$0xf]
  %v29 = vld [vmem:[%s0 + $0x3c] sm:$0xf]
  %v30 = vld [vmem:[%s1] sm:$0xff]
  %v31 = vld [vmem:[%s1 + $0x8] sm:$0xff]
  %v32 = vld [vmem:[%s1 + $0x10] sm:$0xff]
  %v33 = vld [vmem:[%s1 + $0x18] sm:$0xff]
  %v34 = vld [vmem:[%s1 + $0x20] sm:$0xff]
  %v35 = vld [vmem:[%s1 + $0x28] sm:$0xff]
  %v36 = vld [vmem:[%s1 + $0x30] sm:$0xff]
  %v37 = vld [vmem:[%s1 + $0x38] sm:$0xff]
  %v38 = vld [vmem:[%s1 + $0x40] sm:$0xff]
  %v39 = vld [vmem:[%s1 + $0x48] sm:$0xff]
  %v40 = vld [vmem:[%s1 + $0x50] sm:$0xff]
  %v41 = vld [vmem:[%s1 + $0x58] sm:$0xff]
  %v58 = vunpack.c.l.b16 %v14
  %v59 = vunpack.c.l.b16 %v15
  %v60 = vunpack.c.l.b16 %v16
  %v61 = vunpack.c.l.b16 %v17
  %v62 = vunpack.c.l.b16 %v18
  %v63 = vunpack.c.l.b16 %v19
  %v64 = vunpack.c.l.b16 %v20
  %v65 = vunpack.c.l.b16 %v21
  %v66 = vunpack.c.l.b16 %v22
  %v67 = vunpack.c.l.b16 %v23
  %v68 = vunpack.c.l.b16 %v24
  %v69 = vunpack.c.l.b16 %v25
  %v70 = vunpack.c.l.b16 %v26
  %v71 = vunpack.c.l.b16 %v27
  %v72 = vunpack.c.l.b16 %v28
  %v73 = vunpack.c.l.b16 %v29
  %v74 = vpack.c.b16 %v59, %v58
  %v75 = vpack.c.b16 %v61, %v60
  %v76 = vpack.c.b16 %v63, %v62
  %v77 = vpack.c.b16 %v65, %v64
  %v78 = vpack.c.b16 %v67, %v66
  %v79 = vpack.c.b16 %v69, %v68
  %v80 = vpack.c.b16 %v71, %v70
  %v81 = vpack.c.b16 %v73, %v72
  %v94 = vunpack.c.l.b16 %v30
  %v95 = vunpack.c.h.b16 %v30
  %v96 = vunpack.c.l.b16 %v31
  %v97 = vunpack.c.h.b16 %v31
  %v98 = vunpack.c.l.b16 %v32
  %v99 = vunpack.c.h.b16 %v32
  %v100 = vunpack.c.l.b16 %v33
  %v101 = vunpack.c.h.b16 %v33
  %v102 = vunpack.c.l.b16 %v34
  %v103 = vunpack.c.h.b16 %v34
  %v104 = vunpack.c.l.b16 %v35
  %v105 = vunpack.c.h.b16 %v35
  %v106 = vunpack.c.l.b16 %v36
  %v107 = vunpack.c.h.b16 %v36
  %v108 = vunpack.c.l.b16 %v37
  %v109 = vunpack.c.h.b16 %v37
  %v110 = vunpack.c.l.b16 %v38
  %v111 = vunpack.c.h.b16 %v38
  %v112 = vunpack.c.l.b16 %v39
  %v113 = vunpack.c.h.b16 %v39
  %v114 = vunpack.c.l.b16 %v40
  %v115 = vunpack.c.h.b16 %v40
  %v116 = vunpack.c.l.b16 %v41
  %v117 = vunpack.c.h.b16 %v41
  %v118 = vpack.c.b16 %v102, %v94
  %v119 = vpack.c.b16 %v103, %v95
  %v120 = vpack.c.b16 %v104, %v96
  %v121 = vpack.c.b16 %v105, %v97
  %v122 = vpack.c.b16 %v106, %v98
  %v123 = vpack.c.b16 %v107, %v99
  %v124 = vpack.c.b16 %v108, %v100
  %v125 = vpack.c.b16 %v109, %v101
  %v126 = vpack.c.b16 %v110, %v110
  %v127 = vpack.c.b16 %v111, %v111
  %v128 = vpack.c.b16 %v112, %v112
  %v129 = vpack.c.b16 %v113, %v113
  %v130 = vpack.c.b16 %v114, %v114
  %v131 = vpack.c.b16 %v115, %v115
  %v132 = vpack.c.b16 %v116, %v116
  %v133 = vpack.c.b16 %v117, %v117
  %vm142 = vcmask 195584
  %v144 = vsel %vm142, %v74, 0
  %v147 = vsel %vm142, %v75, 0
  %v150 = vsel %vm142, %v76, 0
  %v153 = vsel %vm142, %v77, 0
  %v156 = vsel %vm142, %v78, 0
  %v159 = vsel %vm142, %v79, 0
  %v162 = vsel %vm142, %v80, 0
  %v165 = vsel %vm142, %v81, 0
  %vm167 = vcmask 1043456
  %v169 = vsel %vm167, %v126, 0
  %v172 = vsel %vm167, %v127, 0
  %v175 = vsel %vm167, %v128, 0
  %v178 = vsel %vm167, %v129, 0
  %v181 = vsel %vm167, %v130, 0
  %v184 = vsel %vm167, %v131, 0
  %v187 = vsel %vm167, %v132, 0
  %v190 = vsel %vm167, %v133, 0
  %192 = vmatprep.subr.bf16.mxu0 %v119
  %193 = vmatpush1.bf16.msra.mxu0 %v118
  %194 = vmatprep.subr.bf16.mxu0 %v172
  %195 = vmatpush1.bf16.msra.mxu0 %v169
  %196 = vmatprep.subr.bf16.mxu0 0
  %197 = vmatpush1.bf16.msra.mxu0 0
  %198 = vmatprep.subr.bf16.mxu0 0
  %199 = vmatpush1.bf16.msra.mxu0 0
  %200 = vmatprep.subr.bf16.mxu0 0
  %201 = vmatpush1.bf16.msra.mxu0 0
  %202 = vmatprep.subr.bf16.mxu0 0
  %203 = vmatpush1.bf16.msra.mxu0 0
  %204 = vmatprep.subr.bf16.mxu0 0
  %205 = vmatpush1.bf16.msra.mxu0 0
  %206 = vmatprep.subr.bf16.mxu0 0
  %207 = vmatpush1.bf16.msra.mxu0 0
  %208 = vmatprep.subr.bf16.mxu0 0
  %209 = vmatpush1.bf16.msra.mxu0 0
  %210 = vmatprep.subr.bf16.mxu0 0
  %211 = vmatpush1.bf16.msra.mxu0 0
  %212 = vmatprep.subr.bf16.mxu0 0
  %213 = vmatpush1.bf16.msra.mxu0 0
  %214 = vmatprep.subr.bf16.mxu0 0
  %215 = vmatpush1.bf16.msra.mxu0 0
  %216 = vmatprep.subr.bf16.mxu0 0
  %217 = vmatpush1.bf16.msra.mxu0 0
  %218 = vmatprep.subr.bf16.mxu0 0
  %219 = vmatpush1.bf16.msra.mxu0 0
  %220 = vmatprep.subr.bf16.mxu0 0
  %221 = vmatpush1.bf16.msra.mxu0 0
  %222 = vmatprep.subr.bf16.mxu0 0
  %223 = vmatpush1.bf16.msra.mxu0 0
  %224 = vmatprep.mubr.bf16.mxu0 0
  %225 = vmatmul.mubr.bf16.gmra.mrb[0].mxu0 %v144
  %v226 = vpop.f32.mrb[0].mxu0
  %v227 = vadd.f32 0.0, %v226
  %v228 = vpop.f32.mrb[0].mxu0
  %v229 = vadd.f32 0.0, %v228
  %v230 = vpop.f32.mrb[0].mxu0
  %v231 = vadd.f32 0.0, %v230
  %v232 = vpop.f32.mrb[0].mxu0
  %v233 = vadd.f32 0.0, %v232
  %234 = vmatprep.mubr.bf16.mxu0 0
  %235 = vmatmul.mubr.bf16.gmra.mrb[0].mxu0 %v147
  %v236 = vpop.f32.mrb[0].mxu0
  %v237 = vadd.f32 0.0, %v236
  %v238 = vpop.f32.mrb[0].mxu0
  %v239 = vadd.f32 0.0, %v238
  %v240 = vpop.f32.mrb[0].mxu0
  %v241 = vadd.f32 0.0, %v240
  %v242 = vpop.f32.mrb[0].mxu0
  %v243 = vadd.f32 0.0, %v242
  %244 = vmatprep.mubr.bf16.mxu0 0
  %245 = vmatmul.mubr.bf16.gmra.mrb[0].mxu0 %v150
  %v246 = vpop.f32.mrb[0].mxu0
  %v247 = vadd.f32 0.0, %v246
  %v248 = vpop.f32.mrb[0].mxu0
  %v249 = vadd.f32 0.0, %v248
  %v250 = vpop.f32.mrb[0].mxu0
  %v251 = vadd.f32 0.0, %v250
  %v252 = vpop.f32.mrb[0].mxu0
  %v253 = vadd.f32 0.0, %v252
  %254 = vmatprep.mubr.bf16.mxu0 0
  %255 = vmatmul.mubr.bf16.gmra.mrb[0].mxu0 %v153
  %v256 = vpop.f32.mrb[0].mxu0
  %v257 = vadd.f32 0.0, %v256
  %v258 = vpop.f32.mrb[0].mxu0
  %v259 = vadd.f32 0.0, %v258
  %v260 = vpop.f32.mrb[0].mxu0
  %v261 = vadd.f32 0.0, %v260
  %v262 = vpop.f32.mrb[0].mxu0
  %v263 = vadd.f32 0.0, %v262
  %264 = vmatprep.mubr.bf16.mxu0 0
  %265 = vmatmul.mubr.bf16.gmra.mrb[0].mxu0 %v156
  %v266 = vpop.f32.mrb[0].mxu0
  %v267 = vadd.f32 0.0, %v266
  %v268 = vpop.f32.mrb[0].mxu0
  %v269 = vadd.f32 0.0, %v268
  %v270 = vpop.f32.mrb[0].mxu0
  %v271 = vadd.f32 0.0, %v270
  %v272 = vpop.f32.mrb[0].mxu0
  %v273 = vadd.f32 0.0, %v272
  %274 = vmatprep.mubr.bf16.mxu0 0
  %275 = vmatmul.mubr.bf16.gmra.mrb[0].mxu0 %v159
  %v276 = vpop.f32.mrb[0].mxu0
  %v277 = vadd.f32 0.0, %v276
  %v278 = vpop.f32.mrb[0].mxu0
  %v279 = vadd.f32 0.0, %v278
  %v280 = vpop.f32.mrb[0].mxu0
  %v281 = vadd.f32 0.0, %v280
  %v282 = vpop.f32.mrb[0].mxu0
  %v283 = vadd.f32 0.0, %v282
  %284 = vmatprep.mubr.bf16.mxu0 0
  %285 = vmatmul.mubr.bf16.gmra.mrb[0].mxu0 %v162
  %v286 = vpop.f32.mrb[0].mxu0
  %v287 = vadd.f32 0.0, %v286
  %v288 = vpop.f32.mrb[0].mxu0
  %v289 = vadd.f32 0.0, %v288
  %v290 = vpop.f32.mrb[0].mxu0
  %v291 = vadd.f32 0.0, %v290
  %v292 = vpop.f32.mrb[0].mxu0
  %v293 = vadd.f32 0.0, %v292
  %294 = vmatprep.mubr.bf16.mxu0 0
  %295 = vmatmul.mubr.bf16.gmra.mrb[0].mxu0 %v165
  %v296 = vpop.f32.mrb[0].mxu0
  %v297 = vadd.f32 0.0, %v296
  %v298 = vpop.f32.mrb[0].mxu0
  %v299 = vadd.f32 0.0, %v298
  %v300 = vpop.f32.mrb[0].mxu0
  %v301 = vadd.f32 0.0, %v300
  %v302 = vpop.f32.mrb[0].mxu0
  %v303 = vadd.f32 0.0, %v302
  %304 = vdwg.mxu0
  %305 = vmatprep.subr.bf16.mxu0 %v121
  %306 = vmatpush1.bf16.msra.mxu0 %v120
  %307 = vmatprep.subr.bf16.mxu0 %v178
  %308 = vmatpush1.bf16.msra.mxu0 %v175
  %309 = vmatprep.subr.bf16.mxu0 0
  %310 = vmatpush1.bf16.msra.mxu0 0
  %311 = vmatprep.subr.bf16.mxu0 0
  %312 = vmatpush1.bf16.msra.mxu0 0
  %313 = vmatprep.subr.bf16.mxu0 0
  %314 = vmatpush1.bf16.msra.mxu0 0
  %315 = vmatprep.subr.bf16.mxu0 0
  %316 = vmatpush1.bf16.msra.mxu0 0
  %317 = vmatprep.subr.bf16.mxu0 0
  %318 = vmatpush1.bf16.msra.mxu0 0
  %319 = vmatprep.subr.bf16.mxu0 0
  %320 = vmatpush1.bf16.msra.mxu0 0
  %321 = vmatprep.subr.bf16.mxu0 0
  %322 = vmatpush1.bf16.msra.mxu0 0
  %323 = vmatprep.subr.bf16.mxu0 0
  %324 = vmatpush1.bf16.msra.mxu0 0
  %325 = vmatprep.subr.bf16.mxu0 0
  %326 = vmatpush1.bf16.msra.mxu0 0
  %327 = vmatprep.subr.bf16.mxu0 0
  %328 = vmatpush1.bf16.msra.mxu0 0
  %329 = vmatprep.subr.bf16.mxu0 0
  %330 = vmatpush1.bf16.msra.mxu0 0
  %331 = vmatprep.subr.bf16.mxu0 0
  %332 = vmatpush1.bf16.msra.mxu0 0
  %333 = vmatprep.subr.bf16.mxu0 0
  %334 = vmatpush1.bf16.msra.mxu0 0
  %335 = vmatprep.subr.bf16.mxu0 0
  %336 = vmatpush1.bf16.msra.mxu0 0
  %337 = vmatprep.mubr.bf16.mxu0 0
  %338 = vmatmul.mubr.bf16.gmra.mrb[0].mxu0 %v144
  %v339 = vpop.f32.mrb[0].mxu0
  %v340 = vadd.f32 0.0, %v339
  %v341 = vpop.f32.mrb[0].mxu0
  %v342 = vadd.f32 0.0, %v341
  %v343 = vpop.f32.mrb[0].mxu0
  %v344 = vadd.f32 0.0, %v343
  %v345 = vpop.f32.mrb[0].mxu0
  %v346 = vadd.f32 0.0, %v345
  %347 = vmatprep.mubr.bf16.mxu0 0
  %348 = vmatmul.mubr.bf16.gmra.mrb[0].mxu0 %v147
  %v349 = vpop.f32.mrb[0].mxu0
  %v350 = vadd.f32 0.0, %v349
  %v351 = vpop.f32.mrb[0].mxu0
  %v352 = vadd.f32 0.0, %v351
  %v353 = vpop.f32.mrb[0].mxu0
  %v354 = vadd.f32 0.0, %v353
  %v355 = vpop.f32.mrb[0].mxu0
  %v356 = vadd.f32 0.0, %v355
  %357 = vmatprep.mubr.bf16.mxu0 0
  %358 = vmatmul.mubr.bf16.gmra.mrb[0].mxu0 %v150
  %v359 = vpop.f32.mrb[0].mxu0
  %v360 = vadd.f32 0.0, %v359
  %v361 = vpop.f32.mrb[0].mxu0
  %v362 = vadd.f32 0.0, %v361
  %v363 = vpop.f32.mrb[0].mxu0
  %v364 = vadd.f32 0.0, %v363
  %v365 = vpop.f32.mrb[0].mxu0
  %v366 = vadd.f32 0.0, %v365
  %367 = vmatprep.mubr.bf16.mxu0 0
  %368 = vmatmul.mubr.bf16.gmra.mrb[0].mxu0 %v153
  %v369 = vpop.f32.mrb[0].mxu0
  %v370 = vadd.f32 0.0, %v369
  %v371 = vpop.f32.mrb[0].mxu0
  %v372 = vadd.f32 0.0, %v371
  %v373 = vpop.f32.mrb[0].mxu0
  %v374 = vadd.f32 0.0, %v373
  %v375 = vpop.f32.mrb[0].mxu0
  %v376 = vadd.f32 0.0, %v375
  %377 = vmatprep.mubr.bf16.mxu0 0
  %378 = vmatmul.mubr.bf16.gmra.mrb[0].mxu0 %v156
  %v379 = vpop.f32.mrb[0].mxu0
  %v380 = vadd.f32 0.0, %v379
  %v381 = vpop.f32.mrb[0].mxu0
  %v382 = vadd.f32 0.0, %v381
  %v383 = vpop.f32.mrb[0].mxu0
  %v384 = vadd.f32 0.0, %v383
  %v385 = vpop.f32.mrb[0].mxu0
  %v386 = vadd.f32 0.0, %v385
  %387 = vmatprep.mubr.bf16.mxu0 0
  %388 = vmatmul.mubr.bf16.gmra.mrb[0].mxu0 %v159
  %v389 = vpop.f32.mrb[0].mxu0
  %v390 = vadd.f32 0.0, %v389
  %v391 = vpop.f32.mrb[0].mxu0
  %v392 = vadd.f32 0.0, %v391
  %v393 = vpop.f32.mrb[0].mxu0
  %v394 = vadd.f32 0.0, %v393
  %v395 = vpop.f32.mrb[0].mxu0
  %v396 = vadd.f32 0.0, %v395
  %397 = vmatprep.mubr.bf16.mxu0 0
  %398 = vmatmul.mubr.bf16.gmra.mrb[0].mxu0 %v162
  %v399 = vpop.f32.mrb[0].mxu0
  %v400 = vadd.f32 0.0, %v399
  %v401 = vpop.f32.mrb[0].mxu0
  %v402 = vadd.f32 0.0, %v401
  %v403 = vpop.f32.mrb[0].mxu0
  %v404 = vadd.f32 0.0, %v403
  %v405 = vpop.f32.mrb[0].mxu0
  %v406 = vadd.f32 0.0, %v405
  %407 = vmatprep.mubr.bf16.mxu0 0
  %408 = vmatmul.mubr.bf16.gmra.mrb[0].mxu0 %v165
  %v409 = vpop.f32.mrb[0].mxu0
  %v410 = vadd.f32 0.0, %v409
  %v411 = vpop.f32.mrb[0].mxu0
  %v412 = vadd.f32 0.0, %v411
  %v413 = vpop.f32.mrb[0].mxu0
  %v414 = vadd.f32 0.0, %v413
  %v415 = vpop.f32.mrb[0].mxu0
  %v416 = vadd.f32 0.0, %v415
  %417 = vdwg.mxu0
  %418 = vmatprep.subr.bf16.mxu0 %v123
  %419 = vmatpush1.bf16.msra.mxu0 %v122
  %420 = vmatprep.subr.bf16.mxu0 %v184
  %421 = vmatpush1.bf16.msra.mxu0 %v181
  %422 = vmatprep.subr.bf16.mxu0 0
  %423 = vmatpush1.bf16.msra.mxu0 0
  %424 = vmatprep.subr.bf16.mxu0 0
  %425 = vmatpush1.bf16.msra.mxu0 0
  %426 = vmatprep.subr.bf16.mxu0 0
  %427 = vmatpush1.bf16.msra.mxu0 0
  %428 = vmatprep.subr.bf16.mxu0 0
  %429 = vmatpush1.bf16.msra.mxu0 0
  %430 = vmatprep.subr.bf16.mxu0 0
  %431 = vmatpush1.bf16.msra.mxu0 0
  %432 = vmatprep.subr.bf16.mxu0 0
  %433 = vmatpush1.bf16.msra.mxu0 0
  %434 = vmatprep.subr.bf16.mxu0 0
  %435 = vmatpush1.bf16.msra.mxu0 0
  %436 = vmatprep.subr.bf16.mxu0 0
  %437 = vmatpush1.bf16.msra.mxu0 0
  %438 = vmatprep.subr.bf16.mxu0 0
  %439 = vmatpush1.bf16.msra.mxu0 0
  %440 = vmatprep.subr.bf16.mxu0 0
  %441 = vmatpush1.bf16.msra.mxu0 0
  %442 = vmatprep.subr.bf16.mxu0 0
  %443 = vmatpush1.bf16.msra.mxu0 0
  %444 = vmatprep.subr.bf16.mxu0 0
  %445 = vmatpush1.bf16.msra.mxu0 0
  %446 = vmatprep.subr.bf16.mxu0 0
  %447 = vmatpush1.bf16.msra.mxu0 0
  %448 = vmatprep.subr.bf16.mxu0 0
  %449 = vmatpush1.bf16.msra.mxu0 0
  %450 = vmatprep.mubr.bf16.mxu0 0
  %451 = vmatmul.mubr.bf16.gmra.mrb[0].mxu0 %v144
  %v452 = vpop.f32.mrb[0].mxu0
  %v453 = vadd.f32 0.0, %v452
  %v454 = vpop.f32.mrb[0].mxu0
  %v455 = vadd.f32 0.0, %v454
  %v456 = vpop.f32.mrb[0].mxu0
  %v457 = vadd.f32 0.0, %v456
  %v458 = vpop.f32.mrb[0].mxu0
  %v459 = vadd.f32 0.0, %v458
  %460 = vmatprep.mubr.bf16.mxu0 0
  %461 = vmatmul.mubr.bf16.gmra.mrb[0].mxu0 %v147
  %v462 = vpop.f32.mrb[0].mxu0
  %v463 = vadd.f32 0.0, %v462
  %v464 = vpop.f32.mrb[0].mxu0
  %v465 = vadd.f32 0.0, %v464
  %v466 = vpop.f32.mrb[0].mxu0
  %v467 = vadd.f32 0.0, %v466
  %v468 = vpop.f32.mrb[0].mxu0
  %v469 = vadd.f32 0.0, %v468
  %470 = vmatprep.mubr.bf16.mxu0 0
  %471 = vmatmul.mubr.bf16.gmra.mrb[0].mxu0 %v150
  %v472 = vpop.f32.mrb[0].mxu0
  %v473 = vadd.f32 0.0, %v472
  %v474 = vpop.f32.mrb[0].mxu0
  %v475 = vadd.f32 0.0, %v474
  %v476 = vpop.f32.mrb[0].mxu0
  %v477 = vadd.f32 0.0, %v476
  %v478 = vpop.f32.mrb[0].mxu0
  %v479 = vadd.f32 0.0, %v478
  %480 = vmatprep.mubr.bf16.mxu0 0
  %481 = vmatmul.mubr.bf16.gmra.mrb[0].mxu0 %v153
  %v482 = vpop.f32.mrb[0].mxu0
  %v483 = vadd.f32 0.0, %v482
  %v484 = vpop.f32.mrb[0].mxu0
  %v485 = vadd.f32 0.0, %v484
  %v486 = vpop.f32.mrb[0].mxu0
  %v487 = vadd.f32 0.0, %v486
  %v488 = vpop.f32.mrb[0].mxu0
  %v489 = vadd.f32 0.0, %v488
  %490 = vmatprep.mubr.bf16.mxu0 0
  %491 = vmatmul.mubr.bf16.gmra.mrb[0].mxu0 %v156
  %v492 = vpop.f32.mrb[0].mxu0
  %v493 = vadd.f32 0.0, %v492
  %v494 = vpop.f32.mrb[0].mxu0
  %v495 = vadd.f32 0.0, %v494
  %v496 = vpop.f32.mrb[0].mxu0
  %v497 = vadd.f32 0.0, %v496
  %v498 = vpop.f32.mrb[0].mxu0
  %v499 = vadd.f32 0.0, %v498
  %500 = vmatprep.mubr.bf16.mxu0 0
  %501 = vmatmul.mubr.bf16.gmra.mrb[0].mxu0 %v159
  %v502 = vpop.f32.mrb[0].mxu0
  %v503 = vadd.f32 0.0, %v502
  %v504 = vpop.f32.mrb[0].mxu0
  %v505 = vadd.f32 0.0, %v504
  %v506 = vpop.f32.mrb[0].mxu0
  %v507 = vadd.f32 0.0, %v506
  %v508 = vpop.f32.mrb[0].mxu0
  %v509 = vadd.f32 0.0, %v508
  %510 = vmatprep.mubr.bf16.mxu0 0
  %511 = vmatmul.mubr.bf16.gmra.mrb[0].mxu0 %v162
  %v512 = vpop.f32.mrb[0].mxu0
  %v513 = vadd.f32 0.0, %v512
  %v514 = vpop.f32.mrb[0].mxu0
  %v515 = vadd.f32 0.0, %v514
  %v516 = vpop.f32.mrb[0].mxu0
  %v517 = vadd.f32 0.0, %v516
  %v518 = vpop.f32.mrb[0].mxu0
  %v519 = vadd.f32 0.0, %v518
  %520 = vmatprep.mubr.bf16.mxu0 0
  %521 = vmatmul.mubr.bf16.gmra.mrb[0].mxu0 %v165
  %v522 = vpop.f32.mrb[0].mxu0
  %v523 = vadd.f32 0.0, %v522
  %v524 = vpop.f32.mrb[0].mxu0
  %v525 = vadd.f32 0.0, %v524
  %v526 = vpop.f32.mrb[0].mxu0
  %v527 = vadd.f32 0.0, %v526
  %v528 = vpop.f32.mrb[0].mxu0
  %v529 = vadd.f32 0.0, %v528
  %530 = vdwg.mxu0
  %531 = vmatprep.subr.bf16.mxu0 %v125
  %532 = vmatpush1.bf16.msra.mxu0 %v124
  %533 = vmatprep.subr.bf16.mxu0 %v190
  %534 = vmatpush1.bf16.msra.mxu0 %v187
  %535 = vmatprep.subr.bf16.mxu0 0
  %536 = vmatpush1.bf16.msra.mxu0 0
  %537 = vmatprep.subr.bf16.mxu0 0
  %538 = vmatpush1.bf16.msra.mxu0 0
  %539 = vmatprep.subr.bf16.mxu0 0
  %540 = vmatpush1.bf16.msra.mxu0 0
  %541 = vmatprep.subr.bf16.mxu0 0
  %542 = vmatpush1.bf16.msra.mxu0 0
  %543 = vmatprep.subr.bf16.mxu0 0
  %544 = vmatpush1.bf16.msra.mxu0 0
  %545 = vmatprep.subr.bf16.mxu0 0
  %546 = vmatpush1.bf16.msra.mxu0 0
  %547 = vmatprep.subr.bf16.mxu0 0
  %548 = vmatpush1.bf16.msra.mxu0 0
  %549 = vmatprep.subr.bf16.mxu0 0
  %550 = vmatpush1.bf16.msra.mxu0 0
  %551 = vmatprep.subr.bf16.mxu0 0
  %552 = vmatpush1.bf16.msra.mxu0 0
  %553 = vmatprep.subr.bf16.mxu0 0
  %554 = vmatpush1.bf16.msra.mxu0 0
  %555 = vmatprep.subr.bf16.mxu0 0
  %556 = vmatpush1.bf16.msra.mxu0 0
  %557 = vmatprep.subr.bf16.mxu0 0
  %558 = vmatpush1.bf16.msra.mxu0 0
  %559 = vmatprep.subr.bf16.mxu0 0
  %560 = vmatpush1.bf16.msra.mxu0 0
  %561 = vmatprep.subr.bf16.mxu0 0
  %562 = vmatpush1.bf16.msra.mxu0 0
  %563 = vmatprep.mubr.bf16.mxu0 0
  %564 = vmatmul.mubr.bf16.gmra.mrb[0].mxu0 %v144
  %v565 = vpop.f32.mrb[0].mxu0
  %v566 = vadd.f32 0.0, %v565
  %v567 = vpop.f32.mrb[0].mxu0
  %v568 = vadd.f32 0.0, %v567
  %v569 = vpop.f32.mrb[0].mxu0
  %v570 = vadd.f32 0.0, %v569
  %v571 = vpop.f32.mrb[0].mxu0
  %v572 = vadd.f32 0.0, %v571
  %573 = vmatprep.mubr.bf16.mxu0 0
  %574 = vmatmul.mubr.bf16.gmra.mrb[0].mxu0 %v147
  %v575 = vpop.f32.mrb[0].mxu0
  %v576 = vadd.f32 0.0, %v575
  %v577 = vpop.f32.mrb[0].mxu0
  %v578 = vadd.f32 0.0, %v577
  %v579 = vpop.f32.mrb[0].mxu0
  %v580 = vadd.f32 0.0, %v579
  %v581 = vpop.f32.mrb[0].mxu0
  %v582 = vadd.f32 0.0, %v581
  %583 = vmatprep.mubr.bf16.mxu0 0
  %584 = vmatmul.mubr.bf16.gmra.mrb[0].mxu0 %v150
  %v585 = vpop.f32.mrb[0].mxu0
  %v586 = vadd.f32 0.0, %v585
  %v587 = vpop.f32.mrb[0].mxu0
  %v588 = vadd.f32 0.0, %v587
  %v589 = vpop.f32.mrb[0].mxu0
  %v590 = vadd.f32 0.0, %v589
  %v591 = vpop.f32.mrb[0].mxu0
  %v592 = vadd.f32 0.0, %v591
  %593 = vmatprep.mubr.bf16.mxu0 0
  %594 = vmatmul.mubr.bf16.gmra.mrb[0].mxu0 %v153
  %v595 = vpop.f32.mrb[0].mxu0
  %v596 = vadd.f32 0.0, %v595
  %v597 = vpop.f32.mrb[0].mxu0
  %v598 = vadd.f32 0.0, %v597
  %v599 = vpop.f32.mrb[0].mxu0
  %v600 = vadd.f32 0.0, %v599
  %v601 = vpop.f32.mrb[0].mxu0
  %v602 = vadd.f32 0.0, %v601
  %603 = vmatprep.mubr.bf16.mxu0 0
  %604 = vmatmul.mubr.bf16.gmra.mrb[0].mxu0 %v156
  %v605 = vpop.f32.mrb[0].mxu0
  %v606 = vadd.f32 0.0, %v605
  %v607 = vpop.f32.mrb[0].mxu0
  %v608 = vadd.f32 0.0, %v607
  %v609 = vpop.f32.mrb[0].mxu0
  %v610 = vadd.f32 0.0, %v609
  %v611 = vpop.f32.mrb[0].mxu0
  %v612 = vadd.f32 0.0, %v611
  %613 = vmatprep.mubr.bf16.mxu0 0
  %614 = vmatmul.mubr.bf16.gmra.mrb[0].mxu0 %v159
  %v615 = vpop.f32.mrb[0].mxu0
  %v616 = vadd.f32 0.0, %v615
  %v617 = vpop.f32.mrb[0].mxu0
  %v618 = vadd.f32 0.0, %v617
  %v619 = vpop.f32.mrb[0].mxu0
  %v620 = vadd.f32 0.0, %v619
  %v621 = vpop.f32.mrb[0].mxu0
  %v622 = vadd.f32 0.0, %v621
  %623 = vmatprep.mubr.bf16.mxu0 0
  %624 = vmatmul.mubr.bf16.gmra.mrb[0].mxu0 %v162
  %v625 = vpop.f32.mrb[0].mxu0
  %v626 = vadd.f32 0.0, %v625
  %v627 = vpop.f32.mrb[0].mxu0
  %v628 = vadd.f32 0.0, %v627
  %v629 = vpop.f32.mrb[0].mxu0
  %v630 = vadd.f32 0.0, %v629
  %v631 = vpop.f32.mrb[0].mxu0
  %v632 = vadd.f32 0.0, %v631
  %633 = vmatprep.mubr.bf16.mxu0 0
  %634 = vmatmul.mubr.bf16.gmra.mrb[0].mxu0 %v165
  %v635 = vpop.f32.mrb[0].mxu0
  %v636 = vadd.f32 0.0, %v635
  %v637 = vpop.f32.mrb[0].mxu0
  %v638 = vadd.f32 0.0, %v637
  %v639 = vpop.f32.mrb[0].mxu0
  %v640 = vadd.f32 0.0, %v639
  %v641 = vpop.f32.mrb[0].mxu0
  %v642 = vadd.f32 0.0, %v641
  %643 = vdwg.mxu0
  %v644 = vpack.c.bf16 %v231, %v227
  %v645 = vpack.c.bf16 %v233, %v229
  %v646 = vpack.c.bf16 %v344, %v340
  %v647 = vpack.c.bf16 %v346, %v342
  %v648 = vpack.c.bf16 %v457, %v453
  %v649 = vpack.c.bf16 %v459, %v455
  %v650 = vpack.c.bf16 %v570, %v566
  %v651 = vpack.c.bf16 %v572, %v568
  %v652 = vpack.c.bf16 %v241, %v237
  %v653 = vpack.c.bf16 %v243, %v239
  %v654 = vpack.c.bf16 %v354, %v350
  %v655 = vpack.c.bf16 %v356, %v352
  %v656 = vpack.c.bf16 %v467, %v463
  %v657 = vpack.c.bf16 %v469, %v465
  %v658 = vpack.c.bf16 %v580, %v576
  %v659 = vpack.c.bf16 %v582, %v578
  %v660 = vpack.c.bf16 %v251, %v247
  %v661 = vpack.c.bf16 %v253, %v249
  %v662 = vpack.c.bf16 %v364, %v360
  %v663 = vpack.c.bf16 %v366, %v362
  %v664 = vpack.c.bf16 %v477, %v473
  %v665 = vpack.c.bf16 %v479, %v475
  %v666 = vpack.c.bf16 %v590, %v586
  %v667 = vpack.c.bf16 %v592, %v588
  %v668 = vpack.c.bf16 %v261, %v257
  %v669 = vpack.c.bf16 %v263, %v259
  %v670 = vpack.c.bf16 %v374, %v370
  %v671 = vpack.c.bf16 %v376, %v372
  %v672 = vpack.c.bf16 %v487, %v483
  %v673 = vpack.c.bf16 %v489, %v485
  %v674 = vpack.c.bf16 %v600, %v596
  %v675 = vpack.c.bf16 %v602, %v598
  %v676 = vpack.c.bf16 %v271, %v267
  %v677 = vpack.c.bf16 %v273, %v269
  %v678 = vpack.c.bf16 %v384, %v380
  %v679 = vpack.c.bf16 %v386, %v382
  %v680 = vpack.c.bf16 %v497, %v493
  %v681 = vpack.c.bf16 %v499, %v495
  %v682 = vpack.c.bf16 %v610, %v606
  %v683 = vpack.c.bf16 %v612, %v608
  %v684 = vpack.c.bf16 %v281, %v277
  %v685 = vpack.c.bf16 %v283, %v279
  %v686 = vpack.c.bf16 %v394, %v390
  %v687 = vpack.c.bf16 %v396, %v392
  %v688 = vpack.c.bf16 %v507, %v503
  %v689 = vpack.c.bf16 %v509, %v505
  %v690 = vpack.c.bf16 %v620, %v616
  %v691 = vpack.c.bf16 %v622, %v618
  %v692 = vpack.c.bf16 %v291, %v287
  %v693 = vpack.c.bf16 %v293, %v289
  %v694 = vpack.c.bf16 %v404, %v400
  %v695 = vpack.c.bf16 %v406, %v402
  %v696 = vpack.c.bf16 %v517, %v513
  %v697 = vpack.c.bf16 %v519, %v515
  %v698 = vpack.c.bf16 %v630, %v626
  %v699 = vpack.c.bf16 %v632, %v628
  %v700 = vpack.c.bf16 %v301, %v297
  %v701 = vpack.c.bf16 %v303, %v299
  %v702 = vpack.c.bf16 %v414, %v410
  %v703 = vpack.c.bf16 %v416, %v412
  %v704 = vpack.c.bf16 %v527, %v523
  %v705 = vpack.c.bf16 %v529, %v525
  %v706 = vpack.c.bf16 %v640, %v636
  %v707 = vpack.c.bf16 %v642, %v638
  %v772 = vunpack.c.l.b16 %v644
  %v773 = vunpack.c.l.b16 %v645
  %v774 = vunpack.c.l.b16 %v646
  %v775 = vunpack.c.l.b16 %v647
  %v776 = vunpack.c.l.b16 %v648
  %v777 = vunpack.c.l.b16 %v649
  %v778 = vunpack.c.l.b16 %v650
  %v779 = vunpack.c.l.b16 %v651
  %v780 = vunpack.c.h.b16 %v644
  %v781 = vunpack.c.h.b16 %v645
  %v782 = vunpack.c.h.b16 %v646
  %v783 = vunpack.c.h.b16 %v647
  %v784 = vunpack.c.h.b16 %v648
  %v785 = vunpack.c.h.b16 %v649
  %v786 = vunpack.c.h.b16 %v650
  %v787 = vunpack.c.h.b16 %v651
  %v788 = vunpack.c.l.b16 %v652
  %v789 = vunpack.c.l.b16 %v653
  %v790 = vunpack.c.l.b16 %v654
  %v791 = vunpack.c.l.b16 %v655
  %v792 = vunpack.c.l.b16 %v656
  %v793 = vunpack.c.l.b16 %v657
  %v794 = vunpack.c.l.b16 %v658
  %v795 = vunpack.c.l.b16 %v659
  %v796 = vunpack.c.h.b16 %v652
  %v797 = vunpack.c.h.b16 %v653
  %v798 = vunpack.c.h.b16 %v654
  %v799 = vunpack.c.h.b16 %v655
  %v800 = vunpack.c.h.b16 %v656
  %v801 = vunpack.c.h.b16 %v657
  %v802 = vunpack.c.h.b16 %v658
  %v803 = vunpack.c.h.b16 %v659
  %v804 = vunpack.c.l.b16 %v660
  %v805 = vunpack.c.l.b16 %v661
  %v806 = vunpack.c.l.b16 %v662
  %v807 = vunpack.c.l.b16 %v663
  %v808 = vunpack.c.l.b16 %v664
  %v809 = vunpack.c.l.b16 %v665
  %v810 = vunpack.c.l.b16 %v666
  %v811 = vunpack.c.l.b16 %v667
  %v812 = vunpack.c.h.b16 %v660
  %v813 = vunpack.c.h.b16 %v661
  %v814 = vunpack.c.h.b16 %v662
  %v815 = vunpack.c.h.b16 %v663
  %v816 = vunpack.c.h.b16 %v664
  %v817 = vunpack.c.h.b16 %v665
  %v818 = vunpack.c.h.b16 %v666
  %v819 = vunpack.c.h.b16 %v667
  %v820 = vunpack.c.l.b16 %v668
  %v821 = vunpack.c.l.b16 %v669
  %v822 = vunpack.c.l.b16 %v670
  %v823 = vunpack.c.l.b16 %v671
  %v824 = vunpack.c.l.b16 %v672
  %v825 = vunpack.c.l.b16 %v673
  %v826 = vunpack.c.l.b16 %v674
  %v827 = vunpack.c.l.b16 %v675
  %v828 = vunpack.c.h.b16 %v668
  %v829 = vunpack.c.h.b16 %v669
  %v830 = vunpack.c.h.b16 %v670
  %v831 = vunpack.c.h.b16 %v671
  %v832 = vunpack.c.h.b16 %v672
  %v833 = vunpack.c.h.b16 %v673
  %v834 = vunpack.c.h.b16 %v674
  %v835 = vunpack.c.h.b16 %v675
  %v836 = vunpack.c.l.b16 %v676
  %v837 = vunpack.c.l.b16 %v677
  %v838 = vunpack.c.l.b16 %v678
  %v839 = vunpack.c.l.b16 %v679
  %v840 = vunpack.c.l.b16 %v680
  %v841 = vunpack.c.l.b16 %v681
  %v842 = vunpack.c.l.b16 %v682
  %v843 = vunpack.c.l.b16 %v683
  %v844 = vunpack.c.h.b16 %v676
  %v845 = vunpack.c.h.b16 %v677
  %v846 = vunpack.c.h.b16 %v678
  %v847 = vunpack.c.h.b16 %v679
  %v848 = vunpack.c.h.b16 %v680
  %v849 = vunpack.c.h.b16 %v681
  %v850 = vunpack.c.h.b16 %v682
  %v851 = vunpack.c.h.b16 %v683
  %v852 = vunpack.c.l.b16 %v684
  %v853 = vunpack.c.l.b16 %v685
  %v854 = vunpack.c.l.b16 %v686
  %v855 = vunpack.c.l.b16 %v687
  %v856 = vunpack.c.l.b16 %v688
  %v857 = vunpack.c.l.b16 %v689
  %v858 = vunpack.c.l.b16 %v690
  %v859 = vunpack.c.l.b16 %v691
  %v860 = vunpack.c.h.b16 %v684
  %v861 = vunpack.c.h.b16 %v685
  %v862 = vunpack.c.h.b16 %v686
  %v863 = vunpack.c.h.b16 %v687
  %v864 = vunpack.c.h.b16 %v688
  %v865 = vunpack.c.h.b16 %v689
  %v866 = vunpack.c.h.b16 %v690
  %v867 = vunpack.c.h.b16 %v691
  %v868 = vunpack.c.l.b16 %v692
  %v869 = vunpack.c.l.b16 %v693
  %v870 = vunpack.c.l.b16 %v694
  %v871 = vunpack.c.l.b16 %v695
  %v872 = vunpack.c.l.b16 %v696
  %v873 = vunpack.c.l.b16 %v697
  %v874 = vunpack.c.l.b16 %v698
  %v875 = vunpack.c.l.b16 %v699
  %v876 = vunpack.c.h.b16 %v692
  %v877 = vunpack.c.h.b16 %v693
  %v878 = vunpack.c.h.b16 %v694
  %v879 = vunpack.c.h.b16 %v695
  %v880 = vunpack.c.h.b16 %v696
  %v881 = vunpack.c.h.b16 %v697
  %v882 = vunpack.c.h.b16 %v698
  %v883 = vunpack.c.h.b16 %v699
  %v884 = vunpack.c.l.b16 %v700
  %v885 = vunpack.c.l.b16 %v701
  %v886 = vunpack.c.l.b16 %v702
  %v887 = vunpack.c.l.b16 %v703
  %v888 = vunpack.c.l.b16 %v704
  %v889 = vunpack.c.l.b16 %v705
  %v890 = vunpack.c.l.b16 %v706
  %v891 = vunpack.c.l.b16 %v707
  %v892 = vunpack.c.h.b16 %v700
  %v893 = vunpack.c.h.b16 %v701
  %v894 = vunpack.c.h.b16 %v702
  %v895 = vunpack.c.h.b16 %v703
  %v896 = vunpack.c.h.b16 %v704
  %v897 = vunpack.c.h.b16 %v705
  %v898 = vunpack.c.h.b16 %v706
  %v899 = vunpack.c.h.b16 %v707
  %v900 = vpack.c.b16 %v773, %v772
  %v901 = vpack.c.b16 %v775, %v774
  %v902 = vpack.c.b16 %v777, %v776
  %v903 = vpack.c.b16 %v779, %v778
  %v904 = vpack.c.b16 %v781, %v780
  %v905 = vpack.c.b16 %v783, %v782
  %v906 = vpack.c.b16 %v785, %v784
  %v907 = vpack.c.b16 %v787, %v786
  %v908 = vpack.c.b16 %v789, %v788
  %v909 = vpack.c.b16 %v791, %v790
  %v910 = vpack.c.b16 %v793, %v792
  %v911 = vpack.c.b16 %v795, %v794
  %v912 = vpack.c.b16 %v797, %v796
  %v913 = vpack.c.b16 %v799, %v798
  %v914 = vpack.c.b16 %v801, %v800
  %v915 = vpack.c.b16 %v803, %v802
  %v916 = vpack.c.b16 %v805, %v804
  %v917 = vpack.c.b16 %v807, %v806
  %v918 = vpack.c.b16 %v809, %v808
  %v919 = vpack.c.b16 %v811, %v810
  %v920 = vpack.c.b16 %v813, %v812
  %v921 = vpack.c.b16 %v815, %v814
  %v922 = vpack.c.b16 %v817, %v816
  %v923 = vpack.c.b16 %v819, %v818
  %v924 = vpack.c.b16 %v821, %v820
  %v925 = vpack.c.b16 %v823, %v822
  %v926 = vpack.c.b16 %v825, %v824
  %v927 = vpack.c.b16 %v827, %v826
  %v928 = vpack.c.b16 %v829, %v828
  %v929 = vpack.c.b16 %v831, %v830
  %v930 = vpack.c.b16 %v833, %v832
  %v931 = vpack.c.b16 %v835, %v834
  %v932 = vpack.c.b16 %v837, %v836
  %v933 = vpack.c.b16 %v839, %v838
  %v934 = vpack.c.b16 %v841, %v840
  %v935 = vpack.c.b16 %v843, %v842
  %v936 = vpack.c.b16 %v845, %v844
  %v937 = vpack.c.b16 %v847, %v846
  %v938 = vpack.c.b16 %v849, %v848
  %v939 = vpack.c.b16 %v851, %v850
  %v940 = vpack.c.b16 %v853, %v852
  %v941 = vpack.c.b16 %v855, %v854
  %v942 = vpack.c.b16 %v857, %v856
  %v943 = vpack.c.b16 %v859, %v858
  %v944 = vpack.c.b16 %v861, %v860
  %v945 = vpack.c.b16 %v863, %v862
  %v946 = vpack.c.b16 %v865, %v864
  %v947 = vpack.c.b16 %v867, %v866
  %v948 = vpack.c.b16 %v869, %v868
  %v949 = vpack.c.b16 %v871, %v870
  %v950 = vpack.c.b16 %v873, %v872
  %v951 = vpack.c.b16 %v875, %v874
  %v952 = vpack.c.b16 %v877, %v876
  %v953 = vpack.c.b16 %v879, %v878
  %v954 = vpack.c.b16 %v881, %v880
  %v955 = vpack.c.b16 %v883, %v882
  %v956 = vpack.c.b16 %v885, %v884
  %v957 = vpack.c.b16 %v887, %v886
  %v958 = vpack.c.b16 %v889, %v888
  %v959 = vpack.c.b16 %v891, %v890
  %v960 = vpack.c.b16 %v893, %v892
  %v961 = vpack.c.b16 %v895, %v894
  %v962 = vpack.c.b16 %v897, %v896
  %v963 = vpack.c.b16 %v899, %v898
  %1028 = vst [vmem:[%s2] sm:$0xff] %v900
  %1029 = vst [vmem:[%s2 + $0x8] sm:$0xff] %v901
  %1030 = vst [vmem:[%s2 + $0x10] sm:$0xff] %v902
  %1031 = vst [vmem:[%s2 + $0x18] sm:$0xff] %v903
  %1032 = vst [vmem:[%s2 + $0x20] sm:$0xff] %v904
  %1033 = vst [vmem:[%s2 + $0x28] sm:$0xff] %v905
  %1034 = vst [vmem:[%s2 + $0x30] sm:$0xff] %v906
  %1035 = vst [vmem:[%s2 + $0x38] sm:$0xff] %v907
  %1036 = vst [vmem:[%s2 + $0x40] sm:$0xff] %v908
  %1037 = vst [vmem:[%s2 + $0x48] sm:$0xff] %v909
  %1038 = vst [vmem:[%s2 + $0x50] sm:$0xff] %v910
  %1039 = vst [vmem:[%s2 + $0x58] sm:$0xff] %v911
  %1040 = vst [vmem:[%s2 + $0x60] sm:$0xff] %v912
  %1041 = vst [vmem:[%s2 + $0x68] sm:$0xff] %v913
  %1042 = vst [vmem:[%s2 + $0x70] sm:$0xff] %v914
  %1043 = vst [vmem:[%s2 + $0x78] sm:$0xff] %v915
  %1044 = vst [vmem:[%s2 + $0x80] sm:$0xff] %v916
  %1045 = vst [vmem:[%s2 + $0x88] sm:$0xff] %v917
  %1046 = vst [vmem:[%s2 + $0x90] sm:$0xff] %v918
  %1047 = vst [vmem:[%s2 + $0x98] sm:$0xff] %v919
  %1048 = vst [vmem:[%s2 + $0xa0] sm:$0xff] %v920
  %1049 = vst [vmem:[%s2 + $0xa8] sm:$0xff] %v921
  %1050 = vst [vmem:[%s2 + $0xb0] sm:$0xff] %v922
  %1051 = vst [vmem:[%s2 + $0xb8] sm:$0xff] %v923
  %1052 = vst [vmem:[%s2 + $0xc0] sm:$0xff] %v924
  %1053 = vst [vmem:[%s2 + $0xc8] sm:$0xff] %v925
  %1054 = vst [vmem:[%s2 + $0xd0] sm:$0xff] %v926
  %1055 = vst [vmem:[%s2 + $0xd8] sm:$0xff] %v927
  %1056 = vst [vmem:[%s2 + $0xe0] sm:$0xff] %v928
  %1057 = vst [vmem:[%s2 + $0xe8] sm:$0xff] %v929
  %1058 = vst [vmem:[%s2 + $0xf0] sm:$0xff] %v930
  %1059 = vst [vmem:[%s2 + $0xf8] sm:$0xff] %v931
  %1060 = vst [vmem:[%s2 + $0x100] sm:$0xff] %v932
  %1061 = vst [vmem:[%s2 + $0x108] sm:$0xff] %v933
  %1062 = vst [vmem:[%s2 + $0x110] sm:$0xff] %v934
  %1063 = vst [vmem:[%s2 + $0x118] sm:$0xff] %v935
  %1064 = vst [vmem:[%s2 + $0x120] sm:$0xff] %v936
  %1065 = vst [vmem:[%s2 + $0x128] sm:$0xff] %v937
  %1066 = vst [vmem:[%s2 + $0x130] sm:$0xff] %v938
  %1067 = vst [vmem:[%s2 + $0x138] sm:$0xff] %v939
  %1068 = vst [vmem:[%s2 + $0x140] sm:$0xff] %v940
  %1069 = vst [vmem:[%s2 + $0x148] sm:$0xff] %v941
  %1070 = vst [vmem:[%s2 + $0x150] sm:$0xff] %v942
  %1071 = vst [vmem:[%s2 + $0x158] sm:$0xff] %v943
  %1072 = vst [vmem:[%s2 + $0x160] sm:$0xff] %v944
  %1073 = vst [vmem:[%s2 + $0x168] sm:$0xff] %v945
  %1074 = vst [vmem:[%s2 + $0x170] sm:$0xff] %v946
  %1075 = vst [vmem:[%s2 + $0x178] sm:$0xff] %v947
  %1076 = vst [vmem:[%s2 + $0x180] sm:$0xff] %v948
  %1077 = vst [vmem:[%s2 + $0x188] sm:$0xff] %v949
  %1078 = vst [vmem:[%s2 + $0x190] sm:$0xff] %v950
  %1079 = vst [vmem:[%s2 + $0x198] sm:$0xff] %v951
  %1080 = vst [vmem:[%s2 + $0x1a0] sm:$0xff] %v952
  %1081 = vst [vmem:[%s2 + $0x1a8] sm:$0xff] %v953
  %1082 = vst [vmem:[%s2 + $0x1b0] sm:$0xff] %v954
  %1083 = vst [vmem:[%s2 + $0x1b8] sm:$0xff] %v955
  %1084 = vst [vmem:[%s2 + $0x1c0] sm:$0xff] %v956
  %1085 = vst [vmem:[%s2 + $0x1c8] sm:$0xff] %v957
  %1086 = vst [vmem:[%s2 + $0x1d0] sm:$0xff] %v958
  %1087 = vst [vmem:[%s2 + $0x1d8] sm:$0xff] %v959
  %1088 = vst [vmem:[%s2 + $0x1e0] sm:$0xff] %v960
  %1089 = vst [vmem:[%s2 + $0x1e8] sm:$0xff] %v961
  %1090 = vst [vmem:[%s2 + $0x1f0] sm:$0xff] %v962
  %1091 = vst [vmem:[%s2 + $0x1f8] sm:$0xff] %v963
  %v1092 = vadd.f32 %v227, %v231
  %v1093 = vadd.f32 %v1092, %v237
  %v1094 = vadd.f32 %v1093, %v241
  %v1095 = vadd.f32 %v1094, %v247
  %v1096 = vadd.f32 %v1095, %v251
  %v1097 = vadd.f32 %v1096, %v257
  %v1098 = vadd.f32 %v1097, %v261
  %v1099 = vadd.f32 %v1098, %v267
  %v1100 = vadd.f32 %v1099, %v271
  %v1101 = vadd.f32 %v1100, %v277
  %v1102 = vadd.f32 %v1101, %v281
  %v1103 = vadd.f32 %v1102, %v287
  %v1104 = vadd.f32 %v1103, %v291
  %v1105 = vadd.f32 %v1104, %v297
  %v1106 = vadd.f32 %v1105, %v301
  %v1107 = vrot.slane %v1106, 4
  %v1108 = vadd.f32 %v1106, %v1107
  %v1109 = vrot.slane %v1108, 2
  %v1110 = vadd.f32 %v1108, %v1109
  %v1111 = vrot.slane %v1110, 1
  %v1112 = vadd.f32 %v1110, %v1111
  %v1113 = vadd.f32 %v229, %v233
  %v1114 = vadd.f32 %v1113, %v239
  %v1115 = vadd.f32 %v1114, %v243
  %v1116 = vadd.f32 %v1115, %v249
  %v1117 = vadd.f32 %v1116, %v253
  %v1118 = vadd.f32 %v1117, %v259
  %v1119 = vadd.f32 %v1118, %v263
  %v1120 = vadd.f32 %v1119, %v269
  %v1121 = vadd.f32 %v1120, %v273
  %v1122 = vadd.f32 %v1121, %v279
  %v1123 = vadd.f32 %v1122, %v283
  %v1124 = vadd.f32 %v1123, %v289
  %v1125 = vadd.f32 %v1124, %v293
  %v1126 = vadd.f32 %v1125, %v299
  %v1127 = vadd.f32 %v1126, %v303
  %v1128 = vrot.slane %v1127, 4
  %v1129 = vadd.f32 %v1127, %v1128
  %v1130 = vrot.slane %v1129, 2
  %v1131 = vadd.f32 %v1129, %v1130
  %v1132 = vrot.slane %v1131, 1
  %v1133 = vadd.f32 %v1131, %v1132
  %v1134 = vadd.f32 %v340, %v344
  %v1135 = vadd.f32 %v1134, %v350
  %v1136 = vadd.f32 %v1135, %v354
  %v1137 = vadd.f32 %v1136, %v360
  %v1138 = vadd.f32 %v1137, %v364
  %v1139 = vadd.f32 %v1138, %v370
  %v1140 = vadd.f32 %v1139, %v374
  %v1141 = vadd.f32 %v1140, %v380
  %v1142 = vadd.f32 %v1141, %v384
  %v1143 = vadd.f32 %v1142, %v390
  %v1144 = vadd.f32 %v1143, %v394
  %v1145 = vadd.f32 %v1144, %v400
  %v1146 = vadd.f32 %v1145, %v404
  %v1147 = vadd.f32 %v1146, %v410
  %v1148 = vadd.f32 %v1147, %v414
  %v1149 = vrot.slane %v1148, 4
  %v1150 = vadd.f32 %v1148, %v1149
  %v1151 = vrot.slane %v1150, 2
  %v1152 = vadd.f32 %v1150, %v1151
  %v1153 = vrot.slane %v1152, 1
  %v1154 = vadd.f32 %v1152, %v1153
  %v1155 = vadd.f32 %v342, %v346
  %v1156 = vadd.f32 %v1155, %v352
  %v1157 = vadd.f32 %v1156, %v356
  %v1158 = vadd.f32 %v1157, %v362
  %v1159 = vadd.f32 %v1158, %v366
  %v1160 = vadd.f32 %v1159, %v372
  %v1161 = vadd.f32 %v1160, %v376
  %v1162 = vadd.f32 %v1161, %v382
  %v1163 = vadd.f32 %v1162, %v386
  %v1164 = vadd.f32 %v1163, %v392
  %v1165 = vadd.f32 %v1164, %v396
  %v1166 = vadd.f32 %v1165, %v402
  %v1167 = vadd.f32 %v1166, %v406
  %v1168 = vadd.f32 %v1167, %v412
  %v1169 = vadd.f32 %v1168, %v416
  %v1170 = vrot.slane %v1169, 4
  %v1171 = vadd.f32 %v1169, %v1170
  %v1172 = vrot.slane %v1171, 2
  %v1173 = vadd.f32 %v1171, %v1172
  %v1174 = vrot.slane %v1173, 1
  %v1175 = vadd.f32 %v1173, %v1174
  %v1176 = vadd.f32 %v453, %v457
  %v1177 = vadd.f32 %v1176, %v463
  %v1178 = vadd.f32 %v1177, %v467
  %v1179 = vadd.f32 %v1178, %v473
  %v1180 = vadd.f32 %v1179, %v477
  %v1181 = vadd.f32 %v1180, %v483
  %v1182 = vadd.f32 %v1181, %v487
  %v1183 = vadd.f32 %v1182, %v493
  %v1184 = vadd.f32 %v1183, %v497
  %v1185 = vadd.f32 %v1184, %v503
  %v1186 = vadd.f32 %v1185, %v507
  %v1187 = vadd.f32 %v1186, %v513
  %v1188 = vadd.f32 %v1187, %v517
  %v1189 = vadd.f32 %v1188, %v523
  %v1190 = vadd.f32 %v1189, %v527
  %v1191 = vrot.slane %v1190, 4
  %v1192 = vadd.f32 %v1190, %v1191
  %v1193 = vrot.slane %v1192, 2
  %v1194 = vadd.f32 %v1192, %v1193
  %v1195 = vrot.slane %v1194, 1
  %v1196 = vadd.f32 %v1194, %v1195
  %v1197 = vadd.f32 %v455, %v459
  %v1198 = vadd.f32 %v1197, %v465
  %v1199 = vadd.f32 %v1198, %v469
  %v1200 = vadd.f32 %v1199, %v475
  %v1201 = vadd.f32 %v1200, %v479
  %v1202 = vadd.f32 %v1201, %v485
  %v1203 = vadd.f32 %v1202, %v489
  %v1204 = vadd.f32 %v1203, %v495
  %v1205 = vadd.f32 %v1204, %v499
  %v1206 = vadd.f32 %v1205, %v505
  %v1207 = vadd.f32 %v1206, %v509
  %v1208 = vadd.f32 %v1207, %v515
  %v1209 = vadd.f32 %v1208, %v519
  %v1210 = vadd.f32 %v1209, %v525
  %v1211 = vadd.f32 %v1210, %v529
  %v1212 = vrot.slane %v1211, 4
  %v1213 = vadd.f32 %v1211, %v1212
  %v1214 = vrot.slane %v1213, 2
  %v1215 = vadd.f32 %v1213, %v1214
  %v1216 = vrot.slane %v1215, 1
  %v1217 = vadd.f32 %v1215, %v1216
  %v1218 = vadd.f32 %v566, %v570
  %v1219 = vadd.f32 %v1218, %v576
  %v1220 = vadd.f32 %v1219, %v580
  %v1221 = vadd.f32 %v1220, %v586
  %v1222 = vadd.f32 %v1221, %v590
  %v1223 = vadd.f32 %v1222, %v596
  %v1224 = vadd.f32 %v1223, %v600
  %v1225 = vadd.f32 %v1224, %v606
  %v1226 = vadd.f32 %v1225, %v610
  %v1227 = vadd.f32 %v1226, %v616
  %v1228 = vadd.f32 %v1227, %v620
  %v1229 = vadd.f32 %v1228, %v626
  %v1230 = vadd.f32 %v1229, %v630
  %v1231 = vadd.f32 %v1230, %v636
  %v1232 = vadd.f32 %v1231, %v640
  %v1233 = vrot.slane %v1232, 4
  %v1234 = vadd.f32 %v1232, %v1233
  %v1235 = vrot.slane %v1234, 2
  %v1236 = vadd.f32 %v1234, %v1235
  %v1237 = vrot.slane %v1236, 1
  %v1238 = vadd.f32 %v1236, %v1237
  %v1239 = vadd.f32 %v568, %v572
  %v1240 = vadd.f32 %v1239, %v578
  %v1241 = vadd.f32 %v1240, %v582
  %v1242 = vadd.f32 %v1241, %v588
  %v1243 = vadd.f32 %v1242, %v592
  %v1244 = vadd.f32 %v1243, %v598
  %v1245 = vadd.f32 %v1244, %v602
  %v1246 = vadd.f32 %v1245, %v608
  %v1247 = vadd.f32 %v1246, %v612
  %v1248 = vadd.f32 %v1247, %v618
  %v1249 = vadd.f32 %v1248, %v622
  %v1250 = vadd.f32 %v1249, %v628
  %v1251 = vadd.f32 %v1250, %v632
  %v1252 = vadd.f32 %v1251, %v638
  %v1253 = vadd.f32 %v1252, %v642
  %v1254 = vrot.slane %v1253, 4
  %v1255 = vadd.f32 %v1253, %v1254
  %v1256 = vrot.slane %v1255, 2
  %v1257 = vadd.f32 %v1255, %v1256
  %v1258 = vrot.slane %v1257, 1
  %v1259 = vadd.f32 %v1257, %v1258
  %v1260 = vmul.f32 %v227, %v227
  %v1261 = vmul.f32 %v229, %v229
  %v1262 = vmul.f32 %v340, %v340
  %v1263 = vmul.f32 %v342, %v342
  %v1264 = vmul.f32 %v453, %v453
  %v1265 = vmul.f32 %v455, %v455
  %v1266 = vmul.f32 %v566, %v566
  %v1267 = vmul.f32 %v568, %v568
  %v1268 = vmul.f32 %v231, %v231
  %v1269 = vmul.f32 %v233, %v233
  %v1270 = vmul.f32 %v344, %v344
  %v1271 = vmul.f32 %v346, %v346
  %v1272 = vmul.f32 %v457, %v457
  %v1273 = vmul.f32 %v459, %v459
  %v1274 = vmul.f32 %v570, %v570
  %v1275 = vmul.f32 %v572, %v572
  %v1276 = vmul.f32 %v237, %v237
  %v1277 = vmul.f32 %v239, %v239
  %v1278 = vmul.f32 %v350, %v350
  %v1279 = vmul.f32 %v352, %v352
  %v1280 = vmul.f32 %v463, %v463
  %v1281 = vmul.f32 %v465, %v465
  %v1282 = vmul.f32 %v576, %v576
  %v1283 = vmul.f32 %v578, %v578
  %v1284 = vmul.f32 %v241, %v241
  %v1285 = vmul.f32 %v243, %v243
  %v1286 = vmul.f32 %v354, %v354
  %v1287 = vmul.f32 %v356, %v356
  %v1288 = vmul.f32 %v467, %v467
  %v1289 = vmul.f32 %v469, %v469
  %v1290 = vmul.f32 %v580, %v580
  %v1291 = vmul.f32 %v582, %v582
  %v1292 = vmul.f32 %v247, %v247
  %v1293 = vmul.f32 %v249, %v249
  %v1294 = vmul.f32 %v360, %v360
  %v1295 = vmul.f32 %v362, %v362
  %v1296 = vmul.f32 %v473, %v473
  %v1297 = vmul.f32 %v475, %v475
  %v1298 = vmul.f32 %v586, %v586
  %v1299 = vmul.f32 %v588, %v588
  %v1300 = vmul.f32 %v251, %v251
  %v1301 = vmul.f32 %v253, %v253
  %v1302 = vmul.f32 %v364, %v364
  %v1303 = vmul.f32 %v366, %v366
  %v1304 = vmul.f32 %v477, %v477
  %v1305 = vmul.f32 %v479, %v479
  %v1306 = vmul.f32 %v590, %v590
  %v1307 = vmul.f32 %v592, %v592
  %v1308 = vmul.f32 %v257, %v257
  %v1309 = vmul.f32 %v259, %v259
  %v1310 = vmul.f32 %v370, %v370
  %v1311 = vmul.f32 %v372, %v372
  %v1312 = vmul.f32 %v483, %v483
  %v1313 = vmul.f32 %v485, %v485
  %v1314 = vmul.f32 %v596, %v596
  %v1315 = vmul.f32 %v598, %v598
  %v1316 = vmul.f32 %v261, %v261
  %v1317 = vmul.f32 %v263, %v263
  %v1318 = vmul.f32 %v374, %v374
  %v1319 = vmul.f32 %v376, %v376
  %v1320 = vmul.f32 %v487, %v487
  %v1321 = vmul.f32 %v489, %v489
  %v1322 = vmul.f32 %v600, %v600
  %v1323 = vmul.f32 %v602, %v602
  %v1324 = vmul.f32 %v267, %v267
  %v1325 = vmul.f32 %v269, %v269
  %v1326 = vmul.f32 %v380, %v380
  %v1327 = vmul.f32 %v382, %v382
  %v1328 = vmul.f32 %v493, %v493
  %v1329 = vmul.f32 %v495, %v495
  %v1330 = vmul.f32 %v606, %v606
  %v1331 = vmul.f32 %v608, %v608
  %v1332 = vmul.f32 %v271, %v271
  %v1333 = vmul.f32 %v273, %v273
  %v1334 = vmul.f32 %v384, %v384
  %v1335 = vmul.f32 %v386, %v386
  %v1336 = vmul.f32 %v497, %v497
  %v1337 = vmul.f32 %v499, %v499
  %v1338 = vmul.f32 %v610, %v610
  %v1339 = vmul.f32 %v612, %v612
  %v1340 = vmul.f32 %v277, %v277
  %v1341 = vmul.f32 %v279, %v279
  %v1342 = vmul.f32 %v390, %v390
  %v1343 = vmul.f32 %v392, %v392
  %v1344 = vmul.f32 %v503, %v503
  %v1345 = vmul.f32 %v505, %v505
  %v1346 = vmul.f32 %v616, %v616
  %v1347 = vmul.f32 %v618, %v618
  %v1348 = vmul.f32 %v281, %v281
  %v1349 = vmul.f32 %v283, %v283
  %v1350 = vmul.f32 %v394, %v394
  %v1351 = vmul.f32 %v396, %v396
  %v1352 = vmul.f32 %v507, %v507
  %v1353 = vmul.f32 %v509, %v509
  %v1354 = vmul.f32 %v620, %v620
  %v1355 = vmul.f32 %v622, %v622
  %v1356 = vmul.f32 %v287, %v287
  %v1357 = vmul.f32 %v289, %v289
  %v1358 = vmul.f32 %v400, %v400
  %v1359 = vmul.f32 %v402, %v402
  %v1360 = vmul.f32 %v513, %v513
  %v1361 = vmul.f32 %v515, %v515
  %v1362 = vmul.f32 %v626, %v626
  %v1363 = vmul.f32 %v628, %v628
  %v1364 = vmul.f32 %v291, %v291
  %v1365 = vmul.f32 %v293, %v293
  %v1366 = vmul.f32 %v404, %v404
  %v1367 = vmul.f32 %v406, %v406
  %v1368 = vmul.f32 %v517, %v517
  %v1369 = vmul.f32 %v519, %v519
  %v1370 = vmul.f32 %v630, %v630
  %v1371 = vmul.f32 %v632, %v632
  %v1372 = vmul.f32 %v297, %v297
  %v1373 = vmul.f32 %v299, %v299
  %v1374 = vmul.f32 %v410, %v410
  %v1375 = vmul.f32 %v412, %v412
  %v1376 = vmul.f32 %v523, %v523
  %v1377 = vmul.f32 %v525, %v525
  %v1378 = vmul.f32 %v636, %v636
  %v1379 = vmul.f32 %v638, %v638
  %v1380 = vmul.f32 %v301, %v301
  %v1381 = vmul.f32 %v303, %v303
  %v1382 = vmul.f32 %v414, %v414
  %v1383 = vmul.f32 %v416, %v416
  %v1384 = vmul.f32 %v527, %v527
  %v1385 = vmul.f32 %v529, %v529
  %v1386 = vmul.f32 %v640, %v640
  %v1387 = vmul.f32 %v642, %v642
  %v1388 = vadd.f32 %v1260, %v1268
  %v1389 = vadd.f32 %v1388, %v1276
  %v1390 = vadd.f32 %v1389, %v1284
  %v1391 = vadd.f32 %v1390, %v1292
  %v1392 = vadd.f32 %v1391, %v1300
  %v1393 = vadd.f32 %v1392, %v1308
  %v1394 = vadd.f32 %v1393, %v1316
  %v1395 = vadd.f32 %v1394, %v1324
  %v1396 = vadd.f32 %v1395, %v1332
  %v1397 = vadd.f32 %v1396, %v1340
  %v1398 = vadd.f32 %v1397, %v1348
  %v1399 = vadd.f32 %v1398, %v1356
  %v1400 = vadd.f32 %v1399, %v1364
  %v1401 = vadd.f32 %v1400, %v1372
  %v1402 = vadd.f32 %v1401, %v1380
  %v1403 = vrot.slane %v1402, 4
  %v1404 = vadd.f32 %v1402, %v1403
  %v1405 = vrot.slane %v1404, 2
  %v1406 = vadd.f32 %v1404, %v1405
  %v1407 = vrot.slane %v1406, 1
  %v1408 = vadd.f32 %v1406, %v1407
  %v1409 = vadd.f32 %v1261, %v1269
  %v1410 = vadd.f32 %v1409, %v1277
  %v1411 = vadd.f32 %v1410, %v1285
  %v1412 = vadd.f32 %v1411, %v1293
  %v1413 = vadd.f32 %v1412, %v1301
  %v1414 = vadd.f32 %v1413, %v1309
  %v1415 = vadd.f32 %v1414, %v1317
  %v1416 = vadd.f32 %v1415, %v1325
  %v1417 = vadd.f32 %v1416, %v1333
  %v1418 = vadd.f32 %v1417, %v1341
  %v1419 = vadd.f32 %v1418, %v1349
  %v1420 = vadd.f32 %v1419, %v1357
  %v1421 = vadd.f32 %v1420, %v1365
  %v1422 = vadd.f32 %v1421, %v1373
  %v1423 = vadd.f32 %v1422, %v1381
  %v1424 = vrot.slane %v1423, 4
  %v1425 = vadd.f32 %v1423, %v1424
  %v1426 = vrot.slane %v1425, 2
  %v1427 = vadd.f32 %v1425, %v1426
  %v1428 = vrot.slane %v1427, 1
  %v1429 = vadd.f32 %v1427, %v1428
  %v1430 = vadd.f32 %v1262, %v1270
  %v1431 = vadd.f32 %v1430, %v1278
  %v1432 = vadd.f32 %v1431, %v1286
  %v1433 = vadd.f32 %v1432, %v1294
  %v1434 = vadd.f32 %v1433, %v1302
  %v1435 = vadd.f32 %v1434, %v1310
  %v1436 = vadd.f32 %v1435, %v1318
  %v1437 = vadd.f32 %v1436, %v1326
  %v1438 = vadd.f32 %v1437, %v1334
  %v1439 = vadd.f32 %v1438, %v1342
  %v1440 = vadd.f32 %v1439, %v1350
  %v1441 = vadd.f32 %v1440, %v1358
  %v1442 = vadd.f32 %v1441, %v1366
  %v1443 = vadd.f32 %v1442, %v1374
  %v1444 = vadd.f32 %v1443, %v1382
  %v1445 = vrot.slane %v1444, 4
  %v1446 = vadd.f32 %v1444, %v1445
  %v1447 = vrot.slane %v1446, 2
  %v1448 = vadd.f32 %v1446, %v1447
  %v1449 = vrot.slane %v1448, 1
  %v1450 = vadd.f32 %v1448, %v1449
  %v1451 = vadd.f32 %v1263, %v1271
  %v1452 = vadd.f32 %v1451, %v1279
  %v1453 = vadd.f32 %v1452, %v1287
  %v1454 = vadd.f32 %v1453, %v1295
  %v1455 = vadd.f32 %v1454, %v1303
  %v1456 = vadd.f32 %v1455, %v1311
  %v1457 = vadd.f32 %v1456, %v1319
  %v1458 = vadd.f32 %v1457, %v1327
  %v1459 = vadd.f32 %v1458, %v1335
  %v1460 = vadd.f32 %v1459, %v1343
  %v1461 = vadd.f32 %v1460, %v1351
  %v1462 = vadd.f32 %v1461, %v1359
  %v1463 = vadd.f32 %v1462, %v1367
  %v1464 = vadd.f32 %v1463, %v1375
  %v1465 = vadd.f32 %v1464, %v1383
  %v1466 = vrot.slane %v1465, 4
  %v1467 = vadd.f32 %v1465, %v1466
  %v1468 = vrot.slane %v1467, 2
  %v1469 = vadd.f32 %v1467, %v1468
  %v1470 = vrot.slane %v1469, 1
  %v1471 = vadd.f32 %v1469, %v1470
  %v1472 = vadd.f32 %v1264, %v1272
  %v1473 = vadd.f32 %v1472, %v1280
  %v1474 = vadd.f32 %v1473, %v1288
  %v1475 = vadd.f32 %v1474, %v1296
  %v1476 = vadd.f32 %v1475, %v1304
  %v1477 = vadd.f32 %v1476, %v1312
  %v1478 = vadd.f32 %v1477, %v1320
  %v1479 = vadd.f32 %v1478, %v1328
  %v1480 = vadd.f32 %v1479, %v1336
  %v1481 = vadd.f32 %v1480, %v1344
  %v1482 = vadd.f32 %v1481, %v1352
  %v1483 = vadd.f32 %v1482, %v1360
  %v1484 = vadd.f32 %v1483, %v1368
  %v1485 = vadd.f32 %v1484, %v1376
  %v1486 = vadd.f32 %v1485, %v1384
  %v1487 = vrot.slane %v1486, 4
  %v1488 = vadd.f32 %v1486, %v1487
  %v1489 = vrot.slane %v1488, 2
  %v1490 = vadd.f32 %v1488, %v1489
  %v1491 = vrot.slane %v1490, 1
  %v1492 = vadd.f32 %v1490, %v1491
  %v1493 = vadd.f32 %v1265, %v1273
  %v1494 = vadd.f32 %v1493, %v1281
  %v1495 = vadd.f32 %v1494, %v1289
  %v1496 = vadd.f32 %v1495, %v1297
  %v1497 = vadd.f32 %v1496, %v1305
  %v1498 = vadd.f32 %v1497, %v1313
  %v1499 = vadd.f32 %v1498, %v1321
  %v1500 = vadd.f32 %v1499, %v1329
  %v1501 = vadd.f32 %v1500, %v1337
  %v1502 = vadd.f32 %v1501, %v1345
  %v1503 = vadd.f32 %v1502, %v1353
  %v1504 = vadd.f32 %v1503, %v1361
  %v1505 = vadd.f32 %v1504, %v1369
  %v1506 = vadd.f32 %v1505, %v1377
  %v1507 = vadd.f32 %v1506, %v1385
  %v1508 = vrot.slane %v1507, 4
  %v1509 = vadd.f32 %v1507, %v1508
  %v1510 = vrot.slane %v1509, 2
  %v1511 = vadd.f32 %v1509, %v1510
  %v1512 = vrot.slane %v1511, 1
  %v1513 = vadd.f32 %v1511, %v1512
  %v1514 = vadd.f32 %v1266, %v1274
  %v1515 = vadd.f32 %v1514, %v1282
  %v1516 = vadd.f32 %v1515, %v1290
  %v1517 = vadd.f32 %v1516, %v1298
  %v1518 = vadd.f32 %v1517, %v1306
  %v1519 = vadd.f32 %v1518, %v1314
  %v1520 = vadd.f32 %v1519, %v1322
  %v1521 = vadd.f32 %v1520, %v1330
  %v1522 = vadd.f32 %v1521, %v1338
  %v1523 = vadd.f32 %v1522, %v1346
  %v1524 = vadd.f32 %v1523, %v1354
  %v1525 = vadd.f32 %v1524, %v1362
  %v1526 = vadd.f32 %v1525, %v1370
  %v1527 = vadd.f32 %v1526, %v1378
  %v1528 = vadd.f32 %v1527, %v1386
  %v1529 = vrot.slane %v1528, 4
  %v1530 = vadd.f32 %v1528, %v1529
  %v1531 = vrot.slane %v1530, 2
  %v1532 = vadd.f32 %v1530, %v1531
  %v1533 = vrot.slane %v1532, 1
  %v1534 = vadd.f32 %v1532, %v1533
  %v1535 = vadd.f32 %v1267, %v1275
  %v1536 = vadd.f32 %v1535, %v1283
  %v1537 = vadd.f32 %v1536, %v1291
  %v1538 = vadd.f32 %v1537, %v1299
  %v1539 = vadd.f32 %v1538, %v1307
  %v1540 = vadd.f32 %v1539, %v1315
  %v1541 = vadd.f32 %v1540, %v1323
  %v1542 = vadd.f32 %v1541, %v1331
  %v1543 = vadd.f32 %v1542, %v1339
  %v1544 = vadd.f32 %v1543, %v1347
  %v1545 = vadd.f32 %v1544, %v1355
  %v1546 = vadd.f32 %v1545, %v1363
  %v1547 = vadd.f32 %v1546, %v1371
  %v1548 = vadd.f32 %v1547, %v1379
  %v1549 = vadd.f32 %v1548, %v1387
  %v1550 = vrot.slane %v1549, 4
  %v1551 = vadd.f32 %v1549, %v1550
  %v1552 = vrot.slane %v1551, 2
  %v1553 = vadd.f32 %v1551, %v1552
  %v1554 = vrot.slane %v1553, 1
  %v1555 = vadd.f32 %v1553, %v1554
  %v1556 = vlaneseq
  %v1557 = vshrl.u32 %v1556, 7
  %vm1558 = vcmp.eq.s32.totalorder %v1557, 0
  %vm1559 = vcmp.eq.s32.totalorder %v1557, 1
  %v1560 = vsel %vm1559, %v1408, 0.0
  %v1561 = vsel %vm1559, %v1429, 0.0
  %v1562 = vsel %vm1559, %v1450, 0.0
  %v1563 = vsel %vm1559, %v1471, 0.0
  %v1564 = vsel %vm1559, %v1492, 0.0
  %v1565 = vsel %vm1559, %v1513, 0.0
  %v1566 = vsel %vm1559, %v1534, 0.0
  %v1567 = vsel %vm1559, %v1555, 0.0
  %v1568 = vsel %vm1558, %v1112, %v1560
  %v1569 = vsel %vm1558, %v1133, %v1561
  %v1570 = vsel %vm1558, %v1154, %v1562
  %v1571 = vsel %vm1558, %v1175, %v1563
  %v1572 = vsel %vm1558, %v1196, %v1564
  %v1573 = vsel %vm1558, %v1217, %v1565
  %v1574 = vsel %vm1558, %v1238, %v1566
  %v1575 = vsel %vm1558, %v1259, %v1567
  %1576 = vst [vmem:[%s3] sm:$0xff] %v1568
  %1577 = vst [vmem:[%s3 + $0x8] sm:$0xff] %v1569
  %1578 = vst [vmem:[%s3 + $0x10] sm:$0xff] %v1570
  %1579 = vst [vmem:[%s3 + $0x18] sm:$0xff] %v1571
  %1580 = vst [vmem:[%s3 + $0x20] sm:$0xff] %v1572
  %1581 = vst [vmem:[%s3 + $0x28] sm:$0xff] %v1573
  %1582 = vst [vmem:[%s3 + $0x30] sm:$0xff] %v1574
  %1583 = vst [vmem:[%s3 + $0x38] sm:$0xff] %v1575
  // Predicated region
  $region10: #{generator_forward.9} parent=0 // pred_check
    _
  $region11: #{generator_forward.9} parent=0 // pred_check_branch
    %1585 = sbr.rel (0) target = $region13
  $region12: #{generator_forward.9} parent=0 // pred_region
    _
  $region13: #{generator_forward.9} parent=0 // pred_fallthru
    _
  // Predicated region
  $region14: #{generator_forward.9} parent=0 // pred_check
    _
  $region15: #{generator_forward.9} parent=0 // pred_check_branch
    %1587 = sbr.rel (0) target = $region17
  $region16: #{generator_forward.9} parent=0 // pred_region
    _
  $region17: #{generator_forward.9} parent=0 // pred_fallthru
    _
  // Predicated region
  $region18: #{generator_forward.9} parent=0 // pred_check
    _
  $region19: #{generator_forward.9} parent=0 // pred_check_branch
    %1589 = sbr.rel (0) target = $region21
  $region20: #{generator_forward.9} parent=0 // pred_region
    _
  $region21: #{generator_forward.9} parent=0 // pred_fallthru
    _
  // Predicated region
  $region22: #{generator_forward.9} parent=0 // pred_check
    _
  $region23: #{generator_forward.9} parent=0 // pred_check_branch
    %1591 = sbr.rel (0) target = $region25
  $region24: #{generator_forward.9} parent=0 // pred_region
    _
  $region25: #{generator_forward.9} parent=0 // pred_fallthru
    _

// kernel: generator_forward.11
$region0: #{generator_forward.11}
  #allocation0 [shape = 'u32[]', space=smem, size = 0x4, offset = 0x4, fixed_abs, tag = 'smem constant byte address 0x4 - core index']
  #allocation1 [shape = 'u32[144,128]{1,0:T(1,128)}', space=vmem, size = 0x12000, scoped, tag = 'internal scratch']
  %s0 = inlined_call_operand.vmem [shape: bf16[128,256], index: 0, kind: input, shape index: {}]
  %s1 = inlined_call_operand.vmem [shape: bf16[256,128], index: 1, kind: input, shape index: {}]
  %s2 = inlined_call_operand.vmem [shape: bf16[128,128], index: 2, kind: output, shape index: {0}]
  %s3 = inlined_call_operand.vmem [shape: f32[8,128], index: 3, kind: output, shape index: {1}]
  %4 = xla_tuple %s2, %s3
  %s5 = sld [smem:[#allocation0]]
  $region26: #{generator_forward.11} parent=0
    _
  %s7 = ssub.s32 1, %s5
  %s8 = scalar_select 0, %s7, %s5
  // Predicated region
  $region2: #{generator_forward.11} parent=0 // pred_check
    _
  $region3: #{generator_forward.11} parent=0 // pred_check_branch
    %10 = sbr.rel (0) target = $region5
  $region4: #{generator_forward.11} parent=0 // pred_region
    _
  $region5: #{generator_forward.11} parent=0 // pred_fallthru
    _
  // Predicated region
  $region6: #{generator_forward.11} parent=0 // pred_check
    _
  $region7: #{generator_forward.11} parent=0 // pred_check_branch
    %12 = sbr.rel (0) target = $region9
  $region8: #{generator_forward.11} parent=0 // pred_region
    _
  $region9: #{generator_forward.11} parent=0 // pred_fallthru
    _
  %v14 = vld [vmem:[%s0] sm:$0xff]
  %v15 = vld [vmem:[%s0 + $0x8] sm:$0xff]
  %v16 = vld [vmem:[%s0 + $0x10] sm:$0xff]
  %v17 = vld [vmem:[%s0 + $0x18] sm:$0xff]
  %v18 = vld [vmem:[%s0 + $0x20] sm:$0xff]
  %v19 = vld [vmem:[%s0 + $0x28] sm:$0xff]
  %v20 = vld [vmem:[%s0 + $0x30] sm:$0xff]
  %v21 = vld [vmem:[%s0 + $0x38] sm:$0xff]
  %v22 = vld [vmem:[%s0 + $0x40] sm:$0xff]
  %v23 = vld [vmem:[%s0 + $0x48] sm:$0xff]
  %v24 = vld [vmem:[%s0 + $0x50] sm:$0xff]
  %v25 = vld [vmem:[%s0 + $0x58] sm:$0xff]
  %v26 = vld [vmem:[%s0 + $0x60] sm:$0xff]
  %v27 = vld [vmem:[%s0 + $0x68] sm:$0xff]
  %v28 = vld [vmem:[%s0 + $0x70] sm:$0xff]
  %v29 = vld [vmem:[%s0 + $0x78] sm:$0xff]
  %v30 = vld [vmem:[%s1] sm:$0xf]
  %v31 = vld [vmem:[%s1 + $0x4] sm:$0xf]
  %v32 = vld [vmem:[%s1 + $0x8] sm:$0xf]
  %v33 = vld [vmem:[%s1 + $0xc] sm:$0xf]
  %v34 = vld [vmem:[%s1 + $0x10] sm:$0xf]
  %v35 = vld [vmem:[%s1 + $0x14] sm:$0xf]
  %v36 = vld [vmem:[%s1 + $0x18] sm:$0xf]
  %v37 = vld [vmem:[%s1 + $0x1c] sm:$0xf]
  %v38 = vld [vmem:[%s1 + $0x20] sm:$0xf]
  %v39 = vld [vmem:[%s1 + $0x24] sm:$0xf]
  %v40 = vld [vmem:[%s1 + $0x28] sm:$0xf]
  %v41 = vld [vmem:[%s1 + $0x2c] sm:$0xf]
  %v42 = vld [vmem:[%s1 + $0x30] sm:$0xf]
  %v43 = vld [vmem:[%s1 + $0x34] sm:$0xf]
  %v44 = vld [vmem:[%s1 + $0x38] sm:$0xf]
  %v45 = vld [vmem:[%s1 + $0x3c] sm:$0xf]
  %v46 = vld [vmem:[%s1 + $0x40] sm:$0xf]
  %v47 = vld [vmem:[%s1 + $0x44] sm:$0xf]
  %v48 = vld [vmem:[%s1 + $0x48] sm:$0xf]
  %v49 = vld [vmem:[%s1 + $0x4c] sm:$0xf]
  %v50 = vld [vmem:[%s1 + $0x50] sm:$0xf]
  %v51 = vld [vmem:[%s1 + $0x54] sm:$0xf]
  %v52 = vld [vmem:[%s1 + $0x58] sm:$0xf]
  %v53 = vld [vmem:[%s1 + $0x5c] sm:$0xf]
  %v54 = vld [vmem:[%s1 + $0x60] sm:$0xf]
  %v55 = vld [vmem:[%s1 + $0x64] sm:$0xf]
  %v56 = vld [vmem:[%s1 + $0x68] sm:$0xf]
  %v57 = vld [vmem:[%s1 + $0x6c] sm:$0xf]
  %v58 = vld [vmem:[%s1 + $0x70] sm:$0xf]
  %v59 = vld [vmem:[%s1 + $0x74] sm:$0xf]
  %v60 = vld [vmem:[%s1 + $0x78] sm:$0xf]
  %v61 = vld [vmem:[%s1 + $0x7c] sm:$0xf]
  %v78 = vunpack.c.l.b16 %v14
  %v79 = vunpack.c.h.b16 %v14
  %v80 = vunpack.c.l.b16 %v15
  %v81 = vunpack.c.h.b16 %v15
  %v82 = vunpack.c.l.b16 %v16
  %v83 = vunpack.c.h.b16 %v16
  %v84 = vunpack.c.l.b16 %v17
  %v85 = vunpack.c.h.b16 %v17
  %v86 = vunpack.c.l.b16 %v18
  %v87 = vunpack.c.h.b16 %v18
  %v88 = vunpack.c.l.b16 %v19
  %v89 = vunpack.c.h.b16 %v19
  %v90 = vunpack.c.l.b16 %v20
  %v91 = vunpack.c.h.b16 %v20
  %v92 = vunpack.c.l.b16 %v21
  %v93 = vunpack.c.h.b16 %v21
  %v94 = vunpack.c.l.b16 %v22
  %v95 = vunpack.c.h.b16 %v22
  %v96 = vunpack.c.l.b16 %v23
  %v97 = vunpack.c.h.b16 %v23
  %v98 = vunpack.c.l.b16 %v24
  %v99 = vunpack.c.h.b16 %v24
  %v100 = vunpack.c.l.b16 %v25
  %v101 = vunpack.c.h.b16 %v25
  %v102 = vunpack.c.l.b16 %v26
  %v103 = vunpack.c.h.b16 %v26
  %v104 = vunpack.c.l.b16 %v27
  %v105 = vunpack.c.h.b16 %v27
  %v106 = vunpack.c.l.b16 %v28
  %v107 = vunpack.c.h.b16 %v28
  %v108 = vunpack.c.l.b16 %v29
  %v109 = vunpack.c.h.b16 %v29
  %v110 = vpack.c.b16 %v80, %v78
  %v111 = vpack.c.b16 %v81, %v79
  %v112 = vpack.c.b16 %v84, %v82
  %v113 = vpack.c.b16 %v85, %v83
  %v114 = vpack.c.b16 %v88, %v86
  %v115 = vpack.c.b16 %v89, %v87
  %v116 = vpack.c.b16 %v92, %v90
  %v117 = vpack.c.b16 %v93, %v91
  %v118 = vpack.c.b16 %v96, %v94
  %v119 = vpack.c.b16 %v97, %v95
  %v120 = vpack.c.b16 %v100, %v98
  %v121 = vpack.c.b16 %v101, %v99
  %v122 = vpack.c.b16 %v104, %v102
  %v123 = vpack.c.b16 %v105, %v103
  %v124 = vpack.c.b16 %v108, %v106
  %v125 = vpack.c.b16 %v109, %v107
  %v174 = vunpack.c.l.b16 %v30
  %v175 = vunpack.c.l.b16 %v31
  %v176 = vunpack.c.l.b16 %v32
  %v177 = vunpack.c.l.b16 %v33
  %v178 = vunpack.c.l.b16 %v34
  %v179 = vunpack.c.l.b16 %v35
  %v180 = vunpack.c.l.b16 %v36
  %v181 = vunpack.c.l.b16 %v37
  %v182 = vunpack.c.l.b16 %v38
  %v183 = vunpack.c.l.b16 %v39
  %v184 = vunpack.c.l.b16 %v40
  %v185 = vunpack.c.l.b16 %v41
  %v186 = vunpack.c.l.b16 %v42
  %v187 = vunpack.c.l.b16 %v43
  %v188 = vunpack.c.l.b16 %v44
  %v189 = vunpack.c.l.b16 %v45
  %v190 = vunpack.c.l.b16 %v46
  %v191 = vunpack.c.l.b16 %v47
  %v192 = vunpack.c.l.b16 %v48
  %v193 = vunpack.c.l.b16 %v49
  %v194 = vunpack.c.l.b16 %v50
  %v195 = vunpack.c.l.b16 %v51
  %v196 = vunpack.c.l.b16 %v52
  %v197 = vunpack.c.l.b16 %v53
  %v198 = vunpack.c.l.b16 %v54
  %v199 = vunpack.c.l.b16 %v55
  %v200 = vunpack.c.l.b16 %v56
  %v201 = vunpack.c.l.b16 %v57
  %v202 = vunpack.c.l.b16 %v58
  %v203 = vunpack.c.l.b16 %v59
  %v204 = vunpack.c.l.b16 %v60
  %v205 = vunpack.c.l.b16 %v61
  %v206 = vpack.c.b16 %v175, %v174
  %v207 = vpack.c.b16 %v177, %v176
  %v208 = vpack.c.b16 %v179, %v178
  %v209 = vpack.c.b16 %v181, %v180
  %v210 = vpack.c.b16 %v183, %v182
  %v211 = vpack.c.b16 %v185, %v184
  %v212 = vpack.c.b16 %v187, %v186
  %v213 = vpack.c.b16 %v189, %v188
  %v214 = vpack.c.b16 %v191, %v190
  %v215 = vpack.c.b16 %v193, %v192
  %v216 = vpack.c.b16 %v195, %v194
  %v217 = vpack.c.b16 %v197, %v196
  %v218 = vpack.c.b16 %v199, %v198
  %v219 = vpack.c.b16 %v201, %v200
  %v220 = vpack.c.b16 %v203, %v202
  %v221 = vpack.c.b16 %v205, %v204
  %238 = vmatprep.subr.bf16.mxu0 0
  %239 = vmatpush1.bf16.msra.mxu0 %v206
  %240 = vmatprep.subr.bf16.mxu0 0
  %241 = vmatpush1.bf16.msra.mxu0 %v207
  %242 = vmatprep.subr.bf16.mxu0 0
  %243 = vmatpush1.bf16.msra.mxu0 %v208
  %244 = vmatprep.subr.bf16.mxu0 0
  %245 = vmatpush1.bf16.msra.mxu0 %v209
  %246 = vmatprep.subr.bf16.mxu0 0
  %247 = vmatpush1.bf16.msra.mxu0 %v210
  %248 = vmatprep.subr.bf16.mxu0 0
  %249 = vmatpush1.bf16.msra.mxu0 %v211
  %250 = vmatprep.subr.bf16.mxu0 0
  %251 = vmatpush1.bf16.msra.mxu0 %v212
  %252 = vmatprep.subr.bf16.mxu0 0
  %253 = vmatpush1.bf16.msra.mxu0 %v213
  %254 = vmatprep.subr.bf16.mxu0 0
  %255 = vmatpush1.bf16.msra.mxu0 %v214
  %256 = vmatprep.subr.bf16.mxu0 0
  %257 = vmatpush1.bf16.msra.mxu0 %v215
  %258 = vmatprep.subr.bf16.mxu0 0
  %259 = vmatpush1.bf16.msra.mxu0 %v216
  %260 = vmatprep.subr.bf16.mxu0 0
  %261 = vmatpush1.bf16.msra.mxu0 %v217
  %262 = vmatprep.subr.bf16.mxu0 0
  %263 = vmatpush1.bf16.msra.mxu0 %v218
  %264 = vmatprep.subr.bf16.mxu0 0
  %265 = vmatpush1.bf16.msra.mxu0 %v219
  %266 = vmatprep.subr.bf16.mxu0 0
  %267 = vmatpush1.bf16.msra.mxu0 %v220
  %268 = vmatprep.subr.bf16.mxu0 0
  %269 = vmatpush1.bf16.msra.mxu0 %v221
  %270 = vmatprep.mubr.bf16.mxu0 %v111
  %271 = vmatmul.mubr.bf16.gmra.mrb[0].mxu0 %v110
  %v272 = vpop.f32.mrb[0].mxu0
  %v273 = vadd.f32 0.0, %v272
  %v274 = vpop.f32.mrb[0].mxu0
  %v275 = vpop.f32.mrb[0].mxu0
  %v276 = vadd.f32 0.0, %v275
  %v277 = vpop.f32.mrb[0].mxu0
  %278 = vmatprep.mubr.bf16.mxu0 %v113
  %279 = vmatmul.mubr.bf16.gmra.mrb[0].mxu0 %v112
  %v280 = vpop.f32.mrb[0].mxu0
  %v281 = vadd.f32 0.0, %v280
  %v282 = vpop.f32.mrb[0].mxu0
  %v283 = vpop.f32.mrb[0].mxu0
  %v284 = vadd.f32 0.0, %v283
  %v285 = vpop.f32.mrb[0].mxu0
  %286 = vmatprep.mubr.bf16.mxu0 %v115
  %287 = vmatmul.mubr.bf16.gmra.mrb[0].mxu0 %v114
  %v288 = vpop.f32.mrb[0].mxu0
  %v289 = vadd.f32 0.0, %v288
  %v290 = vpop.f32.mrb[0].mxu0
  %v291 = vpop.f32.mrb[0].mxu0
  %v292 = vadd.f32 0.0, %v291
  %v293 = vpop.f32.mrb[0].mxu0
  %294 = vmatprep.mubr.bf16.mxu0 %v117
  %295 = vmatmul.mubr.bf16.gmra.mrb[0].mxu0 %v116
  %v296 = vpop.f32.mrb[0].mxu0
  %v297 = vadd.f32 0.0, %v296
  %v298 = vpop.f32.mrb[0].mxu0
  %v299 = vpop.f32.mrb[0].mxu0
  %v300 = vadd.f32 0.0, %v299
  %v301 = vpop.f32.mrb[0].mxu0
  %302 = vmatprep.mubr.bf16.mxu0 %v119
  %303 = vmatmul.mubr.bf16.gmra.mrb[0].mxu0 %v118
  %v304 = vpop.f32.mrb[0].mxu0
  %v305 = vadd.f32 0.0, %v304
  %v306 = vpop.f32.mrb[0].mxu0
  %v307 = vpop.f32.mrb[0].mxu0
  %v308 = vadd.f32 0.0, %v307
  %v309 = vpop.f32.mrb[0].mxu0
  %310 = vmatprep.mubr.bf16.mxu0 %v121
  %311 = vmatmul.mubr.bf16.gmra.mrb[0].mxu0 %v120
  %v312 = vpop.f32.mrb[0].mxu0
  %v313 = vadd.f32 0.0, %v312
  %v314 = vpop.f32.mrb[0].mxu0
  %v315 = vpop.f32.mrb[0].mxu0
  %v316 = vadd.f32 0.0, %v315
  %v317 = vpop.f32.mrb[0].mxu0
  %318 = vmatprep.mubr.bf16.mxu0 %v123
  %319 = vmatmul.mubr.bf16.gmra.mrb[0].mxu0 %v122
  %v320 = vpop.f32.mrb[0].mxu0
  %v321 = vadd.f32 0.0, %v320
  %v322 = vpop.f32.mrb[0].mxu0
  %v323 = vpop.f32.mrb[0].mxu0
  %v324 = vadd.f32 0.0, %v323
  %v325 = vpop.f32.mrb[0].mxu0
  %326 = vmatprep.mubr.bf16.mxu0 %v125
  %327 = vmatmul.mubr.bf16.gmra.mrb[0].mxu0 %v124
  %v328 = vpop.f32.mrb[0].mxu0
  %v329 = vadd.f32 0.0, %v328
  %v330 = vpop.f32.mrb[0].mxu0
  %v331 = vpop.f32.mrb[0].mxu0
  %v332 = vadd.f32 0.0, %v331
  %v333 = vpop.f32.mrb[0].mxu0
  %334 = vdwg.mxu0
  %v335 = vpack.c.bf16 %v276, %v273
  %v336 = vpack.c.bf16 %v284, %v281
  %v337 = vpack.c.bf16 %v292, %v289
  %v338 = vpack.c.bf16 %v300, %v297
  %v339 = vpack.c.bf16 %v308, %v305
  %v340 = vpack.c.bf16 %v316, %v313
  %v341 = vpack.c.bf16 %v324, %v321
  %v342 = vpack.c.bf16 %v332, %v329
  %v351 = vunpack.c.l.b16 %v335
  %v352 = vunpack.c.h.b16 %v335
  %v353 = vunpack.c.l.b16 %v336
  %v354 = vunpack.c.h.b16 %v336
  %v355 = vunpack.c.l.b16 %v337
  %v356 = vunpack.c.h.b16 %v337
  %v357 = vunpack.c.l.b16 %v338
  %v358 = vunpack.c.h.b16 %v338
  %v359 = vunpack.c.l.b16 %v339
  %v360 = vunpack.c.h.b16 %v339
  %v361 = vunpack.c.l.b16 %v340
  %v362 = vunpack.c.h.b16 %v340
  %v363 = vunpack.c.l.b16 %v341
  %v364 = vunpack.c.h.b16 %v341
  %v365 = vunpack.c.l.b16 %v342
  %v366 = vunpack.c.h.b16 %v342
  %v367 = vpack.c.b16 %v351, %v351
  %v368 = vpack.c.b16 %v352, %v352
  %v369 = vpack.c.b16 %v353, %v353
  %v370 = vpack.c.b16 %v354, %v354
  %v371 = vpack.c.b16 %v355, %v355
  %v372 = vpack.c.b16 %v356, %v356
  %v373 = vpack.c.b16 %v357, %v357
  %v374 = vpack.c.b16 %v358, %v358
  %v375 = vpack.c.b16 %v359, %v359
  %v376 = vpack.c.b16 %v360, %v360
  %v377 = vpack.c.b16 %v361, %v361
  %v378 = vpack.c.b16 %v362, %v362
  %v379 = vpack.c.b16 %v363, %v363
  %v380 = vpack.c.b16 %v364, %v364
  %v381 = vpack.c.b16 %v365, %v365
  %v382 = vpack.c.b16 %v366, %v366
  %399 = vst [vmem:[%s2] sm:$0xf] %v367
  %400 = vst [vmem:[%s2 + $0x4] sm:$0xf] %v368
  %401 = vst [vmem:[%s2 + $0x8] sm:$0xf] %v369
  %402 = vst [vmem:[%s2 + $0xc] sm:$0xf] %v370
  %403 = vst [vmem:[%s2 + $0x10] sm:$0xf] %v371
  %404 = vst [vmem:[%s2 + $0x14] sm:$0xf] %v372
  %405 = vst [vmem:[%s2 + $0x18] sm:$0xf] %v373
  %406 = vst [vmem:[%s2 + $0x1c] sm:$0xf] %v374
  %407 = vst [vmem:[%s2 + $0x20] sm:$0xf] %v375
  %408 = vst [vmem:[%s2 + $0x24] sm:$0xf] %v376
  %409 = vst [vmem:[%s2 + $0x28] sm:$0xf] %v377
  %410 = vst [vmem:[%s2 + $0x2c] sm:$0xf] %v378
  %411 = vst [vmem:[%s2 + $0x30] sm:$0xf] %v379
  %412 = vst [vmem:[%s2 + $0x34] sm:$0xf] %v380
  %413 = vst [vmem:[%s2 + $0x38] sm:$0xf] %v381
  %414 = vst [vmem:[%s2 + $0x3c] sm:$0xf] %v382
  %v415 = vadd.f32 %v273, %v276
  %v416 = vadd.f32 %v415, %v281
  %v417 = vadd.f32 %v416, %v284
  %v418 = vadd.f32 %v417, %v289
  %v419 = vadd.f32 %v418, %v292
  %v420 = vadd.f32 %v419, %v297
  %v421 = vadd.f32 %v420, %v300
  %v422 = vadd.f32 %v421, %v305
  %v423 = vadd.f32 %v422, %v308
  %v424 = vadd.f32 %v423, %v313
  %v425 = vadd.f32 %v424, %v316
  %v426 = vadd.f32 %v425, %v321
  %v427 = vadd.f32 %v426, %v324
  %v428 = vadd.f32 %v427, %v329
  %v429 = vadd.f32 %v428, %v332
  %v430 = vrot.slane %v429, 4
  %v431 = vadd.f32 %v429, %v430
  %v432 = vrot.slane %v431, 2
  %v433 = vadd.f32 %v431, %v432
  %v434 = vrot.slane %v433, 1
  %v435 = vadd.f32 %v433, %v434
  %v436 = vmul.f32 %v273, %v273
  %v437 = vmul.f32 %v276, %v276
  %v438 = vmul.f32 %v281, %v281
  %v439 = vmul.f32 %v284, %v284
  %v440 = vmul.f32 %v289, %v289
  %v441 = vmul.f32 %v292, %v292
  %v442 = vmul.f32 %v297, %v297
  %v443 = vmul.f32 %v300, %v300
  %v444 = vmul.f32 %v305, %v305
  %v445 = vmul.f32 %v308, %v308
  %v446 = vmul.f32 %v313, %v313
  %v447 = vmul.f32 %v316, %v316
  %v448 = vmul.f32 %v321, %v321
  %v449 = vmul.f32 %v324, %v324
  %v450 = vmul.f32 %v329, %v329
  %v451 = vmul.f32 %v332, %v332
  %v452 = vadd.f32 %v436, %v437
  %v453 = vadd.f32 %v452, %v438
  %v454 = vadd.f32 %v453, %v439
  %v455 = vadd.f32 %v454, %v440
  %v456 = vadd.f32 %v455, %v441
  %v457 = vadd.f32 %v456, %v442
  %v458 = vadd.f32 %v457, %v443
  %v459 = vadd.f32 %v458, %v444
  %v460 = vadd.f32 %v459, %v445
  %v461 = vadd.f32 %v460, %v446
  %v462 = vadd.f32 %v461, %v447
  %v463 = vadd.f32 %v462, %v448
  %v464 = vadd.f32 %v463, %v449
  %v465 = vadd.f32 %v464, %v450
  %v466 = vadd.f32 %v465, %v451
  %v467 = vrot.slane %v466, 4
  %v468 = vadd.f32 %v466, %v467
  %v469 = vrot.slane %v468, 2
  %v470 = vadd.f32 %v468, %v469
  %v471 = vrot.slane %v470, 1
  %v472 = vadd.f32 %v470, %v471
  %v473 = vlaneseq
  %v474 = vshrl.u32 %v473, 7
  %vm475 = vcmp.eq.s32.totalorder %v474, 0
  %vm476 = vcmp.eq.s32.totalorder %v474, 1
  %v477 = vsel %vm476, %v472, 0.0
  %v478 = vsel %vm475, %v435, %v477
  %479 = vst [vmem:[%s3] sm:$0xff] %v478
  // Predicated region
  $region10: #{generator_forward.11} parent=0 // pred_check
    _
  $region11: #{generator_forward.11} parent=0 // pred_check_branch
    %481 = sbr.rel (0) target = $region13
  $region12: #{generator_forward.11} parent=0 // pred_region
    _
  $region13: #{generator_forward.11} parent=0 // pred_fallthru
    _
  // Predicated region
  $region14: #{generator_forward.11} parent=0 // pred_check
    _
  $region15: #{generator_forward.11} parent=0 // pred_check_branch
    %483 = sbr.rel (0) target = $region17
  $region16: #{generator_forward.11} parent=0 // pred_region
    _
  $region17: #{generator_forward.11} parent=0 // pred_fallthru
    _
  // Predicated region
  $region18: #{generator_forward.11} parent=0 // pred_check
    _
  $region19: #{generator_forward.11} parent=0 // pred_check_branch
    %485 = sbr.rel (0) target = $region21
  $region20: #{generator_forward.11} parent=0 // pred_region
    _
  $region21: #{generator_forward.11} parent=0 // pred_fallthru
    _
  // Predicated region
  $region22: #{generator_forward.11} parent=0 // pred_check
    _
  $region23: #{generator_forward.11} parent=0 // pred_check_branch
    %487 = sbr.rel (0) target = $region25
  $region24: #{generator_forward.11} parent=0 // pred_region
    _
  $region25: #{generator_forward.11} parent=0 // pred_fallthru
    _

// kernel: generator_forward.12
$region0: #{generator_forward.12}
  #allocation0 [shape = 'u32[]', space=smem, size = 0x4, offset = 0x4, fixed_abs, tag = 'smem constant byte address 0x4 - core index']
  #allocation1 [shape = 'u32[144,128]{1,0:T(1,128)}', space=vmem, size = 0x12000, scoped, tag = 'internal scratch']
  %s0 = inlined_call_operand.vmem [shape: bf16[128,128], index: 0, kind: input, shape index: {}]
  %s1 = inlined_call_operand.vmem [shape: f32[1,128], index: 1, kind: input, shape index: {}]
  %s2 = inlined_call_operand.vmem [shape: f32[1,128], index: 2, kind: input, shape index: {}]
  %s3 = inlined_call_operand.vmem [shape: bf16[128,128], index: 3, kind: output, shape index: {}]
  %s4 = sld [smem:[#allocation0]]
  $region22: #{generator_forward.12} parent=0
    _
  %s6 = ssub.s32 1, %s4
  %s7 = scalar_select 0, %s6, %s4
  // Predicated region
  $region2: #{generator_forward.12} parent=0 // pred_check
    _
  $region3: #{generator_forward.12} parent=0 // pred_check_branch
    %9 = sbr.rel (0) target = $region5
  $region4: #{generator_forward.12} parent=0 // pred_region
    _
  $region5: #{generator_forward.12} parent=0 // pred_fallthru
    _
  // Predicated region
  $region6: #{generator_forward.12} parent=0 // pred_check
    _
  $region7: #{generator_forward.12} parent=0 // pred_check_branch
    %11 = sbr.rel (0) target = $region9
  $region8: #{generator_forward.12} parent=0 // pred_region
    _
  $region9: #{generator_forward.12} parent=0 // pred_fallthru
    _
  // Predicated region
  $region10: #{generator_forward.12} parent=0 // pred_check
    _
  $region11: #{generator_forward.12} parent=0 // pred_check_branch
    %13 = sbr.rel (0) target = $region13
  $region12: #{generator_forward.12} parent=0 // pred_region
    _
  $region13: #{generator_forward.12} parent=0 // pred_fallthru
    _
  %v14 = vld [vmem:[%s0] sm:$0xf]
  %v15 = vld [vmem:[%s0 + $0x4] sm:$0xf]
  %v16 = vld [vmem:[%s0 + $0x8] sm:$0xf]
  %v17 = vld [vmem:[%s0 + $0xc] sm:$0xf]
  %v18 = vld [vmem:[%s0 + $0x10] sm:$0xf]
  %v19 = vld [vmem:[%s0 + $0x14] sm:$0xf]
  %v20 = vld [vmem:[%s0 + $0x18] sm:$0xf]
  %v21 = vld [vmem:[%s0 + $0x1c] sm:$0xf]
  %v22 = vld [vmem:[%s0 + $0x20] sm:$0xf]
  %v23 = vld [vmem:[%s0 + $0x24] sm:$0xf]
  %v24 = vld [vmem:[%s0 + $0x28] sm:$0xf]
  %v25 = vld [vmem:[%s0 + $0x2c] sm:$0xf]
  %v26 = vld [vmem:[%s0 + $0x30] sm:$0xf]
  %v27 = vld [vmem:[%s0 + $0x34] sm:$0xf]
  %v28 = vld [vmem:[%s0 + $0x38] sm:$0xf]
  %v29 = vld [vmem:[%s0 + $0x3c] sm:$0xf]
  %v30 = vunpack.c.l.bf16 %v14
  %v31 = vunpack.c.l.bf16 %v15
  %v32 = vunpack.c.l.bf16 %v16
  %v33 = vunpack.c.l.bf16 %v17
  %v34 = vunpack.c.l.bf16 %v18
  %v35 = vunpack.c.l.bf16 %v19
  %v36 = vunpack.c.l.bf16 %v20
  %v37 = vunpack.c.l.bf16 %v21
  %v38 = vunpack.c.l.bf16 %v22
  %v39 = vunpack.c.l.bf16 %v23
  %v40 = vunpack.c.l.bf16 %v24
  %v41 = vunpack.c.l.bf16 %v25
  %v42 = vunpack.c.l.bf16 %v26
  %v43 = vunpack.c.l.bf16 %v27
  %v44 = vunpack.c.l.bf16 %v28
  %v45 = vunpack.c.l.bf16 %v29
  %v46 = vld [vmem:[%s1] sm:$0x1]
  %v48 = vlaneseq
  %v49 = vshrl.u32 %v48, 7
  %v50 = vsub.s32 0, %v49
  %v51 = vrot.slane %v46, %v50
  %v53 = vmul.f32 %v30, %v51
  %v54 = vmul.f32 %v31, %v51
  %v55 = vmul.f32 %v32, %v51
  %v56 = vmul.f32 %v33, %v51
  %v57 = vmul.f32 %v34, %v51
  %v58 = vmul.f32 %v35, %v51
  %v59 = vmul.f32 %v36, %v51
  %v60 = vmul.f32 %v37, %v51
  %v61 = vmul.f32 %v38, %v51
  %v62 = vmul.f32 %v39, %v51
  %v63 = vmul.f32 %v40, %v51
  %v64 = vmul.f32 %v41, %v51
  %v65 = vmul.f32 %v42, %v51
  %v66 = vmul.f32 %v43, %v51
  %v67 = vmul.f32 %v44, %v51
  %v68 = vmul.f32 %v45, %v51
  %v69 = vld [vmem:[%s2] sm:$0x1]
  %v71 = vlaneseq
  %v72 = vshrl.u32 %v71, 7
  %v73 = vsub.s32 0, %v72
  %v74 = vrot.slane %v69, %v73
  %v76 = vadd.f32 %v53, %v74
  %v77 = vadd.f32 %v54, %v74
  %v78 = vadd.f32 %v55, %v74
  %v79 = vadd.f32 %v56, %v74
  %v80 = vadd.f32 %v57, %v74
  %v81 = vadd.f32 %v58, %v74
  %v82 = vadd.f32 %v59, %v74
  %v83 = vadd.f32 %v60, %v74
  %v84 = vadd.f32 %v61, %v74
  %v85 = vadd.f32 %v62, %v74
  %v86 = vadd.f32 %v63, %v74
  %v87 = vadd.f32 %v64, %v74
  %v88 = vadd.f32 %v65, %v74
  %v89 = vadd.f32 %v66, %v74
  %v90 = vadd.f32 %v67, %v74
  %v91 = vadd.f32 %v68, %v74
  %v92 = vmax.f32 %v76, 0.0
  %v93 = vmax.f32 %v77, 0.0
  %v94 = vmax.f32 %v78, 0.0
  %v95 = vmax.f32 %v79, 0.0
  %v96 = vmax.f32 %v80, 0.0
  %v97 = vmax.f32 %v81, 0.0
  %v98 = vmax.f32 %v82, 0.0
  %v99 = vmax.f32 %v83, 0.0
  %v100 = vmax.f32 %v84, 0.0
  %v101 = vmax.f32 %v85, 0.0
  %v102 = vmax.f32 %v86, 0.0
  %v103 = vmax.f32 %v87, 0.0
  %v104 = vmax.f32 %v88, 0.0
  %v105 = vmax.f32 %v89, 0.0
  %v106 = vmax.f32 %v90, 0.0
  %v107 = vmax.f32 %v91, 0.0
  %v108 = vpack.c.bf16 %v93, %v92
  %v109 = vpack.c.bf16 %v95, %v94
  %v110 = vpack.c.bf16 %v97, %v96
  %v111 = vpack.c.bf16 %v99, %v98
  %v112 = vpack.c.bf16 %v101, %v100
  %v113 = vpack.c.bf16 %v103, %v102
  %v114 = vpack.c.bf16 %v105, %v104
  %v115 = vpack.c.bf16 %v107, %v106
  %v124 = vunpack.c.l.b16 %v108
  %v125 = vunpack.c.h.b16 %v108
  %v126 = vunpack.c.l.b16 %v109
  %v127 = vunpack.c.h.b16 %v109
  %v128 = vunpack.c.l.b16 %v110
  %v129 = vunpack.c.h.b16 %v110
  %v130 = vunpack.c.l.b16 %v111
  %v131 = vunpack.c.h.b16 %v111
  %v132 = vunpack.c.l.b16 %v112
  %v133 = vunpack.c.h.b16 %v112
  %v134 = vunpack.c.l.b16 %v113
  %v135 = vunpack.c.h.b16 %v113
  %v136 = vunpack.c.l.b16 %v114
  %v137 = vunpack.c.h.b16 %v114
  %v138 = vunpack.c.l.b16 %v115
  %v139 = vunpack.c.h.b16 %v115
  %v140 = vpack.c.b16 %v124, %v124
  %v141 = vpack.c.b16 %v125, %v125
  %v142 = vpack.c.b16 %v126, %v126
  %v143 = vpack.c.b16 %v127, %v127
  %v144 = vpack.c.b16 %v128, %v128
  %v145 = vpack.c.b16 %v129, %v129
  %v146 = vpack.c.b16 %v130, %v130
  %v147 = vpack.c.b16 %v131, %v131
  %v148 = vpack.c.b16 %v132, %v132
  %v149 = vpack.c.b16 %v133, %v133
  %v150 = vpack.c.b16 %v134, %v134
  %v151 = vpack.c.b16 %v135, %v135
  %v152 = vpack.c.b16 %v136, %v136
  %v153 = vpack.c.b16 %v137, %v137
  %v154 = vpack.c.b16 %v138, %v138
  %v155 = vpack.c.b16 %v139, %v139
  %172 = vst [vmem:[%s3] sm:$0xf] %v140
  %173 = vst [vmem:[%s3 + $0x4] sm:$0xf] %v141
  %174 = vst [vmem:[%s3 + $0x8] sm:$0xf] %v142
  %175 = vst [vmem:[%s3 + $0xc] sm:$0xf] %v143
  %176 = vst [vmem:[%s3 + $0x10] sm:$0xf] %v144
  %177 = vst [vmem:[%s3 + $0x14] sm:$0xf] %v145
  %178 = vst [vmem:[%s3 + $0x18] sm:$0xf] %v146
  %179 = vst [vmem:[%s3 + $0x1c] sm:$0xf] %v147
  %180 = vst [vmem:[%s3 + $0x20] sm:$0xf] %v148
  %181 = vst [vmem:[%s3 + $0x24] sm:$0xf] %v149
  %182 = vst [vmem:[%s3 + $0x28] sm:$0xf] %v150
  %183 = vst [vmem:[%s3 + $0x2c] sm:$0xf] %v151
  %184 = vst [vmem:[%s3 + $0x30] sm:$0xf] %v152
  %185 = vst [vmem:[%s3 + $0x34] sm:$0xf] %v153
  %186 = vst [vmem:[%s3 + $0x38] sm:$0xf] %v154
  %187 = vst [vmem:[%s3 + $0x3c] sm:$0xf] %v155
  // Predicated region
  $region14: #{generator_forward.12} parent=0 // pred_check
    _
  $region15: #{generator_forward.12} parent=0 // pred_check_branch
    %189 = sbr.rel (0) target = $region17
  $region16: #{generator_forward.12} parent=0 // pred_region
    _
  $region17: #{generator_forward.12} parent=0 // pred_fallthru
    _
  // Predicated region
  $region18: #{generator_forward.12} parent=0 // pred_check
    _
  $region19: #{generator_forward.12} parent=0 // pred_check_branch
    %191 = sbr.rel (0) target = $region21
  $region20: #{generator_forward.12} parent=0 // pred_region
    _
  $region21: #{generator_forward.12} parent=0 // pred_fallthru
    _

// kernel: generator_forward.13
$region0: #{generator_forward.13}
  #allocation0 [shape = 'u32[]', space=smem, size = 0x4, offset = 0x4, fixed_abs, tag = 'smem constant byte address 0x4 - core index']
  #allocation1 [shape = 'u32[144,128]{1,0:T(1,128)}', space=vmem, size = 0x12000, scoped, tag = 'internal scratch']
  %s0 = inlined_call_operand.vmem [shape: bf16[256,128], index: 0, kind: input, shape index: {}]
  %s1 = inlined_call_operand.vmem [shape: bf16[128,128], index: 1, kind: input, shape index: {}]
  %s2 = inlined_call_operand.vmem [shape: bf16[256,128], index: 2, kind: output, shape index: {0}]
  %s3 = inlined_call_operand.vmem [shape: f32[8,128], index: 3, kind: output, shape index: {1}]
  %4 = xla_tuple %s2, %s3
  %s5 = sld [smem:[#allocation0]]
  $region26: #{generator_forward.13} parent=0
    _
  %s7 = ssub.s32 1, %s5
  %s8 = scalar_select 0, %s7, %s5
  // Predicated region
  $region2: #{generator_forward.13} parent=0 // pred_check
    _
  $region3: #{generator_forward.13} parent=0 // pred_check_branch
    %10 = sbr.rel (0) target = $region5
  $region4: #{generator_forward.13} parent=0 // pred_region
    _
  $region5: #{generator_forward.13} parent=0 // pred_fallthru
    _
  // Predicated region
  $region6: #{generator_forward.13} parent=0 // pred_check
    _
  $region7: #{generator_forward.13} parent=0 // pred_check_branch
    %12 = sbr.rel (0) target = $region9
  $region8: #{generator_forward.13} parent=0 // pred_region
    _
  $region9: #{generator_forward.13} parent=0 // pred_fallthru
    _
  %v14 = vld [vmem:[%s0] sm:$0xf]
  %v15 = vld [vmem:[%s0 + $0x4] sm:$0xf]
  %v16 = vld [vmem:[%s0 + $0x8] sm:$0xf]
  %v17 = vld [vmem:[%s0 + $0xc] sm:$0xf]
  %v18 = vld [vmem:[%s0 + $0x10] sm:$0xf]
  %v19 = vld [vmem:[%s0 + $0x14] sm:$0xf]
  %v20 = vld [vmem:[%s0 + $0x18] sm:$0xf]
  %v21 = vld [vmem:[%s0 + $0x1c] sm:$0xf]
  %v22 = vld [vmem:[%s0 + $0x20] sm:$0xf]
  %v23 = vld [vmem:[%s0 + $0x24] sm:$0xf]
  %v24 = vld [vmem:[%s0 + $0x28] sm:$0xf]
  %v25 = vld [vmem:[%s0 + $0x2c] sm:$0xf]
  %v26 = vld [vmem:[%s0 + $0x30] sm:$0xf]
  %v27 = vld [vmem:[%s0 + $0x34] sm:$0xf]
  %v28 = vld [vmem:[%s0 + $0x38] sm:$0xf]
  %v29 = vld [vmem:[%s0 + $0x3c] sm:$0xf]
  %v30 = vld [vmem:[%s0 + $0x40] sm:$0xf]
  %v31 = vld [vmem:[%s0 + $0x44] sm:$0xf]
  %v32 = vld [vmem:[%s0 + $0x48] sm:$0xf]
  %v33 = vld [vmem:[%s0 + $0x4c] sm:$0xf]
  %v34 = vld [vmem:[%s0 + $0x50] sm:$0xf]
  %v35 = vld [vmem:[%s0 + $0x54] sm:$0xf]
  %v36 = vld [vmem:[%s0 + $0x58] sm:$0xf]
  %v37 = vld [vmem:[%s0 + $0x5c] sm:$0xf]
  %v38 = vld [vmem:[%s0 + $0x60] sm:$0xf]
  %v39 = vld [vmem:[%s0 + $0x64] sm:$0xf]
  %v40 = vld [vmem:[%s0 + $0x68] sm:$0xf]
  %v41 = vld [vmem:[%s0 + $0x6c] sm:$0xf]
  %v42 = vld [vmem:[%s0 + $0x70] sm:$0xf]
  %v43 = vld [vmem:[%s0 + $0x74] sm:$0xf]
  %v44 = vld [vmem:[%s0 + $0x78] sm:$0xf]
  %v45 = vld [vmem:[%s0 + $0x7c] sm:$0xf]
  %v46 = vld [vmem:[%s1] sm:$0xf]
  %v47 = vld [vmem:[%s1 + $0x4] sm:$0xf]
  %v48 = vld [vmem:[%s1 + $0x8] sm:$0xf]
  %v49 = vld [vmem:[%s1 + $0xc] sm:$0xf]
  %v50 = vld [vmem:[%s1 + $0x10] sm:$0xf]
  %v51 = vld [vmem:[%s1 + $0x14] sm:$0xf]
  %v52 = vld [vmem:[%s1 + $0x18] sm:$0xf]
  %v53 = vld [vmem:[%s1 + $0x1c] sm:$0xf]
  %v54 = vld [vmem:[%s1 + $0x20] sm:$0xf]
  %v55 = vld [vmem:[%s1 + $0x24] sm:$0xf]
  %v56 = vld [vmem:[%s1 + $0x28] sm:$0xf]
  %v57 = vld [vmem:[%s1 + $0x2c] sm:$0xf]
  %v58 = vld [vmem:[%s1 + $0x30] sm:$0xf]
  %v59 = vld [vmem:[%s1 + $0x34] sm:$0xf]
  %v60 = vld [vmem:[%s1 + $0x38] sm:$0xf]
  %v61 = vld [vmem:[%s1 + $0x3c] sm:$0xf]
  %v94 = vunpack.c.l.b16 %v14
  %v95 = vunpack.c.l.b16 %v15
  %v96 = vunpack.c.l.b16 %v16
  %v97 = vunpack.c.l.b16 %v17
  %v98 = vunpack.c.l.b16 %v18
  %v99 = vunpack.c.l.b16 %v19
  %v100 = vunpack.c.l.b16 %v20
  %v101 = vunpack.c.l.b16 %v21
  %v102 = vunpack.c.l.b16 %v22
  %v103 = vunpack.c.l.b16 %v23
  %v104 = vunpack.c.l.b16 %v24
  %v105 = vunpack.c.l.b16 %v25
  %v106 = vunpack.c.l.b16 %v26
  %v107 = vunpack.c.l.b16 %v27
  %v108 = vunpack.c.l.b16 %v28
  %v109 = vunpack.c.l.b16 %v29
  %v110 = vunpack.c.l.b16 %v30
  %v111 = vunpack.c.l.b16 %v31
  %v112 = vunpack.c.l.b16 %v32
  %v113 = vunpack.c.l.b16 %v33
  %v114 = vunpack.c.l.b16 %v34
  %v115 = vunpack.c.l.b16 %v35
  %v116 = vunpack.c.l.b16 %v36
  %v117 = vunpack.c.l.b16 %v37
  %v118 = vunpack.c.l.b16 %v38
  %v119 = vunpack.c.l.b16 %v39
  %v120 = vunpack.c.l.b16 %v40
  %v121 = vunpack.c.l.b16 %v41
  %v122 = vunpack.c.l.b16 %v42
  %v123 = vunpack.c.l.b16 %v43
  %v124 = vunpack.c.l.b16 %v44
  %v125 = vunpack.c.l.b16 %v45
  %v126 = vpack.c.b16 %v95, %v94
  %v127 = vpack.c.b16 %v97, %v96
  %v128 = vpack.c.b16 %v99, %v98
  %v129 = vpack.c.b16 %v101, %v100
  %v130 = vpack.c.b16 %v103, %v102
  %v131 = vpack.c.b16 %v105, %v104
  %v132 = vpack.c.b16 %v107, %v106
  %v133 = vpack.c.b16 %v109, %v108
  %v134 = vpack.c.b16 %v111, %v110
  %v135 = vpack.c.b16 %v113, %v112
  %v136 = vpack.c.b16 %v115, %v114
  %v137 = vpack.c.b16 %v117, %v116
  %v138 = vpack.c.b16 %v119, %v118
  %v139 = vpack.c.b16 %v121, %v120
  %v140 = vpack.c.b16 %v123, %v122
  %v141 = vpack.c.b16 %v125, %v124
  %v174 = vunpack.c.l.b16 %v46
  %v175 = vunpack.c.l.b16 %v47
  %v176 = vunpack.c.l.b16 %v48
  %v177 = vunpack.c.l.b16 %v49
  %v178 = vunpack.c.l.b16 %v50
  %v179 = vunpack.c.l.b16 %v51
  %v180 = vunpack.c.l.b16 %v52
  %v181 = vunpack.c.l.b16 %v53
  %v182 = vunpack.c.l.b16 %v54
  %v183 = vunpack.c.l.b16 %v55
  %v184 = vunpack.c.l.b16 %v56
  %v185 = vunpack.c.l.b16 %v57
  %v186 = vunpack.c.l.b16 %v58
  %v187 = vunpack.c.l.b16 %v59
  %v188 = vunpack.c.l.b16 %v60
  %v189 = vunpack.c.l.b16 %v61
  %v190 = vpack.c.b16 %v175, %v174
  %v191 = vpack.c.b16 %v177, %v176
  %v192 = vpack.c.b16 %v179, %v178
  %v193 = vpack.c.b16 %v181, %v180
  %v194 = vpack.c.b16 %v183, %v182
  %v195 = vpack.c.b16 %v185, %v184
  %v196 = vpack.c.b16 %v187, %v186
  %v197 = vpack.c.b16 %v189, %v188
  %206 = vmatprep.subr.bf16.mxu0 0
  %207 = vmatpush1.bf16.msra.mxu0 %v190
  %208 = vmatprep.subr.bf16.mxu0 0
  %209 = vmatpush1.bf16.msra.mxu0 %v191
  %210 = vmatprep.subr.bf16.mxu0 0
  %211 = vmatpush1.bf16.msra.mxu0 %v192
  %212 = vmatprep.subr.bf16.mxu0 0
  %213 = vmatpush1.bf16.msra.mxu0 %v193
  %214 = vmatprep.subr.bf16.mxu0 0
  %215 = vmatpush1.bf16.msra.mxu0 %v194
  %216 = vmatprep.subr.bf16.mxu0 0
  %217 = vmatpush1.bf16.msra.mxu0 %v195
  %218 = vmatprep.subr.bf16.mxu0 0
  %219 = vmatpush1.bf16.msra.mxu0 %v196
  %220 = vmatprep.subr.bf16.mxu0 0
  %221 = vmatpush1.bf16.msra.mxu0 %v197
  %222 = vmatprep.subr.bf16.mxu0 0
  %223 = vmatpush1.bf16.msra.mxu0 0
  %224 = vmatprep.subr.bf16.mxu0 0
  %225 = vmatpush1.bf16.msra.mxu0 0
  %226 = vmatprep.subr.bf16.mxu0 0
  %227 = vmatpush1.bf16.msra.mxu0 0
  %228 = vmatprep.subr.bf16.mxu0 0
  %229 = vmatpush1.bf16.msra.mxu0 0
  %230 = vmatprep.subr.bf16.mxu0 0
  %231 = vmatpush1.bf16.msra.mxu0 0
  %232 = vmatprep.subr.bf16.mxu0 0
  %233 = vmatpush1.bf16.msra.mxu0 0
  %234 = vmatprep.subr.bf16.mxu0 0
  %235 = vmatpush1.bf16.msra.mxu0 0
  %236 = vmatprep.subr.bf16.mxu0 0
  %237 = vmatpush1.bf16.msra.mxu0 0
  %238 = vmatprep.mubr.bf16.mxu0 0
  %239 = vmatmul.mubr.bf16.gmra.mrb[0].mxu0 %v126
  %v240 = vpop.f32.mrb[0].mxu0
  %v241 = vadd.f32 0.0, %v240
  %v242 = vpop.f32.mrb[0].mxu0
  %v243 = vpop.f32.mrb[0].mxu0
  %v244 = vadd.f32 0.0, %v243
  %v245 = vpop.f32.mrb[0].mxu0
  %246 = vmatprep.mubr.bf16.mxu0 0
  %247 = vmatmul.mubr.bf16.gmra.mrb[0].mxu0 %v127
  %v248 = vpop.f32.mrb[0].mxu0
  %v249 = vadd.f32 0.0, %v248
  %v250 = vpop.f32.mrb[0].mxu0
  %v251 = vpop.f32.mrb[0].mxu0
  %v252 = vadd.f32 0.0, %v251
  %v253 = vpop.f32.mrb[0].mxu0
  %254 = vmatprep.mubr.bf16.mxu0 0
  %255 = vmatmul.mubr.bf16.gmra.mrb[0].mxu0 %v128
  %v256 = vpop.f32.mrb[0].mxu0
  %v257 = vadd.f32 0.0, %v256
  %v258 = vpop.f32.mrb[0].mxu0
  %v259 = vpop.f32.mrb[0].mxu0
  %v260 = vadd.f32 0.0, %v259
  %v261 = vpop.f32.mrb[0].mxu0
  %262 = vmatprep.mubr.bf16.mxu0 0
  %263 = vmatmul.mubr.bf16.gmra.mrb[0].mxu0 %v129
  %v264 = vpop.f32.mrb[0].mxu0
  %v265 = vadd.f32 0.0, %v264
  %v266 = vpop.f32.mrb[0].mxu0
  %v267 = vpop.f32.mrb[0].mxu0
  %v268 = vadd.f32 0.0, %v267
  %v269 = vpop.f32.mrb[0].mxu0
  %270 = vmatprep.mubr.bf16.mxu0 0
  %271 = vmatmul.mubr.bf16.gmra.mrb[0].mxu0 %v130
  %v272 = vpop.f32.mrb[0].mxu0
  %v273 = vadd.f32 0.0, %v272
  %v274 = vpop.f32.mrb[0].mxu0
  %v275 = vpop.f32.mrb[0].mxu0
  %v276 = vadd.f32 0.0, %v275
  %v277 = vpop.f32.mrb[0].mxu0
  %278 = vmatprep.mubr.bf16.mxu0 0
  %279 = vmatmul.mubr.bf16.gmra.mrb[0].mxu0 %v131
  %v280 = vpop.f32.mrb[0].mxu0
  %v281 = vadd.f32 0.0, %v280
  %v282 = vpop.f32.mrb[0].mxu0
  %v283 = vpop.f32.mrb[0].mxu0
  %v284 = vadd.f32 0.0, %v283
  %v285 = vpop.f32.mrb[0].mxu0
  %286 = vmatprep.mubr.bf16.mxu0 0
  %287 = vmatmul.mubr.bf16.gmra.mrb[0].mxu0 %v132
  %v288 = vpop.f32.mrb[0].mxu0
  %v289 = vadd.f32 0.0, %v288
  %v290 = vpop.f32.mrb[0].mxu0
  %v291 = vpop.f32.mrb[0].mxu0
  %v292 = vadd.f32 0.0, %v291
  %v293 = vpop.f32.mrb[0].mxu0
  %294 = vmatprep.mubr.bf16.mxu0 0
  %295 = vmatmul.mubr.bf16.gmra.mrb[0].mxu0 %v133
  %v296 = vpop.f32.mrb[0].mxu0
  %v297 = vadd.f32 0.0, %v296
  %v298 = vpop.f32.mrb[0].mxu0
  %v299 = vpop.f32.mrb[0].mxu0
  %v300 = vadd.f32 0.0, %v299
  %v301 = vpop.f32.mrb[0].mxu0
  %302 = vmatprep.mubr.bf16.mxu0 0
  %303 = vmatmul.mubr.bf16.gmra.mrb[0].mxu0 %v134
  %v304 = vpop.f32.mrb[0].mxu0
  %v305 = vadd.f32 0.0, %v304
  %v306 = vpop.f32.mrb[0].mxu0
  %v307 = vpop.f32.mrb[0].mxu0
  %v308 = vadd.f32 0.0, %v307
  %v309 = vpop.f32.mrb[0].mxu0
  %310 = vmatprep.mubr.bf16.mxu0 0
  %311 = vmatmul.mubr.bf16.gmra.mrb[0].mxu0 %v135
  %v312 = vpop.f32.mrb[0].mxu0
  %v313 = vadd.f32 0.0, %v312
  %v314 = vpop.f32.mrb[0].mxu0
  %v315 = vpop.f32.mrb[0].mxu0
  %v316 = vadd.f32 0.0, %v315
  %v317 = vpop.f32.mrb[0].mxu0
  %318 = vmatprep.mubr.bf16.mxu0 0
  %319 = vmatmul.mubr.bf16.gmra.mrb[0].mxu0 %v136
  %v320 = vpop.f32.mrb[0].mxu0
  %v321 = vadd.f32 0.0, %v320
  %v322 = vpop.f32.mrb[0].mxu0
  %v323 = vpop.f32.mrb[0].mxu0
  %v324 = vadd.f32 0.0, %v323
  %v325 = vpop.f32.mrb[0].mxu0
  %326 = vmatprep.mubr.bf16.mxu0 0
  %327 = vmatmul.mubr.bf16.gmra.mrb[0].mxu0 %v137
  %v328 = vpop.f32.mrb[0].mxu0
  %v329 = vadd.f32 0.0, %v328
  %v330 = vpop.f32.mrb[0].mxu0
  %v331 = vpop.f32.mrb[0].mxu0
  %v332 = vadd.f32 0.0, %v331
  %v333 = vpop.f32.mrb[0].mxu0
  %334 = vmatprep.mubr.bf16.mxu0 0
  %335 = vmatmul.mubr.bf16.gmra.mrb[0].mxu0 %v138
  %v336 = vpop.f32.mrb[0].mxu0
  %v337 = vadd.f32 0.0, %v336
  %v338 = vpop.f32.mrb[0].mxu0
  %v339 = vpop.f32.mrb[0].mxu0
  %v340 = vadd.f32 0.0, %v339
  %v341 = vpop.f32.mrb[0].mxu0
  %342 = vmatprep.mubr.bf16.mxu0 0
  %343 = vmatmul.mubr.bf16.gmra.mrb[0].mxu0 %v139
  %v344 = vpop.f32.mrb[0].mxu0
  %v345 = vadd.f32 0.0, %v344
  %v346 = vpop.f32.mrb[0].mxu0
  %v347 = vpop.f32.mrb[0].mxu0
  %v348 = vadd.f32 0.0, %v347
  %v349 = vpop.f32.mrb[0].mxu0
  %350 = vmatprep.mubr.bf16.mxu0 0
  %351 = vmatmul.mubr.bf16.gmra.mrb[0].mxu0 %v140
  %v352 = vpop.f32.mrb[0].mxu0
  %v353 = vadd.f32 0.0, %v352
  %v354 = vpop.f32.mrb[0].mxu0
  %v355 = vpop.f32.mrb[0].mxu0
  %v356 = vadd.f32 0.0, %v355
  %v357 = vpop.f32.mrb[0].mxu0
  %358 = vmatprep.mubr.bf16.mxu0 0
  %359 = vmatmul.mubr.bf16.gmra.mrb[0].mxu0 %v141
  %v360 = vpop.f32.mrb[0].mxu0
  %v361 = vadd.f32 0.0, %v360
  %v362 = vpop.f32.mrb[0].mxu0
  %v363 = vpop.f32.mrb[0].mxu0
  %v364 = vadd.f32 0.0, %v363
  %v365 = vpop.f32.mrb[0].mxu0
  %366 = vdwg.mxu0
  %v367 = vpack.c.bf16 %v244, %v241
  %v368 = vpack.c.bf16 %v252, %v249
  %v369 = vpack.c.bf16 %v260, %v257
  %v370 = vpack.c.bf16 %v268, %v265
  %v371 = vpack.c.bf16 %v276, %v273
  %v372 = vpack.c.bf16 %v284, %v281
  %v373 = vpack.c.bf16 %v292, %v289
  %v374 = vpack.c.bf16 %v300, %v297
  %v375 = vpack.c.bf16 %v308, %v305
  %v376 = vpack.c.bf16 %v316, %v313
  %v377 = vpack.c.bf16 %v324, %v321
  %v378 = vpack.c.bf16 %v332, %v329
  %v379 = vpack.c.bf16 %v340, %v337
  %v380 = vpack.c.bf16 %v348, %v345
  %v381 = vpack.c.bf16 %v356, %v353
  %v382 = vpack.c.bf16 %v364, %v361
  %v399 = vunpack.c.l.b16 %v367
  %v400 = vunpack.c.h.b16 %v367
  %v401 = vunpack.c.l.b16 %v368
  %v402 = vunpack.c.h.b16 %v368
  %v403 = vunpack.c.l.b16 %v369
  %v404 = vunpack.c.h.b16 %v369
  %v405 = vunpack.c.l.b16 %v370
  %v406 = vunpack.c.h.b16 %v370
  %v407 = vunpack.c.l.b16 %v371
  %v408 = vunpack.c.h.b16 %v371
  %v409 = vunpack.c.l.b16 %v372
  %v410 = vunpack.c.h.b16 %v372
  %v411 = vunpack.c.l.b16 %v373
  %v412 = vunpack.c.h.b16 %v373
  %v413 = vunpack.c.l.b16 %v374
  %v414 = vunpack.c.h.b16 %v374
  %v415 = vunpack.c.l.b16 %v375
  %v416 = vunpack.c.h.b16 %v375
  %v417 = vunpack.c.l.b16 %v376
  %v418 = vunpack.c.h.b16 %v376
  %v419 = vunpack.c.l.b16 %v377
  %v420 = vunpack.c.h.b16 %v377
  %v421 = vunpack.c.l.b16 %v378
  %v422 = vunpack.c.h.b16 %v378
  %v423 = vunpack.c.l.b16 %v379
  %v424 = vunpack.c.h.b16 %v379
  %v425 = vunpack.c.l.b16 %v380
  %v426 = vunpack.c.h.b16 %v380
  %v427 = vunpack.c.l.b16 %v381
  %v428 = vunpack.c.h.b16 %v381
  %v429 = vunpack.c.l.b16 %v382
  %v430 = vunpack.c.h.b16 %v382
  %v431 = vpack.c.b16 %v399, %v399
  %v432 = vpack.c.b16 %v400, %v400
  %v433 = vpack.c.b16 %v401, %v401
  %v434 = vpack.c.b16 %v402, %v402
  %v435 = vpack.c.b16 %v403, %v403
  %v436 = vpack.c.b16 %v404, %v404
  %v437 = vpack.c.b16 %v405, %v405
  %v438 = vpack.c.b16 %v406, %v406
  %v439 = vpack.c.b16 %v407, %v407
  %v440 = vpack.c.b16 %v408, %v408
  %v441 = vpack.c.b16 %v409, %v409
  %v442 = vpack.c.b16 %v410, %v410
  %v443 = vpack.c.b16 %v411, %v411
  %v444 = vpack.c.b16 %v412, %v412
  %v445 = vpack.c.b16 %v413, %v413
  %v446 = vpack.c.b16 %v414, %v414
  %v447 = vpack.c.b16 %v415, %v415
  %v448 = vpack.c.b16 %v416, %v416
  %v449 = vpack.c.b16 %v417, %v417
  %v450 = vpack.c.b16 %v418, %v418
  %v451 = vpack.c.b16 %v419, %v419
  %v452 = vpack.c.b16 %v420, %v420
  %v453 = vpack.c.b16 %v421, %v421
  %v454 = vpack.c.b16 %v422, %v422
  %v455 = vpack.c.b16 %v423, %v423
  %v456 = vpack.c.b16 %v424, %v424
  %v457 = vpack.c.b16 %v425, %v425
  %v458 = vpack.c.b16 %v426, %v426
  %v459 = vpack.c.b16 %v427, %v427
  %v460 = vpack.c.b16 %v428, %v428
  %v461 = vpack.c.b16 %v429, %v429
  %v462 = vpack.c.b16 %v430, %v430
  %495 = vst [vmem:[%s2] sm:$0xf] %v431
  %496 = vst [vmem:[%s2 + $0x4] sm:$0xf] %v432
  %497 = vst [vmem:[%s2 + $0x8] sm:$0xf] %v433
  %498 = vst [vmem:[%s2 + $0xc] sm:$0xf] %v434
  %499 = vst [vmem:[%s2 + $0x10] sm:$0xf] %v435
  %500 = vst [vmem:[%s2 + $0x14] sm:$0xf] %v436
  %501 = vst [vmem:[%s2 + $0x18] sm:$0xf] %v437
  %502 = vst [vmem:[%s2 + $0x1c] sm:$0xf] %v438
  %503 = vst [vmem:[%s2 + $0x20] sm:$0xf] %v439
  %504 = vst [vmem:[%s2 + $0x24] sm:$0xf] %v440
  %505 = vst [vmem:[%s2 + $0x28] sm:$0xf] %v441
  %506 = vst [vmem:[%s2 + $0x2c] sm:$0xf] %v442
  %507 = vst [vmem:[%s2 + $0x30] sm:$0xf] %v443
  %508 = vst [vmem:[%s2 + $0x34] sm:$0xf] %v444
  %509 = vst [vmem:[%s2 + $0x38] sm:$0xf] %v445
  %510 = vst [vmem:[%s2 + $0x3c] sm:$0xf] %v446
  %511 = vst [vmem:[%s2 + $0x40] sm:$0xf] %v447
  %512 = vst [vmem:[%s2 + $0x44] sm:$0xf] %v448
  %513 = vst [vmem:[%s2 + $0x48] sm:$0xf] %v449
  %514 = vst [vmem:[%s2 + $0x4c] sm:$0xf] %v450
  %515 = vst [vmem:[%s2 + $0x50] sm:$0xf] %v451
  %516 = vst [vmem:[%s2 + $0x54] sm:$0xf] %v452
  %517 = vst [vmem:[%s2 + $0x58] sm:$0xf] %v453
  %518 = vst [vmem:[%s2 + $0x5c] sm:$0xf] %v454
  %519 = vst [vmem:[%s2 + $0x60] sm:$0xf] %v455
  %520 = vst [vmem:[%s2 + $0x64] sm:$0xf] %v456
  %521 = vst [vmem:[%s2 + $0x68] sm:$0xf] %v457
  %522 = vst [vmem:[%s2 + $0x6c] sm:$0xf] %v458
  %523 = vst [vmem:[%s2 + $0x70] sm:$0xf] %v459
  %524 = vst [vmem:[%s2 + $0x74] sm:$0xf] %v460
  %525 = vst [vmem:[%s2 + $0x78] sm:$0xf] %v461
  %526 = vst [vmem:[%s2 + $0x7c] sm:$0xf] %v462
  %v527 = vadd.f32 %v241, %v244
  %v528 = vadd.f32 %v527, %v249
  %v529 = vadd.f32 %v528, %v252
  %v530 = vadd.f32 %v529, %v257
  %v531 = vadd.f32 %v530, %v260
  %v532 = vadd.f32 %v531, %v265
  %v533 = vadd.f32 %v532, %v268
  %v534 = vadd.f32 %v533, %v273
  %v535 = vadd.f32 %v534, %v276
  %v536 = vadd.f32 %v535, %v281
  %v537 = vadd.f32 %v536, %v284
  %v538 = vadd.f32 %v537, %v289
  %v539 = vadd.f32 %v538, %v292
  %v540 = vadd.f32 %v539, %v297
  %v541 = vadd.f32 %v540, %v300
  %v542 = vadd.f32 %v541, %v305
  %v543 = vadd.f32 %v542, %v308
  %v544 = vadd.f32 %v543, %v313
  %v545 = vadd.f32 %v544, %v316
  %v546 = vadd.f32 %v545, %v321
  %v547 = vadd.f32 %v546, %v324
  %v548 = vadd.f32 %v547, %v329
  %v549 = vadd.f32 %v548, %v332
  %v550 = vadd.f32 %v549, %v337
  %v551 = vadd.f32 %v550, %v340
  %v552 = vadd.f32 %v551, %v345
  %v553 = vadd.f32 %v552, %v348
  %v554 = vadd.f32 %v553, %v353
  %v555 = vadd.f32 %v554, %v356
  %v556 = vadd.f32 %v555, %v361
  %v557 = vadd.f32 %v556, %v364
  %v558 = vrot.slane %v557, 4
  %v559 = vadd.f32 %v557, %v558
  %v560 = vrot.slane %v559, 2
  %v561 = vadd.f32 %v559, %v560
  %v562 = vrot.slane %v561, 1
  %v563 = vadd.f32 %v561, %v562
  %v564 = vmul.f32 %v241, %v241
  %v565 = vmul.f32 %v244, %v244
  %v566 = vmul.f32 %v249, %v249
  %v567 = vmul.f32 %v252, %v252
  %v568 = vmul.f32 %v257, %v257
  %v569 = vmul.f32 %v260, %v260
  %v570 = vmul.f32 %v265, %v265
  %v571 = vmul.f32 %v268, %v268
  %v572 = vmul.f32 %v273, %v273
  %v573 = vmul.f32 %v276, %v276
  %v574 = vmul.f32 %v281, %v281
  %v575 = vmul.f32 %v284, %v284
  %v576 = vmul.f32 %v289, %v289
  %v577 = vmul.f32 %v292, %v292
  %v578 = vmul.f32 %v297, %v297
  %v579 = vmul.f32 %v300, %v300
  %v580 = vmul.f32 %v305, %v305
  %v581 = vmul.f32 %v308, %v308
  %v582 = vmul.f32 %v313, %v313
  %v583 = vmul.f32 %v316, %v316
  %v584 = vmul.f32 %v321, %v321
  %v585 = vmul.f32 %v324, %v324
  %v586 = vmul.f32 %v329, %v329
  %v587 = vmul.f32 %v332, %v332
  %v588 = vmul.f32 %v337, %v337
  %v589 = vmul.f32 %v340, %v340
  %v590 = vmul.f32 %v345, %v345
  %v591 = vmul.f32 %v348, %v348
  %v592 = vmul.f32 %v353, %v353
  %v593 = vmul.f32 %v356, %v356
  %v594 = vmul.f32 %v361, %v361
  %v595 = vmul.f32 %v364, %v364
  %v596 = vadd.f32 %v564, %v565
  %v597 = vadd.f32 %v596, %v566
  %v598 = vadd.f32 %v597, %v567
  %v599 = vadd.f32 %v598, %v568
  %v600 = vadd.f32 %v599, %v569
  %v601 = vadd.f32 %v600, %v570
  %v602 = vadd.f32 %v601, %v571
  %v603 = vadd.f32 %v602, %v572
  %v604 = vadd.f32 %v603, %v573
  %v605 = vadd.f32 %v604, %v574
  %v606 = vadd.f32 %v605, %v575
  %v607 = vadd.f32 %v606, %v576
  %v608 = vadd.f32 %v607, %v577
  %v609 = vadd.f32 %v608, %v578
  %v610 = vadd.f32 %v609, %v579
  %v611 = vadd.f32 %v610, %v580
  %v612 = vadd.f32 %v611, %v581
  %v613 = vadd.f32 %v612, %v582
  %v614 = vadd.f32 %v613, %v583
  %v615 = vadd.f32 %v614, %v584
  %v616 = vadd.f32 %v615, %v585
  %v617 = vadd.f32 %v616, %v586
  %v618 = vadd.f32 %v617, %v587
  %v619 = vadd.f32 %v618, %v588
  %v620 = vadd.f32 %v619, %v589
  %v621 = vadd.f32 %v620, %v590
  %v622 = vadd.f32 %v621, %v591
  %v623 = vadd.f32 %v622, %v592
  %v624 = vadd.f32 %v623, %v593
  %v625 = vadd.f32 %v624, %v594
  %v626 = vadd.f32 %v625, %v595
  %v627 = vrot.slane %v626, 4
  %v628 = vadd.f32 %v626, %v627
  %v629 = vrot.slane %v628, 2
  %v630 = vadd.f32 %v628, %v629
  %v631 = vrot.slane %v630, 1
  %v632 = vadd.f32 %v630, %v631
  %v633 = vlaneseq
  %v634 = vshrl.u32 %v633, 7
  %vm635 = vcmp.eq.s32.totalorder %v634, 0
  %vm636 = vcmp.eq.s32.totalorder %v634, 1
  %v637 = vsel %vm636, %v632, 0.0
  %v638 = vsel %vm635, %v563, %v637
  %639 = vst [vmem:[%s3] sm:$0xff] %v638
  // Predicated region
  $region10: #{generator_forward.13} parent=0 // pred_check
    _
  $region11: #{generator_forward.13} parent=0 // pred_check_branch
    %641 = sbr.rel (0) target = $region13
  $region12: #{generator_forward.13} parent=0 // pred_region
    _
  $region13: #{generator_forward.13} parent=0 // pred_fallthru
    _
  // Predicated region
  $region14: #{generator_forward.13} parent=0 // pred_check
    _
  $region15: #{generator_forward.13} parent=0 // pred_check_branch
    %643 = sbr.rel (0) target = $region17
  $region16: #{generator_forward.13} parent=0 // pred_region
    _
  $region17: #{generator_forward.13} parent=0 // pred_fallthru
    _
  // Predicated region
  $region18: #{generator_forward.13} parent=0 // pred_check
    _
  $region19: #{generator_forward.13} parent=0 // pred_check_branch
    %645 = sbr.rel (0) target = $region21
  $region20: #{generator_forward.13} parent=0 // pred_region
    _
  $region21: #{generator_forward.13} parent=0 // pred_fallthru
    _
  // Predicated region
  $region22: #{generator_forward.13} parent=0 // pred_check
    _
  $region23: #{generator_forward.13} parent=0 // pred_check_branch
    %647 = sbr.rel (0) target = $region25
  $region24: #{generator_forward.13} parent=0 // pred_region
    _
  $region25: #{generator_forward.13} parent=0 // pred_fallthru
    _

// kernel: generator_forward.14
$region0: #{generator_forward.14}
  #allocation0 [shape = 'u32[]', space=smem, size = 0x4, offset = 0x4, fixed_abs, tag = 'smem constant byte address 0x4 - core index']
  #allocation1 [shape = 'u32[144,128]{1,0:T(1,128)}', space=vmem, size = 0x12000, scoped, tag = 'internal scratch']
  %s0 = inlined_call_operand.vmem [shape: bf16[256,128], index: 0, kind: input, shape index: {}]
  %s1 = inlined_call_operand.vmem [shape: f32[1,128], index: 1, kind: input, shape index: {}]
  %s2 = inlined_call_operand.vmem [shape: f32[1,128], index: 2, kind: input, shape index: {}]
  %s3 = inlined_call_operand.vmem [shape: bf16[256,128], index: 3, kind: output, shape index: {}]
  %s4 = sld [smem:[#allocation0]]
  $region22: #{generator_forward.14} parent=0
    _
  %s6 = ssub.s32 1, %s4
  %s7 = scalar_select 0, %s6, %s4
  // Predicated region
  $region2: #{generator_forward.14} parent=0 // pred_check
    _
  $region3: #{generator_forward.14} parent=0 // pred_check_branch
    %9 = sbr.rel (0) target = $region5
  $region4: #{generator_forward.14} parent=0 // pred_region
    _
  $region5: #{generator_forward.14} parent=0 // pred_fallthru
    _
  // Predicated region
  $region6: #{generator_forward.14} parent=0 // pred_check
    _
  $region7: #{generator_forward.14} parent=0 // pred_check_branch
    %11 = sbr.rel (0) target = $region9
  $region8: #{generator_forward.14} parent=0 // pred_region
    _
  $region9: #{generator_forward.14} parent=0 // pred_fallthru
    _
  // Predicated region
  $region10: #{generator_forward.14} parent=0 // pred_check
    _
  $region11: #{generator_forward.14} parent=0 // pred_check_branch
    %13 = sbr.rel (0) target = $region13
  $region12: #{generator_forward.14} parent=0 // pred_region
    _
  $region13: #{generator_forward.14} parent=0 // pred_fallthru
    _
  %v14 = vld [vmem:[%s0] sm:$0xf]
  %v15 = vld [vmem:[%s0 + $0x4] sm:$0xf]
  %v16 = vld [vmem:[%s0 + $0x8] sm:$0xf]
  %v17 = vld [vmem:[%s0 + $0xc] sm:$0xf]
  %v18 = vld [vmem:[%s0 + $0x10] sm:$0xf]
  %v19 = vld [vmem:[%s0 + $0x14] sm:$0xf]
  %v20 = vld [vmem:[%s0 + $0x18] sm:$0xf]
  %v21 = vld [vmem:[%s0 + $0x1c] sm:$0xf]
  %v22 = vld [vmem:[%s0 + $0x20] sm:$0xf]
  %v23 = vld [vmem:[%s0 + $0x24] sm:$0xf]
  %v24 = vld [vmem:[%s0 + $0x28] sm:$0xf]
  %v25 = vld [vmem:[%s0 + $0x2c] sm:$0xf]
  %v26 = vld [vmem:[%s0 + $0x30] sm:$0xf]
  %v27 = vld [vmem:[%s0 + $0x34] sm:$0xf]
  %v28 = vld [vmem:[%s0 + $0x38] sm:$0xf]
  %v29 = vld [vmem:[%s0 + $0x3c] sm:$0xf]
  %v30 = vld [vmem:[%s0 + $0x40] sm:$0xf]
  %v31 = vld [vmem:[%s0 + $0x44] sm:$0xf]
  %v32 = vld [vmem:[%s0 + $0x48] sm:$0xf]
  %v33 = vld [vmem:[%s0 + $0x4c] sm:$0xf]
  %v34 = vld [vmem:[%s0 + $0x50] sm:$0xf]
  %v35 = vld [vmem:[%s0 + $0x54] sm:$0xf]
  %v36 = vld [vmem:[%s0 + $0x58] sm:$0xf]
  %v37 = vld [vmem:[%s0 + $0x5c] sm:$0xf]
  %v38 = vld [vmem:[%s0 + $0x60] sm:$0xf]
  %v39 = vld [vmem:[%s0 + $0x64] sm:$0xf]
  %v40 = vld [vmem:[%s0 + $0x68] sm:$0xf]
  %v41 = vld [vmem:[%s0 + $0x6c] sm:$0xf]
  %v42 = vld [vmem:[%s0 + $0x70] sm:$0xf]
  %v43 = vld [vmem:[%s0 + $0x74] sm:$0xf]
  %v44 = vld [vmem:[%s0 + $0x78] sm:$0xf]
  %v45 = vld [vmem:[%s0 + $0x7c] sm:$0xf]
  %v46 = vunpack.c.l.bf16 %v14
  %v47 = vunpack.c.l.bf16 %v15
  %v48 = vunpack.c.l.bf16 %v16
  %v49 = vunpack.c.l.bf16 %v17
  %v50 = vunpack.c.l.bf16 %v18
  %v51 = vunpack.c.l.bf16 %v19
  %v52 = vunpack.c.l.bf16 %v20
  %v53 = vunpack.c.l.bf16 %v21
  %v54 = vunpack.c.l.bf16 %v22
  %v55 = vunpack.c.l.bf16 %v23
  %v56 = vunpack.c.l.bf16 %v24
  %v57 = vunpack.c.l.bf16 %v25
  %v58 = vunpack.c.l.bf16 %v26
  %v59 = vunpack.c.l.bf16 %v27
  %v60 = vunpack.c.l.bf16 %v28
  %v61 = vunpack.c.l.bf16 %v29
  %v62 = vunpack.c.l.bf16 %v30
  %v63 = vunpack.c.l.bf16 %v31
  %v64 = vunpack.c.l.bf16 %v32
  %v65 = vunpack.c.l.bf16 %v33
  %v66 = vunpack.c.l.bf16 %v34
  %v67 = vunpack.c.l.bf16 %v35
  %v68 = vunpack.c.l.bf16 %v36
  %v69 = vunpack.c.l.bf16 %v37
  %v70 = vunpack.c.l.bf16 %v38
  %v71 = vunpack.c.l.bf16 %v39
  %v72 = vunpack.c.l.bf16 %v40
  %v73 = vunpack.c.l.bf16 %v41
  %v74 = vunpack.c.l.bf16 %v42
  %v75 = vunpack.c.l.bf16 %v43
  %v76 = vunpack.c.l.bf16 %v44
  %v77 = vunpack.c.l.bf16 %v45
  %v78 = vld [vmem:[%s1] sm:$0x1]
  %v80 = vlaneseq
  %v81 = vshrl.u32 %v80, 7
  %v82 = vsub.s32 0, %v81
  %v83 = vrot.slane %v78, %v82
  %v85 = vmul.f32 %v46, %v83
  %v86 = vmul.f32 %v47, %v83
  %v87 = vmul.f32 %v48, %v83
  %v88 = vmul.f32 %v49, %v83
  %v89 = vmul.f32 %v50, %v83
  %v90 = vmul.f32 %v51, %v83
  %v91 = vmul.f32 %v52, %v83
  %v92 = vmul.f32 %v53, %v83
  %v93 = vmul.f32 %v54, %v83
  %v94 = vmul.f32 %v55, %v83
  %v95 = vmul.f32 %v56, %v83
  %v96 = vmul.f32 %v57, %v83
  %v97 = vmul.f32 %v58, %v83
  %v98 = vmul.f32 %v59, %v83
  %v99 = vmul.f32 %v60, %v83
  %v100 = vmul.f32 %v61, %v83
  %v101 = vmul.f32 %v62, %v83
  %v102 = vmul.f32 %v63, %v83
  %v103 = vmul.f32 %v64, %v83
  %v104 = vmul.f32 %v65, %v83
  %v105 = vmul.f32 %v66, %v83
  %v106 = vmul.f32 %v67, %v83
  %v107 = vmul.f32 %v68, %v83
  %v108 = vmul.f32 %v69, %v83
  %v109 = vmul.f32 %v70, %v83
  %v110 = vmul.f32 %v71, %v83
  %v111 = vmul.f32 %v72, %v83
  %v112 = vmul.f32 %v73, %v83
  %v113 = vmul.f32 %v74, %v83
  %v114 = vmul.f32 %v75, %v83
  %v115 = vmul.f32 %v76, %v83
  %v116 = vmul.f32 %v77, %v83
  %v117 = vld [vmem:[%s2] sm:$0x1]
  %v119 = vlaneseq
  %v120 = vshrl.u32 %v119, 7
  %v121 = vsub.s32 0, %v120
  %v122 = vrot.slane %v117, %v121
  %v124 = vadd.f32 %v85, %v122
  %v125 = vadd.f32 %v86, %v122
  %v126 = vadd.f32 %v87, %v122
  %v127 = vadd.f32 %v88, %v122
  %v128 = vadd.f32 %v89, %v122
  %v129 = vadd.f32 %v90, %v122
  %v130 = vadd.f32 %v91, %v122
  %v131 = vadd.f32 %v92, %v122
  %v132 = vadd.f32 %v93, %v122
  %v133 = vadd.f32 %v94, %v122
  %v134 = vadd.f32 %v95, %v122
  %v135 = vadd.f32 %v96, %v122
  %v136 = vadd.f32 %v97, %v122
  %v137 = vadd.f32 %v98, %v122
  %v138 = vadd.f32 %v99, %v122
  %v139 = vadd.f32 %v100, %v122
  %v140 = vadd.f32 %v101, %v122
  %v141 = vadd.f32 %v102, %v122
  %v142 = vadd.f32 %v103, %v122
  %v143 = vadd.f32 %v104, %v122
  %v144 = vadd.f32 %v105, %v122
  %v145 = vadd.f32 %v106, %v122
  %v146 = vadd.f32 %v107, %v122
  %v147 = vadd.f32 %v108, %v122
  %v148 = vadd.f32 %v109, %v122
  %v149 = vadd.f32 %v110, %v122
  %v150 = vadd.f32 %v111, %v122
  %v151 = vadd.f32 %v112, %v122
  %v152 = vadd.f32 %v113, %v122
  %v153 = vadd.f32 %v114, %v122
  %v154 = vadd.f32 %v115, %v122
  %v155 = vadd.f32 %v116, %v122
  %v156 = vmax.f32 %v124, 0.0
  %v157 = vmax.f32 %v125, 0.0
  %v158 = vmax.f32 %v126, 0.0
  %v159 = vmax.f32 %v127, 0.0
  %v160 = vmax.f32 %v128, 0.0
  %v161 = vmax.f32 %v129, 0.0
  %v162 = vmax.f32 %v130, 0.0
  %v163 = vmax.f32 %v131, 0.0
  %v164 = vmax.f32 %v132, 0.0
  %v165 = vmax.f32 %v133, 0.0
  %v166 = vmax.f32 %v134, 0.0
  %v167 = vmax.f32 %v135, 0.0
  %v168 = vmax.f32 %v136, 0.0
  %v169 = vmax.f32 %v137, 0.0
  %v170 = vmax.f32 %v138, 0.0
  %v171 = vmax.f32 %v139, 0.0
  %v172 = vmax.f32 %v140, 0.0
  %v173 = vmax.f32 %v141, 0.0
  %v174 = vmax.f32 %v142, 0.0
  %v175 = vmax.f32 %v143, 0.0
  %v176 = vmax.f32 %v144, 0.0
  %v177 = vmax.f32 %v145, 0.0
  %v178 = vmax.f32 %v146, 0.0
  %v179 = vmax.f32 %v147, 0.0
  %v180 = vmax.f32 %v148, 0.0
  %v181 = vmax.f32 %v149, 0.0
  %v182 = vmax.f32 %v150, 0.0
  %v183 = vmax.f32 %v151, 0.0
  %v184 = vmax.f32 %v152, 0.0
  %v185 = vmax.f32 %v153, 0.0
  %v186 = vmax.f32 %v154, 0.0
  %v187 = vmax.f32 %v155, 0.0
  %v188 = vpack.c.bf16 %v157, %v156
  %v189 = vpack.c.bf16 %v159, %v158
  %v190 = vpack.c.bf16 %v161, %v160
  %v191 = vpack.c.bf16 %v163, %v162
  %v192 = vpack.c.bf16 %v165, %v164
  %v193 = vpack.c.bf16 %v167, %v166
  %v194 = vpack.c.bf16 %v169, %v168
  %v195 = vpack.c.bf16 %v171, %v170
  %v196 = vpack.c.bf16 %v173, %v172
  %v197 = vpack.c.bf16 %v175, %v174
  %v198 = vpack.c.bf16 %v177, %v176
  %v199 = vpack.c.bf16 %v179, %v178
  %v200 = vpack.c.bf16 %v181, %v180
  %v201 = vpack.c.bf16 %v183, %v182
  %v202 = vpack.c.bf16 %v185, %v184
  %v203 = vpack.c.bf16 %v187, %v186
  %v220 = vunpack.c.l.b16 %v188
  %v221 = vunpack.c.h.b16 %v188
  %v222 = vunpack.c.l.b16 %v189
  %v223 = vunpack.c.h.b16 %v189
  %v224 = vunpack.c.l.b16 %v190
  %v225 = vunpack.c.h.b16 %v190
  %v226 = vunpack.c.l.b16 %v191
  %v227 = vunpack.c.h.b16 %v191
  %v228 = vunpack.c.l.b16 %v192
  %v229 = vunpack.c.h.b16 %v192
  %v230 = vunpack.c.l.b16 %v193
  %v231 = vunpack.c.h.b16 %v193
  %v232 = vunpack.c.l.b16 %v194
  %v233 = vunpack.c.h.b16 %v194
  %v234 = vunpack.c.l.b16 %v195
  %v235 = vunpack.c.h.b16 %v195
  %v236 = vunpack.c.l.b16 %v196
  %v237 = vunpack.c.h.b16 %v196
  %v238 = vunpack.c.l.b16 %v197
  %v239 = vunpack.c.h.b16 %v197
  %v240 = vunpack.c.l.b16 %v198
  %v241 = vunpack.c.h.b16 %v198
  %v242 = vunpack.c.l.b16 %v199
  %v243 = vunpack.c.h.b16 %v199
  %v244 = vunpack.c.l.b16 %v200
  %v245 = vunpack.c.h.b16 %v200
  %v246 = vunpack.c.l.b16 %v201
  %v247 = vunpack.c.h.b16 %v201
  %v248 = vunpack.c.l.b16 %v202
  %v249 = vunpack.c.h.b16 %v202
  %v250 = vunpack.c.l.b16 %v203
  %v251 = vunpack.c.h.b16 %v203
  %v252 = vpack.c.b16 %v220, %v220
  %v253 = vpack.c.b16 %v221, %v221
  %v254 = vpack.c.b16 %v222, %v222
  %v255 = vpack.c.b16 %v223, %v223
  %v256 = vpack.c.b16 %v224, %v224
  %v257 = vpack.c.b16 %v225, %v225
  %v258 = vpack.c.b16 %v226, %v226
  %v259 = vpack.c.b16 %v227, %v227
  %v260 = vpack.c.b16 %v228, %v228
  %v261 = vpack.c.b16 %v229, %v229
  %v262 = vpack.c.b16 %v230, %v230
  %v263 = vpack.c.b16 %v231, %v231
  %v264 = vpack.c.b16 %v232, %v232
  %v265 = vpack.c.b16 %v233, %v233
  %v266 = vpack.c.b16 %v234, %v234
  %v267 = vpack.c.b16 %v235, %v235
  %v268 = vpack.c.b16 %v236, %v236
  %v269 = vpack.c.b16 %v237, %v237
  %v270 = vpack.c.b16 %v238, %v238
  %v271 = vpack.c.b16 %v239, %v239
  %v272 = vpack.c.b16 %v240, %v240
  %v273 = vpack.c.b16 %v241, %v241
  %v274 = vpack.c.b16 %v242, %v242
  %v275 = vpack.c.b16 %v243, %v243
  %v276 = vpack.c.b16 %v244, %v244
  %v277 = vpack.c.b16 %v245, %v245
  %v278 = vpack.c.b16 %v246, %v246
  %v279 = vpack.c.b16 %v247, %v247
  %v280 = vpack.c.b16 %v248, %v248
  %v281 = vpack.c.b16 %v249, %v249
  %v282 = vpack.c.b16 %v250, %v250
  %v283 = vpack.c.b16 %v251, %v251
  %316 = vst [vmem:[%s3] sm:$0xf] %v252
  %317 = vst [vmem:[%s3 + $0x4] sm:$0xf] %v253
  %318 = vst [vmem:[%s3 + $0x8] sm:$0xf] %v254
  %319 = vst [vmem:[%s3 + $0xc] sm:$0xf] %v255
  %320 = vst [vmem:[%s3 + $0x10] sm:$0xf] %v256
  %321 = vst [vmem:[%s3 + $0x14] sm:$0xf] %v257
  %322 = vst [vmem:[%s3 + $0x18] sm:$0xf] %v258
  %323 = vst [vmem:[%s3 + $0x1c] sm:$0xf] %v259
  %324 = vst [vmem:[%s3 + $0x20] sm:$0xf] %v260
  %325 = vst [vmem:[%s3 + $0x24] sm:$0xf] %v261
  %326 = vst [vmem:[%s3 + $0x28] sm:$0xf] %v262
  %327 = vst [vmem:[%s3 + $0x2c] sm:$0xf] %v263
  %328 = vst [vmem:[%s3 + $0x30] sm:$0xf] %v264
  %329 = vst [vmem:[%s3 + $0x34] sm:$0xf] %v265
  %330 = vst [vmem:[%s3 + $0x38] sm:$0xf] %v266
  %331 = vst [vmem:[%s3 + $0x3c] sm:$0xf] %v267
  %332 = vst [vmem:[%s3 + $0x40] sm:$0xf] %v268
  %333 = vst [vmem:[%s3 + $0x44] sm:$0xf] %v269
  %334 = vst [vmem:[%s3 + $0x48] sm:$0xf] %v270
  %335 = vst [vmem:[%s3 + $0x4c] sm:$0xf] %v271
  %336 = vst [vmem:[%s3 + $0x50] sm:$0xf] %v272
  %337 = vst [vmem:[%s3 + $0x54] sm:$0xf] %v273
  %338 = vst [vmem:[%s3 + $0x58] sm:$0xf] %v274
  %339 = vst [vmem:[%s3 + $0x5c] sm:$0xf] %v275
  %340 = vst [vmem:[%s3 + $0x60] sm:$0xf] %v276
  %341 = vst [vmem:[%s3 + $0x64] sm:$0xf] %v277
  %342 = vst [vmem:[%s3 + $0x68] sm:$0xf] %v278
  %343 = vst [vmem:[%s3 + $0x6c] sm:$0xf] %v279
  %344 = vst [vmem:[%s3 + $0x70] sm:$0xf] %v280
  %345 = vst [vmem:[%s3 + $0x74] sm:$0xf] %v281
  %346 = vst [vmem:[%s3 + $0x78] sm:$0xf] %v282
  %347 = vst [vmem:[%s3 + $0x7c] sm:$0xf] %v283
  // Predicated region
  $region14: #{generator_forward.14} parent=0 // pred_check
    _
  $region15: #{generator_forward.14} parent=0 // pred_check_branch
    %349 = sbr.rel (0) target = $region17
  $region16: #{generator_forward.14} parent=0 // pred_region
    _
  $region17: #{generator_forward.14} parent=0 // pred_fallthru
    _
  // Predicated region
  $region18: #{generator_forward.14} parent=0 // pred_check
    _
  $region19: #{generator_forward.14} parent=0 // pred_check_branch
    %351 = sbr.rel (0) target = $region21
  $region20: #{generator_forward.14} parent=0 // pred_region
    _
  $region21: #{generator_forward.14} parent=0 // pred_fallthru
    _

// kernel: generator_forward.15
$region0: #{generator_forward.15}
  #allocation0 [shape = 'u32[]', space=smem, size = 0x4, offset = 0x4, fixed_abs, tag = 'smem constant byte address 0x4 - core index']
  #allocation1 [shape = 'u32[144,128]{1,0:T(1,128)}', space=vmem, size = 0x12000, scoped, tag = 'internal scratch']
  %s0 = inlined_call_operand.vmem [shape: bf16[640,64], index: 0, kind: input, shape index: {}]
  %s1 = inlined_call_operand.vmem [shape: bf16[64,128], index: 1, kind: input, shape index: {}]
  %s2 = inlined_call_operand.vmem [shape: bf16[640,128], index: 2, kind: output, shape index: {0}]
  %s3 = inlined_call_operand.vmem [shape: f32[8,128], index: 3, kind: output, shape index: {1}]
  %4 = xla_tuple %s2, %s3
  %s5 = sld [smem:[#allocation0]]
  $region26: #{generator_forward.15} parent=0
    _
  %s7 = ssub.s32 1, %s5
  %s8 = scalar_select 0, %s7, %s5
  // Predicated region
  $region2: #{generator_forward.15} parent=0 // pred_check
    _
  $region3: #{generator_forward.15} parent=0 // pred_check_branch
    %10 = sbr.rel (0) target = $region5
  $region4: #{generator_forward.15} parent=0 // pred_region
    _
  $region5: #{generator_forward.15} parent=0 // pred_fallthru
    _
  // Predicated region
  $region6: #{generator_forward.15} parent=0 // pred_check
    _
  $region7: #{generator_forward.15} parent=0 // pred_check_branch
    %12 = sbr.rel (0) target = $region9
  $region8: #{generator_forward.15} parent=0 // pred_region
    _
  $region9: #{generator_forward.15} parent=0 // pred_fallthru
    _
  %v14 = vld [vmem:[%s0] sm:$0xf]
  %v15 = vld [vmem:[%s0 + $0x4] sm:$0xf]
  %v16 = vld [vmem:[%s0 + $0x8] sm:$0xf]
  %v17 = vld [vmem:[%s0 + $0xc] sm:$0xf]
  %v18 = vld [vmem:[%s0 + $0x10] sm:$0xf]
  %v19 = vld [vmem:[%s0 + $0x14] sm:$0xf]
  %v20 = vld [vmem:[%s0 + $0x18] sm:$0xf]
  %v21 = vld [vmem:[%s0 + $0x1c] sm:$0xf]
  %v22 = vld [vmem:[%s0 + $0x20] sm:$0xf]
  %v23 = vld [vmem:[%s0 + $0x24] sm:$0xf]
  %v24 = vld [vmem:[%s0 + $0x28] sm:$0xf]
  %v25 = vld [vmem:[%s0 + $0x2c] sm:$0xf]
  %v26 = vld [vmem:[%s0 + $0x30] sm:$0xf]
  %v27 = vld [vmem:[%s0 + $0x34] sm:$0xf]
  %v28 = vld [vmem:[%s0 + $0x38] sm:$0xf]
  %v29 = vld [vmem:[%s0 + $0x3c] sm:$0xf]
  %v30 = vld [vmem:[%s0 + $0x40] sm:$0xf]
  %v31 = vld [vmem:[%s0 + $0x44] sm:$0xf]
  %v32 = vld [vmem:[%s0 + $0x48] sm:$0xf]
  %v33 = vld [vmem:[%s0 + $0x4c] sm:$0xf]
  %v34 = vld [vmem:[%s0 + $0x50] sm:$0xf]
  %v35 = vld [vmem:[%s0 + $0x54] sm:$0xf]
  %v36 = vld [vmem:[%s0 + $0x58] sm:$0xf]
  %v37 = vld [vmem:[%s0 + $0x5c] sm:$0xf]
  %v38 = vld [vmem:[%s0 + $0x60] sm:$0xf]
  %v39 = vld [vmem:[%s0 + $0x64] sm:$0xf]
  %v40 = vld [vmem:[%s0 + $0x68] sm:$0xf]
  %v41 = vld [vmem:[%s0 + $0x6c] sm:$0xf]
  %v42 = vld [vmem:[%s0 + $0x70] sm:$0xf]
  %v43 = vld [vmem:[%s0 + $0x74] sm:$0xf]
  %v44 = vld [vmem:[%s0 + $0x78] sm:$0xf]
  %v45 = vld [vmem:[%s0 + $0x7c] sm:$0xf]
  %v46 = vld [vmem:[%s0 + $0x80] sm:$0xf]
  %v47 = vld [vmem:[%s0 + $0x84] sm:$0xf]
  %v48 = vld [vmem:[%s0 + $0x88] sm:$0xf]
  %v49 = vld [vmem:[%s0 + $0x8c] sm:$0xf]
  %v50 = vld [vmem:[%s0 + $0x90] sm:$0xf]
  %v51 = vld [vmem:[%s0 + $0x94] sm:$0xf]
  %v52 = vld [vmem:[%s0 + $0x98] sm:$0xf]
  %v53 = vld [vmem:[%s0 + $0x9c] sm:$0xf]
  %v54 = vld [vmem:[%s0 + $0xa0] sm:$0xf]
  %v55 = vld [vmem:[%s0 + $0xa4] sm:$0xf]
  %v56 = vld [vmem:[%s0 + $0xa8] sm:$0xf]
  %v57 = vld [vmem:[%s0 + $0xac] sm:$0xf]
  %v58 = vld [vmem:[%s0 + $0xb0] sm:$0xf]
  %v59 = vld [vmem:[%s0 + $0xb4] sm:$0xf]
  %v60 = vld [vmem:[%s0 + $0xb8] sm:$0xf]
  %v61 = vld [vmem:[%s0 + $0xbc] sm:$0xf]
  %v62 = vld [vmem:[%s0 + $0xc0] sm:$0xf]
  %v63 = vld [vmem:[%s0 + $0xc4] sm:$0xf]
  %v64 = vld [vmem:[%s0 + $0xc8] sm:$0xf]
  %v65 = vld [vmem:[%s0 + $0xcc] sm:$0xf]
  %v66 = vld [vmem:[%s0 + $0xd0] sm:$0xf]
  %v67 = vld [vmem:[%s0 + $0xd4] sm:$0xf]
  %v68 = vld [vmem:[%s0 + $0xd8] sm:$0xf]
  %v69 = vld [vmem:[%s0 + $0xdc] sm:$0xf]
  %v70 = vld [vmem:[%s0 + $0xe0] sm:$0xf]
  %v71 = vld [vmem:[%s0 + $0xe4] sm:$0xf]
  %v72 = vld [vmem:[%s0 + $0xe8] sm:$0xf]
  %v73 = vld [vmem:[%s0 + $0xec] sm:$0xf]
  %v74 = vld [vmem:[%s0 + $0xf0] sm:$0xf]
  %v75 = vld [vmem:[%s0 + $0xf4] sm:$0xf]
  %v76 = vld [vmem:[%s0 + $0xf8] sm:$0xf]
  %v77 = vld [vmem:[%s0 + $0xfc] sm:$0xf]
  %v78 = vld [vmem:[%s0 + $0x100] sm:$0xf]
  %v79 = vld [vmem:[%s0 + $0x104] sm:$0xf]
  %v80 = vld [vmem:[%s0 + $0x108] sm:$0xf]
  %v81 = vld [vmem:[%s0 + $0x10c] sm:$0xf]
  %v82 = vld [vmem:[%s0 + $0x110] sm:$0xf]
  %v83 = vld [vmem:[%s0 + $0x114] sm:$0xf]
  %v84 = vld [vmem:[%s0 + $0x118] sm:$0xf]
  %v85 = vld [vmem:[%s0 + $0x11c] sm:$0xf]
  %v86 = vld [vmem:[%s0 + $0x120] sm:$0xf]
  %v87 = vld [vmem:[%s0 + $0x124] sm:$0xf]
  %v88 = vld [vmem:[%s0 + $0x128] sm:$0xf]
  %v89 = vld [vmem:[%s0 + $0x12c] sm:$0xf]
  %v90 = vld [vmem:[%s0 + $0x130] sm:$0xf]
  %v91 = vld [vmem:[%s0 + $0x134] sm:$0xf]
  %v92 = vld [vmem:[%s0 + $0x138] sm:$0xf]
  %v93 = vld [vmem:[%s0 + $0x13c] sm:$0xf]
  %v94 = vld [vmem:[%s1] sm:$0xf]
  %v95 = vld [vmem:[%s1 + $0x4] sm:$0xf]
  %v96 = vld [vmem:[%s1 + $0x8] sm:$0xf]
  %v97 = vld [vmem:[%s1 + $0xc] sm:$0xf]
  %v98 = vld [vmem:[%s1 + $0x10] sm:$0xf]
  %v99 = vld [vmem:[%s1 + $0x14] sm:$0xf]
  %v100 = vld [vmem:[%s1 + $0x18] sm:$0xf]
  %v101 = vld [vmem:[%s1 + $0x1c] sm:$0xf]
  %v182 = vunpack.c.l.b16 %v14
  %v183 = vunpack.c.l.b16 %v15
  %v184 = vunpack.c.l.b16 %v16
  %v185 = vunpack.c.l.b16 %v17
  %v186 = vunpack.c.l.b16 %v18
  %v187 = vunpack.c.l.b16 %v19
  %v188 = vunpack.c.l.b16 %v20
  %v189 = vunpack.c.l.b16 %v21
  %v190 = vunpack.c.l.b16 %v22
  %v191 = vunpack.c.l.b16 %v23
  %v192 = vunpack.c.l.b16 %v24
  %v193 = vunpack.c.l.b16 %v25
  %v194 = vunpack.c.l.b16 %v26
  %v195 = vunpack.c.l.b16 %v27
  %v196 = vunpack.c.l.b16 %v28
  %v197 = vunpack.c.l.b16 %v29
  %v198 = vunpack.c.l.b16 %v30
  %v199 = vunpack.c.l.b16 %v31
  %v200 = vunpack.c.l.b16 %v32
  %v201 = vunpack.c.l.b16 %v33
  %v202 = vunpack.c.l.b16 %v34
  %v203 = vunpack.c.l.b16 %v35
  %v204 = vunpack.c.l.b16 %v36
  %v205 = vunpack.c.l.b16 %v37
  %v206 = vunpack.c.l.b16 %v38
  %v207 = vunpack.c.l.b16 %v39
  %v208 = vunpack.c.l.b16 %v40
  %v209 = vunpack.c.l.b16 %v41
  %v210 = vunpack.c.l.b16 %v42
  %v211 = vunpack.c.l.b16 %v43
  %v212 = vunpack.c.l.b16 %v44
  %v213 = vunpack.c.l.b16 %v45
  %v214 = vunpack.c.l.b16 %v46
  %v215 = vunpack.c.l.b16 %v47
  %v216 = vunpack.c.l.b16 %v48
  %v217 = vunpack.c.l.b16 %v49
  %v218 = vunpack.c.l.b16 %v50
  %v219 = vunpack.c.l.b16 %v51
  %v220 = vunpack.c.l.b16 %v52
  %v221 = vunpack.c.l.b16 %v53
  %v222 = vunpack.c.l.b16 %v54
  %v223 = vunpack.c.l.b16 %v55
  %v224 = vunpack.c.l.b16 %v56
  %v225 = vunpack.c.l.b16 %v57
  %v226 = vunpack.c.l.b16 %v58
  %v227 = vunpack.c.l.b16 %v59
  %v228 = vunpack.c.l.b16 %v60
  %v229 = vunpack.c.l.b16 %v61
  %v230 = vunpack.c.l.b16 %v62
  %v231 = vunpack.c.l.b16 %v63
  %v232 = vunpack.c.l.b16 %v64
  %v233 = vunpack.c.l.b16 %v65
  %v234 = vunpack.c.l.b16 %v66
  %v235 = vunpack.c.l.b16 %v67
  %v236 = vunpack.c.l.b16 %v68
  %v237 = vunpack.c.l.b16 %v69
  %v238 = vunpack.c.l.b16 %v70
  %v239 = vunpack.c.l.b16 %v71
  %v240 = vunpack.c.l.b16 %v72
  %v241 = vunpack.c.l.b16 %v73
  %v242 = vunpack.c.l.b16 %v74
  %v243 = vunpack.c.l.b16 %v75
  %v244 = vunpack.c.l.b16 %v76
  %v245 = vunpack.c.l.b16 %v77
  %v246 = vunpack.c.l.b16 %v78
  %v247 = vunpack.c.l.b16 %v79
  %v248 = vunpack.c.l.b16 %v80
  %v249 = vunpack.c.l.b16 %v81
  %v250 = vunpack.c.l.b16 %v82
  %v251 = vunpack.c.l.b16 %v83
  %v252 = vunpack.c.l.b16 %v84
  %v253 = vunpack.c.l.b16 %v85
  %v254 = vunpack.c.l.b16 %v86
  %v255 = vunpack.c.l.b16 %v87
  %v256 = vunpack.c.l.b16 %v88
  %v257 = vunpack.c.l.b16 %v89
  %v258 = vunpack.c.l.b16 %v90
  %v259 = vunpack.c.l.b16 %v91
  %v260 = vunpack.c.l.b16 %v92
  %v261 = vunpack.c.l.b16 %v93
  %v262 = vpack.c.b16 %v183, %v182
  %v263 = vpack.c.b16 %v185, %v184
  %v264 = vpack.c.b16 %v187, %v186
  %v265 = vpack.c.b16 %v189, %v188
  %v266 = vpack.c.b16 %v191, %v190
  %v267 = vpack.c.b16 %v193, %v192
  %v268 = vpack.c.b16 %v195, %v194
  %v269 = vpack.c.b16 %v197, %v196
  %v270 = vpack.c.b16 %v199, %v198
  %v271 = vpack.c.b16 %v201, %v200
  %v272 = vpack.c.b16 %v203, %v202
  %v273 = vpack.c.b16 %v205, %v204
  %v274 = vpack.c.b16 %v207, %v206
  %v275 = vpack.c.b16 %v209, %v208
  %v276 = vpack.c.b16 %v211, %v210
  %v277 = vpack.c.b16 %v213, %v212
  %v278 = vpack.c.b16 %v215, %v214
  %v279 = vpack.c.b16 %v217, %v216
  %v280 = vpack.c.b16 %v219, %v218
  %v281 = vpack.c.b16 %v221, %v220
  %v282 = vpack.c.b16 %v223, %v222
  %v283 = vpack.c.b16 %v225, %v224
  %v284 = vpack.c.b16 %v227, %v226
  %v285 = vpack.c.b16 %v229, %v228
  %v286 = vpack.c.b16 %v231, %v230
  %v287 = vpack.c.b16 %v233, %v232
  %v288 = vpack.c.b16 %v235, %v234
  %v289 = vpack.c.b16 %v237, %v236
  %v290 = vpack.c.b16 %v239, %v238
  %v291 = vpack.c.b16 %v241, %v240
  %v292 = vpack.c.b16 %v243, %v242
  %v293 = vpack.c.b16 %v245, %v244
  %v294 = vpack.c.b16 %v247, %v246
  %v295 = vpack.c.b16 %v249, %v248
  %v296 = vpack.c.b16 %v251, %v250
  %v297 = vpack.c.b16 %v253, %v252
  %v298 = vpack.c.b16 %v255, %v254
  %v299 = vpack.c.b16 %v257, %v256
  %v300 = vpack.c.b16 %v259, %v258
  %v301 = vpack.c.b16 %v261, %v260
  %v310 = vunpack.c.l.b16 %v94
  %v311 = vunpack.c.l.b16 %v95
  %v312 = vunpack.c.l.b16 %v96
  %v313 = vunpack.c.l.b16 %v97
  %v314 = vunpack.c.l.b16 %v98
  %v315 = vunpack.c.l.b16 %v99
  %v316 = vunpack.c.l.b16 %v100
  %v317 = vunpack.c.l.b16 %v101
  %v318 = vpack.c.b16 %v311, %v310
  %v319 = vpack.c.b16 %v313, %v312
  %v320 = vpack.c.b16 %v315, %v314
  %v321 = vpack.c.b16 %v317, %v316
  %vm326 = vcmask 523264
  %v328 = vsel %vm326, %v262, 0
  %v331 = vsel %vm326, %v263, 0
  %v334 = vsel %vm326, %v264, 0
  %v337 = vsel %vm326, %v265, 0
  %v340 = vsel %vm326, %v266, 0
  %v343 = vsel %vm326, %v267, 0
  %v346 = vsel %vm326, %v268, 0
  %v349 = vsel %vm326, %v269, 0
  %v352 = vsel %vm326, %v270, 0
  %v355 = vsel %vm326, %v271, 0
  %v358 = vsel %vm326, %v272, 0
  %v361 = vsel %vm326, %v273, 0
  %v364 = vsel %vm326, %v274, 0
  %v367 = vsel %vm326, %v275, 0
  %v370 = vsel %vm326, %v276, 0
  %v373 = vsel %vm326, %v277, 0
  %v376 = vsel %vm326, %v278, 0
  %v379 = vsel %vm326, %v279, 0
  %v382 = vsel %vm326, %v280, 0
  %v385 = vsel %vm326, %v281, 0
  %v388 = vsel %vm326, %v282, 0
  %v391 = vsel %vm326, %v283, 0
  %v394 = vsel %vm326, %v284, 0
  %v397 = vsel %vm326, %v285, 0
  %v400 = vsel %vm326, %v286, 0
  %v403 = vsel %vm326, %v287, 0
  %v406 = vsel %vm326, %v288, 0
  %v409 = vsel %vm326, %v289, 0
  %v412 = vsel %vm326, %v290, 0
  %v415 = vsel %vm326, %v291, 0
  %v418 = vsel %vm326, %v292, 0
  %v421 = vsel %vm326, %v293, 0
  %v424 = vsel %vm326, %v294, 0
  %v427 = vsel %vm326, %v295, 0
  %v430 = vsel %vm326, %v296, 0
  %v433 = vsel %vm326, %v297, 0
  %v436 = vsel %vm326, %v298, 0
  %v439 = vsel %vm326, %v299, 0
  %v442 = vsel %vm326, %v300, 0
  %v445 = vsel %vm326, %v301, 0
  %447 = vmatprep.subr.bf16.mxu0 0
  %448 = vmatpush1.bf16.msra.mxu0 %v318
  %449 = vmatprep.subr.bf16.mxu0 0
  %450 = vmatpush1.bf16.msra.mxu0 %v319
  %451 = vmatprep.subr.bf16.mxu0 0
  %452 = vmatpush1.bf16.msra.mxu0 %v320
  %453 = vmatprep.subr.bf16.mxu0 0
  %454 = vmatpush1.bf16.msra.mxu0 %v321
  %455 = vmatprep.subr.bf16.mxu0 0
  %456 = vmatpush1.bf16.msra.mxu0 0
  %457 = vmatprep.subr.bf16.mxu0 0
  %458 = vmatpush1.bf16.msra.mxu0 0
  %459 = vmatprep.subr.bf16.mxu0 0
  %460 = vmatpush1.bf16.msra.mxu0 0
  %461 = vmatprep.subr.bf16.mxu0 0
  %462 = vmatpush1.bf16.msra.mxu0 0
  %463 = vmatprep.subr.bf16.mxu0 0
  %464 = vmatpush1.bf16.msra.mxu0 0
  %465 = vmatprep.subr.bf16.mxu0 0
  %466 = vmatpush1.bf16.msra.mxu0 0
  %467 = vmatprep.subr.bf16.mxu0 0
  %468 = vmatpush1.bf16.msra.mxu0 0
  %469 = vmatprep.subr.bf16.mxu0 0
  %470 = vmatpush1.bf16.msra.mxu0 0
  %471 = vmatprep.subr.bf16.mxu0 0
  %472 = vmatpush1.bf16.msra.mxu0 0
  %473 = vmatprep.subr.bf16.mxu0 0
  %474 = vmatpush1.bf16.msra.mxu0 0
  %475 = vmatprep.subr.bf16.mxu0 0
  %476 = vmatpush1.bf16.msra.mxu0 0
  %477 = vmatprep.subr.bf16.mxu0 0
  %478 = vmatpush1.bf16.msra.mxu0 0
  %479 = vmatprep.mubr.bf16.mxu0 0
  %480 = vmatmul.mubr.bf16.gmra.mrb[0].mxu0 %v328
  %v481 = vpop.f32.mrb[0].mxu0
  %v482 = vadd.f32 0.0, %v481
  %v483 = vpop.f32.mrb[0].mxu0
  %v484 = vpop.f32.mrb[0].mxu0
  %v485 = vadd.f32 0.0, %v484
  %v486 = vpop.f32.mrb[0].mxu0
  %487 = vmatprep.mubr.bf16.mxu0 0
  %488 = vmatmul.mubr.bf16.gmra.mrb[0].mxu0 %v331
  %v489 = vpop.f32.mrb[0].mxu0
  %v490 = vadd.f32 0.0, %v489
  %v491 = vpop.f32.mrb[0].mxu0
  %v492 = vpop.f32.mrb[0].mxu0
  %v493 = vadd.f32 0.0, %v492
  %v494 = vpop.f32.mrb[0].mxu0
  %495 = vmatprep.mubr.bf16.mxu0 0
  %496 = vmatmul.mubr.bf16.gmra.mrb[0].mxu0 %v334
  %v497 = vpop.f32.mrb[0].mxu0
  %v498 = vadd.f32 0.0, %v497
  %v499 = vpop.f32.mrb[0].mxu0
  %v500 = vpop.f32.mrb[0].mxu0
  %v501 = vadd.f32 0.0, %v500
  %v502 = vpop.f32.mrb[0].mxu0
  %503 = vmatprep.mubr.bf16.mxu0 0
  %504 = vmatmul.mubr.bf16.gmra.mrb[0].mxu0 %v337
  %v505 = vpop.f32.mrb[0].mxu0
  %v506 = vadd.f32 0.0, %v505
  %v507 = vpop.f32.mrb[0].mxu0
  %v508 = vpop.f32.mrb[0].mxu0
  %v509 = vadd.f32 0.0, %v508
  %v510 = vpop.f32.mrb[0].mxu0
  %511 = vmatprep.mubr.bf16.mxu0 0
  %512 = vmatmul.mubr.bf16.gmra.mrb[0].mxu0 %v340
  %v513 = vpop.f32.mrb[0].mxu0
  %v514 = vadd.f32 0.0, %v513
  %v515 = vpop.f32.mrb[0].mxu0
  %v516 = vpop.f32.mrb[0].mxu0
  %v517 = vadd.f32 0.0, %v516
  %v518 = vpop.f32.mrb[0].mxu0
  %519 = vmatprep.mubr.bf16.mxu0 0
  %520 = vmatmul.mubr.bf16.gmra.mrb[0].mxu0 %v343
  %v521 = vpop.f32.mrb[0].mxu0
  %v522 = vadd.f32 0.0, %v521
  %v523 = vpop.f32.mrb[0].mxu0
  %v524 = vpop.f32.mrb[0].mxu0
  %v525 = vadd.f32 0.0, %v524
  %v526 = vpop.f32.mrb[0].mxu0
  %527 = vmatprep.mubr.bf16.mxu0 0
  %528 = vmatmul.mubr.bf16.gmra.mrb[0].mxu0 %v346
  %v529 = vpop.f32.mrb[0].mxu0
  %v530 = vadd.f32 0.0, %v529
  %v531 = vpop.f32.mrb[0].mxu0
  %v532 = vpop.f32.mrb[0].mxu0
  %v533 = vadd.f32 0.0, %v532
  %v534 = vpop.f32.mrb[0].mxu0
  %535 = vmatprep.mubr.bf16.mxu0 0
  %536 = vmatmul.mubr.bf16.gmra.mrb[0].mxu0 %v349
  %v537 = vpop.f32.mrb[0].mxu0
  %v538 = vadd.f32 0.0, %v537
  %v539 = vpop.f32.mrb[0].mxu0
  %v540 = vpop.f32.mrb[0].mxu0
  %v541 = vadd.f32 0.0, %v540
  %v542 = vpop.f32.mrb[0].mxu0
  %543 = vmatprep.mubr.bf16.mxu0 0
  %544 = vmatmul.mubr.bf16.gmra.mrb[0].mxu0 %v352
  %v545 = vpop.f32.mrb[0].mxu0
  %v546 = vadd.f32 0.0, %v545
  %v547 = vpop.f32.mrb[0].mxu0
  %v548 = vpop.f32.mrb[0].mxu0
  %v549 = vadd.f32 0.0, %v548
  %v550 = vpop.f32.mrb[0].mxu0
  %551 = vmatprep.mubr.bf16.mxu0 0
  %552 = vmatmul.mubr.bf16.gmra.mrb[0].mxu0 %v355
  %v553 = vpop.f32.mrb[0].mxu0
  %v554 = vadd.f32 0.0, %v553
  %v555 = vpop.f32.mrb[0].mxu0
  %v556 = vpop.f32.mrb[0].mxu0
  %v557 = vadd.f32 0.0, %v556
  %v558 = vpop.f32.mrb[0].mxu0
  %559 = vmatprep.mubr.bf16.mxu0 0
  %560 = vmatmul.mubr.bf16.gmra.mrb[0].mxu0 %v358
  %v561 = vpop.f32.mrb[0].mxu0
  %v562 = vadd.f32 0.0, %v561
  %v563 = vpop.f32.mrb[0].mxu0
  %v564 = vpop.f32.mrb[0].mxu0
  %v565 = vadd.f32 0.0, %v564
  %v566 = vpop.f32.mrb[0].mxu0
  %567 = vmatprep.mubr.bf16.mxu0 0
  %568 = vmatmul.mubr.bf16.gmra.mrb[0].mxu0 %v361
  %v569 = vpop.f32.mrb[0].mxu0
  %v570 = vadd.f32 0.0, %v569
  %v571 = vpop.f32.mrb[0].mxu0
  %v572 = vpop.f32.mrb[0].mxu0
  %v573 = vadd.f32 0.0, %v572
  %v574 = vpop.f32.mrb[0].mxu0
  %575 = vmatprep.mubr.bf16.mxu0 0
  %576 = vmatmul.mubr.bf16.gmra.mrb[0].mxu0 %v364
  %v577 = vpop.f32.mrb[0].mxu0
  %v578 = vadd.f32 0.0, %v577
  %v579 = vpop.f32.mrb[0].mxu0
  %v580 = vpop.f32.mrb[0].mxu0
  %v581 = vadd.f32 0.0, %v580
  %v582 = vpop.f32.mrb[0].mxu0
  %583 = vmatprep.mubr.bf16.mxu0 0
  %584 = vmatmul.mubr.bf16.gmra.mrb[0].mxu0 %v367
  %v585 = vpop.f32.mrb[0].mxu0
  %v586 = vadd.f32 0.0, %v585
  %v587 = vpop.f32.mrb[0].mxu0
  %v588 = vpop.f32.mrb[0].mxu0
  %v589 = vadd.f32 0.0, %v588
  %v590 = vpop.f32.mrb[0].mxu0
  %591 = vmatprep.mubr.bf16.mxu0 0
  %592 = vmatmul.mubr.bf16.gmra.mrb[0].mxu0 %v370
  %v593 = vpop.f32.mrb[0].mxu0
  %v594 = vadd.f32 0.0, %v593
  %v595 = vpop.f32.mrb[0].mxu0
  %v596 = vpop.f32.mrb[0].mxu0
  %v597 = vadd.f32 0.0, %v596
  %v598 = vpop.f32.mrb[0].mxu0
  %599 = vmatprep.mubr.bf16.mxu0 0
  %600 = vmatmul.mubr.bf16.gmra.mrb[0].mxu0 %v373
  %v601 = vpop.f32.mrb[0].mxu0
  %v602 = vadd.f32 0.0, %v601
  %v603 = vpop.f32.mrb[0].mxu0
  %v604 = vpop.f32.mrb[0].mxu0
  %v605 = vadd.f32 0.0, %v604
  %v606 = vpop.f32.mrb[0].mxu0
  %607 = vmatprep.mubr.bf16.mxu0 0
  %608 = vmatmul.mubr.bf16.gmra.mrb[0].mxu0 %v376
  %v609 = vpop.f32.mrb[0].mxu0
  %v610 = vadd.f32 0.0, %v609
  %v611 = vpop.f32.mrb[0].mxu0
  %v612 = vpop.f32.mrb[0].mxu0
  %v613 = vadd.f32 0.0, %v612
  %v614 = vpop.f32.mrb[0].mxu0
  %615 = vmatprep.mubr.bf16.mxu0 0
  %616 = vmatmul.mubr.bf16.gmra.mrb[0].mxu0 %v379
  %v617 = vpop.f32.mrb[0].mxu0
  %v618 = vadd.f32 0.0, %v617
  %v619 = vpop.f32.mrb[0].mxu0
  %v620 = vpop.f32.mrb[0].mxu0
  %v621 = vadd.f32 0.0, %v620
  %v622 = vpop.f32.mrb[0].mxu0
  %623 = vmatprep.mubr.bf16.mxu0 0
  %624 = vmatmul.mubr.bf16.gmra.mrb[0].mxu0 %v382
  %v625 = vpop.f32.mrb[0].mxu0
  %v626 = vadd.f32 0.0, %v625
  %v627 = vpop.f32.mrb[0].mxu0
  %v628 = vpop.f32.mrb[0].mxu0
  %v629 = vadd.f32 0.0, %v628
  %v630 = vpop.f32.mrb[0].mxu0
  %631 = vmatprep.mubr.bf16.mxu0 0
  %632 = vmatmul.mubr.bf16.gmra.mrb[0].mxu0 %v385
  %v633 = vpop.f32.mrb[0].mxu0
  %v634 = vadd.f32 0.0, %v633
  %v635 = vpop.f32.mrb[0].mxu0
  %v636 = vpop.f32.mrb[0].mxu0
  %v637 = vadd.f32 0.0, %v636
  %v638 = vpop.f32.mrb[0].mxu0
  %639 = vmatprep.mubr.bf16.mxu0 0
  %640 = vmatmul.mubr.bf16.gmra.mrb[0].mxu0 %v388
  %v641 = vpop.f32.mrb[0].mxu0
  %v642 = vadd.f32 0.0, %v641
  %v643 = vpop.f32.mrb[0].mxu0
  %v644 = vpop.f32.mrb[0].mxu0
  %v645 = vadd.f32 0.0, %v644
  %v646 = vpop.f32.mrb[0].mxu0
  %647 = vmatprep.mubr.bf16.mxu0 0
  %648 = vmatmul.mubr.bf16.gmra.mrb[0].mxu0 %v391
  %v649 = vpop.f32.mrb[0].mxu0
  %v650 = vadd.f32 0.0, %v649
  %v651 = vpop.f32.mrb[0].mxu0
  %v652 = vpop.f32.mrb[0].mxu0
  %v653 = vadd.f32 0.0, %v652
  %v654 = vpop.f32.mrb[0].mxu0
  %655 = vmatprep.mubr.bf16.mxu0 0
  %656 = vmatmul.mubr.bf16.gmra.mrb[0].mxu0 %v394
  %v657 = vpop.f32.mrb[0].mxu0
  %v658 = vadd.f32 0.0, %v657
  %v659 = vpop.f32.mrb[0].mxu0
  %v660 = vpop.f32.mrb[0].mxu0
  %v661 = vadd.f32 0.0, %v660
  %v662 = vpop.f32.mrb[0].mxu0
  %663 = vmatprep.mubr.bf16.mxu0 0
  %664 = vmatmul.mubr.bf16.gmra.mrb[0].mxu0 %v397
  %v665 = vpop.f32.mrb[0].mxu0
  %v666 = vadd.f32 0.0, %v665
  %v667 = vpop.f32.mrb[0].mxu0
  %v668 = vpop.f32.mrb[0].mxu0
  %v669 = vadd.f32 0.0, %v668
  %v670 = vpop.f32.mrb[0].mxu0
  %671 = vmatprep.mubr.bf16.mxu0 0
  %672 = vmatmul.mubr.bf16.gmra.mrb[0].mxu0 %v400
  %v673 = vpop.f32.mrb[0].mxu0
  %v674 = vadd.f32 0.0, %v673
  %v675 = vpop.f32.mrb[0].mxu0
  %v676 = vpop.f32.mrb[0].mxu0
  %v677 = vadd.f32 0.0, %v676
  %v678 = vpop.f32.mrb[0].mxu0
  %679 = vmatprep.mubr.bf16.mxu0 0
  %680 = vmatmul.mubr.bf16.gmra.mrb[0].mxu0 %v403
  %v681 = vpop.f32.mrb[0].mxu0
  %v682 = vadd.f32 0.0, %v681
  %v683 = vpop.f32.mrb[0].mxu0
  %v684 = vpop.f32.mrb[0].mxu0
  %v685 = vadd.f32 0.0, %v684
  %v686 = vpop.f32.mrb[0].mxu0
  %687 = vmatprep.mubr.bf16.mxu0 0
  %688 = vmatmul.mubr.bf16.gmra.mrb[0].mxu0 %v406
  %v689 = vpop.f32.mrb[0].mxu0
  %v690 = vadd.f32 0.0, %v689
  %v691 = vpop.f32.mrb[0].mxu0
  %v692 = vpop.f32.mrb[0].mxu0
  %v693 = vadd.f32 0.0, %v692
  %v694 = vpop.f32.mrb[0].mxu0
  %695 = vmatprep.mubr.bf16.mxu0 0
  %696 = vmatmul.mubr.bf16.gmra.mrb[0].mxu0 %v409
  %v697 = vpop.f32.mrb[0].mxu0
  %v698 = vadd.f32 0.0, %v697
  %v699 = vpop.f32.mrb[0].mxu0
  %v700 = vpop.f32.mrb[0].mxu0
  %v701 = vadd.f32 0.0, %v700
  %v702 = vpop.f32.mrb[0].mxu0
  %703 = vmatprep.mubr.bf16.mxu0 0
  %704 = vmatmul.mubr.bf16.gmra.mrb[0].mxu0 %v412
  %v705 = vpop.f32.mrb[0].mxu0
  %v706 = vadd.f32 0.0, %v705
  %v707 = vpop.f32.mrb[0].mxu0
  %v708 = vpop.f32.mrb[0].mxu0
  %v709 = vadd.f32 0.0, %v708
  %v710 = vpop.f32.mrb[0].mxu0
  %711 = vmatprep.mubr.bf16.mxu0 0
  %712 = vmatmul.mubr.bf16.gmra.mrb[0].mxu0 %v415
  %v713 = vpop.f32.mrb[0].mxu0
  %v714 = vadd.f32 0.0, %v713
  %v715 = vpop.f32.mrb[0].mxu0
  %v716 = vpop.f32.mrb[0].mxu0
  %v717 = vadd.f32 0.0, %v716
  %v718 = vpop.f32.mrb[0].mxu0
  %719 = vmatprep.mubr.bf16.mxu0 0
  %720 = vmatmul.mubr.bf16.gmra.mrb[0].mxu0 %v418
  %v721 = vpop.f32.mrb[0].mxu0
  %v722 = vadd.f32 0.0, %v721
  %v723 = vpop.f32.mrb[0].mxu0
  %v724 = vpop.f32.mrb[0].mxu0
  %v725 = vadd.f32 0.0, %v724
  %v726 = vpop.f32.mrb[0].mxu0
  %727 = vmatprep.mubr.bf16.mxu0 0
  %728 = vmatmul.mubr.bf16.gmra.mrb[0].mxu0 %v421
  %v729 = vpop.f32.mrb[0].mxu0
  %v730 = vadd.f32 0.0, %v729
  %v731 = vpop.f32.mrb[0].mxu0
  %v732 = vpop.f32.mrb[0].mxu0
  %v733 = vadd.f32 0.0, %v732
  %v734 = vpop.f32.mrb[0].mxu0
  %735 = vmatprep.mubr.bf16.mxu0 0
  %736 = vmatmul.mubr.bf16.gmra.mrb[0].mxu0 %v424
  %v737 = vpop.f32.mrb[0].mxu0
  %v738 = vadd.f32 0.0, %v737
  %v739 = vpop.f32.mrb[0].mxu0
  %v740 = vpop.f32.mrb[0].mxu0
  %v741 = vadd.f32 0.0, %v740
  %v742 = vpop.f32.mrb[0].mxu0
  %743 = vmatprep.mubr.bf16.mxu0 0
  %744 = vmatmul.mubr.bf16.gmra.mrb[0].mxu0 %v427
  %v745 = vpop.f32.mrb[0].mxu0
  %v746 = vadd.f32 0.0, %v745
  %v747 = vpop.f32.mrb[0].mxu0
  %v748 = vpop.f32.mrb[0].mxu0
  %v749 = vadd.f32 0.0, %v748
  %v750 = vpop.f32.mrb[0].mxu0
  %751 = vmatprep.mubr.bf16.mxu0 0
  %752 = vmatmul.mubr.bf16.gmra.mrb[0].mxu0 %v430
  %v753 = vpop.f32.mrb[0].mxu0
  %v754 = vadd.f32 0.0, %v753
  %v755 = vpop.f32.mrb[0].mxu0
  %v756 = vpop.f32.mrb[0].mxu0
  %v757 = vadd.f32 0.0, %v756
  %v758 = vpop.f32.mrb[0].mxu0
  %759 = vmatprep.mubr.bf16.mxu0 0
  %760 = vmatmul.mubr.bf16.gmra.mrb[0].mxu0 %v433
  %v761 = vpop.f32.mrb[0].mxu0
  %v762 = vadd.f32 0.0, %v761
  %v763 = vpop.f32.mrb[0].mxu0
  %v764 = vpop.f32.mrb[0].mxu0
  %v765 = vadd.f32 0.0, %v764
  %v766 = vpop.f32.mrb[0].mxu0
  %767 = vmatprep.mubr.bf16.mxu0 0
  %768 = vmatmul.mubr.bf16.gmra.mrb[0].mxu0 %v436
  %v769 = vpop.f32.mrb[0].mxu0
  %v770 = vadd.f32 0.0, %v769
  %v771 = vpop.f32.mrb[0].mxu0
  %v772 = vpop.f32.mrb[0].mxu0
  %v773 = vadd.f32 0.0, %v772
  %v774 = vpop.f32.mrb[0].mxu0
  %775 = vmatprep.mubr.bf16.mxu0 0
  %776 = vmatmul.mubr.bf16.gmra.mrb[0].mxu0 %v439
  %v777 = vpop.f32.mrb[0].mxu0
  %v778 = vadd.f32 0.0, %v777
  %v779 = vpop.f32.mrb[0].mxu0
  %v780 = vpop.f32.mrb[0].mxu0
  %v781 = vadd.f32 0.0, %v780
  %v782 = vpop.f32.mrb[0].mxu0
  %783 = vmatprep.mubr.bf16.mxu0 0
  %784 = vmatmul.mubr.bf16.gmra.mrb[0].mxu0 %v442
  %v785 = vpop.f32.mrb[0].mxu0
  %v786 = vadd.f32 0.0, %v785
  %v787 = vpop.f32.mrb[0].mxu0
  %v788 = vpop.f32.mrb[0].mxu0
  %v789 = vadd.f32 0.0, %v788
  %v790 = vpop.f32.mrb[0].mxu0
  %791 = vmatprep.mubr.bf16.mxu0 0
  %792 = vmatmul.mubr.bf16.gmra.mrb[0].mxu0 %v445
  %v793 = vpop.f32.mrb[0].mxu0
  %v794 = vadd.f32 0.0, %v793
  %v795 = vpop.f32.mrb[0].mxu0
  %v796 = vpop.f32.mrb[0].mxu0
  %v797 = vadd.f32 0.0, %v796
  %v798 = vpop.f32.mrb[0].mxu0
  %799 = vdwg.mxu0
  %v800 = vpack.c.bf16 %v485, %v482
  %v801 = vpack.c.bf16 %v493, %v490
  %v802 = vpack.c.bf16 %v501, %v498
  %v803 = vpack.c.bf16 %v509, %v506
  %v804 = vpack.c.bf16 %v517, %v514
  %v805 = vpack.c.bf16 %v525, %v522
  %v806 = vpack.c.bf16 %v533, %v530
  %v807 = vpack.c.bf16 %v541, %v538
  %v808 = vpack.c.bf16 %v549, %v546
  %v809 = vpack.c.bf16 %v557, %v554
  %v810 = vpack.c.bf16 %v565, %v562
  %v811 = vpack.c.bf16 %v573, %v570
  %v812 = vpack.c.bf16 %v581, %v578
  %v813 = vpack.c.bf16 %v589, %v586
  %v814 = vpack.c.bf16 %v597, %v594
  %v815 = vpack.c.bf16 %v605, %v602
  %v816 = vpack.c.bf16 %v613, %v610
  %v817 = vpack.c.bf16 %v621, %v618
  %v818 = vpack.c.bf16 %v629, %v626
  %v819 = vpack.c.bf16 %v637, %v634
  %v820 = vpack.c.bf16 %v645, %v642
  %v821 = vpack.c.bf16 %v653, %v650
  %v822 = vpack.c.bf16 %v661, %v658
  %v823 = vpack.c.bf16 %v669, %v666
  %v824 = vpack.c.bf16 %v677, %v674
  %v825 = vpack.c.bf16 %v685, %v682
  %v826 = vpack.c.bf16 %v693, %v690
  %v827 = vpack.c.bf16 %v701, %v698
  %v828 = vpack.c.bf16 %v709, %v706
  %v829 = vpack.c.bf16 %v717, %v714
  %v830 = vpack.c.bf16 %v725, %v722
  %v831 = vpack.c.bf16 %v733, %v730
  %v832 = vpack.c.bf16 %v741, %v738
  %v833 = vpack.c.bf16 %v749, %v746
  %v834 = vpack.c.bf16 %v757, %v754
  %v835 = vpack.c.bf16 %v765, %v762
  %v836 = vpack.c.bf16 %v773, %v770
  %v837 = vpack.c.bf16 %v781, %v778
  %v838 = vpack.c.bf16 %v789, %v786
  %v839 = vpack.c.bf16 %v797, %v794
  %v880 = vunpack.c.l.b16 %v800
  %v881 = vunpack.c.h.b16 %v800
  %v882 = vunpack.c.l.b16 %v801
  %v883 = vunpack.c.h.b16 %v801
  %v884 = vunpack.c.l.b16 %v802
  %v885 = vunpack.c.h.b16 %v802
  %v886 = vunpack.c.l.b16 %v803
  %v887 = vunpack.c.h.b16 %v803
  %v888 = vunpack.c.l.b16 %v804
  %v889 = vunpack.c.h.b16 %v804
  %v890 = vunpack.c.l.b16 %v805
  %v891 = vunpack.c.h.b16 %v805
  %v892 = vunpack.c.l.b16 %v806
  %v893 = vunpack.c.h.b16 %v806
  %v894 = vunpack.c.l.b16 %v807
  %v895 = vunpack.c.h.b16 %v807
  %v896 = vunpack.c.l.b16 %v808
  %v897 = vunpack.c.h.b16 %v808
  %v898 = vunpack.c.l.b16 %v809
  %v899 = vunpack.c.h.b16 %v809
  %v900 = vunpack.c.l.b16 %v810
  %v901 = vunpack.c.h.b16 %v810
  %v902 = vunpack.c.l.b16 %v811
  %v903 = vunpack.c.h.b16 %v811
  %v904 = vunpack.c.l.b16 %v812
  %v905 = vunpack.c.h.b16 %v812
  %v906 = vunpack.c.l.b16 %v813
  %v907 = vunpack.c.h.b16 %v813
  %v908 = vunpack.c.l.b16 %v814
  %v909 = vunpack.c.h.b16 %v814
  %v910 = vunpack.c.l.b16 %v815
  %v911 = vunpack.c.h.b16 %v815
  %v912 = vunpack.c.l.b16 %v816
  %v913 = vunpack.c.h.b16 %v816
  %v914 = vunpack.c.l.b16 %v817
  %v915 = vunpack.c.h.b16 %v817
  %v916 = vunpack.c.l.b16 %v818
  %v917 = vunpack.c.h.b16 %v818
  %v918 = vunpack.c.l.b16 %v819
  %v919 = vunpack.c.h.b16 %v819
  %v920 = vunpack.c.l.b16 %v820
  %v921 = vunpack.c.h.b16 %v820
  %v922 = vunpack.c.l.b16 %v821
  %v923 = vunpack.c.h.b16 %v821
  %v924 = vunpack.c.l.b16 %v822
  %v925 = vunpack.c.h.b16 %v822
  %v926 = vunpack.c.l.b16 %v823
  %v927 = vunpack.c.h.b16 %v823
  %v928 = vunpack.c.l.b16 %v824
  %v929 = vunpack.c.h.b16 %v824
  %v930 = vunpack.c.l.b16 %v825
  %v931 = vunpack.c.h.b16 %v825
  %v932 = vunpack.c.l.b16 %v826
  %v933 = vunpack.c.h.b16 %v826
  %v934 = vunpack.c.l.b16 %v827
  %v935 = vunpack.c.h.b16 %v827
  %v936 = vunpack.c.l.b16 %v828
  %v937 = vunpack.c.h.b16 %v828
  %v938 = vunpack.c.l.b16 %v829
  %v939 = vunpack.c.h.b16 %v829
  %v940 = vunpack.c.l.b16 %v830
  %v941 = vunpack.c.h.b16 %v830
  %v942 = vunpack.c.l.b16 %v831
  %v943 = vunpack.c.h.b16 %v831
  %v944 = vunpack.c.l.b16 %v832
  %v945 = vunpack.c.h.b16 %v832
  %v946 = vunpack.c.l.b16 %v833
  %v947 = vunpack.c.h.b16 %v833
  %v948 = vunpack.c.l.b16 %v834
  %v949 = vunpack.c.h.b16 %v834
  %v950 = vunpack.c.l.b16 %v835
  %v951 = vunpack.c.h.b16 %v835
  %v952 = vunpack.c.l.b16 %v836
  %v953 = vunpack.c.h.b16 %v836
  %v954 = vunpack.c.l.b16 %v837
  %v955 = vunpack.c.h.b16 %v837
  %v956 = vunpack.c.l.b16 %v838
  %v957 = vunpack.c.h.b16 %v838
  %v958 = vunpack.c.l.b16 %v839
  %v959 = vunpack.c.h.b16 %v839
  %v960 = vpack.c.b16 %v880, %v880
  %v961 = vpack.c.b16 %v881, %v881
  %v962 = vpack.c.b16 %v882, %v882
  %v963 = vpack.c.b16 %v883, %v883
  %v964 = vpack.c.b16 %v884, %v884
  %v965 = vpack.c.b16 %v885, %v885
  %v966 = vpack.c.b16 %v886, %v886
  %v967 = vpack.c.b16 %v887, %v887
  %v968 = vpack.c.b16 %v888, %v888
  %v969 = vpack.c.b16 %v889, %v889
  %v970 = vpack.c.b16 %v890, %v890
  %v971 = vpack.c.b16 %v891, %v891
  %v972 = vpack.c.b16 %v892, %v892
  %v973 = vpack.c.b16 %v893, %v893
  %v974 = vpack.c.b16 %v894, %v894
  %v975 = vpack.c.b16 %v895, %v895
  %v976 = vpack.c.b16 %v896, %v896
  %v977 = vpack.c.b16 %v897, %v897
  %v978 = vpack.c.b16 %v898, %v898
  %v979 = vpack.c.b16 %v899, %v899
  %v980 = vpack.c.b16 %v900, %v900
  %v981 = vpack.c.b16 %v901, %v901
  %v982 = vpack.c.b16 %v902, %v902
  %v983 = vpack.c.b16 %v903, %v903
  %v984 = vpack.c.b16 %v904, %v904
  %v985 = vpack.c.b16 %v905, %v905
  %v986 = vpack.c.b16 %v906, %v906
  %v987 = vpack.c.b16 %v907, %v907
  %v988 = vpack.c.b16 %v908, %v908
  %v989 = vpack.c.b16 %v909, %v909
  %v990 = vpack.c.b16 %v910, %v910
  %v991 = vpack.c.b16 %v911, %v911
  %v992 = vpack.c.b16 %v912, %v912
  %v993 = vpack.c.b16 %v913, %v913
  %v994 = vpack.c.b16 %v914, %v914
  %v995 = vpack.c.b16 %v915, %v915
  %v996 = vpack.c.b16 %v916, %v916
  %v997 = vpack.c.b16 %v917, %v917
  %v998 = vpack.c.b16 %v918, %v918
  %v999 = vpack.c.b16 %v919, %v919
  %v1000 = vpack.c.b16 %v920, %v920
  %v1001 = vpack.c.b16 %v921, %v921
  %v1002 = vpack.c.b16 %v922, %v922
  %v1003 = vpack.c.b16 %v923, %v923
  %v1004 = vpack.c.b16 %v924, %v924
  %v1005 = vpack.c.b16 %v925, %v925
  %v1006 = vpack.c.b16 %v926, %v926
  %v1007 = vpack.c.b16 %v927, %v927
  %v1008 = vpack.c.b16 %v928, %v928
  %v1009 = vpack.c.b16 %v929, %v929
  %v1010 = vpack.c.b16 %v930, %v930
  %v1011 = vpack.c.b16 %v931, %v931
  %v1012 = vpack.c.b16 %v932, %v932
  %v1013 = vpack.c.b16 %v933, %v933
  %v1014 = vpack.c.b16 %v934, %v934
  %v1015 = vpack.c.b16 %v935, %v935
  %v1016 = vpack.c.b16 %v936, %v936
  %v1017 = vpack.c.b16 %v937, %v937
  %v1018 = vpack.c.b16 %v938, %v938
  %v1019 = vpack.c.b16 %v939, %v939
  %v1020 = vpack.c.b16 %v940, %v940
  %v1021 = vpack.c.b16 %v941, %v941
  %v1022 = vpack.c.b16 %v942, %v942
  %v1023 = vpack.c.b16 %v943, %v943
  %v1024 = vpack.c.b16 %v944, %v944
  %v1025 = vpack.c.b16 %v945, %v945
  %v1026 = vpack.c.b16 %v946, %v946
  %v1027 = vpack.c.b16 %v947, %v947
  %v1028 = vpack.c.b16 %v948, %v948
  %v1029 = vpack.c.b16 %v949, %v949
  %v1030 = vpack.c.b16 %v950, %v950
  %v1031 = vpack.c.b16 %v951, %v951
  %v1032 = vpack.c.b16 %v952, %v952
  %v1033 = vpack.c.b16 %v953, %v953
  %v1034 = vpack.c.b16 %v954, %v954
  %v1035 = vpack.c.b16 %v955, %v955
  %v1036 = vpack.c.b16 %v956, %v956
  %v1037 = vpack.c.b16 %v957, %v957
  %v1038 = vpack.c.b16 %v958, %v958
  %v1039 = vpack.c.b16 %v959, %v959
  %1120 = vst [vmem:[%s2] sm:$0xf] %v960
  %1121 = vst [vmem:[%s2 + $0x4] sm:$0xf] %v961
  %1122 = vst [vmem:[%s2 + $0x8] sm:$0xf] %v962
  %1123 = vst [vmem:[%s2 + $0xc] sm:$0xf] %v963
  %1124 = vst [vmem:[%s2 + $0x10] sm:$0xf] %v964
  %1125 = vst [vmem:[%s2 + $0x14] sm:$0xf] %v965
  %1126 = vst [vmem:[%s2 + $0x18] sm:$0xf] %v966
  %1127 = vst [vmem:[%s2 + $0x1c] sm:$0xf] %v967
  %1128 = vst [vmem:[%s2 + $0x20] sm:$0xf] %v968
  %1129 = vst [vmem:[%s2 + $0x24] sm:$0xf] %v969
  %1130 = vst [vmem:[%s2 + $0x28] sm:$0xf] %v970
  %1131 = vst [vmem:[%s2 + $0x2c] sm:$0xf] %v971
  %1132 = vst [vmem:[%s2 + $0x30] sm:$0xf] %v972
  %1133 = vst [vmem:[%s2 + $0x34] sm:$0xf] %v973
  %1134 = vst [vmem:[%s2 + $0x38] sm:$0xf] %v974
  %1135 = vst [vmem:[%s2 + $0x3c] sm:$0xf] %v975
  %1136 = vst [vmem:[%s2 + $0x40] sm:$0xf] %v976
  %1137 = vst [vmem:[%s2 + $0x44] sm:$0xf] %v977
  %1138 = vst [vmem:[%s2 + $0x48] sm:$0xf] %v978
  %1139 = vst [vmem:[%s2 + $0x4c] sm:$0xf] %v979
  %1140 = vst [vmem:[%s2 + $0x50] sm:$0xf] %v980
  %1141 = vst [vmem:[%s2 + $0x54] sm:$0xf] %v981
  %1142 = vst [vmem:[%s2 + $0x58] sm:$0xf] %v982
  %1143 = vst [vmem:[%s2 + $0x5c] sm:$0xf] %v983
  %1144 = vst [vmem:[%s2 + $0x60] sm:$0xf] %v984
  %1145 = vst [vmem:[%s2 + $0x64] sm:$0xf] %v985
  %1146 = vst [vmem:[%s2 + $0x68] sm:$0xf] %v986
  %1147 = vst [vmem:[%s2 + $0x6c] sm:$0xf] %v987
  %1148 = vst [vmem:[%s2 + $0x70] sm:$0xf] %v988
  %1149 = vst [vmem:[%s2 + $0x74] sm:$0xf] %v989
  %1150 = vst [vmem:[%s2 + $0x78] sm:$0xf] %v990
  %1151 = vst [vmem:[%s2 + $0x7c] sm:$0xf] %v991
  %1152 = vst [vmem:[%s2 + $0x80] sm:$0xf] %v992
  %1153 = vst [vmem:[%s2 + $0x84] sm:$0xf] %v993
  %1154 = vst [vmem:[%s2 + $0x88] sm:$0xf] %v994
  %1155 = vst [vmem:[%s2 + $0x8c] sm:$0xf] %v995
  %1156 = vst [vmem:[%s2 + $0x90] sm:$0xf] %v996
  %1157 = vst [vmem:[%s2 + $0x94] sm:$0xf] %v997
  %1158 = vst [vmem:[%s2 + $0x98] sm:$0xf] %v998
  %1159 = vst [vmem:[%s2 + $0x9c] sm:$0xf] %v999
  %1160 = vst [vmem:[%s2 + $0xa0] sm:$0xf] %v1000
  %1161 = vst [vmem:[%s2 + $0xa4] sm:$0xf] %v1001
  %1162 = vst [vmem:[%s2 + $0xa8] sm:$0xf] %v1002
  %1163 = vst [vmem:[%s2 + $0xac] sm:$0xf] %v1003
  %1164 = vst [vmem:[%s2 + $0xb0] sm:$0xf] %v1004
  %1165 = vst [vmem:[%s2 + $0xb4] sm:$0xf] %v1005
  %1166 = vst [vmem:[%s2 + $0xb8] sm:$0xf] %v1006
  %1167 = vst [vmem:[%s2 + $0xbc] sm:$0xf] %v1007
  %1168 = vst [vmem:[%s2 + $0xc0] sm:$0xf] %v1008
  %1169 = vst [vmem:[%s2 + $0xc4] sm:$0xf] %v1009
  %1170 = vst [vmem:[%s2 + $0xc8] sm:$0xf] %v1010
  %1171 = vst [vmem:[%s2 + $0xcc] sm:$0xf] %v1011
  %1172 = vst [vmem:[%s2 + $0xd0] sm:$0xf] %v1012
  %1173 = vst [vmem:[%s2 + $0xd4] sm:$0xf] %v1013
  %1174 = vst [vmem:[%s2 + $0xd8] sm:$0xf] %v1014
  %1175 = vst [vmem:[%s2 + $0xdc] sm:$0xf] %v1015
  %1176 = vst [vmem:[%s2 + $0xe0] sm:$0xf] %v1016
  %1177 = vst [vmem:[%s2 + $0xe4] sm:$0xf] %v1017
  %1178 = vst [vmem:[%s2 + $0xe8] sm:$0xf] %v1018
  %1179 = vst [vmem:[%s2 + $0xec] sm:$0xf] %v1019
  %1180 = vst [vmem:[%s2 + $0xf0] sm:$0xf] %v1020
  %1181 = vst [vmem:[%s2 + $0xf4] sm:$0xf] %v1021
  %1182 = vst [vmem:[%s2 + $0xf8] sm:$0xf] %v1022
  %1183 = vst [vmem:[%s2 + $0xfc] sm:$0xf] %v1023
  %1184 = vst [vmem:[%s2 + $0x100] sm:$0xf] %v1024
  %1185 = vst [vmem:[%s2 + $0x104] sm:$0xf] %v1025
  %1186 = vst [vmem:[%s2 + $0x108] sm:$0xf] %v1026
  %1187 = vst [vmem:[%s2 + $0x10c] sm:$0xf] %v1027
  %1188 = vst [vmem:[%s2 + $0x110] sm:$0xf] %v1028
  %1189 = vst [vmem:[%s2 + $0x114] sm:$0xf] %v1029
  %1190 = vst [vmem:[%s2 + $0x118] sm:$0xf] %v1030
  %1191 = vst [vmem:[%s2 + $0x11c] sm:$0xf] %v1031
  %1192 = vst [vmem:[%s2 + $0x120] sm:$0xf] %v1032
  %1193 = vst [vmem:[%s2 + $0x124] sm:$0xf] %v1033
  %1194 = vst [vmem:[%s2 + $0x128] sm:$0xf] %v1034
  %1195 = vst [vmem:[%s2 + $0x12c] sm:$0xf] %v1035
  %1196 = vst [vmem:[%s2 + $0x130] sm:$0xf] %v1036
  %1197 = vst [vmem:[%s2 + $0x134] sm:$0xf] %v1037
  %1198 = vst [vmem:[%s2 + $0x138] sm:$0xf] %v1038
  %1199 = vst [vmem:[%s2 + $0x13c] sm:$0xf] %v1039
  %v1200 = vadd.f32 %v482, %v485
  %v1201 = vadd.f32 %v1200, %v490
  %v1202 = vadd.f32 %v1201, %v493
  %v1203 = vadd.f32 %v1202, %v498
  %v1204 = vadd.f32 %v1203, %v501
  %v1205 = vadd.f32 %v1204, %v506
  %v1206 = vadd.f32 %v1205, %v509
  %v1207 = vadd.f32 %v1206, %v514
  %v1208 = vadd.f32 %v1207, %v517
  %v1209 = vadd.f32 %v1208, %v522
  %v1210 = vadd.f32 %v1209, %v525
  %v1211 = vadd.f32 %v1210, %v530
  %v1212 = vadd.f32 %v1211, %v533
  %v1213 = vadd.f32 %v1212, %v538
  %v1214 = vadd.f32 %v1213, %v541
  %v1215 = vadd.f32 %v1214, %v546
  %v1216 = vadd.f32 %v1215, %v549
  %v1217 = vadd.f32 %v1216, %v554
  %v1218 = vadd.f32 %v1217, %v557
  %v1219 = vadd.f32 %v1218, %v562
  %v1220 = vadd.f32 %v1219, %v565
  %v1221 = vadd.f32 %v1220, %v570
  %v1222 = vadd.f32 %v1221, %v573
  %v1223 = vadd.f32 %v1222, %v578
  %v1224 = vadd.f32 %v1223, %v581
  %v1225 = vadd.f32 %v1224, %v586
  %v1226 = vadd.f32 %v1225, %v589
  %v1227 = vadd.f32 %v1226, %v594
  %v1228 = vadd.f32 %v1227, %v597
  %v1229 = vadd.f32 %v1228, %v602
  %v1230 = vadd.f32 %v1229, %v605
  %v1231 = vadd.f32 %v1230, %v610
  %v1232 = vadd.f32 %v1231, %v613
  %v1233 = vadd.f32 %v1232, %v618
  %v1234 = vadd.f32 %v1233, %v621
  %v1235 = vadd.f32 %v1234, %v626
  %v1236 = vadd.f32 %v1235, %v629
  %v1237 = vadd.f32 %v1236, %v634
  %v1238 = vadd.f32 %v1237, %v637
  %v1239 = vadd.f32 %v1238, %v642
  %v1240 = vadd.f32 %v1239, %v645
  %v1241 = vadd.f32 %v1240, %v650
  %v1242 = vadd.f32 %v1241, %v653
  %v1243 = vadd.f32 %v1242, %v658
  %v1244 = vadd.f32 %v1243, %v661
  %v1245 = vadd.f32 %v1244, %v666
  %v1246 = vadd.f32 %v1245, %v669
  %v1247 = vadd.f32 %v1246, %v674
  %v1248 = vadd.f32 %v1247, %v677
  %v1249 = vadd.f32 %v1248, %v682
  %v1250 = vadd.f32 %v1249, %v685
  %v1251 = vadd.f32 %v1250, %v690
  %v1252 = vadd.f32 %v1251, %v693
  %v1253 = vadd.f32 %v1252, %v698
  %v1254 = vadd.f32 %v1253, %v701
  %v1255 = vadd.f32 %v1254, %v706
  %v1256 = vadd.f32 %v1255, %v709
  %v1257 = vadd.f32 %v1256, %v714
  %v1258 = vadd.f32 %v1257, %v717
  %v1259 = vadd.f32 %v1258, %v722
  %v1260 = vadd.f32 %v1259, %v725
  %v1261 = vadd.f32 %v1260, %v730
  %v1262 = vadd.f32 %v1261, %v733
  %v1263 = vadd.f32 %v1262, %v738
  %v1264 = vadd.f32 %v1263, %v741
  %v1265 = vadd.f32 %v1264, %v746
  %v1266 = vadd.f32 %v1265, %v749
  %v1267 = vadd.f32 %v1266, %v754
  %v1268 = vadd.f32 %v1267, %v757
  %v1269 = vadd.f32 %v1268, %v762
  %v1270 = vadd.f32 %v1269, %v765
  %v1271 = vadd.f32 %v1270, %v770
  %v1272 = vadd.f32 %v1271, %v773
  %v1273 = vadd.f32 %v1272, %v778
  %v1274 = vadd.f32 %v1273, %v781
  %v1275 = vadd.f32 %v1274, %v786
  %v1276 = vadd.f32 %v1275, %v789
  %v1277 = vadd.f32 %v1276, %v794
  %v1278 = vadd.f32 %v1277, %v797
  %v1279 = vrot.slane %v1278, 4
  %v1280 = vadd.f32 %v1278, %v1279
  %v1281 = vrot.slane %v1280, 2
  %v1282 = vadd.f32 %v1280, %v1281
  %v1283 = vrot.slane %v1282, 1
  %v1284 = vadd.f32 %v1282, %v1283
  %v1285 = vmul.f32 %v482, %v482
  %v1286 = vmul.f32 %v485, %v485
  %v1287 = vmul.f32 %v490, %v490
  %v1288 = vmul.f32 %v493, %v493
  %v1289 = vmul.f32 %v498, %v498
  %v1290 = vmul.f32 %v501, %v501
  %v1291 = vmul.f32 %v506, %v506
  %v1292 = vmul.f32 %v509, %v509
  %v1293 = vmul.f32 %v514, %v514
  %v1294 = vmul.f32 %v517, %v517
  %v1295 = vmul.f32 %v522, %v522
  %v1296 = vmul.f32 %v525, %v525
  %v1297 = vmul.f32 %v530, %v530
  %v1298 = vmul.f32 %v533, %v533
  %v1299 = vmul.f32 %v538, %v538
  %v1300 = vmul.f32 %v541, %v541
  %v1301 = vmul.f32 %v546, %v546
  %v1302 = vmul.f32 %v549, %v549
  %v1303 = vmul.f32 %v554, %v554
  %v1304 = vmul.f32 %v557, %v557
  %v1305 = vmul.f32 %v562, %v562
  %v1306 = vmul.f32 %v565, %v565
  %v1307 = vmul.f32 %v570, %v570
  %v1308 = vmul.f32 %v573, %v573
  %v1309 = vmul.f32 %v578, %v578
  %v1310 = vmul.f32 %v581, %v581
  %v1311 = vmul.f32 %v586, %v586
  %v1312 = vmul.f32 %v589, %v589
  %v1313 = vmul.f32 %v594, %v594
  %v1314 = vmul.f32 %v597, %v597
  %v1315 = vmul.f32 %v602, %v602
  %v1316 = vmul.f32 %v605, %v605
  %v1317 = vmul.f32 %v610, %v610
  %v1318 = vmul.f32 %v613, %v613
  %v1319 = vmul.f32 %v618, %v618
  %v1320 = vmul.f32 %v621, %v621
  %v1321 = vmul.f32 %v626, %v626
  %v1322 = vmul.f32 %v629, %v629
  %v1323 = vmul.f32 %v634, %v634
  %v1324 = vmul.f32 %v637, %v637
  %v1325 = vmul.f32 %v642, %v642
  %v1326 = vmul.f32 %v645, %v645
  %v1327 = vmul.f32 %v650, %v650
  %v1328 = vmul.f32 %v653, %v653
  %v1329 = vmul.f32 %v658, %v658
  %v1330 = vmul.f32 %v661, %v661
  %v1331 = vmul.f32 %v666, %v666
  %v1332 = vmul.f32 %v669, %v669
  %v1333 = vmul.f32 %v674, %v674
  %v1334 = vmul.f32 %v677, %v677
  %v1335 = vmul.f32 %v682, %v682
  %v1336 = vmul.f32 %v685, %v685
  %v1337 = vmul.f32 %v690, %v690
  %v1338 = vmul.f32 %v693, %v693
  %v1339 = vmul.f32 %v698, %v698
  %v1340 = vmul.f32 %v701, %v701
  %v1341 = vmul.f32 %v706, %v706
  %v1342 = vmul.f32 %v709, %v709
  %v1343 = vmul.f32 %v714, %v714
  %v1344 = vmul.f32 %v717, %v717
  %v1345 = vmul.f32 %v722, %v722
  %v1346 = vmul.f32 %v725, %v725
  %v1347 = vmul.f32 %v730, %v730
  %v1348 = vmul.f32 %v733, %v733
  %v1349 = vmul.f32 %v738, %v738
  %v1350 = vmul.f32 %v741, %v741
  %v1351 = vmul.f32 %v746, %v746
  %v1352 = vmul.f32 %v749, %v749
  %v1353 = vmul.f32 %v754, %v754
  %v1354 = vmul.f32 %v757, %v757
  %v1355 = vmul.f32 %v762, %v762
  %v1356 = vmul.f32 %v765, %v765
  %v1357 = vmul.f32 %v770, %v770
  %v1358 = vmul.f32 %v773, %v773
  %v1359 = vmul.f32 %v778, %v778
  %v1360 = vmul.f32 %v781, %v781
  %v1361 = vmul.f32 %v786, %v786
  %v1362 = vmul.f32 %v789, %v789
  %v1363 = vmul.f32 %v794, %v794
  %v1364 = vmul.f32 %v797, %v797
  %v1365 = vadd.f32 %v1285, %v1286
  %v1366 = vadd.f32 %v1365, %v1287
  %v1367 = vadd.f32 %v1366, %v1288
  %v1368 = vadd.f32 %v1367, %v1289
  %v1369 = vadd.f32 %v1368, %v1290
  %v1370 = vadd.f32 %v1369, %v1291
  %v1371 = vadd.f32 %v1370, %v1292
  %v1372 = vadd.f32 %v1371, %v1293
  %v1373 = vadd.f32 %v1372, %v1294
  %v1374 = vadd.f32 %v1373, %v1295
  %v1375 = vadd.f32 %v1374, %v1296
  %v1376 = vadd.f32 %v1375, %v1297
  %v1377 = vadd.f32 %v1376, %v1298
  %v1378 = vadd.f32 %v1377, %v1299
  %v1379 = vadd.f32 %v1378, %v1300
  %v1380 = vadd.f32 %v1379, %v1301
  %v1381 = vadd.f32 %v1380, %v1302
  %v1382 = vadd.f32 %v1381, %v1303
  %v1383 = vadd.f32 %v1382, %v1304
  %v1384 = vadd.f32 %v1383, %v1305
  %v1385 = vadd.f32 %v1384, %v1306
  %v1386 = vadd.f32 %v1385, %v1307
  %v1387 = vadd.f32 %v1386, %v1308
  %v1388 = vadd.f32 %v1387, %v1309
  %v1389 = vadd.f32 %v1388, %v1310
  %v1390 = vadd.f32 %v1389, %v1311
  %v1391 = vadd.f32 %v1390, %v1312
  %v1392 = vadd.f32 %v1391, %v1313
  %v1393 = vadd.f32 %v1392, %v1314
  %v1394 = vadd.f32 %v1393, %v1315
  %v1395 = vadd.f32 %v1394, %v1316
  %v1396 = vadd.f32 %v1395, %v1317
  %v1397 = vadd.f32 %v1396, %v1318
  %v1398 = vadd.f32 %v1397, %v1319
  %v1399 = vadd.f32 %v1398, %v1320
  %v1400 = vadd.f32 %v1399, %v1321
  %v1401 = vadd.f32 %v1400, %v1322
  %v1402 = vadd.f32 %v1401, %v1323
  %v1403 = vadd.f32 %v1402, %v1324
  %v1404 = vadd.f32 %v1403, %v1325
  %v1405 = vadd.f32 %v1404, %v1326
  %v1406 = vadd.f32 %v1405, %v1327
  %v1407 = vadd.f32 %v1406, %v1328
  %v1408 = vadd.f32 %v1407, %v1329
  %v1409 = vadd.f32 %v1408, %v1330
  %v1410 = vadd.f32 %v1409, %v1331
  %v1411 = vadd.f32 %v1410, %v1332
  %v1412 = vadd.f32 %v1411, %v1333
  %v1413 = vadd.f32 %v1412, %v1334
  %v1414 = vadd.f32 %v1413, %v1335
  %v1415 = vadd.f32 %v1414, %v1336
  %v1416 = vadd.f32 %v1415, %v1337
  %v1417 = vadd.f32 %v1416, %v1338
  %v1418 = vadd.f32 %v1417, %v1339
  %v1419 = vadd.f32 %v1418, %v1340
  %v1420 = vadd.f32 %v1419, %v1341
  %v1421 = vadd.f32 %v1420, %v1342
  %v1422 = vadd.f32 %v1421, %v1343
  %v1423 = vadd.f32 %v1422, %v1344
  %v1424 = vadd.f32 %v1423, %v1345
  %v1425 = vadd.f32 %v1424, %v1346
  %v1426 = vadd.f32 %v1425, %v1347
  %v1427 = vadd.f32 %v1426, %v1348
  %v1428 = vadd.f32 %v1427, %v1349
  %v1429 = vadd.f32 %v1428, %v1350
  %v1430 = vadd.f32 %v1429, %v1351
  %v1431 = vadd.f32 %v1430, %v1352
  %v1432 = vadd.f32 %v1431, %v1353
  %v1433 = vadd.f32 %v1432, %v1354
  %v1434 = vadd.f32 %v1433, %v1355
  %v1435 = vadd.f32 %v1434, %v1356
  %v1436 = vadd.f32 %v1435, %v1357
  %v1437 = vadd.f32 %v1436, %v1358
  %v1438 = vadd.f32 %v1437, %v1359
  %v1439 = vadd.f32 %v1438, %v1360
  %v1440 = vadd.f32 %v1439, %v1361
  %v1441 = vadd.f32 %v1440, %v1362
  %v1442 = vadd.f32 %v1441, %v1363
  %v1443 = vadd.f32 %v1442, %v1364
  %v1444 = vrot.slane %v1443, 4
  %v1445 = vadd.f32 %v1443, %v1444
  %v1446 = vrot.slane %v1445, 2
  %v1447 = vadd.f32 %v1445, %v1446
  %v1448 = vrot.slane %v1447, 1
  %v1449 = vadd.f32 %v1447, %v1448
  %v1450 = vlaneseq
  %v1451 = vshrl.u32 %v1450, 7
  %vm1452 = vcmp.eq.s32.totalorder %v1451, 0
  %vm1453 = vcmp.eq.s32.totalorder %v1451, 1
  %v1454 = vsel %vm1453, %v1449, 0.0
  %v1455 = vsel %vm1452, %v1284, %v1454
  %1456 = vst [vmem:[%s3] sm:$0xff] %v1455
  // Predicated region
  $region10: #{generator_forward.15} parent=0 // pred_check
    _
  $region11: #{generator_forward.15} parent=0 // pred_check_branch
    %1458 = sbr.rel (0) target = $region13
  $region12: #{generator_forward.15} parent=0 // pred_region
    _
  $region13: #{generator_forward.15} parent=0 // pred_fallthru
    _
  // Predicated region
  $region14: #{generator_forward.15} parent=0 // pred_check
    _
  $region15: #{generator_forward.15} parent=0 // pred_check_branch
    %1460 = sbr.rel (0) target = $region17
  $region16: #{generator_forward.15} parent=0 // pred_region
    _
  $region17: #{generator_forward.15} parent=0 // pred_fallthru
    _
  // Predicated region
  $region18: #{generator_forward.15} parent=0 // pred_check
    _
  $region19: #{generator_forward.15} parent=0 // pred_check_branch
    %1462 = sbr.rel (0) target = $region21
  $region20: #{generator_forward.15} parent=0 // pred_region
    _
  $region21: #{generator_forward.15} parent=0 // pred_fallthru
    _
  // Predicated region
  $region22: #{generator_forward.15} parent=0 // pred_check
    _
  $region23: #{generator_forward.15} parent=0 // pred_check_branch
    %1464 = sbr.rel (0) target = $region25
  $region24: #{generator_forward.15} parent=0 // pred_region
    _
  $region25: #{generator_forward.15} parent=0 // pred_fallthru
    _

// kernel: generator_forward.16
$region0: #{generator_forward.16}
  #allocation0 [shape = 'u32[]', space=smem, size = 0x4, offset = 0x4, fixed_abs, tag = 'smem constant byte address 0x4 - core index']
  #allocation1 [shape = 'u32[144,128]{1,0:T(1,128)}', space=vmem, size = 0x12000, scoped, tag = 'internal scratch']
  %s0 = inlined_call_operand.vmem [shape: bf16[640,128], index: 0, kind: input, shape index: {}]
  %s1 = inlined_call_operand.vmem [shape: f32[1,128], index: 1, kind: input, shape index: {}]
  %s2 = inlined_call_operand.vmem [shape: f32[1,128], index: 2, kind: input, shape index: {}]
  %s3 = inlined_call_operand.vmem [shape: bf16[640,128], index: 3, kind: output, shape index: {}]
  %s4 = sld [smem:[#allocation0]]
  $region22: #{generator_forward.16} parent=0
    _
  %s6 = ssub.s32 1, %s4
  %s7 = scalar_select 0, %s6, %s4
  // Predicated region
  $region2: #{generator_forward.16} parent=0 // pred_check
    _
  $region3: #{generator_forward.16} parent=0 // pred_check_branch
    %9 = sbr.rel (0) target = $region5
  $region4: #{generator_forward.16} parent=0 // pred_region
    _
  $region5: #{generator_forward.16} parent=0 // pred_fallthru
    _
  // Predicated region
  $region6: #{generator_forward.16} parent=0 // pred_check
    _
  $region7: #{generator_forward.16} parent=0 // pred_check_branch
    %11 = sbr.rel (0) target = $region9
  $region8: #{generator_forward.16} parent=0 // pred_region
    _
  $region9: #{generator_forward.16} parent=0 // pred_fallthru
    _
  // Predicated region
  $region10: #{generator_forward.16} parent=0 // pred_check
    _
  $region11: #{generator_forward.16} parent=0 // pred_check_branch
    %13 = sbr.rel (0) target = $region13
  $region12: #{generator_forward.16} parent=0 // pred_region
    _
  $region13: #{generator_forward.16} parent=0 // pred_fallthru
    _
  %v14 = vld [vmem:[%s0] sm:$0xf]
  %v15 = vld [vmem:[%s0 + $0x4] sm:$0xf]
  %v16 = vld [vmem:[%s0 + $0x8] sm:$0xf]
  %v17 = vld [vmem:[%s0 + $0xc] sm:$0xf]
  %v18 = vld [vmem:[%s0 + $0x10] sm:$0xf]
  %v19 = vld [vmem:[%s0 + $0x14] sm:$0xf]
  %v20 = vld [vmem:[%s0 + $0x18] sm:$0xf]
  %v21 = vld [vmem:[%s0 + $0x1c] sm:$0xf]
  %v22 = vld [vmem:[%s0 + $0x20] sm:$0xf]
  %v23 = vld [vmem:[%s0 + $0x24] sm:$0xf]
  %v24 = vld [vmem:[%s0 + $0x28] sm:$0xf]
  %v25 = vld [vmem:[%s0 + $0x2c] sm:$0xf]
  %v26 = vld [vmem:[%s0 + $0x30] sm:$0xf]
  %v27 = vld [vmem:[%s0 + $0x34] sm:$0xf]
  %v28 = vld [vmem:[%s0 + $0x38] sm:$0xf]
  %v29 = vld [vmem:[%s0 + $0x3c] sm:$0xf]
  %v30 = vld [vmem:[%s0 + $0x40] sm:$0xf]
  %v31 = vld [vmem:[%s0 + $0x44] sm:$0xf]
  %v32 = vld [vmem:[%s0 + $0x48] sm:$0xf]
  %v33 = vld [vmem:[%s0 + $0x4c] sm:$0xf]
  %v34 = vld [vmem:[%s0 + $0x50] sm:$0xf]
  %v35 = vld [vmem:[%s0 + $0x54] sm:$0xf]
  %v36 = vld [vmem:[%s0 + $0x58] sm:$0xf]
  %v37 = vld [vmem:[%s0 + $0x5c] sm:$0xf]
  %v38 = vld [vmem:[%s0 + $0x60] sm:$0xf]
  %v39 = vld [vmem:[%s0 + $0x64] sm:$0xf]
  %v40 = vld [vmem:[%s0 + $0x68] sm:$0xf]
  %v41 = vld [vmem:[%s0 + $0x6c] sm:$0xf]
  %v42 = vld [vmem:[%s0 + $0x70] sm:$0xf]
  %v43 = vld [vmem:[%s0 + $0x74] sm:$0xf]
  %v44 = vld [vmem:[%s0 + $0x78] sm:$0xf]
  %v45 = vld [vmem:[%s0 + $0x7c] sm:$0xf]
  %v46 = vld [vmem:[%s0 + $0x80] sm:$0xf]
  %v47 = vld [vmem:[%s0 + $0x84] sm:$0xf]
  %v48 = vld [vmem:[%s0 + $0x88] sm:$0xf]
  %v49 = vld [vmem:[%s0 + $0x8c] sm:$0xf]
  %v50 = vld [vmem:[%s0 + $0x90] sm:$0xf]
  %v51 = vld [vmem:[%s0 + $0x94] sm:$0xf]
  %v52 = vld [vmem:[%s0 + $0x98] sm:$0xf]
  %v53 = vld [vmem:[%s0 + $0x9c] sm:$0xf]
  %v54 = vld [vmem:[%s0 + $0xa0] sm:$0xf]
  %v55 = vld [vmem:[%s0 + $0xa4] sm:$0xf]
  %v56 = vld [vmem:[%s0 + $0xa8] sm:$0xf]
  %v57 = vld [vmem:[%s0 + $0xac] sm:$0xf]
  %v58 = vld [vmem:[%s0 + $0xb0] sm:$0xf]
  %v59 = vld [vmem:[%s0 + $0xb4] sm:$0xf]
  %v60 = vld [vmem:[%s0 + $0xb8] sm:$0xf]
  %v61 = vld [vmem:[%s0 + $0xbc] sm:$0xf]
  %v62 = vld [vmem:[%s0 + $0xc0] sm:$0xf]
  %v63 = vld [vmem:[%s0 + $0xc4] sm:$0xf]
  %v64 = vld [vmem:[%s0 + $0xc8] sm:$0xf]
  %v65 = vld [vmem:[%s0 + $0xcc] sm:$0xf]
  %v66 = vld [vmem:[%s0 + $0xd0] sm:$0xf]
  %v67 = vld [vmem:[%s0 + $0xd4] sm:$0xf]
  %v68 = vld [vmem:[%s0 + $0xd8] sm:$0xf]
  %v69 = vld [vmem:[%s0 + $0xdc] sm:$0xf]
  %v70 = vld [vmem:[%s0 + $0xe0] sm:$0xf]
  %v71 = vld [vmem:[%s0 + $0xe4] sm:$0xf]
  %v72 = vld [vmem:[%s0 + $0xe8] sm:$0xf]
  %v73 = vld [vmem:[%s0 + $0xec] sm:$0xf]
  %v74 = vld [vmem:[%s0 + $0xf0] sm:$0xf]
  %v75 = vld [vmem:[%s0 + $0xf4] sm:$0xf]
  %v76 = vld [vmem:[%s0 + $0xf8] sm:$0xf]
  %v77 = vld [vmem:[%s0 + $0xfc] sm:$0xf]
  %v78 = vld [vmem:[%s0 + $0x100] sm:$0xf]
  %v79 = vld [vmem:[%s0 + $0x104] sm:$0xf]
  %v80 = vld [vmem:[%s0 + $0x108] sm:$0xf]
  %v81 = vld [vmem:[%s0 + $0x10c] sm:$0xf]
  %v82 = vld [vmem:[%s0 + $0x110] sm:$0xf]
  %v83 = vld [vmem:[%s0 + $0x114] sm:$0xf]
  %v84 = vld [vmem:[%s0 + $0x118] sm:$0xf]
  %v85 = vld [vmem:[%s0 + $0x11c] sm:$0xf]
  %v86 = vld [vmem:[%s0 + $0x120] sm:$0xf]
  %v87 = vld [vmem:[%s0 + $0x124] sm:$0xf]
  %v88 = vld [vmem:[%s0 + $0x128] sm:$0xf]
  %v89 = vld [vmem:[%s0 + $0x12c] sm:$0xf]
  %v90 = vld [vmem:[%s0 + $0x130] sm:$0xf]
  %v91 = vld [vmem:[%s0 + $0x134] sm:$0xf]
  %v92 = vld [vmem:[%s0 + $0x138] sm:$0xf]
  %v93 = vld [vmem:[%s0 + $0x13c] sm:$0xf]
  %v94 = vunpack.c.l.bf16 %v14
  %v95 = vunpack.c.l.bf16 %v15
  %v96 = vunpack.c.l.bf16 %v16
  %v97 = vunpack.c.l.bf16 %v17
  %v98 = vunpack.c.l.bf16 %v18
  %v99 = vunpack.c.l.bf16 %v19
  %v100 = vunpack.c.l.bf16 %v20
  %v101 = vunpack.c.l.bf16 %v21
  %v102 = vunpack.c.l.bf16 %v22
  %v103 = vunpack.c.l.bf16 %v23
  %v104 = vunpack.c.l.bf16 %v24
  %v105 = vunpack.c.l.bf16 %v25
  %v106 = vunpack.c.l.bf16 %v26
  %v107 = vunpack.c.l.bf16 %v27
  %v108 = vunpack.c.l.bf16 %v28
  %v109 = vunpack.c.l.bf16 %v29
  %v110 = vunpack.c.l.bf16 %v30
  %v111 = vunpack.c.l.bf16 %v31
  %v112 = vunpack.c.l.bf16 %v32
  %v113 = vunpack.c.l.bf16 %v33
  %v114 = vunpack.c.l.bf16 %v34
  %v115 = vunpack.c.l.bf16 %v35
  %v116 = vunpack.c.l.bf16 %v36
  %v117 = vunpack.c.l.bf16 %v37
  %v118 = vunpack.c.l.bf16 %v38
  %v119 = vunpack.c.l.bf16 %v39
  %v120 = vunpack.c.l.bf16 %v40
  %v121 = vunpack.c.l.bf16 %v41
  %v122 = vunpack.c.l.bf16 %v42
  %v123 = vunpack.c.l.bf16 %v43
  %v124 = vunpack.c.l.bf16 %v44
  %v125 = vunpack.c.l.bf16 %v45
  %v126 = vunpack.c.l.bf16 %v46
  %v127 = vunpack.c.l.bf16 %v47
  %v128 = vunpack.c.l.bf16 %v48
  %v129 = vunpack.c.l.bf16 %v49
  %v130 = vunpack.c.l.bf16 %v50
  %v131 = vunpack.c.l.bf16 %v51
  %v132 = vunpack.c.l.bf16 %v52
  %v133 = vunpack.c.l.bf16 %v53
  %v134 = vunpack.c.l.bf16 %v54
  %v135 = vunpack.c.l.bf16 %v55
  %v136 = vunpack.c.l.bf16 %v56
  %v137 = vunpack.c.l.bf16 %v57
  %v138 = vunpack.c.l.bf16 %v58
  %v139 = vunpack.c.l.bf16 %v59
  %v140 = vunpack.c.l.bf16 %v60
  %v141 = vunpack.c.l.bf16 %v61
  %v142 = vunpack.c.l.bf16 %v62
  %v143 = vunpack.c.l.bf16 %v63
  %v144 = vunpack.c.l.bf16 %v64
  %v145 = vunpack.c.l.bf16 %v65
  %v146 = vunpack.c.l.bf16 %v66
  %v147 = vunpack.c.l.bf16 %v67
  %v148 = vunpack.c.l.bf16 %v68
  %v149 = vunpack.c.l.bf16 %v69
  %v150 = vunpack.c.l.bf16 %v70
  %v151 = vunpack.c.l.bf16 %v71
  %v152 = vunpack.c.l.bf16 %v72
  %v153 = vunpack.c.l.bf16 %v73
  %v154 = vunpack.c.l.bf16 %v74
  %v155 = vunpack.c.l.bf16 %v75
  %v156 = vunpack.c.l.bf16 %v76
  %v157 = vunpack.c.l.bf16 %v77
  %v158 = vunpack.c.l.bf16 %v78
  %v159 = vunpack.c.l.bf16 %v79
  %v160 = vunpack.c.l.bf16 %v80
  %v161 = vunpack.c.l.bf16 %v81
  %v162 = vunpack.c.l.bf16 %v82
  %v163 = vunpack.c.l.bf16 %v83
  %v164 = vunpack.c.l.bf16 %v84
  %v165 = vunpack.c.l.bf16 %v85
  %v166 = vunpack.c.l.bf16 %v86
  %v167 = vunpack.c.l.bf16 %v87
  %v168 = vunpack.c.l.bf16 %v88
  %v169 = vunpack.c.l.bf16 %v89
  %v170 = vunpack.c.l.bf16 %v90
  %v171 = vunpack.c.l.bf16 %v91
  %v172 = vunpack.c.l.bf16 %v92
  %v173 = vunpack.c.l.bf16 %v93
  %v174 = vld [vmem:[%s1] sm:$0x1]
  %v176 = vlaneseq
  %v177 = vshrl.u32 %v176, 7
  %v178 = vsub.s32 0, %v177
  %v179 = vrot.slane %v174, %v178
  %v181 = vmul.f32 %v94, %v179
  %v182 = vmul.f32 %v95, %v179
  %v183 = vmul.f32 %v96, %v179
  %v184 = vmul.f32 %v97, %v179
  %v185 = vmul.f32 %v98, %v179
  %v186 = vmul.f32 %v99, %v179
  %v187 = vmul.f32 %v100, %v179
  %v188 = vmul.f32 %v101, %v179
  %v189 = vmul.f32 %v102, %v179
  %v190 = vmul.f32 %v103, %v179
  %v191 = vmul.f32 %v104, %v179
  %v192 = vmul.f32 %v105, %v179
  %v193 = vmul.f32 %v106, %v179
  %v194 = vmul.f32 %v107, %v179
  %v195 = vmul.f32 %v108, %v179
  %v196 = vmul.f32 %v109, %v179
  %v197 = vmul.f32 %v110, %v179
  %v198 = vmul.f32 %v111, %v179
  %v199 = vmul.f32 %v112, %v179
  %v200 = vmul.f32 %v113, %v179
  %v201 = vmul.f32 %v114, %v179
  %v202 = vmul.f32 %v115, %v179
  %v203 = vmul.f32 %v116, %v179
  %v204 = vmul.f32 %v117, %v179
  %v205 = vmul.f32 %v118, %v179
  %v206 = vmul.f32 %v119, %v179
  %v207 = vmul.f32 %v120, %v179
  %v208 = vmul.f32 %v121, %v179
  %v209 = vmul.f32 %v122, %v179
  %v210 = vmul.f32 %v123, %v179
  %v211 = vmul.f32 %v124, %v179
  %v212 = vmul.f32 %v125, %v179
  %v213 = vmul.f32 %v126, %v179
  %v214 = vmul.f32 %v127, %v179
  %v215 = vmul.f32 %v128, %v179
  %v216 = vmul.f32 %v129, %v179
  %v217 = vmul.f32 %v130, %v179
  %v218 = vmul.f32 %v131, %v179
  %v219 = vmul.f32 %v132, %v179
  %v220 = vmul.f32 %v133, %v179
  %v221 = vmul.f32 %v134, %v179
  %v222 = vmul.f32 %v135, %v179
  %v223 = vmul.f32 %v136, %v179
  %v224 = vmul.f32 %v137, %v179
  %v225 = vmul.f32 %v138, %v179
  %v226 = vmul.f32 %v139, %v179
  %v227 = vmul.f32 %v140, %v179
  %v228 = vmul.f32 %v141, %v179
  %v229 = vmul.f32 %v142, %v179
  %v230 = vmul.f32 %v143, %v179
  %v231 = vmul.f32 %v144, %v179
  %v232 = vmul.f32 %v145, %v179
  %v233 = vmul.f32 %v146, %v179
  %v234 = vmul.f32 %v147, %v179
  %v235 = vmul.f32 %v148, %v179
  %v236 = vmul.f32 %v149, %v179
  %v237 = vmul.f32 %v150, %v179
  %v238 = vmul.f32 %v151, %v179
  %v239 = vmul.f32 %v152, %v179
  %v240 = vmul.f32 %v153, %v179
  %v241 = vmul.f32 %v154, %v179
  %v242 = vmul.f32 %v155, %v179
  %v243 = vmul.f32 %v156, %v179
  %v244 = vmul.f32 %v157, %v179
  %v245 = vmul.f32 %v158, %v179
  %v246 = vmul.f32 %v159, %v179
  %v247 = vmul.f32 %v160, %v179
  %v248 = vmul.f32 %v161, %v179
  %v249 = vmul.f32 %v162, %v179
  %v250 = vmul.f32 %v163, %v179
  %v251 = vmul.f32 %v164, %v179
  %v252 = vmul.f32 %v165, %v179
  %v253 = vmul.f32 %v166, %v179
  %v254 = vmul.f32 %v167, %v179
  %v255 = vmul.f32 %v168, %v179
  %v256 = vmul.f32 %v169, %v179
  %v257 = vmul.f32 %v170, %v179
  %v258 = vmul.f32 %v171, %v179
  %v259 = vmul.f32 %v172, %v179
  %v260 = vmul.f32 %v173, %v179
  %v261 = vld [vmem:[%s2] sm:$0x1]
  %v263 = vlaneseq
  %v264 = vshrl.u32 %v263, 7
  %v265 = vsub.s32 0, %v264
  %v266 = vrot.slane %v261, %v265
  %v268 = vadd.f32 %v181, %v266
  %v269 = vadd.f32 %v182, %v266
  %v270 = vadd.f32 %v183, %v266
  %v271 = vadd.f32 %v184, %v266
  %v272 = vadd.f32 %v185, %v266
  %v273 = vadd.f32 %v186, %v266
  %v274 = vadd.f32 %v187, %v266
  %v275 = vadd.f32 %v188, %v266
  %v276 = vadd.f32 %v189, %v266
  %v277 = vadd.f32 %v190, %v266
  %v278 = vadd.f32 %v191, %v266
  %v279 = vadd.f32 %v192, %v266
  %v280 = vadd.f32 %v193, %v266
  %v281 = vadd.f32 %v194, %v266
  %v282 = vadd.f32 %v195, %v266
  %v283 = vadd.f32 %v196, %v266
  %v284 = vadd.f32 %v197, %v266
  %v285 = vadd.f32 %v198, %v266
  %v286 = vadd.f32 %v199, %v266
  %v287 = vadd.f32 %v200, %v266
  %v288 = vadd.f32 %v201, %v266
  %v289 = vadd.f32 %v202, %v266
  %v290 = vadd.f32 %v203, %v266
  %v291 = vadd.f32 %v204, %v266
  %v292 = vadd.f32 %v205, %v266
  %v293 = vadd.f32 %v206, %v266
  %v294 = vadd.f32 %v207, %v266
  %v295 = vadd.f32 %v208, %v266
  %v296 = vadd.f32 %v209, %v266
  %v297 = vadd.f32 %v210, %v266
  %v298 = vadd.f32 %v211, %v266
  %v299 = vadd.f32 %v212, %v266
  %v300 = vadd.f32 %v213, %v266
  %v301 = vadd.f32 %v214, %v266
  %v302 = vadd.f32 %v215, %v266
  %v303 = vadd.f32 %v216, %v266
  %v304 = vadd.f32 %v217, %v266
  %v305 = vadd.f32 %v218, %v266
  %v306 = vadd.f32 %v219, %v266
  %v307 = vadd.f32 %v220, %v266
  %v308 = vadd.f32 %v221, %v266
  %v309 = vadd.f32 %v222, %v266
  %v310 = vadd.f32 %v223, %v266
  %v311 = vadd.f32 %v224, %v266
  %v312 = vadd.f32 %v225, %v266
  %v313 = vadd.f32 %v226, %v266
  %v314 = vadd.f32 %v227, %v266
  %v315 = vadd.f32 %v228, %v266
  %v316 = vadd.f32 %v229, %v266
  %v317 = vadd.f32 %v230, %v266
  %v318 = vadd.f32 %v231, %v266
  %v319 = vadd.f32 %v232, %v266
  %v320 = vadd.f32 %v233, %v266
  %v321 = vadd.f32 %v234, %v266
  %v322 = vadd.f32 %v235, %v266
  %v323 = vadd.f32 %v236, %v266
  %v324 = vadd.f32 %v237, %v266
  %v325 = vadd.f32 %v238, %v266
  %v326 = vadd.f32 %v239, %v266
  %v327 = vadd.f32 %v240, %v266
  %v328 = vadd.f32 %v241, %v266
  %v329 = vadd.f32 %v242, %v266
  %v330 = vadd.f32 %v243, %v266
  %v331 = vadd.f32 %v244, %v266
  %v332 = vadd.f32 %v245, %v266
  %v333 = vadd.f32 %v246, %v266
  %v334 = vadd.f32 %v247, %v266
  %v335 = vadd.f32 %v248, %v266
  %v336 = vadd.f32 %v249, %v266
  %v337 = vadd.f32 %v250, %v266
  %v338 = vadd.f32 %v251, %v266
  %v339 = vadd.f32 %v252, %v266
  %v340 = vadd.f32 %v253, %v266
  %v341 = vadd.f32 %v254, %v266
  %v342 = vadd.f32 %v255, %v266
  %v343 = vadd.f32 %v256, %v266
  %v344 = vadd.f32 %v257, %v266
  %v345 = vadd.f32 %v258, %v266
  %v346 = vadd.f32 %v259, %v266
  %v347 = vadd.f32 %v260, %v266
  %v348 = vmax.f32 %v268, 0.0
  %v349 = vmax.f32 %v269, 0.0
  %v350 = vmax.f32 %v270, 0.0
  %v351 = vmax.f32 %v271, 0.0
  %v352 = vmax.f32 %v272, 0.0
  %v353 = vmax.f32 %v273, 0.0
  %v354 = vmax.f32 %v274, 0.0
  %v355 = vmax.f32 %v275, 0.0
  %v356 = vmax.f32 %v276, 0.0
  %v357 = vmax.f32 %v277, 0.0
  %v358 = vmax.f32 %v278, 0.0
  %v359 = vmax.f32 %v279, 0.0
  %v360 = vmax.f32 %v280, 0.0
  %v361 = vmax.f32 %v281, 0.0
  %v362 = vmax.f32 %v282, 0.0
  %v363 = vmax.f32 %v283, 0.0
  %v364 = vmax.f32 %v284, 0.0
  %v365 = vmax.f32 %v285, 0.0
  %v366 = vmax.f32 %v286, 0.0
  %v367 = vmax.f32 %v287, 0.0
  %v368 = vmax.f32 %v288, 0.0
  %v369 = vmax.f32 %v289, 0.0
  %v370 = vmax.f32 %v290, 0.0
  %v371 = vmax.f32 %v291, 0.0
  %v372 = vmax.f32 %v292, 0.0
  %v373 = vmax.f32 %v293, 0.0
  %v374 = vmax.f32 %v294, 0.0
  %v375 = vmax.f32 %v295, 0.0
  %v376 = vmax.f32 %v296, 0.0
  %v377 = vmax.f32 %v297, 0.0
  %v378 = vmax.f32 %v298, 0.0
  %v379 = vmax.f32 %v299, 0.0
  %v380 = vmax.f32 %v300, 0.0
  %v381 = vmax.f32 %v301, 0.0
  %v382 = vmax.f32 %v302, 0.0
  %v383 = vmax.f32 %v303, 0.0
  %v384 = vmax.f32 %v304, 0.0
  %v385 = vmax.f32 %v305, 0.0
  %v386 = vmax.f32 %v306, 0.0
  %v387 = vmax.f32 %v307, 0.0
  %v388 = vmax.f32 %v308, 0.0
  %v389 = vmax.f32 %v309, 0.0
  %v390 = vmax.f32 %v310, 0.0
  %v391 = vmax.f32 %v311, 0.0
  %v392 = vmax.f32 %v312, 0.0
  %v393 = vmax.f32 %v313, 0.0
  %v394 = vmax.f32 %v314, 0.0
  %v395 = vmax.f32 %v315, 0.0
  %v396 = vmax.f32 %v316, 0.0
  %v397 = vmax.f32 %v317, 0.0
  %v398 = vmax.f32 %v318, 0.0
  %v399 = vmax.f32 %v319, 0.0
  %v400 = vmax.f32 %v320, 0.0
  %v401 = vmax.f32 %v321, 0.0
  %v402 = vmax.f32 %v322, 0.0
  %v403 = vmax.f32 %v323, 0.0
  %v404 = vmax.f32 %v324, 0.0
  %v405 = vmax.f32 %v325, 0.0
  %v406 = vmax.f32 %v326, 0.0
  %v407 = vmax.f32 %v327, 0.0
  %v408 = vmax.f32 %v328, 0.0
  %v409 = vmax.f32 %v329, 0.0
  %v410 = vmax.f32 %v330, 0.0
  %v411 = vmax.f32 %v331, 0.0
  %v412 = vmax.f32 %v332, 0.0
  %v413 = vmax.f32 %v333, 0.0
  %v414 = vmax.f32 %v334, 0.0
  %v415 = vmax.f32 %v335, 0.0
  %v416 = vmax.f32 %v336, 0.0
  %v417 = vmax.f32 %v337, 0.0
  %v418 = vmax.f32 %v338, 0.0
  %v419 = vmax.f32 %v339, 0.0
  %v420 = vmax.f32 %v340, 0.0
  %v421 = vmax.f32 %v341, 0.0
  %v422 = vmax.f32 %v342, 0.0
  %v423 = vmax.f32 %v343, 0.0
  %v424 = vmax.f32 %v344, 0.0
  %v425 = vmax.f32 %v345, 0.0
  %v426 = vmax.f32 %v346, 0.0
  %v427 = vmax.f32 %v347, 0.0
  %v428 = vpack.c.bf16 %v349, %v348
  %v429 = vpack.c.bf16 %v351, %v350
  %v430 = vpack.c.bf16 %v353, %v352
  %v431 = vpack.c.bf16 %v355, %v354
  %v432 = vpack.c.bf16 %v357, %v356
  %v433 = vpack.c.bf16 %v359, %v358
  %v434 = vpack.c.bf16 %v361, %v360
  %v435 = vpack.c.bf16 %v363, %v362
  %v436 = vpack.c.bf16 %v365, %v364
  %v437 = vpack.c.bf16 %v367, %v366
  %v438 = vpack.c.bf16 %v369, %v368
  %v439 = vpack.c.bf16 %v371, %v370
  %v440 = vpack.c.bf16 %v373, %v372
  %v441 = vpack.c.bf16 %v375, %v374
  %v442 = vpack.c.bf16 %v377, %v376
  %v443 = vpack.c.bf16 %v379, %v378
  %v444 = vpack.c.bf16 %v381, %v380
  %v445 = vpack.c.bf16 %v383, %v382
  %v446 = vpack.c.bf16 %v385, %v384
  %v447 = vpack.c.bf16 %v387, %v386
  %v448 = vpack.c.bf16 %v389, %v388
  %v449 = vpack.c.bf16 %v391, %v390
  %v450 = vpack.c.bf16 %v393, %v392
  %v451 = vpack.c.bf16 %v395, %v394
  %v452 = vpack.c.bf16 %v397, %v396
  %v453 = vpack.c.bf16 %v399, %v398
  %v454 = vpack.c.bf16 %v401, %v400
  %v455 = vpack.c.bf16 %v403, %v402
  %v456 = vpack.c.bf16 %v405, %v404
  %v457 = vpack.c.bf16 %v407, %v406
  %v458 = vpack.c.bf16 %v409, %v408
  %v459 = vpack.c.bf16 %v411, %v410
  %v460 = vpack.c.bf16 %v413, %v412
  %v461 = vpack.c.bf16 %v415, %v414
  %v462 = vpack.c.bf16 %v417, %v416
  %v463 = vpack.c.bf16 %v419, %v418
  %v464 = vpack.c.bf16 %v421, %v420
  %v465 = vpack.c.bf16 %v423, %v422
  %v466 = vpack.c.bf16 %v425, %v424
  %v467 = vpack.c.bf16 %v427, %v426
  %v508 = vunpack.c.l.b16 %v428
  %v509 = vunpack.c.h.b16 %v428
  %v510 = vunpack.c.l.b16 %v429
  %v511 = vunpack.c.h.b16 %v429
  %v512 = vunpack.c.l.b16 %v430
  %v513 = vunpack.c.h.b16 %v430
  %v514 = vunpack.c.l.b16 %v431
  %v515 = vunpack.c.h.b16 %v431
  %v516 = vunpack.c.l.b16 %v432
  %v517 = vunpack.c.h.b16 %v432
  %v518 = vunpack.c.l.b16 %v433
  %v519 = vunpack.c.h.b16 %v433
  %v520 = vunpack.c.l.b16 %v434
  %v521 = vunpack.c.h.b16 %v434
  %v522 = vunpack.c.l.b16 %v435
  %v523 = vunpack.c.h.b16 %v435
  %v524 = vunpack.c.l.b16 %v436
  %v525 = vunpack.c.h.b16 %v436
  %v526 = vunpack.c.l.b16 %v437
  %v527 = vunpack.c.h.b16 %v437
  %v528 = vunpack.c.l.b16 %v438
  %v529 = vunpack.c.h.b16 %v438
  %v530 = vunpack.c.l.b16 %v439
  %v531 = vunpack.c.h.b16 %v439
  %v532 = vunpack.c.l.b16 %v440
  %v533 = vunpack.c.h.b16 %v440
  %v534 = vunpack.c.l.b16 %v441
  %v535 = vunpack.c.h.b16 %v441
  %v536 = vunpack.c.l.b16 %v442
  %v537 = vunpack.c.h.b16 %v442
  %v538 = vunpack.c.l.b16 %v443
  %v539 = vunpack.c.h.b16 %v443
  %v540 = vunpack.c.l.b16 %v444
  %v541 = vunpack.c.h.b16 %v444
  %v542 = vunpack.c.l.b16 %v445
  %v543 = vunpack.c.h.b16 %v445
  %v544 = vunpack.c.l.b16 %v446
  %v545 = vunpack.c.h.b16 %v446
  %v546 = vunpack.c.l.b16 %v447
  %v547 = vunpack.c.h.b16 %v447
  %v548 = vunpack.c.l.b16 %v448
  %v549 = vunpack.c.h.b16 %v448
  %v550 = vunpack.c.l.b16 %v449
  %v551 = vunpack.c.h.b16 %v449
  %v552 = vunpack.c.l.b16 %v450
  %v553 = vunpack.c.h.b16 %v450
  %v554 = vunpack.c.l.b16 %v451
  %v555 = vunpack.c.h.b16 %v451
  %v556 = vunpack.c.l.b16 %v452
  %v557 = vunpack.c.h.b16 %v452
  %v558 = vunpack.c.l.b16 %v453
  %v559 = vunpack.c.h.b16 %v453
  %v560 = vunpack.c.l.b16 %v454
  %v561 = vunpack.c.h.b16 %v454
  %v562 = vunpack.c.l.b16 %v455
  %v563 = vunpack.c.h.b16 %v455
  %v564 = vunpack.c.l.b16 %v456
  %v565 = vunpack.c.h.b16 %v456
  %v566 = vunpack.c.l.b16 %v457
  %v567 = vunpack.c.h.b16 %v457
  %v568 = vunpack.c.l.b16 %v458
  %v569 = vunpack.c.h.b16 %v458
  %v570 = vunpack.c.l.b16 %v459
  %v571 = vunpack.c.h.b16 %v459
  %v572 = vunpack.c.l.b16 %v460
  %v573 = vunpack.c.h.b16 %v460
  %v574 = vunpack.c.l.b16 %v461
  %v575 = vunpack.c.h.b16 %v461
  %v576 = vunpack.c.l.b16 %v462
  %v577 = vunpack.c.h.b16 %v462
  %v578 = vunpack.c.l.b16 %v463
  %v579 = vunpack.c.h.b16 %v463
  %v580 = vunpack.c.l.b16 %v464
  %v581 = vunpack.c.h.b16 %v464
  %v582 = vunpack.c.l.b16 %v465
  %v583 = vunpack.c.h.b16 %v465
  %v584 = vunpack.c.l.b16 %v466
  %v585 = vunpack.c.h.b16 %v466
  %v586 = vunpack.c.l.b16 %v467
  %v587 = vunpack.c.h.b16 %v467
  %v588 = vpack.c.b16 %v508, %v508
  %v589 = vpack.c.b16 %v509, %v509
  %v590 = vpack.c.b16 %v510, %v510
  %v591 = vpack.c.b16 %v511, %v511
  %v592 = vpack.c.b16 %v512, %v512
  %v593 = vpack.c.b16 %v513, %v513
  %v594 = vpack.c.b16 %v514, %v514
  %v595 = vpack.c.b16 %v515, %v515
  %v596 = vpack.c.b16 %v516, %v516
  %v597 = vpack.c.b16 %v517, %v517
  %v598 = vpack.c.b16 %v518, %v518
  %v599 = vpack.c.b16 %v519, %v519
  %v600 = vpack.c.b16 %v520, %v520
  %v601 = vpack.c.b16 %v521, %v521
  %v602 = vpack.c.b16 %v522, %v522
  %v603 = vpack.c.b16 %v523, %v523
  %v604 = vpack.c.b16 %v524, %v524
  %v605 = vpack.c.b16 %v525, %v525
  %v606 = vpack.c.b16 %v526, %v526
  %v607 = vpack.c.b16 %v527, %v527
  %v608 = vpack.c.b16 %v528, %v528
  %v609 = vpack.c.b16 %v529, %v529
  %v610 = vpack.c.b16 %v530, %v530
  %v611 = vpack.c.b16 %v531, %v531
  %v612 = vpack.c.b16 %v532, %v532
  %v613 = vpack.c.b16 %v533, %v533
  %v614 = vpack.c.b16 %v534, %v534
  %v615 = vpack.c.b16 %v535, %v535
  %v616 = vpack.c.b16 %v536, %v536
  %v617 = vpack.c.b16 %v537, %v537
  %v618 = vpack.c.b16 %v538, %v538
  %v619 = vpack.c.b16 %v539, %v539
  %v620 = vpack.c.b16 %v540, %v540
  %v621 = vpack.c.b16 %v541, %v541
  %v622 = vpack.c.b16 %v542, %v542
  %v623 = vpack.c.b16 %v543, %v543
  %v624 = vpack.c.b16 %v544, %v544
  %v625 = vpack.c.b16 %v545, %v545
  %v626 = vpack.c.b16 %v546, %v546
  %v627 = vpack.c.b16 %v547, %v547
  %v628 = vpack.c.b16 %v548, %v548
  %v629 = vpack.c.b16 %v549, %v549
  %v630 = vpack.c.b16 %v550, %v550
  %v631 = vpack.c.b16 %v551, %v551
  %v632 = vpack.c.b16 %v552, %v552
  %v633 = vpack.c.b16 %v553, %v553
  %v634 = vpack.c.b16 %v554, %v554
  %v635 = vpack.c.b16 %v555, %v555
  %v636 = vpack.c.b16 %v556, %v556
  %v637 = vpack.c.b16 %v557, %v557
  %v638 = vpack.c.b16 %v558, %v558
  %v639 = vpack.c.b16 %v559, %v559
  %v640 = vpack.c.b16 %v560, %v560
  %v641 = vpack.c.b16 %v561, %v561
  %v642 = vpack.c.b16 %v562, %v562
  %v643 = vpack.c.b16 %v563, %v563
  %v644 = vpack.c.b16 %v564, %v564
  %v645 = vpack.c.b16 %v565, %v565
  %v646 = vpack.c.b16 %v566, %v566
  %v647 = vpack.c.b16 %v567, %v567
  %v648 = vpack.c.b16 %v568, %v568
  %v649 = vpack.c.b16 %v569, %v569
  %v650 = vpack.c.b16 %v570, %v570
  %v651 = vpack.c.b16 %v571, %v571
  %v652 = vpack.c.b16 %v572, %v572
  %v653 = vpack.c.b16 %v573, %v573
  %v654 = vpack.c.b16 %v574, %v574
  %v655 = vpack.c.b16 %v575, %v575
  %v656 = vpack.c.b16 %v576, %v576
  %v657 = vpack.c.b16 %v577, %v577
  %v658 = vpack.c.b16 %v578, %v578
  %v659 = vpack.c.b16 %v579, %v579
  %v660 = vpack.c.b16 %v580, %v580
  %v661 = vpack.c.b16 %v581, %v581
  %v662 = vpack.c.b16 %v582, %v582
  %v663 = vpack.c.b16 %v583, %v583
  %v664 = vpack.c.b16 %v584, %v584
  %v665 = vpack.c.b16 %v585, %v585
  %v666 = vpack.c.b16 %v586, %v586
  %v667 = vpack.c.b16 %v587, %v587
  %748 = vst [vmem:[%s3] sm:$0xf] %v588
  %749 = vst [vmem:[%s3 + $0x4] sm:$0xf] %v589
  %750 = vst [vmem:[%s3 + $0x8] sm:$0xf] %v590
  %751 = vst [vmem:[%s3 + $0xc] sm:$0xf] %v591
  %752 = vst [vmem:[%s3 + $0x10] sm:$0xf] %v592
  %753 = vst [vmem:[%s3 + $0x14] sm:$0xf] %v593
  %754 = vst [vmem:[%s3 + $0x18] sm:$0xf] %v594
  %755 = vst [vmem:[%s3 + $0x1c] sm:$0xf] %v595
  %756 = vst [vmem:[%s3 + $0x20] sm:$0xf] %v596
  %757 = vst [vmem:[%s3 + $0x24] sm:$0xf] %v597
  %758 = vst [vmem:[%s3 + $0x28] sm:$0xf] %v598
  %759 = vst [vmem:[%s3 + $0x2c] sm:$0xf] %v599
  %760 = vst [vmem:[%s3 + $0x30] sm:$0xf] %v600
  %761 = vst [vmem:[%s3 + $0x34] sm:$0xf] %v601
  %762 = vst [vmem:[%s3 + $0x38] sm:$0xf] %v602
  %763 = vst [vmem:[%s3 + $0x3c] sm:$0xf] %v603
  %764 = vst [vmem:[%s3 + $0x40] sm:$0xf] %v604
  %765 = vst [vmem:[%s3 + $0x44] sm:$0xf] %v605
  %766 = vst [vmem:[%s3 + $0x48] sm:$0xf] %v606
  %767 = vst [vmem:[%s3 + $0x4c] sm:$0xf] %v607
  %768 = vst [vmem:[%s3 + $0x50] sm:$0xf] %v608
  %769 = vst [vmem:[%s3 + $0x54] sm:$0xf] %v609
  %770 = vst [vmem:[%s3 + $0x58] sm:$0xf] %v610
  %771 = vst [vmem:[%s3 + $0x5c] sm:$0xf] %v611
  %772 = vst [vmem:[%s3 + $0x60] sm:$0xf] %v612
  %773 = vst [vmem:[%s3 + $0x64] sm:$0xf] %v613
  %774 = vst [vmem:[%s3 + $0x68] sm:$0xf] %v614
  %775 = vst [vmem:[%s3 + $0x6c] sm:$0xf] %v615
  %776 = vst [vmem:[%s3 + $0x70] sm:$0xf] %v616
  %777 = vst [vmem:[%s3 + $0x74] sm:$0xf] %v617
  %778 = vst [vmem:[%s3 + $0x78] sm:$0xf] %v618
  %779 = vst [vmem:[%s3 + $0x7c] sm:$0xf] %v619
  %780 = vst [vmem:[%s3 + $0x80] sm:$0xf] %v620
  %781 = vst [vmem:[%s3 + $0x84] sm:$0xf] %v621
  %782 = vst [vmem:[%s3 + $0x88] sm:$0xf] %v622
  %783 = vst [vmem:[%s3 + $0x8c] sm:$0xf] %v623
  %784 = vst [vmem:[%s3 + $0x90] sm:$0xf] %v624
  %785 = vst [vmem:[%s3 + $0x94] sm:$0xf] %v625
  %786 = vst [vmem:[%s3 + $0x98] sm:$0xf] %v626
  %787 = vst [vmem:[%s3 + $0x9c] sm:$0xf] %v627
  %788 = vst [vmem:[%s3 + $0xa0] sm:$0xf] %v628
  %789 = vst [vmem:[%s3 + $0xa4] sm:$0xf] %v629
  %790 = vst [vmem:[%s3 + $0xa8] sm:$0xf] %v630
  %791 = vst [vmem:[%s3 + $0xac] sm:$0xf] %v631
  %792 = vst [vmem:[%s3 + $0xb0] sm:$0xf] %v632
  %793 = vst [vmem:[%s3 + $0xb4] sm:$0xf] %v633
  %794 = vst [vmem:[%s3 + $0xb8] sm:$0xf] %v634
  %795 = vst [vmem:[%s3 + $0xbc] sm:$0xf] %v635
  %796 = vst [vmem:[%s3 + $0xc0] sm:$0xf] %v636
  %797 = vst [vmem:[%s3 + $0xc4] sm:$0xf] %v637
  %798 = vst [vmem:[%s3 + $0xc8] sm:$0xf] %v638
  %799 = vst [vmem:[%s3 + $0xcc] sm:$0xf] %v639
  %800 = vst [vmem:[%s3 + $0xd0] sm:$0xf] %v640
  %801 = vst [vmem:[%s3 + $0xd4] sm:$0xf] %v641
  %802 = vst [vmem:[%s3 + $0xd8] sm:$0xf] %v642
  %803 = vst [vmem:[%s3 + $0xdc] sm:$0xf] %v643
  %804 = vst [vmem:[%s3 + $0xe0] sm:$0xf] %v644
  %805 = vst [vmem:[%s3 + $0xe4] sm:$0xf] %v645
  %806 = vst [vmem:[%s3 + $0xe8] sm:$0xf] %v646
  %807 = vst [vmem:[%s3 + $0xec] sm:$0xf] %v647
  %808 = vst [vmem:[%s3 + $0xf0] sm:$0xf] %v648
  %809 = vst [vmem:[%s3 + $0xf4] sm:$0xf] %v649
  %810 = vst [vmem:[%s3 + $0xf8] sm:$0xf] %v650
  %811 = vst [vmem:[%s3 + $0xfc] sm:$0xf] %v651
  %812 = vst [vmem:[%s3 + $0x100] sm:$0xf] %v652
  %813 = vst [vmem:[%s3 + $0x104] sm:$0xf] %v653
  %814 = vst [vmem:[%s3 + $0x108] sm:$0xf] %v654
  %815 = vst [vmem:[%s3 + $0x10c] sm:$0xf] %v655
  %816 = vst [vmem:[%s3 + $0x110] sm:$0xf] %v656
  %817 = vst [vmem:[%s3 + $0x114] sm:$0xf] %v657
  %818 = vst [vmem:[%s3 + $0x118] sm:$0xf] %v658
  %819 = vst [vmem:[%s3 + $0x11c] sm:$0xf] %v659
  %820 = vst [vmem:[%s3 + $0x120] sm:$0xf] %v660
  %821 = vst [vmem:[%s3 + $0x124] sm:$0xf] %v661
  %822 = vst [vmem:[%s3 + $0x128] sm:$0xf] %v662
  %823 = vst [vmem:[%s3 + $0x12c] sm:$0xf] %v663
  %824 = vst [vmem:[%s3 + $0x130] sm:$0xf] %v664
  %825 = vst [vmem:[%s3 + $0x134] sm:$0xf] %v665
  %826 = vst [vmem:[%s3 + $0x138] sm:$0xf] %v666
  %827 = vst [vmem:[%s3 + $0x13c] sm:$0xf] %v667
  // Predicated region
  $region14: #{generator_forward.16} parent=0 // pred_check
    _
  $region15: #{generator_forward.16} parent=0 // pred_check_branch
    %829 = sbr.rel (0) target = $region17
  $region16: #{generator_forward.16} parent=0 // pred_region
    _
  $region17: #{generator_forward.16} parent=0 // pred_fallthru
    _
  // Predicated region
  $region18: #{generator_forward.16} parent=0 // pred_check
    _
  $region19: #{generator_forward.16} parent=0 // pred_check_branch
    %831 = sbr.rel (0) target = $region21
  $region20: #{generator_forward.16} parent=0 // pred_region
    _
  $region21: #{generator_forward.16} parent=0 // pred_fallthru
    _

// kernel: generator_forward.17
$region0: #{generator_forward.17}
  #allocation0 [shape = 'u32[]', space=smem, size = 0x4, offset = 0x4, fixed_abs, tag = 'smem constant byte address 0x4 - core index']
  #allocation1 [shape = 'u32[144,128]{1,0:T(1,128)}', space=vmem, size = 0x12000, scoped, tag = 'internal scratch']
  %s0 = inlined_call_operand.vmem [shape: bf16[2304,32], index: 0, kind: input, shape index: {}]
  %s1 = inlined_call_operand.vmem [shape: bf16[32,128], index: 1, kind: input, shape index: {}]
  %s2 = inlined_call_operand.vmem [shape: f32[1,128], index: 2, kind: input, shape index: {}]
  %s3 = inlined_call_operand.vmem [shape: bf16[2304,128], index: 3, kind: output, shape index: {}]
  %s4 = sld [smem:[#allocation0]]
  $region45: #{generator_forward.17} parent=0
    _
  %s6 = ssub.s32 1, %s4
  %s7 = scalar_select 0, %s6, %s4
  loop: start=0, step=1, limit=4
  $region2: #{generator_forward.17} parent=0 // loop_pre_header
    _
  $region3: #{generator_forward.17} parent=0 // loop_header
    %s9 = sphi 0, %s13
    %p10 = scmp.ge.s32.totalorder %s9, 4
    %s16 = sphi 0, %s28
    %s17 = sphi 0, %s24
    %s18 = sphi 0, %s16
    %s19 = sphi 0, %s17
    %s20 = sphi 0, %s18
    %s21 = sphi 0, %s19
    %s31 = sphi 0, %s33
    %s34 = sphi 0, %s31
    %s35 = sphi 0, %s34
    %s51 = sphi 0, %s35
    %s57 = sphi 0, %s59
    %s60 = sphi 0, %s57
    %s61 = sphi 0, %s60
    %s77 = sphi 0, %s61
    %s83 = sphi 0, %s85
    %s86 = sphi 0, %s83
    %s87 = sphi 0, %s86
    %s103 = sphi 0, %s87
    %s111 = sphi 0, %s113
    %s114 = sphi 0, %s111
    %s115 = sphi 0, %s114
    %s131 = sphi 0, %s115
  $region4: #{generator_forward.17} parent=0 // loop_header_branch
    %12 = sbr.rel (%p10) target = $region8
  $region5: #{generator_forward.17} parent=0 // loop_body
    %s14 = ssub.s32 %s9, 1
    %s15 = ssub.s32 %s9, 2
    %s22 = sadd.s32 1, %s17
    %p23 = scmp.ge.s32.totalorder %s22, 2
    %s24 = scalar_select %p23, 0, %s22
    %s25 = sadd.s32 1, %s16
    %s26 = scalar_select %p23, %s25, %s16
    %p27 = scmp.ge.s32.totalorder %s26, 1
    %s28 = scalar_select %p27, 0, %s26
    %s29 = ssub.s32 %s17, %s24
    %p30 = scmp.eq.s32.totalorder %s29, 0
    %s32 = sadd.s32 %s31, 1
    %s33 = scalar_select %p30, %s31, %s32
    %p36 = pneg %p30
    %p37 = scmp.eq.s32.totalorder %s9, 1
    %p38 = por %p36, %p37
    %p39 = scmp.ne.s32.totalorder %s31, %s34
    %p40 = scmp.eq.s32.totalorder %s9, 0
    %p41 = por %p39, %p40
    %p42 = scmp.ne.s32.totalorder %s31, %s34
    %p43 = scmp.eq.s32.totalorder %s14, 1
    %p44 = por %p42, %p43
    %p45 = scmp.ne.s32.totalorder %s34, %s35
    %p46 = scmp.eq.s32.totalorder %s14, 0
    %p47 = por %p45, %p46
    %p48 = scmp.ne.s32.totalorder %s34, %s35
    %p49 = scmp.eq.s32.totalorder %s15, 1
    %p50 = por %p48, %p49
    %p52 = scmp.ne.s32.totalorder %s35, %s51
    %p53 = scmp.eq.s32.totalorder %s15, 0
    %p54 = por %p52, %p53
    %s55 = ssub.s32 %s16, %s28
    %p56 = scmp.eq.s32.totalorder %s55, 0
    %s58 = sadd.s32 %s57, 1
    %s59 = scalar_select %p56, %s57, %s58
    %p62 = pneg %p56
    %p63 = scmp.eq.s32.totalorder %s9, 1
    %p64 = por %p62, %p63
    %p65 = scmp.ne.s32.totalorder %s57, %s60
    %p66 = scmp.eq.s32.totalorder %s9, 0
    %p67 = por %p65, %p66
    %p68 = scmp.ne.s32.totalorder %s57, %s60
    %p69 = scmp.eq.s32.totalorder %s14, 1
    %p70 = por %p68, %p69
    %p71 = scmp.ne.s32.totalorder %s60, %s61
    %p72 = scmp.eq.s32.totalorder %s14, 0
    %p73 = por %p71, %p72
    %p74 = scmp.ne.s32.totalorder %s60, %s61
    %p75 = scmp.eq.s32.totalorder %s15, 1
    %p76 = por %p74, %p75
    %p78 = scmp.ne.s32.totalorder %s61, %s77
    %p79 = scmp.eq.s32.totalorder %s15, 0
    %p80 = por %p78, %p79
    %s81 = ssub.s32 %s16, %s28
    %p82 = scmp.eq.s32.totalorder %s81, 0
    %s84 = sadd.s32 %s83, 1
    %s85 = scalar_select %p82, %s83, %s84
    %p88 = pneg %p82
    %p89 = scmp.eq.s32.totalorder %s9, 1
    %p90 = por %p88, %p89
    %p91 = scmp.ne.s32.totalorder %s83, %s86
    %p92 = scmp.eq.s32.totalorder %s9, 0
    %p93 = por %p91, %p92
    %p94 = scmp.ne.s32.totalorder %s83, %s86
    %p95 = scmp.eq.s32.totalorder %s14, 1
    %p96 = por %p94, %p95
    %p97 = scmp.ne.s32.totalorder %s86, %s87
    %p98 = scmp.eq.s32.totalorder %s14, 0
    %p99 = por %p97, %p98
    %p100 = scmp.ne.s32.totalorder %s86, %s87
    %p101 = scmp.eq.s32.totalorder %s15, 1
    %p102 = por %p100, %p101
    %p104 = scmp.ne.s32.totalorder %s87, %s103
    %p105 = scmp.eq.s32.totalorder %s15, 0
    %p106 = por %p104, %p105
    %s107 = ssub.s32 %s17, %s24
    %s108 = ssub.s32 %s16, %s28
    %s109 = sor.u32 %s107, %s108
    %p110 = scmp.eq.s32.totalorder %s109, 0
    %s112 = sadd.s32 %s111, 1
    %s113 = scalar_select %p110, %s111, %s112
    %p116 = pneg %p110
    %p117 = scmp.eq.s32.totalorder %s9, 1
    %p118 = por %p116, %p117
    %p119 = scmp.ne.s32.totalorder %s111, %s114
    %p120 = scmp.eq.s32.totalorder %s9, 0
    %p121 = por %p119, %p120
    %p122 = scmp.ne.s32.totalorder %s111, %s114
    %p123 = scmp.eq.s32.totalorder %s14, 1
    %p124 = por %p122, %p123
    %p125 = scmp.ne.s32.totalorder %s114, %s115
    %p126 = scmp.eq.s32.totalorder %s14, 0
    %p127 = por %p125, %p126
    %p128 = scmp.ne.s32.totalorder %s114, %s115
    %p129 = scmp.eq.s32.totalorder %s15, 1
    %p130 = por %p128, %p129
    %p132 = scmp.ne.s32.totalorder %s115, %s131
    %p133 = scmp.eq.s32.totalorder %s15, 0
    %p134 = por %p132, %p133
    %p135 = scmp.le.s32.totalorder 1, %s9
    %p136 = scmp.lt.s32.totalorder %s9, 3
    %p137 = pnand %p135, %p136
    %p138 = pneg %p137
    // Predicated region
    $region9: #{generator_forward.17} parent=5 // pred_check
      _
    $region10: #{generator_forward.17} parent=5 // pred_check_branch
      %140 = sbr.rel (%p137) target = $region12
    $region11: #{generator_forward.17} parent=5 // pred_region
      %s141 = ssub.s32 %s9, 1
      // Predicated region
      $region13: #{generator_forward.17} parent=11 // pred_check
        %p142 = pneg %p73
      $region14: #{generator_forward.17} parent=11 // pred_check_branch
        %144 = sbr.rel (%p142) target = $region16
      $region15: #{generator_forward.17} parent=11 // pred_region
        %p145 = scmp.lt.s32.totalorder %s18, 0
        %s146 = scalar_select %p145, %s18, 0
        %s147 = smul.addr %s146, 4
        %s148 = scalar_lea.vmem %s1, %s147
      $region16: #{generator_forward.17} parent=11 // pred_fallthru
        _
      // Predicated region
      $region17: #{generator_forward.17} parent=11 // pred_check
        %p149 = pneg %p99
      $region18: #{generator_forward.17} parent=11 // pred_check_branch
        %151 = sbr.rel (%p149) target = $region20
      $region19: #{generator_forward.17} parent=11 // pred_region
        %p152 = scmp.lt.s32.totalorder %s18, 0
        %s153 = scalar_select %p152, %s18, 0
        %s154 = scalar_lea.vmem %s2, %s153
      $region20: #{generator_forward.17} parent=11 // pred_fallthru
        _
    $region12: #{generator_forward.17} parent=5 // pred_fallthru
      _
    %p155 = scmp.lt.s32.totalorder %s9, 2
    // Predicated region
    $region21: #{generator_forward.17} parent=5 // pred_check
      %p156 = pneg %p155
    $region22: #{generator_forward.17} parent=5 // pred_check_branch
      %158 = sbr.rel (%p156) target = $region24
    $region23: #{generator_forward.17} parent=5 // pred_region
      // Predicated region
      $region25: #{generator_forward.17} parent=23 // pred_check
        %p159 = pneg %p41
      $region26: #{generator_forward.17} parent=23 // pred_check_branch
        %161 = sbr.rel (%p159) target = $region28
      $region27: #{generator_forward.17} parent=23 // pred_region
        %s162 = smul.u32 144, %s17
        %p163 = scmp.lt.s32.totalorder %s162, 287
        %s164 = scalar_select %p163, %s162, 287
        %s165 = smul.addr %s164, 4
        %s166 = scalar_lea.vmem %s0, %s165
        %s167 = smul.u32 144, %s17
      $region28: #{generator_forward.17} parent=23 // pred_fallthru
        _
    $region24: #{generator_forward.17} parent=5 // pred_fallthru
      _
    %p168 = scmp.le.s32.totalorder 1, %s9
    %p169 = scmp.lt.s32.totalorder %s9, 3
    %p170 = pnand %p168, %p169
    %p171 = pneg %p170
    // Predicated region
    $region29: #{generator_forward.17} parent=5 // pred_check
      _
    $region30: #{generator_forward.17} parent=5 // pred_check_branch
      %173 = sbr.rel (%p170) target = $region32
    $region31: #{generator_forward.17} parent=5 // pred_region
      %s174 = ssub.s32 %s9, 1
      %s175 = smul.u32 144, %s19
      %p176 = scmp.lt.s32.totalorder %s175, 287
      %s177 = scalar_select %p176, %s175, 287
      %s178 = smul.addr %s177, 4
      %s179 = scalar_lea.vmem %s0, %s178
      %p180 = pneg %p47
      %p181 = pneg %p44
      %p182 = scmp.lt.s32.totalorder %s18, 0
      %s183 = scalar_select %p182, %s18, 0
      %s184 = smul.addr %s183, 4
      %s185 = scalar_lea.vmem %s1, %s184
      %p186 = pneg %p73
      %p187 = pneg %p70
      %p188 = scmp.lt.s32.totalorder %s18, 0
      %s189 = scalar_select %p188, %s18, 0
      %s190 = scalar_lea.vmem %s2, %s189
      %p191 = pneg %p99
      %p192 = pneg %p96
      %p193 = pneg %p127
      %p194 = pneg %p124
      %s195 = smul.u32 144, %s19
      %p196 = scmp.lt.s32.totalorder %s195, 287
      %s197 = scalar_select %p196, %s195, 287
      %p198 = scmp.lt.s32.totalorder %s18, 0
      %s199 = scalar_select %p198, %s18, 0
      %s200 = sadd.s32 %s199, %s197
      %s201 = smul.addr %s200, 4
      %s202 = scalar_lea.vmem %s3, %s201
      %s203 = smul.u32 144, %s19
      %p204 = scmp.lt.s32.totalorder %s203, 287
      %s205 = scalar_select %p204, %s203, 287
      %s206 = smul.addr %s205, 4
      %s207 = scalar_lea.vmem %s0, %s206
      %s208 = smul.u32 144, %s19
      %p209 = scmp.lt.s32.totalorder %s18, 0
      %s210 = scalar_select %p209, %s18, 0
      %s211 = smul.addr %s210, 4
      %s212 = scalar_lea.vmem %s1, %s211
      %p213 = scmp.lt.s32.totalorder %s18, 0
      %s214 = scalar_select %p213, %s18, 0
      %s215 = scalar_lea.vmem %s2, %s214
      %s216 = smul.u32 144, %s19
      %p217 = scmp.lt.s32.totalorder %s216, 287
      %s218 = scalar_select %p217, %s216, 287
      %p219 = scmp.lt.s32.totalorder %s18, 0
      %s220 = scalar_select %p219, %s18, 0
      %s221 = sadd.s32 %s220, %s218
      %s222 = smul.addr %s221, 4
      %s223 = scalar_lea.vmem %s3, %s222
      %s224 = smul.u32 144, %s19
      %v226 = vld [vmem:[%s207] sm:$0xf]
      %v227 = vld [vmem:[%s207 + $0x4] sm:$0xf]
      %v228 = vld [vmem:[%s207 + $0x8] sm:$0xf]
      %v229 = vld [vmem:[%s207 + $0xc] sm:$0xf]
      %v230 = vld [vmem:[%s207 + $0x10] sm:$0xf]
      %v231 = vld [vmem:[%s207 + $0x14] sm:$0xf]
      %v232 = vld [vmem:[%s207 + $0x18] sm:$0xf]
      %v233 = vld [vmem:[%s207 + $0x1c] sm:$0xf]
      %v234 = vld [vmem:[%s207 + $0x20] sm:$0xf]
      %v235 = vld [vmem:[%s207 + $0x24] sm:$0xf]
      %v236 = vld [vmem:[%s207 + $0x28] sm:$0xf]
      %v237 = vld [vmem:[%s207 + $0x2c] sm:$0xf]
      %v238 = vld [vmem:[%s207 + $0x30] sm:$0xf]
      %v239 = vld [vmem:[%s207 + $0x34] sm:$0xf]
      %v240 = vld [vmem:[%s207 + $0x38] sm:$0xf]
      %v241 = vld [vmem:[%s207 + $0x3c] sm:$0xf]
      %v242 = vld [vmem:[%s207 + $0x40] sm:$0xf]
      %v243 = vld [vmem:[%s207 + $0x44] sm:$0xf]
      %v244 = vld [vmem:[%s207 + $0x48] sm:$0xf]
      %v245 = vld [vmem:[%s207 + $0x4c] sm:$0xf]
      %v246 = vld [vmem:[%s207 + $0x50] sm:$0xf]
      %v247 = vld [vmem:[%s207 + $0x54] sm:$0xf]
      %v248 = vld [vmem:[%s207 + $0x58] sm:$0xf]
      %v249 = vld [vmem:[%s207 + $0x5c] sm:$0xf]
      %v250 = vld [vmem:[%s207 + $0x60] sm:$0xf]
      %v251 = vld [vmem:[%s207 + $0x64] sm:$0xf]
      %v252 = vld [vmem:[%s207 + $0x68] sm:$0xf]
      %v253 = vld [vmem:[%s207 + $0x6c] sm:$0xf]
      %v254 = vld [vmem:[%s207 + $0x70] sm:$0xf]
      %v255 = vld [vmem:[%s207 + $0x74] sm:$0xf]
      %v256 = vld [vmem:[%s207 + $0x78] sm:$0xf]
      %v257 = vld [vmem:[%s207 + $0x7c] sm:$0xf]
      %v258 = vld [vmem:[%s207 + $0x80] sm:$0xf]
      %v259 = vld [vmem:[%s207 + $0x84] sm:$0xf]
      %v260 = vld [vmem:[%s207 + $0x88] sm:$0xf]
      %v261 = vld [vmem:[%s207 + $0x8c] sm:$0xf]
      %v262 = vld [vmem:[%s207 + $0x90] sm:$0xf]
      %v263 = vld [vmem:[%s207 + $0x94] sm:$0xf]
      %v264 = vld [vmem:[%s207 + $0x98] sm:$0xf]
      %v265 = vld [vmem:[%s207 + $0x9c] sm:$0xf]
      %v266 = vld [vmem:[%s207 + $0xa0] sm:$0xf]
      %v267 = vld [vmem:[%s207 + $0xa4] sm:$0xf]
      %v268 = vld [vmem:[%s207 + $0xa8] sm:$0xf]
      %v269 = vld [vmem:[%s207 + $0xac] sm:$0xf]
      %v270 = vld [vmem:[%s207 + $0xb0] sm:$0xf]
      %v271 = vld [vmem:[%s207 + $0xb4] sm:$0xf]
      %v272 = vld [vmem:[%s207 + $0xb8] sm:$0xf]
      %v273 = vld [vmem:[%s207 + $0xbc] sm:$0xf]
      %v274 = vld [vmem:[%s207 + $0xc0] sm:$0xf]
      %v275 = vld [vmem:[%s207 + $0xc4] sm:$0xf]
      %v276 = vld [vmem:[%s207 + $0xc8] sm:$0xf]
      %v277 = vld [vmem:[%s207 + $0xcc] sm:$0xf]
      %v278 = vld [vmem:[%s207 + $0xd0] sm:$0xf]
      %v279 = vld [vmem:[%s207 + $0xd4] sm:$0xf]
      %v280 = vld [vmem:[%s207 + $0xd8] sm:$0xf]
      %v281 = vld [vmem:[%s207 + $0xdc] sm:$0xf]
      %v282 = vld [vmem:[%s207 + $0xe0] sm:$0xf]
      %v283 = vld [vmem:[%s207 + $0xe4] sm:$0xf]
      %v284 = vld [vmem:[%s207 + $0xe8] sm:$0xf]
      %v285 = vld [vmem:[%s207 + $0xec] sm:$0xf]
      %v286 = vld [vmem:[%s207 + $0xf0] sm:$0xf]
      %v287 = vld [vmem:[%s207 + $0xf4] sm:$0xf]
      %v288 = vld [vmem:[%s207 + $0xf8] sm:$0xf]
      %v289 = vld [vmem:[%s207 + $0xfc] sm:$0xf]
      %v290 = vld [vmem:[%s207 + $0x100] sm:$0xf]
      %v291 = vld [vmem:[%s207 + $0x104] sm:$0xf]
      %v292 = vld [vmem:[%s207 + $0x108] sm:$0xf]
      %v293 = vld [vmem:[%s207 + $0x10c] sm:$0xf]
      %v294 = vld [vmem:[%s207 + $0x110] sm:$0xf]
      %v295 = vld [vmem:[%s207 + $0x114] sm:$0xf]
      %v296 = vld [vmem:[%s207 + $0x118] sm:$0xf]
      %v297 = vld [vmem:[%s207 + $0x11c] sm:$0xf]
      %v298 = vld [vmem:[%s207 + $0x120] sm:$0xf]
      %v299 = vld [vmem:[%s207 + $0x124] sm:$0xf]
      %v300 = vld [vmem:[%s207 + $0x128] sm:$0xf]
      %v301 = vld [vmem:[%s207 + $0x12c] sm:$0xf]
      %v302 = vld [vmem:[%s207 + $0x130] sm:$0xf]
      %v303 = vld [vmem:[%s207 + $0x134] sm:$0xf]
      %v304 = vld [vmem:[%s207 + $0x138] sm:$0xf]
      %v305 = vld [vmem:[%s207 + $0x13c] sm:$0xf]
      %v306 = vld [vmem:[%s207 + $0x140] sm:$0xf]
      %v307 = vld [vmem:[%s207 + $0x144] sm:$0xf]
      %v308 = vld [vmem:[%s207 + $0x148] sm:$0xf]
      %v309 = vld [vmem:[%s207 + $0x14c] sm:$0xf]
      %v310 = vld [vmem:[%s207 + $0x150] sm:$0xf]
      %v311 = vld [vmem:[%s207 + $0x154] sm:$0xf]
      %v312 = vld [vmem:[%s207 + $0x158] sm:$0xf]
      %v313 = vld [vmem:[%s207 + $0x15c] sm:$0xf]
      %v314 = vld [vmem:[%s207 + $0x160] sm:$0xf]
      %v315 = vld [vmem:[%s207 + $0x164] sm:$0xf]
      %v316 = vld [vmem:[%s207 + $0x168] sm:$0xf]
      %v317 = vld [vmem:[%s207 + $0x16c] sm:$0xf]
      %v318 = vld [vmem:[%s207 + $0x170] sm:$0xf]
      %v319 = vld [vmem:[%s207 + $0x174] sm:$0xf]
      %v320 = vld [vmem:[%s207 + $0x178] sm:$0xf]
      %v321 = vld [vmem:[%s207 + $0x17c] sm:$0xf]
      %v322 = vld [vmem:[%s207 + $0x180] sm:$0xf]
      %v323 = vld [vmem:[%s207 + $0x184] sm:$0xf]
      %v324 = vld [vmem:[%s207 + $0x188] sm:$0xf]
      %v325 = vld [vmem:[%s207 + $0x18c] sm:$0xf]
      %v326 = vld [vmem:[%s207 + $0x190] sm:$0xf]
      %v327 = vld [vmem:[%s207 + $0x194] sm:$0xf]
      %v328 = vld [vmem:[%s207 + $0x198] sm:$0xf]
      %v329 = vld [vmem:[%s207 + $0x19c] sm:$0xf]
      %v330 = vld [vmem:[%s207 + $0x1a0] sm:$0xf]
      %v331 = vld [vmem:[%s207 + $0x1a4] sm:$0xf]
      %v332 = vld [vmem:[%s207 + $0x1a8] sm:$0xf]
      %v333 = vld [vmem:[%s207 + $0x1ac] sm:$0xf]
      %v334 = vld [vmem:[%s207 + $0x1b0] sm:$0xf]
      %v335 = vld [vmem:[%s207 + $0x1b4] sm:$0xf]
      %v336 = vld [vmem:[%s207 + $0x1b8] sm:$0xf]
      %v337 = vld [vmem:[%s207 + $0x1bc] sm:$0xf]
      %v338 = vld [vmem:[%s207 + $0x1c0] sm:$0xf]
      %v339 = vld [vmem:[%s207 + $0x1c4] sm:$0xf]
      %v340 = vld [vmem:[%s207 + $0x1c8] sm:$0xf]
      %v341 = vld [vmem:[%s207 + $0x1cc] sm:$0xf]
      %v342 = vld [vmem:[%s207 + $0x1d0] sm:$0xf]
      %v343 = vld [vmem:[%s207 + $0x1d4] sm:$0xf]
      %v344 = vld [vmem:[%s207 + $0x1d8] sm:$0xf]
      %v345 = vld [vmem:[%s207 + $0x1dc] sm:$0xf]
      %v346 = vld [vmem:[%s207 + $0x1e0] sm:$0xf]
      %v347 = vld [vmem:[%s207 + $0x1e4] sm:$0xf]
      %v348 = vld [vmem:[%s207 + $0x1e8] sm:$0xf]
      %v349 = vld [vmem:[%s207 + $0x1ec] sm:$0xf]
      %v350 = vld [vmem:[%s207 + $0x1f0] sm:$0xf]
      %v351 = vld [vmem:[%s207 + $0x1f4] sm:$0xf]
      %v352 = vld [vmem:[%s207 + $0x1f8] sm:$0xf]
      %v353 = vld [vmem:[%s207 + $0x1fc] sm:$0xf]
      %v354 = vld [vmem:[%s207 + $0x200] sm:$0xf]
      %v355 = vld [vmem:[%s207 + $0x204] sm:$0xf]
      %v356 = vld [vmem:[%s207 + $0x208] sm:$0xf]
      %v357 = vld [vmem:[%s207 + $0x20c] sm:$0xf]
      %v358 = vld [vmem:[%s207 + $0x210] sm:$0xf]
      %v359 = vld [vmem:[%s207 + $0x214] sm:$0xf]
      %v360 = vld [vmem:[%s207 + $0x218] sm:$0xf]
      %v361 = vld [vmem:[%s207 + $0x21c] sm:$0xf]
      %v362 = vld [vmem:[%s207 + $0x220] sm:$0xf]
      %v363 = vld [vmem:[%s207 + $0x224] sm:$0xf]
      %v364 = vld [vmem:[%s207 + $0x228] sm:$0xf]
      %v365 = vld [vmem:[%s207 + $0x22c] sm:$0xf]
      %v366 = vld [vmem:[%s207 + $0x230] sm:$0xf]
      %v367 = vld [vmem:[%s207 + $0x234] sm:$0xf]
      %v368 = vld [vmem:[%s207 + $0x238] sm:$0xf]
      %v369 = vld [vmem:[%s207 + $0x23c] sm:$0xf]
      %v370 = vld [vmem:[%s212] sm:$0xf]
      %v371 = vld [vmem:[%s212 + $0x4] sm:$0xf]
      %v372 = vld [vmem:[%s212 + $0x8] sm:$0xf]
      %v373 = vld [vmem:[%s212 + $0xc] sm:$0xf]
      %v374 = vld [vmem:[%s215] sm:$0x1]
      %v376 = vlaneseq
      %v377 = vshrl.u32 %v376, 7
      %v378 = vsub.s32 0, %v377
      %v379 = vrot.slane %v374, %v378
      %v525 = vunpack.c.l.b16 %v226
      %v526 = vunpack.c.l.b16 %v227
      %v527 = vunpack.c.l.b16 %v228
      %v528 = vunpack.c.l.b16 %v229
      %v529 = vunpack.c.l.b16 %v230
      %v530 = vunpack.c.l.b16 %v231
      %v531 = vunpack.c.l.b16 %v232
      %v532 = vunpack.c.l.b16 %v233
      %v533 = vunpack.c.l.b16 %v234
      %v534 = vunpack.c.l.b16 %v235
      %v535 = vunpack.c.l.b16 %v236
      %v536 = vunpack.c.l.b16 %v237
      %v537 = vunpack.c.l.b16 %v238
      %v538 = vunpack.c.l.b16 %v239
      %v539 = vunpack.c.l.b16 %v240
      %v540 = vunpack.c.l.b16 %v241
      %v541 = vunpack.c.l.b16 %v242
      %v542 = vunpack.c.l.b16 %v243
      %v543 = vunpack.c.l.b16 %v244
      %v544 = vunpack.c.l.b16 %v245
      %v545 = vunpack.c.l.b16 %v246
      %v546 = vunpack.c.l.b16 %v247
      %v547 = vunpack.c.l.b16 %v248
      %v548 = vunpack.c.l.b16 %v249
      %v549 = vunpack.c.l.b16 %v250
      %v550 = vunpack.c.l.b16 %v251
      %v551 = vunpack.c.l.b16 %v252
      %v552 = vunpack.c.l.b16 %v253
      %v553 = vunpack.c.l.b16 %v254
      %v554 = vunpack.c.l.b16 %v255
      %v555 = vunpack.c.l.b16 %v256
      %v556 = vunpack.c.l.b16 %v257
      %v557 = vunpack.c.l.b16 %v258
      %v558 = vunpack.c.l.b16 %v259
      %v559 = vunpack.c.l.b16 %v260
      %v560 = vunpack.c.l.b16 %v261
      %v561 = vunpack.c.l.b16 %v262
      %v562 = vunpack.c.l.b16 %v263
      %v563 = vunpack.c.l.b16 %v264
      %v564 = vunpack.c.l.b16 %v265
      %v565 = vunpack.c.l.b16 %v266
      %v566 = vunpack.c.l.b16 %v267
      %v567 = vunpack.c.l.b16 %v268
      %v568 = vunpack.c.l.b16 %v269
      %v569 = vunpack.c.l.b16 %v270
      %v570 = vunpack.c.l.b16 %v271
      %v571 = vunpack.c.l.b16 %v272
      %v572 = vunpack.c.l.b16 %v273
      %v573 = vunpack.c.l.b16 %v274
      %v574 = vunpack.c.l.b16 %v275
      %v575 = vunpack.c.l.b16 %v276
      %v576 = vunpack.c.l.b16 %v277
      %v577 = vunpack.c.l.b16 %v278
      %v578 = vunpack.c.l.b16 %v279
      %v579 = vunpack.c.l.b16 %v280
      %v580 = vunpack.c.l.b16 %v281
      %v581 = vunpack.c.l.b16 %v282
      %v582 = vunpack.c.l.b16 %v283
      %v583 = vunpack.c.l.b16 %v284
      %v584 = vunpack.c.l.b16 %v285
      %v585 = vunpack.c.l.b16 %v286
      %v586 = vunpack.c.l.b16 %v287
      %v587 = vunpack.c.l.b16 %v288
      %v588 = vunpack.c.l.b16 %v289
      %v589 = vunpack.c.l.b16 %v290
      %v590 = vunpack.c.l.b16 %v291
      %v591 = vunpack.c.l.b16 %v292
      %v592 = vunpack.c.l.b16 %v293
      %v593 = vunpack.c.l.b16 %v294
      %v594 = vunpack.c.l.b16 %v295
      %v595 = vunpack.c.l.b16 %v296
      %v596 = vunpack.c.l.b16 %v297
      %v597 = vunpack.c.l.b16 %v298
      %v598 = vunpack.c.l.b16 %v299
      %v599 = vunpack.c.l.b16 %v300
      %v600 = vunpack.c.l.b16 %v301
      %v601 = vunpack.c.l.b16 %v302
      %v602 = vunpack.c.l.b16 %v303
      %v603 = vunpack.c.l.b16 %v304
      %v604 = vunpack.c.l.b16 %v305
      %v605 = vunpack.c.l.b16 %v306
      %v606 = vunpack.c.l.b16 %v307
      %v607 = vunpack.c.l.b16 %v308
      %v608 = vunpack.c.l.b16 %v309
      %v609 = vunpack.c.l.b16 %v310
      %v610 = vunpack.c.l.b16 %v311
      %v611 = vunpack.c.l.b16 %v312
      %v612 = vunpack.c.l.b16 %v313
      %v613 = vunpack.c.l.b16 %v314
      %v614 = vunpack.c.l.b16 %v315
      %v615 = vunpack.c.l.b16 %v316
      %v616 = vunpack.c.l.b16 %v317
      %v617 = vunpack.c.l.b16 %v318
      %v618 = vunpack.c.l.b16 %v319
      %v619 = vunpack.c.l.b16 %v320
      %v620 = vunpack.c.l.b16 %v321
      %v621 = vunpack.c.l.b16 %v322
      %v622 = vunpack.c.l.b16 %v323
      %v623 = vunpack.c.l.b16 %v324
      %v624 = vunpack.c.l.b16 %v325
      %v625 = vunpack.c.l.b16 %v326
      %v626 = vunpack.c.l.b16 %v327
      %v627 = vunpack.c.l.b16 %v328
      %v628 = vunpack.c.l.b16 %v329
      %v629 = vunpack.c.l.b16 %v330
      %v630 = vunpack.c.l.b16 %v331
      %v631 = vunpack.c.l.b16 %v332
      %v632 = vunpack.c.l.b16 %v333
      %v633 = vunpack.c.l.b16 %v334
      %v634 = vunpack.c.l.b16 %v335
      %v635 = vunpack.c.l.b16 %v336
      %v636 = vunpack.c.l.b16 %v337
      %v637 = vunpack.c.l.b16 %v338
      %v638 = vunpack.c.l.b16 %v339
      %v639 = vunpack.c.l.b16 %v340
      %v640 = vunpack.c.l.b16 %v341
      %v641 = vunpack.c.l.b16 %v342
      %v642 = vunpack.c.l.b16 %v343
      %v643 = vunpack.c.l.b16 %v344
      %v644 = vunpack.c.l.b16 %v345
      %v645 = vunpack.c.l.b16 %v346
      %v646 = vunpack.c.l.b16 %v347
      %v647 = vunpack.c.l.b16 %v348
      %v648 = vunpack.c.l.b16 %v349
      %v649 = vunpack.c.l.b16 %v350
      %v650 = vunpack.c.l.b16 %v351
      %v651 = vunpack.c.l.b16 %v352
      %v652 = vunpack.c.l.b16 %v353
      %v653 = vunpack.c.l.b16 %v354
      %v654 = vunpack.c.l.b16 %v355
      %v655 = vunpack.c.l.b16 %v356
      %v656 = vunpack.c.l.b16 %v357
      %v657 = vunpack.c.l.b16 %v358
      %v658 = vunpack.c.l.b16 %v359
      %v659 = vunpack.c.l.b16 %v360
      %v660 = vunpack.c.l.b16 %v361
      %v661 = vunpack.c.l.b16 %v362
      %v662 = vunpack.c.l.b16 %v363
      %v663 = vunpack.c.l.b16 %v364
      %v664 = vunpack.c.l.b16 %v365
      %v665 = vunpack.c.l.b16 %v366
      %v666 = vunpack.c.l.b16 %v367
      %v667 = vunpack.c.l.b16 %v368
      %v668 = vunpack.c.l.b16 %v369
      %v669 = vpack.c.b16 %v526, %v525
      %v670 = vpack.c.b16 %v528, %v527
      %v671 = vpack.c.b16 %v530, %v529
      %v672 = vpack.c.b16 %v532, %v531
      %v673 = vpack.c.b16 %v534, %v533
      %v674 = vpack.c.b16 %v536, %v535
      %v675 = vpack.c.b16 %v538, %v537
      %v676 = vpack.c.b16 %v540, %v539
      %v677 = vpack.c.b16 %v542, %v541
      %v678 = vpack.c.b16 %v544, %v543
      %v679 = vpack.c.b16 %v546, %v545
      %v680 = vpack.c.b16 %v548, %v547
      %v681 = vpack.c.b16 %v550, %v549
      %v682 = vpack.c.b16 %v552, %v551
      %v683 = vpack.c.b16 %v554, %v553
      %v684 = vpack.c.b16 %v556, %v555
      %v685 = vpack.c.b16 %v558, %v557
      %v686 = vpack.c.b16 %v560, %v559
      %v687 = vpack.c.b16 %v562, %v561
      %v688 = vpack.c.b16 %v564, %v563
      %v689 = vpack.c.b16 %v566, %v565
      %v690 = vpack.c.b16 %v568, %v567
      %v691 = vpack.c.b16 %v570, %v569
      %v692 = vpack.c.b16 %v572, %v571
      %v693 = vpack.c.b16 %v574, %v573
      %v694 = vpack.c.b16 %v576, %v575
      %v695 = vpack.c.b16 %v578, %v577
      %v696 = vpack.c.b16 %v580, %v579
      %v697 = vpack.c.b16 %v582, %v581
      %v698 = vpack.c.b16 %v584, %v583
      %v699 = vpack.c.b16 %v586, %v585
      %v700 = vpack.c.b16 %v588, %v587
      %v701 = vpack.c.b16 %v590, %v589
      %v702 = vpack.c.b16 %v592, %v591
      %v703 = vpack.c.b16 %v594, %v593
      %v704 = vpack.c.b16 %v596, %v595
      %v705 = vpack.c.b16 %v598, %v597
      %v706 = vpack.c.b16 %v600, %v599
      %v707 = vpack.c.b16 %v602, %v601
      %v708 = vpack.c.b16 %v604, %v603
      %v709 = vpack.c.b16 %v606, %v605
      %v710 = vpack.c.b16 %v608, %v607
      %v711 = vpack.c.b16 %v610, %v609
      %v712 = vpack.c.b16 %v612, %v611
      %v713 = vpack.c.b16 %v614, %v613
      %v714 = vpack.c.b16 %v616, %v615
      %v715 = vpack.c.b16 %v618, %v617
      %v716 = vpack.c.b16 %v620, %v619
      %v717 = vpack.c.b16 %v622, %v621
      %v718 = vpack.c.b16 %v624, %v623
      %v719 = vpack.c.b16 %v626, %v625
      %v720 = vpack.c.b16 %v628, %v627
      %v721 = vpack.c.b16 %v630, %v629
      %v722 = vpack.c.b16 %v632, %v631
      %v723 = vpack.c.b16 %v634, %v633
      %v724 = vpack.c.b16 %v636, %v635
      %v725 = vpack.c.b16 %v638, %v637
      %v726 = vpack.c.b16 %v640, %v639
      %v727 = vpack.c.b16 %v642, %v641
      %v728 = vpack.c.b16 %v644, %v643
      %v729 = vpack.c.b16 %v646, %v645
      %v730 = vpack.c.b16 %v648, %v647
      %v731 = vpack.c.b16 %v650, %v649
      %v732 = vpack.c.b16 %v652, %v651
      %v733 = vpack.c.b16 %v654, %v653
      %v734 = vpack.c.b16 %v656, %v655
      %v735 = vpack.c.b16 %v658, %v657
      %v736 = vpack.c.b16 %v660, %v659
      %v737 = vpack.c.b16 %v662, %v661
      %v738 = vpack.c.b16 %v664, %v663
      %v739 = vpack.c.b16 %v666, %v665
      %v740 = vpack.c.b16 %v668, %v667
      %v745 = vunpack.c.l.b16 %v370
      %v746 = vunpack.c.l.b16 %v371
      %v747 = vunpack.c.l.b16 %v372
      %v748 = vunpack.c.l.b16 %v373
      %v749 = vpack.c.b16 %v746, %v745
      %v750 = vpack.c.b16 %v748, %v747
      %vm753 = vcmask 261120
      %v755 = vsel %vm753, %v669, 0
      %v758 = vsel %vm753, %v670, 0
      %v761 = vsel %vm753, %v671, 0
      %v764 = vsel %vm753, %v672, 0
      %v767 = vsel %vm753, %v673, 0
      %v770 = vsel %vm753, %v674, 0
      %v773 = vsel %vm753, %v675, 0
      %v776 = vsel %vm753, %v676, 0
      %v779 = vsel %vm753, %v677, 0
      %v782 = vsel %vm753, %v678, 0
      %v785 = vsel %vm753, %v679, 0
      %v788 = vsel %vm753, %v680, 0
      %v791 = vsel %vm753, %v681, 0
      %v794 = vsel %vm753, %v682, 0
      %v797 = vsel %vm753, %v683, 0
      %v800 = vsel %vm753, %v684, 0
      %v803 = vsel %vm753, %v685, 0
      %v806 = vsel %vm753, %v686, 0
      %v809 = vsel %vm753, %v687, 0
      %v812 = vsel %vm753, %v688, 0
      %v815 = vsel %vm753, %v689, 0
      %v818 = vsel %vm753, %v690, 0
      %v821 = vsel %vm753, %v691, 0
      %v824 = vsel %vm753, %v692, 0
      %v827 = vsel %vm753, %v693, 0
      %v830 = vsel %vm753, %v694, 0
      %v833 = vsel %vm753, %v695, 0
      %v836 = vsel %vm753, %v696, 0
      %v839 = vsel %vm753, %v697, 0
      %v842 = vsel %vm753, %v698, 0
      %v845 = vsel %vm753, %v699, 0
      %v848 = vsel %vm753, %v700, 0
      %v851 = vsel %vm753, %v701, 0
      %v854 = vsel %vm753, %v702, 0
      %v857 = vsel %vm753, %v703, 0
      %v860 = vsel %vm753, %v704, 0
      %v863 = vsel %vm753, %v705, 0
      %v866 = vsel %vm753, %v706, 0
      %v869 = vsel %vm753, %v707, 0
      %v872 = vsel %vm753, %v708, 0
      %v875 = vsel %vm753, %v709, 0
      %v878 = vsel %vm753, %v710, 0
      %v881 = vsel %vm753, %v711, 0
      %v884 = vsel %vm753, %v712, 0
      %v887 = vsel %vm753, %v713, 0
      %v890 = vsel %vm753, %v714, 0
      %v893 = vsel %vm753, %v715, 0
      %v896 = vsel %vm753, %v716, 0
      %v899 = vsel %vm753, %v717, 0
      %v902 = vsel %vm753, %v718, 0
      %v905 = vsel %vm753, %v719, 0
      %v908 = vsel %vm753, %v720, 0
      %v911 = vsel %vm753, %v721, 0
      %v914 = vsel %vm753, %v722, 0
      %v917 = vsel %vm753, %v723, 0
      %v920 = vsel %vm753, %v724, 0
      %v923 = vsel %vm753, %v725, 0
      %v926 = vsel %vm753, %v726, 0
      %v929 = vsel %vm753, %v727, 0
      %v932 = vsel %vm753, %v728, 0
      %v935 = vsel %vm753, %v729, 0
      %v938 = vsel %vm753, %v730, 0
      %v941 = vsel %vm753, %v731, 0
      %v944 = vsel %vm753, %v732, 0
      %v947 = vsel %vm753, %v733, 0
      %v950 = vsel %vm753, %v734, 0
      %v953 = vsel %vm753, %v735, 0
      %v956 = vsel %vm753, %v736, 0
      %v959 = vsel %vm753, %v737, 0
      %v962 = vsel %vm753, %v738, 0
      %v965 = vsel %vm753, %v739, 0
      %v968 = vsel %vm753, %v740, 0
      %970 = vmatprep.subr.bf16.mxu0 0
      %971 = vmatpush1.bf16.msra.mxu0 %v749
      %972 = vmatprep.subr.bf16.mxu0 0
      %973 = vmatpush1.bf16.msra.mxu0 %v750
      %974 = vmatprep.subr.bf16.mxu0 0
      %975 = vmatpush1.bf16.msra.mxu0 0
      %976 = vmatprep.subr.bf16.mxu0 0
      %977 = vmatpush1.bf16.msra.mxu0 0
      %978 = vmatprep.subr.bf16.mxu0 0
      %979 = vmatpush1.bf16.msra.mxu0 0
      %980 = vmatprep.subr.bf16.mxu0 0
      %981 = vmatpush1.bf16.msra.mxu0 0
      %982 = vmatprep.subr.bf16.mxu0 0
      %983 = vmatpush1.bf16.msra.mxu0 0
      %984 = vmatprep.subr.bf16.mxu0 0
      %985 = vmatpush1.bf16.msra.mxu0 0
      %986 = vmatprep.subr.bf16.mxu0 0
      %987 = vmatpush1.bf16.msra.mxu0 0
      %988 = vmatprep.subr.bf16.mxu0 0
      %989 = vmatpush1.bf16.msra.mxu0 0
      %990 = vmatprep.subr.bf16.mxu0 0
      %991 = vmatpush1.bf16.msra.mxu0 0
      %992 = vmatprep.subr.bf16.mxu0 0
      %993 = vmatpush1.bf16.msra.mxu0 0
      %994 = vmatprep.subr.bf16.mxu0 0
      %995 = vmatpush1.bf16.msra.mxu0 0
      %996 = vmatprep.subr.bf16.mxu0 0
      %997 = vmatpush1.bf16.msra.mxu0 0
      %998 = vmatprep.subr.bf16.mxu0 0
      %999 = vmatpush1.bf16.msra.mxu0 0
      %1000 = vmatprep.subr.bf16.mxu0 0
      %1001 = vmatpush1.bf16.msra.mxu0 0
      %1002 = vmatprep.mubr.bf16.mxu0 0
      %1003 = vmatmul.mubr.bf16.gmra.mrb[0].mxu0 %v755
      %v1004 = vpop.f32.mrb[0].mxu0
      %v1005 = vadd.f32 %v379, %v1004
      %v1006 = vpop.f32.mrb[0].mxu0
      %v1007 = vpop.f32.mrb[0].mxu0
      %v1008 = vadd.f32 %v379, %v1007
      %v1009 = vpop.f32.mrb[0].mxu0
      %1010 = vmatprep.mubr.bf16.mxu0 0
      %1011 = vmatmul.mubr.bf16.gmra.mrb[0].mxu0 %v758
      %v1012 = vpop.f32.mrb[0].mxu0
      %v1013 = vadd.f32 %v379, %v1012
      %v1014 = vpop.f32.mrb[0].mxu0
      %v1015 = vpop.f32.mrb[0].mxu0
      %v1016 = vadd.f32 %v379, %v1015
      %v1017 = vpop.f32.mrb[0].mxu0
      %1018 = vmatprep.mubr.bf16.mxu0 0
      %1019 = vmatmul.mubr.bf16.gmra.mrb[0].mxu0 %v761
      %v1020 = vpop.f32.mrb[0].mxu0
      %v1021 = vadd.f32 %v379, %v1020
      %v1022 = vpop.f32.mrb[0].mxu0
      %v1023 = vpop.f32.mrb[0].mxu0
      %v1024 = vadd.f32 %v379, %v1023
      %v1025 = vpop.f32.mrb[0].mxu0
      %1026 = vmatprep.mubr.bf16.mxu0 0
      %1027 = vmatmul.mubr.bf16.gmra.mrb[0].mxu0 %v764
      %v1028 = vpop.f32.mrb[0].mxu0
      %v1029 = vadd.f32 %v379, %v1028
      %v1030 = vpop.f32.mrb[0].mxu0
      %v1031 = vpop.f32.mrb[0].mxu0
      %v1032 = vadd.f32 %v379, %v1031
      %v1033 = vpop.f32.mrb[0].mxu0
      %1034 = vmatprep.mubr.bf16.mxu0 0
      %1035 = vmatmul.mubr.bf16.gmra.mrb[0].mxu0 %v767
      %v1036 = vpop.f32.mrb[0].mxu0
      %v1037 = vadd.f32 %v379, %v1036
      %v1038 = vpop.f32.mrb[0].mxu0
      %v1039 = vpop.f32.mrb[0].mxu0
      %v1040 = vadd.f32 %v379, %v1039
      %v1041 = vpop.f32.mrb[0].mxu0
      %1042 = vmatprep.mubr.bf16.mxu0 0
      %1043 = vmatmul.mubr.bf16.gmra.mrb[0].mxu0 %v770
      %v1044 = vpop.f32.mrb[0].mxu0
      %v1045 = vadd.f32 %v379, %v1044
      %v1046 = vpop.f32.mrb[0].mxu0
      %v1047 = vpop.f32.mrb[0].mxu0
      %v1048 = vadd.f32 %v379, %v1047
      %v1049 = vpop.f32.mrb[0].mxu0
      %1050 = vmatprep.mubr.bf16.mxu0 0
      %1051 = vmatmul.mubr.bf16.gmra.mrb[0].mxu0 %v773
      %v1052 = vpop.f32.mrb[0].mxu0
      %v1053 = vadd.f32 %v379, %v1052
      %v1054 = vpop.f32.mrb[0].mxu0
      %v1055 = vpop.f32.mrb[0].mxu0
      %v1056 = vadd.f32 %v379, %v1055
      %v1057 = vpop.f32.mrb[0].mxu0
      %1058 = vmatprep.mubr.bf16.mxu0 0
      %1059 = vmatmul.mubr.bf16.gmra.mrb[0].mxu0 %v776
      %v1060 = vpop.f32.mrb[0].mxu0
      %v1061 = vadd.f32 %v379, %v1060
      %v1062 = vpop.f32.mrb[0].mxu0
      %v1063 = vpop.f32.mrb[0].mxu0
      %v1064 = vadd.f32 %v379, %v1063
      %v1065 = vpop.f32.mrb[0].mxu0
      %1066 = vmatprep.mubr.bf16.mxu0 0
      %1067 = vmatmul.mubr.bf16.gmra.mrb[0].mxu0 %v779
      %v1068 = vpop.f32.mrb[0].mxu0
      %v1069 = vadd.f32 %v379, %v1068
      %v1070 = vpop.f32.mrb[0].mxu0
      %v1071 = vpop.f32.mrb[0].mxu0
      %v1072 = vadd.f32 %v379, %v1071
      %v1073 = vpop.f32.mrb[0].mxu0
      %1074 = vmatprep.mubr.bf16.mxu0 0
      %1075 = vmatmul.mubr.bf16.gmra.mrb[0].mxu0 %v782
      %v1076 = vpop.f32.mrb[0].mxu0
      %v1077 = vadd.f32 %v379, %v1076
      %v1078 = vpop.f32.mrb[0].mxu0
      %v1079 = vpop.f32.mrb[0].mxu0
      %v1080 = vadd.f32 %v379, %v1079
      %v1081 = vpop.f32.mrb[0].mxu0
      %1082 = vmatprep.mubr.bf16.mxu0 0
      %1083 = vmatmul.mubr.bf16.gmra.mrb[0].mxu0 %v785
      %v1084 = vpop.f32.mrb[0].mxu0
      %v1085 = vadd.f32 %v379, %v1084
      %v1086 = vpop.f32.mrb[0].mxu0
      %v1087 = vpop.f32.mrb[0].mxu0
      %v1088 = vadd.f32 %v379, %v1087
      %v1089 = vpop.f32.mrb[0].mxu0
      %1090 = vmatprep.mubr.bf16.mxu0 0
      %1091 = vmatmul.mubr.bf16.gmra.mrb[0].mxu0 %v788
      %v1092 = vpop.f32.mrb[0].mxu0
      %v1093 = vadd.f32 %v379, %v1092
      %v1094 = vpop.f32.mrb[0].mxu0
      %v1095 = vpop.f32.mrb[0].mxu0
      %v1096 = vadd.f32 %v379, %v1095
      %v1097 = vpop.f32.mrb[0].mxu0
      %1098 = vmatprep.mubr.bf16.mxu0 0
      %1099 = vmatmul.mubr.bf16.gmra.mrb[0].mxu0 %v791
      %v1100 = vpop.f32.mrb[0].mxu0
      %v1101 = vadd.f32 %v379, %v1100
      %v1102 = vpop.f32.mrb[0].mxu0
      %v1103 = vpop.f32.mrb[0].mxu0
      %v1104 = vadd.f32 %v379, %v1103
      %v1105 = vpop.f32.mrb[0].mxu0
      %1106 = vmatprep.mubr.bf16.mxu0 0
      %1107 = vmatmul.mubr.bf16.gmra.mrb[0].mxu0 %v794
      %v1108 = vpop.f32.mrb[0].mxu0
      %v1109 = vadd.f32 %v379, %v1108
      %v1110 = vpop.f32.mrb[0].mxu0
      %v1111 = vpop.f32.mrb[0].mxu0
      %v1112 = vadd.f32 %v379, %v1111
      %v1113 = vpop.f32.mrb[0].mxu0
      %1114 = vmatprep.mubr.bf16.mxu0 0
      %1115 = vmatmul.mubr.bf16.gmra.mrb[0].mxu0 %v797
      %v1116 = vpop.f32.mrb[0].mxu0
      %v1117 = vadd.f32 %v379, %v1116
      %v1118 = vpop.f32.mrb[0].mxu0
      %v1119 = vpop.f32.mrb[0].mxu0
      %v1120 = vadd.f32 %v379, %v1119
      %v1121 = vpop.f32.mrb[0].mxu0
      %1122 = vmatprep.mubr.bf16.mxu0 0
      %1123 = vmatmul.mubr.bf16.gmra.mrb[0].mxu0 %v800
      %v1124 = vpop.f32.mrb[0].mxu0
      %v1125 = vadd.f32 %v379, %v1124
      %v1126 = vpop.f32.mrb[0].mxu0
      %v1127 = vpop.f32.mrb[0].mxu0
      %v1128 = vadd.f32 %v379, %v1127
      %v1129 = vpop.f32.mrb[0].mxu0
      %1130 = vmatprep.mubr.bf16.mxu0 0
      %1131 = vmatmul.mubr.bf16.gmra.mrb[0].mxu0 %v803
      %v1132 = vpop.f32.mrb[0].mxu0
      %v1133 = vadd.f32 %v379, %v1132
      %v1134 = vpop.f32.mrb[0].mxu0
      %v1135 = vpop.f32.mrb[0].mxu0
      %v1136 = vadd.f32 %v379, %v1135
      %v1137 = vpop.f32.mrb[0].mxu0
      %1138 = vmatprep.mubr.bf16.mxu0 0
      %1139 = vmatmul.mubr.bf16.gmra.mrb[0].mxu0 %v806
      %v1140 = vpop.f32.mrb[0].mxu0
      %v1141 = vadd.f32 %v379, %v1140
      %v1142 = vpop.f32.mrb[0].mxu0
      %v1143 = vpop.f32.mrb[0].mxu0
      %v1144 = vadd.f32 %v379, %v1143
      %v1145 = vpop.f32.mrb[0].mxu0
      %1146 = vmatprep.mubr.bf16.mxu0 0
      %1147 = vmatmul.mubr.bf16.gmra.mrb[0].mxu0 %v809
      %v1148 = vpop.f32.mrb[0].mxu0
      %v1149 = vadd.f32 %v379, %v1148
      %v1150 = vpop.f32.mrb[0].mxu0
      %v1151 = vpop.f32.mrb[0].mxu0
      %v1152 = vadd.f32 %v379, %v1151
      %v1153 = vpop.f32.mrb[0].mxu0
      %1154 = vmatprep.mubr.bf16.mxu0 0
      %1155 = vmatmul.mubr.bf16.gmra.mrb[0].mxu0 %v812
      %v1156 = vpop.f32.mrb[0].mxu0
      %v1157 = vadd.f32 %v379, %v1156
      %v1158 = vpop.f32.mrb[0].mxu0
      %v1159 = vpop.f32.mrb[0].mxu0
      %v1160 = vadd.f32 %v379, %v1159
      %v1161 = vpop.f32.mrb[0].mxu0
      %1162 = vmatprep.mubr.bf16.mxu0 0
      %1163 = vmatmul.mubr.bf16.gmra.mrb[0].mxu0 %v815
      %v1164 = vpop.f32.mrb[0].mxu0
      %v1165 = vadd.f32 %v379, %v1164
      %v1166 = vpop.f32.mrb[0].mxu0
      %v1167 = vpop.f32.mrb[0].mxu0
      %v1168 = vadd.f32 %v379, %v1167
      %v1169 = vpop.f32.mrb[0].mxu0
      %1170 = vmatprep.mubr.bf16.mxu0 0
      %1171 = vmatmul.mubr.bf16.gmra.mrb[0].mxu0 %v818
      %v1172 = vpop.f32.mrb[0].mxu0
      %v1173 = vadd.f32 %v379, %v1172
      %v1174 = vpop.f32.mrb[0].mxu0
      %v1175 = vpop.f32.mrb[0].mxu0
      %v1176 = vadd.f32 %v379, %v1175
      %v1177 = vpop.f32.mrb[0].mxu0
      %1178 = vmatprep.mubr.bf16.mxu0 0
      %1179 = vmatmul.mubr.bf16.gmra.mrb[0].mxu0 %v821
      %v1180 = vpop.f32.mrb[0].mxu0
      %v1181 = vadd.f32 %v379, %v1180
      %v1182 = vpop.f32.mrb[0].mxu0
      %v1183 = vpop.f32.mrb[0].mxu0
      %v1184 = vadd.f32 %v379, %v1183
      %v1185 = vpop.f32.mrb[0].mxu0
      %1186 = vmatprep.mubr.bf16.mxu0 0
      %1187 = vmatmul.mubr.bf16.gmra.mrb[0].mxu0 %v824
      %v1188 = vpop.f32.mrb[0].mxu0
      %v1189 = vadd.f32 %v379, %v1188
      %v1190 = vpop.f32.mrb[0].mxu0
      %v1191 = vpop.f32.mrb[0].mxu0
      %v1192 = vadd.f32 %v379, %v1191
      %v1193 = vpop.f32.mrb[0].mxu0
      %1194 = vmatprep.mubr.bf16.mxu0 0
      %1195 = vmatmul.mubr.bf16.gmra.mrb[0].mxu0 %v827
      %v1196 = vpop.f32.mrb[0].mxu0
      %v1197 = vadd.f32 %v379, %v1196
      %v1198 = vpop.f32.mrb[0].mxu0
      %v1199 = vpop.f32.mrb[0].mxu0
      %v1200 = vadd.f32 %v379, %v1199
      %v1201 = vpop.f32.mrb[0].mxu0
      %1202 = vmatprep.mubr.bf16.mxu0 0
      %1203 = vmatmul.mubr.bf16.gmra.mrb[0].mxu0 %v830
      %v1204 = vpop.f32.mrb[0].mxu0
      %v1205 = vadd.f32 %v379, %v1204
      %v1206 = vpop.f32.mrb[0].mxu0
      %v1207 = vpop.f32.mrb[0].mxu0
      %v1208 = vadd.f32 %v379, %v1207
      %v1209 = vpop.f32.mrb[0].mxu0
      %1210 = vmatprep.mubr.bf16.mxu0 0
      %1211 = vmatmul.mubr.bf16.gmra.mrb[0].mxu0 %v833
      %v1212 = vpop.f32.mrb[0].mxu0
      %v1213 = vadd.f32 %v379, %v1212
      %v1214 = vpop.f32.mrb[0].mxu0
      %v1215 = vpop.f32.mrb[0].mxu0
      %v1216 = vadd.f32 %v379, %v1215
      %v1217 = vpop.f32.mrb[0].mxu0
      %1218 = vmatprep.mubr.bf16.mxu0 0
      %1219 = vmatmul.mubr.bf16.gmra.mrb[0].mxu0 %v836
      %v1220 = vpop.f32.mrb[0].mxu0
      %v1221 = vadd.f32 %v379, %v1220
      %v1222 = vpop.f32.mrb[0].mxu0
      %v1223 = vpop.f32.mrb[0].mxu0
      %v1224 = vadd.f32 %v379, %v1223
      %v1225 = vpop.f32.mrb[0].mxu0
      %1226 = vmatprep.mubr.bf16.mxu0 0
      %1227 = vmatmul.mubr.bf16.gmra.mrb[0].mxu0 %v839
      %v1228 = vpop.f32.mrb[0].mxu0
      %v1229 = vadd.f32 %v379, %v1228
      %v1230 = vpop.f32.mrb[0].mxu0
      %v1231 = vpop.f32.mrb[0].mxu0
      %v1232 = vadd.f32 %v379, %v1231
      %v1233 = vpop.f32.mrb[0].mxu0
      %1234 = vmatprep.mubr.bf16.mxu0 0
      %1235 = vmatmul.mubr.bf16.gmra.mrb[0].mxu0 %v842
      %v1236 = vpop.f32.mrb[0].mxu0
      %v1237 = vadd.f32 %v379, %v1236
      %v1238 = vpop.f32.mrb[0].mxu0
      %v1239 = vpop.f32.mrb[0].mxu0
      %v1240 = vadd.f32 %v379, %v1239
      %v1241 = vpop.f32.mrb[0].mxu0
      %1242 = vmatprep.mubr.bf16.mxu0 0
      %1243 = vmatmul.mubr.bf16.gmra.mrb[0].mxu0 %v845
      %v1244 = vpop.f32.mrb[0].mxu0
      %v1245 = vadd.f32 %v379, %v1244
      %v1246 = vpop.f32.mrb[0].mxu0
      %v1247 = vpop.f32.mrb[0].mxu0
      %v1248 = vadd.f32 %v379, %v1247
      %v1249 = vpop.f32.mrb[0].mxu0
      %1250 = vmatprep.mubr.bf16.mxu0 0
      %1251 = vmatmul.mubr.bf16.gmra.mrb[0].mxu0 %v848
      %v1252 = vpop.f32.mrb[0].mxu0
      %v1253 = vadd.f32 %v379, %v1252
      %v1254 = vpop.f32.mrb[0].mxu0
      %v1255 = vpop.f32.mrb[0].mxu0
      %v1256 = vadd.f32 %v379, %v1255
      %v1257 = vpop.f32.mrb[0].mxu0
      %1258 = vmatprep.mubr.bf16.mxu0 0
      %1259 = vmatmul.mubr.bf16.gmra.mrb[0].mxu0 %v851
      %v1260 = vpop.f32.mrb[0].mxu0
      %v1261 = vadd.f32 %v379, %v1260
      %v1262 = vpop.f32.mrb[0].mxu0
      %v1263 = vpop.f32.mrb[0].mxu0
      %v1264 = vadd.f32 %v379, %v1263
      %v1265 = vpop.f32.mrb[0].mxu0
      %1266 = vmatprep.mubr.bf16.mxu0 0
      %1267 = vmatmul.mubr.bf16.gmra.mrb[0].mxu0 %v854
      %v1268 = vpop.f32.mrb[0].mxu0
      %v1269 = vadd.f32 %v379, %v1268
      %v1270 = vpop.f32.mrb[0].mxu0
      %v1271 = vpop.f32.mrb[0].mxu0
      %v1272 = vadd.f32 %v379, %v1271
      %v1273 = vpop.f32.mrb[0].mxu0
      %1274 = vmatprep.mubr.bf16.mxu0 0
      %1275 = vmatmul.mubr.bf16.gmra.mrb[0].mxu0 %v857
      %v1276 = vpop.f32.mrb[0].mxu0
      %v1277 = vadd.f32 %v379, %v1276
      %v1278 = vpop.f32.mrb[0].mxu0
      %v1279 = vpop.f32.mrb[0].mxu0
      %v1280 = vadd.f32 %v379, %v1279
      %v1281 = vpop.f32.mrb[0].mxu0
      %1282 = vmatprep.mubr.bf16.mxu0 0
      %1283 = vmatmul.mubr.bf16.gmra.mrb[0].mxu0 %v860
      %v1284 = vpop.f32.mrb[0].mxu0
      %v1285 = vadd.f32 %v379, %v1284
      %v1286 = vpop.f32.mrb[0].mxu0
      %v1287 = vpop.f32.mrb[0].mxu0
      %v1288 = vadd.f32 %v379, %v1287
      %v1289 = vpop.f32.mrb[0].mxu0
      %1290 = vmatprep.mubr.bf16.mxu0 0
      %1291 = vmatmul.mubr.bf16.gmra.mrb[0].mxu0 %v863
      %v1292 = vpop.f32.mrb[0].mxu0
      %v1293 = vadd.f32 %v379, %v1292
      %v1294 = vpop.f32.mrb[0].mxu0
      %v1295 = vpop.f32.mrb[0].mxu0
      %v1296 = vadd.f32 %v379, %v1295
      %v1297 = vpop.f32.mrb[0].mxu0
      %1298 = vmatprep.mubr.bf16.mxu0 0
      %1299 = vmatmul.mubr.bf16.gmra.mrb[0].mxu0 %v866
      %v1300 = vpop.f32.mrb[0].mxu0
      %v1301 = vadd.f32 %v379, %v1300
      %v1302 = vpop.f32.mrb[0].mxu0
      %v1303 = vpop.f32.mrb[0].mxu0
      %v1304 = vadd.f32 %v379, %v1303
      %v1305 = vpop.f32.mrb[0].mxu0
      %1306 = vmatprep.mubr.bf16.mxu0 0
      %1307 = vmatmul.mubr.bf16.gmra.mrb[0].mxu0 %v869
      %v1308 = vpop.f32.mrb[0].mxu0
      %v1309 = vadd.f32 %v379, %v1308
      %v1310 = vpop.f32.mrb[0].mxu0
      %v1311 = vpop.f32.mrb[0].mxu0
      %v1312 = vadd.f32 %v379, %v1311
      %v1313 = vpop.f32.mrb[0].mxu0
      %1314 = vmatprep.mubr.bf16.mxu0 0
      %1315 = vmatmul.mubr.bf16.gmra.mrb[0].mxu0 %v872
      %v1316 = vpop.f32.mrb[0].mxu0
      %v1317 = vadd.f32 %v379, %v1316
      %v1318 = vpop.f32.mrb[0].mxu0
      %v1319 = vpop.f32.mrb[0].mxu0
      %v1320 = vadd.f32 %v379, %v1319
      %v1321 = vpop.f32.mrb[0].mxu0
      %1322 = vmatprep.mubr.bf16.mxu0 0
      %1323 = vmatmul.mubr.bf16.gmra.mrb[0].mxu0 %v875
      %v1324 = vpop.f32.mrb[0].mxu0
      %v1325 = vadd.f32 %v379, %v1324
      %v1326 = vpop.f32.mrb[0].mxu0
      %v1327 = vpop.f32.mrb[0].mxu0
      %v1328 = vadd.f32 %v379, %v1327
      %v1329 = vpop.f32.mrb[0].mxu0
      %1330 = vmatprep.mubr.bf16.mxu0 0
      %1331 = vmatmul.mubr.bf16.gmra.mrb[0].mxu0 %v878
      %v1332 = vpop.f32.mrb[0].mxu0
      %v1333 = vadd.f32 %v379, %v1332
      %v1334 = vpop.f32.mrb[0].mxu0
      %v1335 = vpop.f32.mrb[0].mxu0
      %v1336 = vadd.f32 %v379, %v1335
      %v1337 = vpop.f32.mrb[0].mxu0
      %1338 = vmatprep.mubr.bf16.mxu0 0
      %1339 = vmatmul.mubr.bf16.gmra.mrb[0].mxu0 %v881
      %v1340 = vpop.f32.mrb[0].mxu0
      %v1341 = vadd.f32 %v379, %v1340
      %v1342 = vpop.f32.mrb[0].mxu0
      %v1343 = vpop.f32.mrb[0].mxu0
      %v1344 = vadd.f32 %v379, %v1343
      %v1345 = vpop.f32.mrb[0].mxu0
      %1346 = vmatprep.mubr.bf16.mxu0 0
      %1347 = vmatmul.mubr.bf16.gmra.mrb[0].mxu0 %v884
      %v1348 = vpop.f32.mrb[0].mxu0
      %v1349 = vadd.f32 %v379, %v1348
      %v1350 = vpop.f32.mrb[0].mxu0
      %v1351 = vpop.f32.mrb[0].mxu0
      %v1352 = vadd.f32 %v379, %v1351
      %v1353 = vpop.f32.mrb[0].mxu0
      %1354 = vmatprep.mubr.bf16.mxu0 0
      %1355 = vmatmul.mubr.bf16.gmra.mrb[0].mxu0 %v887
      %v1356 = vpop.f32.mrb[0].mxu0
      %v1357 = vadd.f32 %v379, %v1356
      %v1358 = vpop.f32.mrb[0].mxu0
      %v1359 = vpop.f32.mrb[0].mxu0
      %v1360 = vadd.f32 %v379, %v1359
      %v1361 = vpop.f32.mrb[0].mxu0
      %1362 = vmatprep.mubr.bf16.mxu0 0
      %1363 = vmatmul.mubr.bf16.gmra.mrb[0].mxu0 %v890
      %v1364 = vpop.f32.mrb[0].mxu0
      %v1365 = vadd.f32 %v379, %v1364
      %v1366 = vpop.f32.mrb[0].mxu0
      %v1367 = vpop.f32.mrb[0].mxu0
      %v1368 = vadd.f32 %v379, %v1367
      %v1369 = vpop.f32.mrb[0].mxu0
      %1370 = vmatprep.mubr.bf16.mxu0 0
      %1371 = vmatmul.mubr.bf16.gmra.mrb[0].mxu0 %v893
      %v1372 = vpop.f32.mrb[0].mxu0
      %v1373 = vadd.f32 %v379, %v1372
      %v1374 = vpop.f32.mrb[0].mxu0
      %v1375 = vpop.f32.mrb[0].mxu0
      %v1376 = vadd.f32 %v379, %v1375
      %v1377 = vpop.f32.mrb[0].mxu0
      %1378 = vmatprep.mubr.bf16.mxu0 0
      %1379 = vmatmul.mubr.bf16.gmra.mrb[0].mxu0 %v896
      %v1380 = vpop.f32.mrb[0].mxu0
      %v1381 = vadd.f32 %v379, %v1380
      %v1382 = vpop.f32.mrb[0].mxu0
      %v1383 = vpop.f32.mrb[0].mxu0
      %v1384 = vadd.f32 %v379, %v1383
      %v1385 = vpop.f32.mrb[0].mxu0
      %1386 = vmatprep.mubr.bf16.mxu0 0
      %1387 = vmatmul.mubr.bf16.gmra.mrb[0].mxu0 %v899
      %v1388 = vpop.f32.mrb[0].mxu0
      %v1389 = vadd.f32 %v379, %v1388
      %v1390 = vpop.f32.mrb[0].mxu0
      %v1391 = vpop.f32.mrb[0].mxu0
      %v1392 = vadd.f32 %v379, %v1391
      %v1393 = vpop.f32.mrb[0].mxu0
      %1394 = vmatprep.mubr.bf16.mxu0 0
      %1395 = vmatmul.mubr.bf16.gmra.mrb[0].mxu0 %v902
      %v1396 = vpop.f32.mrb[0].mxu0
      %v1397 = vadd.f32 %v379, %v1396
      %v1398 = vpop.f32.mrb[0].mxu0
      %v1399 = vpop.f32.mrb[0].mxu0
      %v1400 = vadd.f32 %v379, %v1399
      %v1401 = vpop.f32.mrb[0].mxu0
      %1402 = vmatprep.mubr.bf16.mxu0 0
      %1403 = vmatmul.mubr.bf16.gmra.mrb[0].mxu0 %v905
      %v1404 = vpop.f32.mrb[0].mxu0
      %v1405 = vadd.f32 %v379, %v1404
      %v1406 = vpop.f32.mrb[0].mxu0
      %v1407 = vpop.f32.mrb[0].mxu0
      %v1408 = vadd.f32 %v379, %v1407
      %v1409 = vpop.f32.mrb[0].mxu0
      %1410 = vmatprep.mubr.bf16.mxu0 0
      %1411 = vmatmul.mubr.bf16.gmra.mrb[0].mxu0 %v908
      %v1412 = vpop.f32.mrb[0].mxu0
      %v1413 = vadd.f32 %v379, %v1412
      %v1414 = vpop.f32.mrb[0].mxu0
      %v1415 = vpop.f32.mrb[0].mxu0
      %v1416 = vadd.f32 %v379, %v1415
      %v1417 = vpop.f32.mrb[0].mxu0
      %1418 = vmatprep.mubr.bf16.mxu0 0
      %1419 = vmatmul.mubr.bf16.gmra.mrb[0].mxu0 %v911
      %v1420 = vpop.f32.mrb[0].mxu0
      %v1421 = vadd.f32 %v379, %v1420
      %v1422 = vpop.f32.mrb[0].mxu0
      %v1423 = vpop.f32.mrb[0].mxu0
      %v1424 = vadd.f32 %v379, %v1423
      %v1425 = vpop.f32.mrb[0].mxu0
      %1426 = vmatprep.mubr.bf16.mxu0 0
      %1427 = vmatmul.mubr.bf16.gmra.mrb[0].mxu0 %v914
      %v1428 = vpop.f32.mrb[0].mxu0
      %v1429 = vadd.f32 %v379, %v1428
      %v1430 = vpop.f32.mrb[0].mxu0
      %v1431 = vpop.f32.mrb[0].mxu0
      %v1432 = vadd.f32 %v379, %v1431
      %v1433 = vpop.f32.mrb[0].mxu0
      %1434 = vmatprep.mubr.bf16.mxu0 0
      %1435 = vmatmul.mubr.bf16.gmra.mrb[0].mxu0 %v917
      %v1436 = vpop.f32.mrb[0].mxu0
      %v1437 = vadd.f32 %v379, %v1436
      %v1438 = vpop.f32.mrb[0].mxu0
      %v1439 = vpop.f32.mrb[0].mxu0
      %v1440 = vadd.f32 %v379, %v1439
      %v1441 = vpop.f32.mrb[0].mxu0
      %1442 = vmatprep.mubr.bf16.mxu0 0
      %1443 = vmatmul.mubr.bf16.gmra.mrb[0].mxu0 %v920
      %v1444 = vpop.f32.mrb[0].mxu0
      %v1445 = vadd.f32 %v379, %v1444
      %v1446 = vpop.f32.mrb[0].mxu0
      %v1447 = vpop.f32.mrb[0].mxu0
      %v1448 = vadd.f32 %v379, %v1447
      %v1449 = vpop.f32.mrb[0].mxu0
      %1450 = vmatprep.mubr.bf16.mxu0 0
      %1451 = vmatmul.mubr.bf16.gmra.mrb[0].mxu0 %v923
      %v1452 = vpop.f32.mrb[0].mxu0
      %v1453 = vadd.f32 %v379, %v1452
      %v1454 = vpop.f32.mrb[0].mxu0
      %v1455 = vpop.f32.mrb[0].mxu0
      %v1456 = vadd.f32 %v379, %v1455
      %v1457 = vpop.f32.mrb[0].mxu0
      %1458 = vmatprep.mubr.bf16.mxu0 0
      %1459 = vmatmul.mubr.bf16.gmra.mrb[0].mxu0 %v926
      %v1460 = vpop.f32.mrb[0].mxu0
      %v1461 = vadd.f32 %v379, %v1460
      %v1462 = vpop.f32.mrb[0].mxu0
      %v1463 = vpop.f32.mrb[0].mxu0
      %v1464 = vadd.f32 %v379, %v1463
      %v1465 = vpop.f32.mrb[0].mxu0
      %1466 = vmatprep.mubr.bf16.mxu0 0
      %1467 = vmatmul.mubr.bf16.gmra.mrb[0].mxu0 %v929
      %v1468 = vpop.f32.mrb[0].mxu0
      %v1469 = vadd.f32 %v379, %v1468
      %v1470 = vpop.f32.mrb[0].mxu0
      %v1471 = vpop.f32.mrb[0].mxu0
      %v1472 = vadd.f32 %v379, %v1471
      %v1473 = vpop.f32.mrb[0].mxu0
      %1474 = vmatprep.mubr.bf16.mxu0 0
      %1475 = vmatmul.mubr.bf16.gmra.mrb[0].mxu0 %v932
      %v1476 = vpop.f32.mrb[0].mxu0
      %v1477 = vadd.f32 %v379, %v1476
      %v1478 = vpop.f32.mrb[0].mxu0
      %v1479 = vpop.f32.mrb[0].mxu0
      %v1480 = vadd.f32 %v379, %v1479
      %v1481 = vpop.f32.mrb[0].mxu0
      %1482 = vmatprep.mubr.bf16.mxu0 0
      %1483 = vmatmul.mubr.bf16.gmra.mrb[0].mxu0 %v935
      %v1484 = vpop.f32.mrb[0].mxu0
      %v1485 = vadd.f32 %v379, %v1484
      %v1486 = vpop.f32.mrb[0].mxu0
      %v1487 = vpop.f32.mrb[0].mxu0
      %v1488 = vadd.f32 %v379, %v1487
      %v1489 = vpop.f32.mrb[0].mxu0
      %1490 = vmatprep.mubr.bf16.mxu0 0
      %1491 = vmatmul.mubr.bf16.gmra.mrb[0].mxu0 %v938
      %v1492 = vpop.f32.mrb[0].mxu0
      %v1493 = vadd.f32 %v379, %v1492
      %v1494 = vpop.f32.mrb[0].mxu0
      %v1495 = vpop.f32.mrb[0].mxu0
      %v1496 = vadd.f32 %v379, %v1495
      %v1497 = vpop.f32.mrb[0].mxu0
      %1498 = vmatprep.mubr.bf16.mxu0 0
      %1499 = vmatmul.mubr.bf16.gmra.mrb[0].mxu0 %v941
      %v1500 = vpop.f32.mrb[0].mxu0
      %v1501 = vadd.f32 %v379, %v1500
      %v1502 = vpop.f32.mrb[0].mxu0
      %v1503 = vpop.f32.mrb[0].mxu0
      %v1504 = vadd.f32 %v379, %v1503
      %v1505 = vpop.f32.mrb[0].mxu0
      %1506 = vmatprep.mubr.bf16.mxu0 0
      %1507 = vmatmul.mubr.bf16.gmra.mrb[0].mxu0 %v944
      %v1508 = vpop.f32.mrb[0].mxu0
      %v1509 = vadd.f32 %v379, %v1508
      %v1510 = vpop.f32.mrb[0].mxu0
      %v1511 = vpop.f32.mrb[0].mxu0
      %v1512 = vadd.f32 %v379, %v1511
      %v1513 = vpop.f32.mrb[0].mxu0
      %1514 = vmatprep.mubr.bf16.mxu0 0
      %1515 = vmatmul.mubr.bf16.gmra.mrb[0].mxu0 %v947
      %v1516 = vpop.f32.mrb[0].mxu0
      %v1517 = vadd.f32 %v379, %v1516
      %v1518 = vpop.f32.mrb[0].mxu0
      %v1519 = vpop.f32.mrb[0].mxu0
      %v1520 = vadd.f32 %v379, %v1519
      %v1521 = vpop.f32.mrb[0].mxu0
      %1522 = vmatprep.mubr.bf16.mxu0 0
      %1523 = vmatmul.mubr.bf16.gmra.mrb[0].mxu0 %v950
      %v1524 = vpop.f32.mrb[0].mxu0
      %v1525 = vadd.f32 %v379, %v1524
      %v1526 = vpop.f32.mrb[0].mxu0
      %v1527 = vpop.f32.mrb[0].mxu0
      %v1528 = vadd.f32 %v379, %v1527
      %v1529 = vpop.f32.mrb[0].mxu0
      %1530 = vmatprep.mubr.bf16.mxu0 0
      %1531 = vmatmul.mubr.bf16.gmra.mrb[0].mxu0 %v953
      %v1532 = vpop.f32.mrb[0].mxu0
      %v1533 = vadd.f32 %v379, %v1532
      %v1534 = vpop.f32.mrb[0].mxu0
      %v1535 = vpop.f32.mrb[0].mxu0
      %v1536 = vadd.f32 %v379, %v1535
      %v1537 = vpop.f32.mrb[0].mxu0
      %1538 = vmatprep.mubr.bf16.mxu0 0
      %1539 = vmatmul.mubr.bf16.gmra.mrb[0].mxu0 %v956
      %v1540 = vpop.f32.mrb[0].mxu0
      %v1541 = vadd.f32 %v379, %v1540
      %v1542 = vpop.f32.mrb[0].mxu0
      %v1543 = vpop.f32.mrb[0].mxu0
      %v1544 = vadd.f32 %v379, %v1543
      %v1545 = vpop.f32.mrb[0].mxu0
      %1546 = vmatprep.mubr.bf16.mxu0 0
      %1547 = vmatmul.mubr.bf16.gmra.mrb[0].mxu0 %v959
      %v1548 = vpop.f32.mrb[0].mxu0
      %v1549 = vadd.f32 %v379, %v1548
      %v1550 = vpop.f32.mrb[0].mxu0
      %v1551 = vpop.f32.mrb[0].mxu0
      %v1552 = vadd.f32 %v379, %v1551
      %v1553 = vpop.f32.mrb[0].mxu0
      %1554 = vmatprep.mubr.bf16.mxu0 0
      %1555 = vmatmul.mubr.bf16.gmra.mrb[0].mxu0 %v962
      %v1556 = vpop.f32.mrb[0].mxu0
      %v1557 = vadd.f32 %v379, %v1556
      %v1558 = vpop.f32.mrb[0].mxu0
      %v1559 = vpop.f32.mrb[0].mxu0
      %v1560 = vadd.f32 %v379, %v1559
      %v1561 = vpop.f32.mrb[0].mxu0
      %1562 = vmatprep.mubr.bf16.mxu0 0
      %1563 = vmatmul.mubr.bf16.gmra.mrb[0].mxu0 %v965
      %v1564 = vpop.f32.mrb[0].mxu0
      %v1565 = vadd.f32 %v379, %v1564
      %v1566 = vpop.f32.mrb[0].mxu0
      %v1567 = vpop.f32.mrb[0].mxu0
      %v1568 = vadd.f32 %v379, %v1567
      %v1569 = vpop.f32.mrb[0].mxu0
      %1570 = vmatprep.mubr.bf16.mxu0 0
      %1571 = vmatmul.mubr.bf16.gmra.mrb[0].mxu0 %v968
      %v1572 = vpop.f32.mrb[0].mxu0
      %v1573 = vadd.f32 %v379, %v1572
      %v1574 = vpop.f32.mrb[0].mxu0
      %v1575 = vpop.f32.mrb[0].mxu0
      %v1576 = vadd.f32 %v379, %v1575
      %v1577 = vpop.f32.mrb[0].mxu0
      %1578 = vdwg.mxu0
      %v1579 = vtanh.pop %v1005
      %v1580 = vtanh.pop %v1008
      %v1581 = vtanh.pop %v1013
      %v1582 = vtanh.pop %v1016
      %v1583 = vtanh.pop %v1021
      %v1584 = vtanh.pop %v1024
      %v1585 = vtanh.pop %v1029
      %v1586 = vtanh.pop %v1032
      %v1587 = vtanh.pop %v1037
      %v1588 = vtanh.pop %v1040
      %v1589 = vtanh.pop %v1045
      %v1590 = vtanh.pop %v1048
      %v1591 = vtanh.pop %v1053
      %v1592 = vtanh.pop %v1056
      %v1593 = vtanh.pop %v1061
      %v1594 = vtanh.pop %v1064
      %v1595 = vtanh.pop %v1069
      %v1596 = vtanh.pop %v1072
      %v1597 = vtanh.pop %v1077
      %v1598 = vtanh.pop %v1080
      %v1599 = vtanh.pop %v1085
      %v1600 = vtanh.pop %v1088
      %v1601 = vtanh.pop %v1093
      %v1602 = vtanh.pop %v1096
      %v1603 = vtanh.pop %v1101
      %v1604 = vtanh.pop %v1104
      %v1605 = vtanh.pop %v1109
      %v1606 = vtanh.pop %v1112
      %v1607 = vtanh.pop %v1117
      %v1608 = vtanh.pop %v1120
      %v1609 = vtanh.pop %v1125
      %v1610 = vtanh.pop %v1128
      %v1611 = vtanh.pop %v1133
      %v1612 = vtanh.pop %v1136
      %v1613 = vtanh.pop %v1141
      %v1614 = vtanh.pop %v1144
      %v1615 = vtanh.pop %v1149
      %v1616 = vtanh.pop %v1152
      %v1617 = vtanh.pop %v1157
      %v1618 = vtanh.pop %v1160
      %v1619 = vtanh.pop %v1165
      %v1620 = vtanh.pop %v1168
      %v1621 = vtanh.pop %v1173
      %v1622 = vtanh.pop %v1176
      %v1623 = vtanh.pop %v1181
      %v1624 = vtanh.pop %v1184
      %v1625 = vtanh.pop %v1189
      %v1626 = vtanh.pop %v1192
      %v1627 = vtanh.pop %v1197
      %v1628 = vtanh.pop %v1200
      %v1629 = vtanh.pop %v1205
      %v1630 = vtanh.pop %v1208
      %v1631 = vtanh.pop %v1213
      %v1632 = vtanh.pop %v1216
      %v1633 = vtanh.pop %v1221
      %v1634 = vtanh.pop %v1224
      %v1635 = vtanh.pop %v1229
      %v1636 = vtanh.pop %v1232
      %v1637 = vtanh.pop %v1237
      %v1638 = vtanh.pop %v1240
      %v1639 = vtanh.pop %v1245
      %v1640 = vtanh.pop %v1248
      %v1641 = vtanh.pop %v1253
      %v1642 = vtanh.pop %v1256
      %v1643 = vtanh.pop %v1261
      %v1644 = vtanh.pop %v1264
      %v1645 = vtanh.pop %v1269
      %v1646 = vtanh.pop %v1272
      %v1647 = vtanh.pop %v1277
      %v1648 = vtanh.pop %v1280
      %v1649 = vtanh.pop %v1285
      %v1650 = vtanh.pop %v1288
      %v1651 = vtanh.pop %v1293
      %v1652 = vtanh.pop %v1296
      %v1653 = vtanh.pop %v1301
      %v1654 = vtanh.pop %v1304
      %v1655 = vtanh.pop %v1309
      %v1656 = vtanh.pop %v1312
      %v1657 = vtanh.pop %v1317
      %v1658 = vtanh.pop %v1320
      %v1659 = vtanh.pop %v1325
      %v1660 = vtanh.pop %v1328
      %v1661 = vtanh.pop %v1333
      %v1662 = vtanh.pop %v1336
      %v1663 = vtanh.pop %v1341
      %v1664 = vtanh.pop %v1344
      %v1665 = vtanh.pop %v1349
      %v1666 = vtanh.pop %v1352
      %v1667 = vtanh.pop %v1357
      %v1668 = vtanh.pop %v1360
      %v1669 = vtanh.pop %v1365
      %v1670 = vtanh.pop %v1368
      %v1671 = vtanh.pop %v1373
      %v1672 = vtanh.pop %v1376
      %v1673 = vtanh.pop %v1381
      %v1674 = vtanh.pop %v1384
      %v1675 = vtanh.pop %v1389
      %v1676 = vtanh.pop %v1392
      %v1677 = vtanh.pop %v1397
      %v1678 = vtanh.pop %v1400
      %v1679 = vtanh.pop %v1405
      %v1680 = vtanh.pop %v1408
      %v1681 = vtanh.pop %v1413
      %v1682 = vtanh.pop %v1416
      %v1683 = vtanh.pop %v1421
      %v1684 = vtanh.pop %v1424
      %v1685 = vtanh.pop %v1429
      %v1686 = vtanh.pop %v1432
      %v1687 = vtanh.pop %v1437
      %v1688 = vtanh.pop %v1440
      %v1689 = vtanh.pop %v1445
      %v1690 = vtanh.pop %v1448
      %v1691 = vtanh.pop %v1453
      %v1692 = vtanh.pop %v1456
      %v1693 = vtanh.pop %v1461
      %v1694 = vtanh.pop %v1464
      %v1695 = vtanh.pop %v1469
      %v1696 = vtanh.pop %v1472
      %v1697 = vtanh.pop %v1477
      %v1698 = vtanh.pop %v1480
      %v1699 = vtanh.pop %v1485
      %v1700 = vtanh.pop %v1488
      %v1701 = vtanh.pop %v1493
      %v1702 = vtanh.pop %v1496
      %v1703 = vtanh.pop %v1501
      %v1704 = vtanh.pop %v1504
      %v1705 = vtanh.pop %v1509
      %v1706 = vtanh.pop %v1512
      %v1707 = vtanh.pop %v1517
      %v1708 = vtanh.pop %v1520
      %v1709 = vtanh.pop %v1525
      %v1710 = vtanh.pop %v1528
      %v1711 = vtanh.pop %v1533
      %v1712 = vtanh.pop %v1536
      %v1713 = vtanh.pop %v1541
      %v1714 = vtanh.pop %v1544
      %v1715 = vtanh.pop %v1549
      %v1716 = vtanh.pop %v1552
      %v1717 = vtanh.pop %v1557
      %v1718 = vtanh.pop %v1560
      %v1719 = vtanh.pop %v1565
      %v1720 = vtanh.pop %v1568
      %v1721 = vtanh.pop %v1573
      %v1722 = vtanh.pop %v1576
      %v1723 = vpack.c.bf16 %v1580, %v1579
      %v1724 = vpack.c.bf16 %v1582, %v1581
      %v1725 = vpack.c.bf16 %v1584, %v1583
      %v1726 = vpack.c.bf16 %v1586, %v1585
      %v1727 = vpack.c.bf16 %v1588, %v1587
      %v1728 = vpack.c.bf16 %v1590, %v1589
      %v1729 = vpack.c.bf16 %v1592, %v1591
      %v1730 = vpack.c.bf16 %v1594, %v1593
      %v1731 = vpack.c.bf16 %v1596, %v1595
      %v1732 = vpack.c.bf16 %v1598, %v1597
      %v1733 = vpack.c.bf16 %v1600, %v1599
      %v1734 = vpack.c.bf16 %v1602, %v1601
      %v1735 = vpack.c.bf16 %v1604, %v1603
      %v1736 = vpack.c.bf16 %v1606, %v1605
      %v1737 = vpack.c.bf16 %v1608, %v1607
      %v1738 = vpack.c.bf16 %v1610, %v1609
      %v1739 = vpack.c.bf16 %v1612, %v1611
      %v1740 = vpack.c.bf16 %v1614, %v1613
      %v1741 = vpack.c.bf16 %v1616, %v1615
      %v1742 = vpack.c.bf16 %v1618, %v1617
      %v1743 = vpack.c.bf16 %v1620, %v1619
      %v1744 = vpack.c.bf16 %v1622, %v1621
      %v1745 = vpack.c.bf16 %v1624, %v1623
      %v1746 = vpack.c.bf16 %v1626, %v1625
      %v1747 = vpack.c.bf16 %v1628, %v1627
      %v1748 = vpack.c.bf16 %v1630, %v1629
      %v1749 = vpack.c.bf16 %v1632, %v1631
      %v1750 = vpack.c.bf16 %v1634, %v1633
      %v1751 = vpack.c.bf16 %v1636, %v1635
      %v1752 = vpack.c.bf16 %v1638, %v1637
      %v1753 = vpack.c.bf16 %v1640, %v1639
      %v1754 = vpack.c.bf16 %v1642, %v1641
      %v1755 = vpack.c.bf16 %v1644, %v1643
      %v1756 = vpack.c.bf16 %v1646, %v1645
      %v1757 = vpack.c.bf16 %v1648, %v1647
      %v1758 = vpack.c.bf16 %v1650, %v1649
      %v1759 = vpack.c.bf16 %v1652, %v1651
      %v1760 = vpack.c.bf16 %v1654, %v1653
      %v1761 = vpack.c.bf16 %v1656, %v1655
      %v1762 = vpack.c.bf16 %v1658, %v1657
      %v1763 = vpack.c.bf16 %v1660, %v1659
      %v1764 = vpack.c.bf16 %v1662, %v1661
      %v1765 = vpack.c.bf16 %v1664, %v1663
      %v1766 = vpack.c.bf16 %v1666, %v1665
      %v1767 = vpack.c.bf16 %v1668, %v1667
      %v1768 = vpack.c.bf16 %v1670, %v1669
      %v1769 = vpack.c.bf16 %v1672, %v1671
      %v1770 = vpack.c.bf16 %v1674, %v1673
      %v1771 = vpack.c.bf16 %v1676, %v1675
      %v1772 = vpack.c.bf16 %v1678, %v1677
      %v1773 = vpack.c.bf16 %v1680, %v1679
      %v1774 = vpack.c.bf16 %v1682, %v1681
      %v1775 = vpack.c.bf16 %v1684, %v1683
      %v1776 = vpack.c.bf16 %v1686, %v1685
      %v1777 = vpack.c.bf16 %v1688, %v1687
      %v1778 = vpack.c.bf16 %v1690, %v1689
      %v1779 = vpack.c.bf16 %v1692, %v1691
      %v1780 = vpack.c.bf16 %v1694, %v1693
      %v1781 = vpack.c.bf16 %v1696, %v1695
      %v1782 = vpack.c.bf16 %v1698, %v1697
      %v1783 = vpack.c.bf16 %v1700, %v1699
      %v1784 = vpack.c.bf16 %v1702, %v1701
      %v1785 = vpack.c.bf16 %v1704, %v1703
      %v1786 = vpack.c.bf16 %v1706, %v1705
      %v1787 = vpack.c.bf16 %v1708, %v1707
      %v1788 = vpack.c.bf16 %v1710, %v1709
      %v1789 = vpack.c.bf16 %v1712, %v1711
      %v1790 = vpack.c.bf16 %v1714, %v1713
      %v1791 = vpack.c.bf16 %v1716, %v1715
      %v1792 = vpack.c.bf16 %v1718, %v1717
      %v1793 = vpack.c.bf16 %v1720, %v1719
      %v1794 = vpack.c.bf16 %v1722, %v1721
      %v1867 = vunpack.c.l.b16 %v1723
      %v1868 = vunpack.c.h.b16 %v1723
      %v1869 = vunpack.c.l.b16 %v1724
      %v1870 = vunpack.c.h.b16 %v1724
      %v1871 = vunpack.c.l.b16 %v1725
      %v1872 = vunpack.c.h.b16 %v1725
      %v1873 = vunpack.c.l.b16 %v1726
      %v1874 = vunpack.c.h.b16 %v1726
      %v1875 = vunpack.c.l.b16 %v1727
      %v1876 = vunpack.c.h.b16 %v1727
      %v1877 = vunpack.c.l.b16 %v1728
      %v1878 = vunpack.c.h.b16 %v1728
      %v1879 = vunpack.c.l.b16 %v1729
      %v1880 = vunpack.c.h.b16 %v1729
      %v1881 = vunpack.c.l.b16 %v1730
      %v1882 = vunpack.c.h.b16 %v1730
      %v1883 = vunpack.c.l.b16 %v1731
      %v1884 = vunpack.c.h.b16 %v1731
      %v1885 = vunpack.c.l.b16 %v1732
      %v1886 = vunpack.c.h.b16 %v1732
      %v1887 = vunpack.c.l.b16 %v1733
      %v1888 = vunpack.c.h.b16 %v1733
      %v1889 = vunpack.c.l.b16 %v1734
      %v1890 = vunpack.c.h.b16 %v1734
      %v1891 = vunpack.c.l.b16 %v1735
      %v1892 = vunpack.c.h.b16 %v1735
      %v1893 = vunpack.c.l.b16 %v1736
      %v1894 = vunpack.c.h.b16 %v1736
      %v1895 = vunpack.c.l.b16 %v1737
      %v1896 = vunpack.c.h.b16 %v1737
      %v1897 = vunpack.c.l.b16 %v1738
      %v1898 = vunpack.c.h.b16 %v1738
      %v1899 = vunpack.c.l.b16 %v1739
      %v1900 = vunpack.c.h.b16 %v1739
      %v1901 = vunpack.c.l.b16 %v1740
      %v1902 = vunpack.c.h.b16 %v1740
      %v1903 = vunpack.c.l.b16 %v1741
      %v1904 = vunpack.c.h.b16 %v1741
      %v1905 = vunpack.c.l.b16 %v1742
      %v1906 = vunpack.c.h.b16 %v1742
      %v1907 = vunpack.c.l.b16 %v1743
      %v1908 = vunpack.c.h.b16 %v1743
      %v1909 = vunpack.c.l.b16 %v1744
      %v1910 = vunpack.c.h.b16 %v1744
      %v1911 = vunpack.c.l.b16 %v1745
      %v1912 = vunpack.c.h.b16 %v1745
      %v1913 = vunpack.c.l.b16 %v1746
      %v1914 = vunpack.c.h.b16 %v1746
      %v1915 = vunpack.c.l.b16 %v1747
      %v1916 = vunpack.c.h.b16 %v1747
      %v1917 = vunpack.c.l.b16 %v1748
      %v1918 = vunpack.c.h.b16 %v1748
      %v1919 = vunpack.c.l.b16 %v1749
      %v1920 = vunpack.c.h.b16 %v1749
      %v1921 = vunpack.c.l.b16 %v1750
      %v1922 = vunpack.c.h.b16 %v1750
      %v1923 = vunpack.c.l.b16 %v1751
      %v1924 = vunpack.c.h.b16 %v1751
      %v1925 = vunpack.c.l.b16 %v1752
      %v1926 = vunpack.c.h.b16 %v1752
      %v1927 = vunpack.c.l.b16 %v1753
      %v1928 = vunpack.c.h.b16 %v1753
      %v1929 = vunpack.c.l.b16 %v1754
      %v1930 = vunpack.c.h.b16 %v1754
      %v1931 = vunpack.c.l.b16 %v1755
      %v1932 = vunpack.c.h.b16 %v1755
      %v1933 = vunpack.c.l.b16 %v1756
      %v1934 = vunpack.c.h.b16 %v1756
      %v1935 = vunpack.c.l.b16 %v1757
      %v1936 = vunpack.c.h.b16 %v1757
      %v1937 = vunpack.c.l.b16 %v1758
      %v1938 = vunpack.c.h.b16 %v1758
      %v1939 = vunpack.c.l.b16 %v1759
      %v1940 = vunpack.c.h.b16 %v1759
      %v1941 = vunpack.c.l.b16 %v1760
      %v1942 = vunpack.c.h.b16 %v1760
      %v1943 = vunpack.c.l.b16 %v1761
      %v1944 = vunpack.c.h.b16 %v1761
      %v1945 = vunpack.c.l.b16 %v1762
      %v1946 = vunpack.c.h.b16 %v1762
      %v1947 = vunpack.c.l.b16 %v1763
      %v1948 = vunpack.c.h.b16 %v1763
      %v1949 = vunpack.c.l.b16 %v1764
      %v1950 = vunpack.c.h.b16 %v1764
      %v1951 = vunpack.c.l.b16 %v1765
      %v1952 = vunpack.c.h.b16 %v1765
      %v1953 = vunpack.c.l.b16 %v1766
      %v1954 = vunpack.c.h.b16 %v1766
      %v1955 = vunpack.c.l.b16 %v1767
      %v1956 = vunpack.c.h.b16 %v1767
      %v1957 = vunpack.c.l.b16 %v1768
      %v1958 = vunpack.c.h.b16 %v1768
      %v1959 = vunpack.c.l.b16 %v1769
      %v1960 = vunpack.c.h.b16 %v1769
      %v1961 = vunpack.c.l.b16 %v1770
      %v1962 = vunpack.c.h.b16 %v1770
      %v1963 = vunpack.c.l.b16 %v1771
      %v1964 = vunpack.c.h.b16 %v1771
      %v1965 = vunpack.c.l.b16 %v1772
      %v1966 = vunpack.c.h.b16 %v1772
      %v1967 = vunpack.c.l.b16 %v1773
      %v1968 = vunpack.c.h.b16 %v1773
      %v1969 = vunpack.c.l.b16 %v1774
      %v1970 = vunpack.c.h.b16 %v1774
      %v1971 = vunpack.c.l.b16 %v1775
      %v1972 = vunpack.c.h.b16 %v1775
      %v1973 = vunpack.c.l.b16 %v1776
      %v1974 = vunpack.c.h.b16 %v1776
      %v1975 = vunpack.c.l.b16 %v1777
      %v1976 = vunpack.c.h.b16 %v1777
      %v1977 = vunpack.c.l.b16 %v1778
      %v1978 = vunpack.c.h.b16 %v1778
      %v1979 = vunpack.c.l.b16 %v1779
      %v1980 = vunpack.c.h.b16 %v1779
      %v1981 = vunpack.c.l.b16 %v1780
      %v1982 = vunpack.c.h.b16 %v1780
      %v1983 = vunpack.c.l.b16 %v1781
      %v1984 = vunpack.c.h.b16 %v1781
      %v1985 = vunpack.c.l.b16 %v1782
      %v1986 = vunpack.c.h.b16 %v1782
      %v1987 = vunpack.c.l.b16 %v1783
      %v1988 = vunpack.c.h.b16 %v1783
      %v1989 = vunpack.c.l.b16 %v1784
      %v1990 = vunpack.c.h.b16 %v1784
      %v1991 = vunpack.c.l.b16 %v1785
      %v1992 = vunpack.c.h.b16 %v1785
      %v1993 = vunpack.c.l.b16 %v1786
      %v1994 = vunpack.c.h.b16 %v1786
      %v1995 = vunpack.c.l.b16 %v1787
      %v1996 = vunpack.c.h.b16 %v1787
      %v1997 = vunpack.c.l.b16 %v1788
      %v1998 = vunpack.c.h.b16 %v1788
      %v1999 = vunpack.c.l.b16 %v1789
      %v2000 = vunpack.c.h.b16 %v1789
      %v2001 = vunpack.c.l.b16 %v1790
      %v2002 = vunpack.c.h.b16 %v1790
      %v2003 = vunpack.c.l.b16 %v1791
      %v2004 = vunpack.c.h.b16 %v1791
      %v2005 = vunpack.c.l.b16 %v1792
      %v2006 = vunpack.c.h.b16 %v1792
      %v2007 = vunpack.c.l.b16 %v1793
      %v2008 = vunpack.c.h.b16 %v1793
      %v2009 = vunpack.c.l.b16 %v1794
      %v2010 = vunpack.c.h.b16 %v1794
      %v2011 = vpack.c.b16 %v1867, %v1867
      %v2012 = vpack.c.b16 %v1868, %v1868
      %v2013 = vpack.c.b16 %v1869, %v1869
      %v2014 = vpack.c.b16 %v1870, %v1870
      %v2015 = vpack.c.b16 %v1871, %v1871
      %v2016 = vpack.c.b16 %v1872, %v1872
      %v2017 = vpack.c.b16 %v1873, %v1873
      %v2018 = vpack.c.b16 %v1874, %v1874
      %v2019 = vpack.c.b16 %v1875, %v1875
      %v2020 = vpack.c.b16 %v1876, %v1876
      %v2021 = vpack.c.b16 %v1877, %v1877
      %v2022 = vpack.c.b16 %v1878, %v1878
      %v2023 = vpack.c.b16 %v1879, %v1879
      %v2024 = vpack.c.b16 %v1880, %v1880
      %v2025 = vpack.c.b16 %v1881, %v1881
      %v2026 = vpack.c.b16 %v1882, %v1882
      %v2027 = vpack.c.b16 %v1883, %v1883
      %v2028 = vpack.c.b16 %v1884, %v1884
      %v2029 = vpack.c.b16 %v1885, %v1885
      %v2030 = vpack.c.b16 %v1886, %v1886
      %v2031 = vpack.c.b16 %v1887, %v1887
      %v2032 = vpack.c.b16 %v1888, %v1888
      %v2033 = vpack.c.b16 %v1889, %v1889
      %v2034 = vpack.c.b16 %v1890, %v1890
      %v2035 = vpack.c.b16 %v1891, %v1891
      %v2036 = vpack.c.b16 %v1892, %v1892
      %v2037 = vpack.c.b16 %v1893, %v1893
      %v2038 = vpack.c.b16 %v1894, %v1894
      %v2039 = vpack.c.b16 %v1895, %v1895
      %v2040 = vpack.c.b16 %v1896, %v1896
      %v2041 = vpack.c.b16 %v1897, %v1897
      %v2042 = vpack.c.b16 %v1898, %v1898
      %v2043 = vpack.c.b16 %v1899, %v1899
      %v2044 = vpack.c.b16 %v1900, %v1900
      %v2045 = vpack.c.b16 %v1901, %v1901
      %v2046 = vpack.c.b16 %v1902, %v1902
      %v2047 = vpack.c.b16 %v1903, %v1903
      %v2048 = vpack.c.b16 %v1904, %v1904
      %v2049 = vpack.c.b16 %v1905, %v1905
      %v2050 = vpack.c.b16 %v1906, %v1906
      %v2051 = vpack.c.b16 %v1907, %v1907
      %v2052 = vpack.c.b16 %v1908, %v1908
      %v2053 = vpack.c.b16 %v1909, %v1909
      %v2054 = vpack.c.b16 %v1910, %v1910
      %v2055 = vpack.c.b16 %v1911, %v1911
      %v2056 = vpack.c.b16 %v1912, %v1912
      %v2057 = vpack.c.b16 %v1913, %v1913
      %v2058 = vpack.c.b16 %v1914, %v1914
      %v2059 = vpack.c.b16 %v1915, %v1915
      %v2060 = vpack.c.b16 %v1916, %v1916
      %v2061 = vpack.c.b16 %v1917, %v1917
      %v2062 = vpack.c.b16 %v1918, %v1918
      %v2063 = vpack.c.b16 %v1919, %v1919
      %v2064 = vpack.c.b16 %v1920, %v1920
      %v2065 = vpack.c.b16 %v1921, %v1921
      %v2066 = vpack.c.b16 %v1922, %v1922
      %v2067 = vpack.c.b16 %v1923, %v1923
      %v2068 = vpack.c.b16 %v1924, %v1924
      %v2069 = vpack.c.b16 %v1925, %v1925
      %v2070 = vpack.c.b16 %v1926, %v1926
      %v2071 = vpack.c.b16 %v1927, %v1927
      %v2072 = vpack.c.b16 %v1928, %v1928
      %v2073 = vpack.c.b16 %v1929, %v1929
      %v2074 = vpack.c.b16 %v1930, %v1930
      %v2075 = vpack.c.b16 %v1931, %v1931
      %v2076 = vpack.c.b16 %v1932, %v1932
      %v2077 = vpack.c.b16 %v1933, %v1933
      %v2078 = vpack.c.b16 %v1934, %v1934
      %v2079 = vpack.c.b16 %v1935, %v1935
      %v2080 = vpack.c.b16 %v1936, %v1936
      %v2081 = vpack.c.b16 %v1937, %v1937
      %v2082 = vpack.c.b16 %v1938, %v1938
      %v2083 = vpack.c.b16 %v1939, %v1939
      %v2084 = vpack.c.b16 %v1940, %v1940
      %v2085 = vpack.c.b16 %v1941, %v1941
      %v2086 = vpack.c.b16 %v1942, %v1942
      %v2087 = vpack.c.b16 %v1943, %v1943
      %v2088 = vpack.c.b16 %v1944, %v1944
      %v2089 = vpack.c.b16 %v1945, %v1945
      %v2090 = vpack.c.b16 %v1946, %v1946
      %v2091 = vpack.c.b16 %v1947, %v1947
      %v2092 = vpack.c.b16 %v1948, %v1948
      %v2093 = vpack.c.b16 %v1949, %v1949
      %v2094 = vpack.c.b16 %v1950, %v1950
      %v2095 = vpack.c.b16 %v1951, %v1951
      %v2096 = vpack.c.b16 %v1952, %v1952
      %v2097 = vpack.c.b16 %v1953, %v1953
      %v2098 = vpack.c.b16 %v1954, %v1954
      %v2099 = vpack.c.b16 %v1955, %v1955
      %v2100 = vpack.c.b16 %v1956, %v1956
      %v2101 = vpack.c.b16 %v1957, %v1957
      %v2102 = vpack.c.b16 %v1958, %v1958
      %v2103 = vpack.c.b16 %v1959, %v1959
      %v2104 = vpack.c.b16 %v1960, %v1960
      %v2105 = vpack.c.b16 %v1961, %v1961
      %v2106 = vpack.c.b16 %v1962, %v1962
      %v2107 = vpack.c.b16 %v1963, %v1963
      %v2108 = vpack.c.b16 %v1964, %v1964
      %v2109 = vpack.c.b16 %v1965, %v1965
      %v2110 = vpack.c.b16 %v1966, %v1966
      %v2111 = vpack.c.b16 %v1967, %v1967
      %v2112 = vpack.c.b16 %v1968, %v1968
      %v2113 = vpack.c.b16 %v1969, %v1969
      %v2114 = vpack.c.b16 %v1970, %v1970
      %v2115 = vpack.c.b16 %v1971, %v1971
      %v2116 = vpack.c.b16 %v1972, %v1972
      %v2117 = vpack.c.b16 %v1973, %v1973
      %v2118 = vpack.c.b16 %v1974, %v1974
      %v2119 = vpack.c.b16 %v1975, %v1975
      %v2120 = vpack.c.b16 %v1976, %v1976
      %v2121 = vpack.c.b16 %v1977, %v1977
      %v2122 = vpack.c.b16 %v1978, %v1978
      %v2123 = vpack.c.b16 %v1979, %v1979
      %v2124 = vpack.c.b16 %v1980, %v1980
      %v2125 = vpack.c.b16 %v1981, %v1981
      %v2126 = vpack.c.b16 %v1982, %v1982
      %v2127 = vpack.c.b16 %v1983, %v1983
      %v2128 = vpack.c.b16 %v1984, %v1984
      %v2129 = vpack.c.b16 %v1985, %v1985
      %v2130 = vpack.c.b16 %v1986, %v1986
      %v2131 = vpack.c.b16 %v1987, %v1987
      %v2132 = vpack.c.b16 %v1988, %v1988
      %v2133 = vpack.c.b16 %v1989, %v1989
      %v2134 = vpack.c.b16 %v1990, %v1990
      %v2135 = vpack.c.b16 %v1991, %v1991
      %v2136 = vpack.c.b16 %v1992, %v1992
      %v2137 = vpack.c.b16 %v1993, %v1993
      %v2138 = vpack.c.b16 %v1994, %v1994
      %v2139 = vpack.c.b16 %v1995, %v1995
      %v2140 = vpack.c.b16 %v1996, %v1996
      %v2141 = vpack.c.b16 %v1997, %v1997
      %v2142 = vpack.c.b16 %v1998, %v1998
      %v2143 = vpack.c.b16 %v1999, %v1999
      %v2144 = vpack.c.b16 %v2000, %v2000
      %v2145 = vpack.c.b16 %v2001, %v2001
      %v2146 = vpack.c.b16 %v2002, %v2002
      %v2147 = vpack.c.b16 %v2003, %v2003
      %v2148 = vpack.c.b16 %v2004, %v2004
      %v2149 = vpack.c.b16 %v2005, %v2005
      %v2150 = vpack.c.b16 %v2006, %v2006
      %v2151 = vpack.c.b16 %v2007, %v2007
      %v2152 = vpack.c.b16 %v2008, %v2008
      %v2153 = vpack.c.b16 %v2009, %v2009
      %v2154 = vpack.c.b16 %v2010, %v2010
      %2299 = vst [vmem:[%s223] sm:$0xf] %v2011
      %2300 = vst [vmem:[%s223 + $0x4] sm:$0xf] %v2012
      %2301 = vst [vmem:[%s223 + $0x8] sm:$0xf] %v2013
      %2302 = vst [vmem:[%s223 + $0xc] sm:$0xf] %v2014
      %2303 = vst [vmem:[%s223 + $0x10] sm:$0xf] %v2015
      %2304 = vst [vmem:[%s223 + $0x14] sm:$0xf] %v2016
      %2305 = vst [vmem:[%s223 + $0x18] sm:$0xf] %v2017
      %2306 = vst [vmem:[%s223 + $0x1c] sm:$0xf] %v2018
      %2307 = vst [vmem:[%s223 + $0x20] sm:$0xf] %v2019
      %2308 = vst [vmem:[%s223 + $0x24] sm:$0xf] %v2020
      %2309 = vst [vmem:[%s223 + $0x28] sm:$0xf] %v2021
      %2310 = vst [vmem:[%s223 + $0x2c] sm:$0xf] %v2022
      %2311 = vst [vmem:[%s223 + $0x30] sm:$0xf] %v2023
      %2312 = vst [vmem:[%s223 + $0x34] sm:$0xf] %v2024
      %2313 = vst [vmem:[%s223 + $0x38] sm:$0xf] %v2025
      %2314 = vst [vmem:[%s223 + $0x3c] sm:$0xf] %v2026
      %2315 = vst [vmem:[%s223 + $0x40] sm:$0xf] %v2027
      %2316 = vst [vmem:[%s223 + $0x44] sm:$0xf] %v2028
      %2317 = vst [vmem:[%s223 + $0x48] sm:$0xf] %v2029
      %2318 = vst [vmem:[%s223 + $0x4c] sm:$0xf] %v2030
      %2319 = vst [vmem:[%s223 + $0x50] sm:$0xf] %v2031
      %2320 = vst [vmem:[%s223 + $0x54] sm:$0xf] %v2032
      %2321 = vst [vmem:[%s223 + $0x58] sm:$0xf] %v2033
      %2322 = vst [vmem:[%s223 + $0x5c] sm:$0xf] %v2034
      %2323 = vst [vmem:[%s223 + $0x60] sm:$0xf] %v2035
      %2324 = vst [vmem:[%s223 + $0x64] sm:$0xf] %v2036
      %2325 = vst [vmem:[%s223 + $0x68] sm:$0xf] %v2037
      %2326 = vst [vmem:[%s223 + $0x6c] sm:$0xf] %v2038
      %2327 = vst [vmem:[%s223 + $0x70] sm:$0xf] %v2039
      %2328 = vst [vmem:[%s223 + $0x74] sm:$0xf] %v2040
      %2329 = vst [vmem:[%s223 + $0x78] sm:$0xf] %v2041
      %2330 = vst [vmem:[%s223 + $0x7c] sm:$0xf] %v2042
      %2331 = vst [vmem:[%s223 + $0x80] sm:$0xf] %v2043
      %2332 = vst [vmem:[%s223 + $0x84] sm:$0xf] %v2044
      %2333 = vst [vmem:[%s223 + $0x88] sm:$0xf] %v2045
      %2334 = vst [vmem:[%s223 + $0x8c] sm:$0xf] %v2046
      %2335 = vst [vmem:[%s223 + $0x90] sm:$0xf] %v2047
      %2336 = vst [vmem:[%s223 + $0x94] sm:$0xf] %v2048
      %2337 = vst [vmem:[%s223 + $0x98] sm:$0xf] %v2049
      %2338 = vst [vmem:[%s223 + $0x9c] sm:$0xf] %v2050
      %2339 = vst [vmem:[%s223 + $0xa0] sm:$0xf] %v2051
      %2340 = vst [vmem:[%s223 + $0xa4] sm:$0xf] %v2052
      %2341 = vst [vmem:[%s223 + $0xa8] sm:$0xf] %v2053
      %2342 = vst [vmem:[%s223 + $0xac] sm:$0xf] %v2054
      %2343 = vst [vmem:[%s223 + $0xb0] sm:$0xf] %v2055
      %2344 = vst [vmem:[%s223 + $0xb4] sm:$0xf] %v2056
      %2345 = vst [vmem:[%s223 + $0xb8] sm:$0xf] %v2057
      %2346 = vst [vmem:[%s223 + $0xbc] sm:$0xf] %v2058
      %2347 = vst [vmem:[%s223 + $0xc0] sm:$0xf] %v2059
      %2348 = vst [vmem:[%s223 + $0xc4] sm:$0xf] %v2060
      %2349 = vst [vmem:[%s223 + $0xc8] sm:$0xf] %v2061
      %2350 = vst [vmem:[%s223 + $0xcc] sm:$0xf] %v2062
      %2351 = vst [vmem:[%s223 + $0xd0] sm:$0xf] %v2063
      %2352 = vst [vmem:[%s223 + $0xd4] sm:$0xf] %v2064
      %2353 = vst [vmem:[%s223 + $0xd8] sm:$0xf] %v2065
      %2354 = vst [vmem:[%s223 + $0xdc] sm:$0xf] %v2066
      %2355 = vst [vmem:[%s223 + $0xe0] sm:$0xf] %v2067
      %2356 = vst [vmem:[%s223 + $0xe4] sm:$0xf] %v2068
      %2357 = vst [vmem:[%s223 + $0xe8] sm:$0xf] %v2069
      %2358 = vst [vmem:[%s223 + $0xec] sm:$0xf] %v2070
      %2359 = vst [vmem:[%s223 + $0xf0] sm:$0xf] %v2071
      %2360 = vst [vmem:[%s223 + $0xf4] sm:$0xf] %v2072
      %2361 = vst [vmem:[%s223 + $0xf8] sm:$0xf] %v2073
      %2362 = vst [vmem:[%s223 + $0xfc] sm:$0xf] %v2074
      %2363 = vst [vmem:[%s223 + $0x100] sm:$0xf] %v2075
      %2364 = vst [vmem:[%s223 + $0x104] sm:$0xf] %v2076
      %2365 = vst [vmem:[%s223 + $0x108] sm:$0xf] %v2077
      %2366 = vst [vmem:[%s223 + $0x10c] sm:$0xf] %v2078
      %2367 = vst [vmem:[%s223 + $0x110] sm:$0xf] %v2079
      %2368 = vst [vmem:[%s223 + $0x114] sm:$0xf] %v2080
      %2369 = vst [vmem:[%s223 + $0x118] sm:$0xf] %v2081
      %2370 = vst [vmem:[%s223 + $0x11c] sm:$0xf] %v2082
      %2371 = vst [vmem:[%s223 + $0x120] sm:$0xf] %v2083
      %2372 = vst [vmem:[%s223 + $0x124] sm:$0xf] %v2084
      %2373 = vst [vmem:[%s223 + $0x128] sm:$0xf] %v2085
      %2374 = vst [vmem:[%s223 + $0x12c] sm:$0xf] %v2086
      %2375 = vst [vmem:[%s223 + $0x130] sm:$0xf] %v2087
      %2376 = vst [vmem:[%s223 + $0x134] sm:$0xf] %v2088
      %2377 = vst [vmem:[%s223 + $0x138] sm:$0xf] %v2089
      %2378 = vst [vmem:[%s223 + $0x13c] sm:$0xf] %v2090
      %2379 = vst [vmem:[%s223 + $0x140] sm:$0xf] %v2091
      %2380 = vst [vmem:[%s223 + $0x144] sm:$0xf] %v2092
      %2381 = vst [vmem:[%s223 + $0x148] sm:$0xf] %v2093
      %2382 = vst [vmem:[%s223 + $0x14c] sm:$0xf] %v2094
      %2383 = vst [vmem:[%s223 + $0x150] sm:$0xf] %v2095
      %2384 = vst [vmem:[%s223 + $0x154] sm:$0xf] %v2096
      %2385 = vst [vmem:[%s223 + $0x158] sm:$0xf] %v2097
      %2386 = vst [vmem:[%s223 + $0x15c] sm:$0xf] %v2098
      %2387 = vst [vmem:[%s223 + $0x160] sm:$0xf] %v2099
      %2388 = vst [vmem:[%s223 + $0x164] sm:$0xf] %v2100
      %2389 = vst [vmem:[%s223 + $0x168] sm:$0xf] %v2101
      %2390 = vst [vmem:[%s223 + $0x16c] sm:$0xf] %v2102
      %2391 = vst [vmem:[%s223 + $0x170] sm:$0xf] %v2103
      %2392 = vst [vmem:[%s223 + $0x174] sm:$0xf] %v2104
      %2393 = vst [vmem:[%s223 + $0x178] sm:$0xf] %v2105
      %2394 = vst [vmem:[%s223 + $0x17c] sm:$0xf] %v2106
      %2395 = vst [vmem:[%s223 + $0x180] sm:$0xf] %v2107
      %2396 = vst [vmem:[%s223 + $0x184] sm:$0xf] %v2108
      %2397 = vst [vmem:[%s223 + $0x188] sm:$0xf] %v2109
      %2398 = vst [vmem:[%s223 + $0x18c] sm:$0xf] %v2110
      %2399 = vst [vmem:[%s223 + $0x190] sm:$0xf] %v2111
      %2400 = vst [vmem:[%s223 + $0x194] sm:$0xf] %v2112
      %2401 = vst [vmem:[%s223 + $0x198] sm:$0xf] %v2113
      %2402 = vst [vmem:[%s223 + $0x19c] sm:$0xf] %v2114
      %2403 = vst [vmem:[%s223 + $0x1a0] sm:$0xf] %v2115
      %2404 = vst [vmem:[%s223 + $0x1a4] sm:$0xf] %v2116
      %2405 = vst [vmem:[%s223 + $0x1a8] sm:$0xf] %v2117
      %2406 = vst [vmem:[%s223 + $0x1ac] sm:$0xf] %v2118
      %2407 = vst [vmem:[%s223 + $0x1b0] sm:$0xf] %v2119
      %2408 = vst [vmem:[%s223 + $0x1b4] sm:$0xf] %v2120
      %2409 = vst [vmem:[%s223 + $0x1b8] sm:$0xf] %v2121
      %2410 = vst [vmem:[%s223 + $0x1bc] sm:$0xf] %v2122
      %2411 = vst [vmem:[%s223 + $0x1c0] sm:$0xf] %v2123
      %2412 = vst [vmem:[%s223 + $0x1c4] sm:$0xf] %v2124
      %2413 = vst [vmem:[%s223 + $0x1c8] sm:$0xf] %v2125
      %2414 = vst [vmem:[%s223 + $0x1cc] sm:$0xf] %v2126
      %2415 = vst [vmem:[%s223 + $0x1d0] sm:$0xf] %v2127
      %2416 = vst [vmem:[%s223 + $0x1d4] sm:$0xf] %v2128
      %2417 = vst [vmem:[%s223 + $0x1d8] sm:$0xf] %v2129
      %2418 = vst [vmem:[%s223 + $0x1dc] sm:$0xf] %v2130
      %2419 = vst [vmem:[%s223 + $0x1e0] sm:$0xf] %v2131
      %2420 = vst [vmem:[%s223 + $0x1e4] sm:$0xf] %v2132
      %2421 = vst [vmem:[%s223 + $0x1e8] sm:$0xf] %v2133
      %2422 = vst [vmem:[%s223 + $0x1ec] sm:$0xf] %v2134
      %2423 = vst [vmem:[%s223 + $0x1f0] sm:$0xf] %v2135
      %2424 = vst [vmem:[%s223 + $0x1f4] sm:$0xf] %v2136
      %2425 = vst [vmem:[%s223 + $0x1f8] sm:$0xf] %v2137
      %2426 = vst [vmem:[%s223 + $0x1fc] sm:$0xf] %v2138
      %2427 = vst [vmem:[%s223 + $0x200] sm:$0xf] %v2139
      %2428 = vst [vmem:[%s223 + $0x204] sm:$0xf] %v2140
      %2429 = vst [vmem:[%s223 + $0x208] sm:$0xf] %v2141
      %2430 = vst [vmem:[%s223 + $0x20c] sm:$0xf] %v2142
      %2431 = vst [vmem:[%s223 + $0x210] sm:$0xf] %v2143
      %2432 = vst [vmem:[%s223 + $0x214] sm:$0xf] %v2144
      %2433 = vst [vmem:[%s223 + $0x218] sm:$0xf] %v2145
      %2434 = vst [vmem:[%s223 + $0x21c] sm:$0xf] %v2146
      %2435 = vst [vmem:[%s223 + $0x220] sm:$0xf] %v2147
      %2436 = vst [vmem:[%s223 + $0x224] sm:$0xf] %v2148
      %2437 = vst [vmem:[%s223 + $0x228] sm:$0xf] %v2149
      %2438 = vst [vmem:[%s223 + $0x22c] sm:$0xf] %v2150
      %2439 = vst [vmem:[%s223 + $0x230] sm:$0xf] %v2151
      %2440 = vst [vmem:[%s223 + $0x234] sm:$0xf] %v2152
      %2441 = vst [vmem:[%s223 + $0x238] sm:$0xf] %v2153
      %2442 = vst [vmem:[%s223 + $0x23c] sm:$0xf] %v2154
      %s2443 = smul.u32 144, %s19
      %p2444 = scmp.lt.s32.totalorder %s2443, 287
      %s2445 = scalar_select %p2444, %s2443, 287
      %p2446 = scmp.lt.s32.totalorder %s18, 0
      %s2447 = scalar_select %p2446, %s18, 0
      %s2448 = sadd.s32 %s2447, %s2445
      %s2449 = smul.addr %s2448, 4
      %s2450 = scalar_lea.vmem %s3, %s2449
      // Predicated region
      $region33: #{generator_forward.17} parent=31 // pred_check
        %p2451 = pneg %p124
      $region34: #{generator_forward.17} parent=31 // pred_check_branch
        %2453 = sbr.rel (%p2451) target = $region36
      $region35: #{generator_forward.17} parent=31 // pred_region
        %s2454 = smul.u32 144, %s19
      $region36: #{generator_forward.17} parent=31 // pred_fallthru
        _
    $region32: #{generator_forward.17} parent=5 // pred_fallthru
      _
    %p2455 = scmp.le.s32.totalorder 2, %s9
    // Predicated region
    $region37: #{generator_forward.17} parent=5 // pred_check
      %p2456 = pneg %p2455
    $region38: #{generator_forward.17} parent=5 // pred_check_branch
      %2458 = sbr.rel (%p2456) target = $region40
    $region39: #{generator_forward.17} parent=5 // pred_region
      %s2459 = ssub.s32 %s9, 2
      // Predicated region
      $region41: #{generator_forward.17} parent=39 // pred_check
        %p2460 = pneg %p130
      $region42: #{generator_forward.17} parent=39 // pred_check_branch
        %2462 = sbr.rel (%p2460) target = $region44
      $region43: #{generator_forward.17} parent=39 // pred_region
        %s2463 = smul.u32 144, %s21
        %p2464 = scmp.lt.s32.totalorder %s2463, 287
        %s2465 = scalar_select %p2464, %s2463, 287
        %p2466 = scmp.lt.s32.totalorder %s20, 0
        %s2467 = scalar_select %p2466, %s20, 0
        %s2468 = sadd.s32 %s2467, %s2465
        %s2469 = smul.addr %s2468, 4
        %s2470 = scalar_lea.vmem %s3, %s2469
      $region44: #{generator_forward.17} parent=39 // pred_fallthru
        _
    $region40: #{generator_forward.17} parent=5 // pred_fallthru
      _
  $region6: #{generator_forward.17} parent=0 // loop_footer
    %s13 = sadd.s32 1, %s9
  $region7: #{generator_forward.17} parent=0 // loop_footer_branch
    %8 = sbr.rel target = $region3
  $region8: #{generator_forward.17} parent=0 // loop_exit
    _

</llo_original>
